<compile_context>
chip_gen: v5e
topology: v5e:2x2
jax: 0.10.0
libtpu: 0.0.40
codegen_flags: <defaults>
</compile_context>

<pallas_src>
import functools

import jax
import jax.numpy as jnp
from jax.experimental import pallas as pl
from jax.experimental.pallas import tpu as pltpu

IN_DIM = 26 * 71   # 1846 (kept ragged; handled in-kernel)
H1_DIM = 265       # odd hidden width from the original model
H1_PAD = 384       # 265 rounded up to a multiple of 128 (internal only)

# (in, out) feature sizes of the 8 Linear layers actually used in forward().
ENC_DIMS = [(IN_DIM, 512), (512, H1_DIM), (H1_DIM, 128), (128, 64)]
DEC_DIMS = [(64, 128), (128, 256), (256, 512), (512, IN_DIM)]
ALL_DIMS = ENC_DIMS + DEC_DIMS


def _round_up(x, m):
    return (x + m - 1) // m * m


def _tpu_generation():
    """Best-effort TPU generation from device_kind; 0 if unknown."""
    try:
        kind = jax.devices()[0].device_kind.lower()
    except Exception:
        return 0
    for g in (7, 6, 5, 4):
        if str(g) in kind:
            return g
    return 0


def _use_bf16_activations():
    # v6e / v7x have bf16 VPU+EUP (~2x tanh throughput, half the intermediate
    # footprint).  v5e and older do not -> keep activations in f32 there.
    return _tpu_generation() >= 6


def _bdot(a, w):
    """bf16 x bf16 MXU matmul with f32 accumulation."""
    return jnp.dot(a.astype(jnp.bfloat16), w, preferred_element_type=jnp.float32)


def ae_kernel(
    x_ref,
    # encoder params (bf16 weights, f32 biases)
    ew0, eb0, ew1, eb1, ew2, eb2, ew3, eb3,
    # decoder params
    dw0, db0, dw1, db1, dw2, db2, dw3, db3,
    out_ref,
    *, bf16_act,
):
    act_dt = jnp.bfloat16 if bf16_act else jnp.float32

    def tanh(z):
        return jnp.tanh(z.astype(act_dt))

    def relu(z):
        return jnp.maximum(z.astype(act_dt), 0.0)

    # ---------------- encoder ----------------
    # Feed the first matmul straight from x_ref (bf16 cast inside _bdot) so the
    # big f32 x tile is not kept live across all 8 layers.
    h = tanh(_bdot(x_ref[...], ew0[...]) + eb0[...])     # Linear(1846,512) + Tanh
    h = tanh(_bdot(h, ew1[...]) + eb1[...])              # Linear(512,265) + Dropout(id) + Tanh
    h = relu(_bdot(h, ew2[...]) + eb2[...])              # Linear(265,128) + Dropout(id) + ReLU
    enc = _bdot(h, ew3[...]) + eb3[...]                  # Linear(128,64)

    # ---------------- decoder ----------------
    d = relu(_bdot(enc, dw0[...]) + db0[...])            # Linear(64,128) + ReLU
    d = tanh(_bdot(d, dw1[...]) + db1[...])              # Linear(128,256) + Tanh
    d = tanh(_bdot(d, dw2[...]) + db2[...])              # Linear(256,512) + Tanh
    dec = _bdot(d, dw3[...]) + db3[...]                  # Linear(512,1846)

    # residual: decoded = decoder(encoded) + x   (x re-read from VMEM here)
    out_ref[...] = (dec + x_ref[...]).astype(out_ref.dtype)


def init_params(key):
    """Deterministic PyTorch-Linear-style init: U(-1/sqrt(in), 1/sqrt(in)). f32."""
    params = []
    for (fan_in, fan_out) in ALL_DIMS:
        key, kw, kb = jax.random.split(key, 3)
        bound = 1.0 / (fan_in ** 0.5)
        w = jax.random.uniform(kw, (fan_in, fan_out), jnp.float32, -bound, bound)
        b = jax.random.uniform(kb, (1, fan_out), jnp.float32, -bound, bound)
        params.extend([w, b])
    return params


def prepare_params(params):
    """Zero-pad the internal ragged hidden dim (265 -> 384) and cast weights to bf16.

    The padding is numerically exact: padded output cols get bias 0 ->
    tanh(0) = 0 -> multiplied by zero rows of the next weight.  The ragged
    1846 dims of ew0 / dw3 / db3 are left as-is (handled in-kernel)."""
    (ew0, eb0, ew1, eb1, ew2, eb2, ew3, eb3,
     dw0, db0, dw1, db1, dw2, db2, dw3, db3) = params

    ew1 = jnp.pad(ew1, ((0, 0), (0, H1_PAD - H1_DIM)))
    eb1 = jnp.pad(eb1, ((0, 0), (0, H1_PAD - H1_DIM)))
    ew2 = jnp.pad(ew2, ((0, H1_PAD - H1_DIM), (0, 0)))

    ws = [ew0, ew1, ew2, ew3, dw0, dw1, dw2, dw3]
    bs = [eb0, eb1, eb2, eb3, db0, db1, db2, db3]
    out = []
    for w, b in zip(ws, bs):
        out.append(w.astype(jnp.bfloat16))   # bf16 weights (halve HBM traffic)
        out.append(b.astype(jnp.float32))    # f32 biases
    return tuple(out)


@jax.jit
def ae_forward(x, padded_params):
    B = x.shape[0]
    assert x.shape[1] == IN_DIM
    x = x.astype(jnp.float32)

    gen = _tpu_generation()
    bf16_act = gen >= 6

    if gen == 7:
        # v7x: 64 MiB VMEM, 2 TensorCores.  Keep tiles <= 256 rows and make the
        # batch grid have >= 2 steps so "parallel" can shard across both TCs.
        tb = min(256, _round_up(pl.cdiv(B, 2), 8))
        vmem_limit = 40 << 20
    else:
        # v5e / v6e: single TC, 128 MiB physical VMEM -> bigger tiles / DMAs.
        # (Explicit limit also needed on v5e, whose default scoped VMEM is 16 MiB.)
        tb = min(512, _round_up(B, 8))
        vmem_limit = 72 << 20
    tb = max(tb, 8)

    # Ragged last batch block (B % tb != 0) is handled by Pallas: OOB rows read
    # garbage but rows are independent and the writeback is clamped to B.
    grid = (pl.cdiv(B, tb),)

    x_spec = pl.BlockSpec((tb, IN_DIM), lambda i: (i, 0))
    out_spec = pl.BlockSpec((tb, IN_DIM), lambda i: (i, 0))
    # Whole-array blocks with constant index maps -> params stay VMEM-resident
    # and are DMA'd only once across the whole batch grid.
    param_specs = [pl.BlockSpec(p.shape, lambda i: (0, 0)) for p in padded_params]

    flops = 2 * B * sum(fi * fo for fi, fo in ALL_DIMS)
    transcendentals = B * (512 + H1_DIM + 256 + 512)          # tanh count
    bytes_accessed = (sum(p.size * p.dtype.itemsize for p in padded_params)
                      + 2 * B * IN_DIM * 4)

    out = pl.pallas_call(
        functools.partial(ae_kernel, bf16_act=bf16_act),
        out_shape=jax.ShapeDtypeStruct((B, IN_DIM), jnp.float32),
        grid=grid,
        in_specs=[x_spec] + param_specs,
        out_specs=out_spec,
        input_output_aliases={0: 0},        # residual output overwrites x buffer
        compiler_params=pltpu.CompilerParams(
            dimension_semantics=("parallel",),
            vmem_limit_bytes=vmem_limit,
        ),
        cost_estimate=pl.CostEstimate(
            flops=flops,
            transcendentals=transcendentals,
            bytes_accessed=bytes_accessed,
        ),
    )(x, *padded_params)

    return out


def ae_reference_kernel_numerics(x, params, bf16_act):
    """Pure-JAX reference mirroring the kernel numerics (bf16 weights, bf16 or
    f32 activations, f32 accumulation) for tight correctness checking."""
    adt = jnp.bfloat16 if bf16_act else jnp.float32

    def bd(a, w):
        return jnp.dot(a.astype(jnp.bfloat16), w.astype(jnp.bfloat16),
                       preferred_element_type=jnp.float32)

    def tanh(z):
        return jnp.tanh(z.astype(adt))

    def relu(z):
        return jnp.maximum(z.astype(adt), 0.0)

    (ew0, eb0, ew1, eb1, ew2, eb2, ew3, eb3,
     dw0, db0, dw1, db1, dw2, db2, dw3, db3) = params
    h = tanh(bd(x, ew0) + eb0)
    h = tanh(bd(h, ew1) + eb1)
    h = relu(bd(h, ew2) + eb2)
    enc = bd(h, ew3) + eb3
    d = relu(bd(enc, dw0) + db0)
    d = tanh(bd(d, dw1) + db1)
    d = tanh(bd(d, dw2) + db2)
    dec = bd(d, dw3) + db3
    return (dec + x).astype(jnp.float32)


def ae_reference_f32(x, params):
    """Full-precision f32 reference (original module semantics)."""
    (ew0, eb0, ew1, eb1, ew2, eb2, ew3, eb3,
     dw0, db0, dw1, db1, dw2, db2, dw3, db3) = params
    h = jnp.tanh(x @ ew0 + eb0)
    h = jnp.tanh(h @ ew1 + eb1)
    h = jnp.maximum(h @ ew2 + eb2, 0.0)
    enc = h @ ew3 + eb3
    d = jnp.maximum(enc @ dw0 + db0, 0.0)
    d = jnp.tanh(d @ dw1 + db1)
    d = jnp.tanh(d @ dw2 + db2)
    dec = d @ dw3 + db3
    return dec + x


if __name__ == "__main__":
    key = jax.random.PRNGKey(0)
    key, kx = jax.random.split(key)

    B = 8  # small batch for the smoke test
    x = jax.random.normal(kx, (B, IN_DIM), dtype=jnp.float32)
    params = init_params(key)
    padded_params = prepare_params(params)

    out = jax.block_until_ready(ae_forward(x, padded_params))
    assert out.shape == (B, IN_DIM)

    # Tight check vs a reference that mirrors the kernel's numerics exactly.
    ref = ae_reference_kernel_numerics(x, params, _use_bf16_activations())
    assert jnp.allclose(out, ref, atol=2e-2, rtol=2e-2), "mismatch vs kernel-numerics ref"

    # Loose sanity check vs the full-precision f32 module semantics.
    ref_f32 = ae_reference_f32(x, params)
    assert jnp.allclose(out, ref_f32, atol=8e-2, rtol=8e-2), "mismatch vs f32 ref"

    print("KERNEL_OK")
</pallas_src>

<mosaic_0001>
module attributes {stable_mosaic.version = 11 : i64} {
  func.func @ae_kernel(%arg0: i32, %arg1: memref<8x1846xf32, #tpu.memory_space<vmem>>, %arg2: memref<1846x512xbf16, #tpu.memory_space<vmem>>, %arg3: memref<1x512xf32, #tpu.memory_space<vmem>>, %arg4: memref<512x384xbf16, #tpu.memory_space<vmem>>, %arg5: memref<1x384xf32, #tpu.memory_space<vmem>>, %arg6: memref<384x128xbf16, #tpu.memory_space<vmem>>, %arg7: memref<1x128xf32, #tpu.memory_space<vmem>>, %arg8: memref<128x64xbf16, #tpu.memory_space<vmem>>, %arg9: memref<1x64xf32, #tpu.memory_space<vmem>>, %arg10: memref<64x128xbf16, #tpu.memory_space<vmem>>, %arg11: memref<1x128xf32, #tpu.memory_space<vmem>>, %arg12: memref<128x256xbf16, #tpu.memory_space<vmem>>, %arg13: memref<1x256xf32, #tpu.memory_space<vmem>>, %arg14: memref<256x512xbf16, #tpu.memory_space<vmem>>, %arg15: memref<1x512xf32, #tpu.memory_space<vmem>>, %arg16: memref<512x1846xbf16, #tpu.memory_space<vmem>>, %arg17: memref<1x1846xf32, #tpu.memory_space<vmem>>, %arg18: memref<8x1846xf32, #tpu.memory_space<vmem>>) attributes {dimension_semantics = [#tpu.dimension_semantics<parallel>], iteration_bounds = array<i64: 1>, scalar_prefetch = 0 : i64, scratch_operands = 0 : i64, tpu.core_type = #tpu.core_type<tc>, window_params = [{transform_indices = @transform_0, window_bounds = array<i64: 8, 1846>}, {pipeline_mode = #tpu.pipeline_mode<synchronous>, transform_indices = @transform_1, window_bounds = array<i64: 1846, 512>}, {pipeline_mode = #tpu.pipeline_mode<synchronous>, transform_indices = @transform_2, window_bounds = array<i64: 1, 512>}, {pipeline_mode = #tpu.pipeline_mode<synchronous>, transform_indices = @transform_3, window_bounds = array<i64: 512, 384>}, {pipeline_mode = #tpu.pipeline_mode<synchronous>, transform_indices = @transform_4, window_bounds = array<i64: 1, 384>}, {pipeline_mode = #tpu.pipeline_mode<synchronous>, transform_indices = @transform_5, window_bounds = array<i64: 384, 128>}, {pipeline_mode = #tpu.pipeline_mode<synchronous>, transform_indices = @transform_6, window_bounds = array<i64: 1, 128>}, {pipeline_mode = #tpu.pipeline_mode<synchronous>, transform_indices = @transform_7, window_bounds = array<i64: 128, 64>}, {pipeline_mode = #tpu.pipeline_mode<synchronous>, transform_indices = @transform_8, window_bounds = array<i64: 1, 64>}, {pipeline_mode = #tpu.pipeline_mode<synchronous>, transform_indices = @transform_9, window_bounds = array<i64: 64, 128>}, {pipeline_mode = #tpu.pipeline_mode<synchronous>, transform_indices = @transform_10, window_bounds = array<i64: 1, 128>}, {pipeline_mode = #tpu.pipeline_mode<synchronous>, transform_indices = @transform_11, window_bounds = array<i64: 128, 256>}, {pipeline_mode = #tpu.pipeline_mode<synchronous>, transform_indices = @transform_12, window_bounds = array<i64: 1, 256>}, {pipeline_mode = #tpu.pipeline_mode<synchronous>, transform_indices = @transform_13, window_bounds = array<i64: 256, 512>}, {pipeline_mode = #tpu.pipeline_mode<synchronous>, transform_indices = @transform_14, window_bounds = array<i64: 1, 512>}, {pipeline_mode = #tpu.pipeline_mode<synchronous>, transform_indices = @transform_15, window_bounds = array<i64: 512, 1846>}, {pipeline_mode = #tpu.pipeline_mode<synchronous>, transform_indices = @transform_16, window_bounds = array<i64: 1, 1846>}, {transform_indices = @transform_17, window_bounds = array<i64: 8, 1846>}]} {
    %c0 = arith.constant 0 : index
    %c0_0 = arith.constant 0 : index
    %0 = vector.load %arg1[%c0, %c0_0] : memref<8x1846xf32, #tpu.memory_space<vmem>>, vector<8x1846xf32>
    %c0_1 = arith.constant 0 : index
    %c0_2 = arith.constant 0 : index
    %1 = vector.load %arg2[%c0_1, %c0_2] : memref<1846x512xbf16, #tpu.memory_space<vmem>>, vector<1846x512xbf16>
    %2 = arith.truncf %0 : vector<8x1846xf32> to vector<8x1846xbf16>
    %cst = arith.constant dense<0.000000e+00> : vector<8x512xf32>
    %3 = tpu.matmul %2, %1, %cst {dimension_numbers = #tpu.dot_dimension_numbers<[1], [0], [0], [1], [0, 0, 1, 1], [], []>} : vector<8x1846xbf16>, vector<1846x512xbf16>, vector<8x512xf32> -> vector<8x512xf32>
    %c0_3 = arith.constant 0 : index
    %c0_4 = arith.constant 0 : index
    %4 = vector.load %arg3[%c0_3, %c0_4] : memref<1x512xf32, #tpu.memory_space<vmem>>, vector<1x512xf32>
    %5 = vector.broadcast %4 : vector<1x512xf32> to vector<8x512xf32>
    %6 = arith.addf %3, %5 : vector<8x512xf32>
    %7 = math.tanh %6 : vector<8x512xf32>
    %c0_5 = arith.constant 0 : index
    %c0_6 = arith.constant 0 : index
    %8 = vector.load %arg4[%c0_5, %c0_6] : memref<512x384xbf16, #tpu.memory_space<vmem>>, vector<512x384xbf16>
    %9 = arith.truncf %7 : vector<8x512xf32> to vector<8x512xbf16>
    %cst_7 = arith.constant dense<0.000000e+00> : vector<8x384xf32>
    %10 = tpu.matmul %9, %8, %cst_7 {dimension_numbers = #tpu.dot_dimension_numbers<[1], [0], [0], [1], [0, 0, 1, 1], [], []>} : vector<8x512xbf16>, vector<512x384xbf16>, vector<8x384xf32> -> vector<8x384xf32>
    %c0_8 = arith.constant 0 : index
    %c0_9 = arith.constant 0 : index
    %11 = vector.load %arg5[%c0_8, %c0_9] : memref<1x384xf32, #tpu.memory_space<vmem>>, vector<1x384xf32>
    %12 = vector.broadcast %11 : vector<1x384xf32> to vector<8x384xf32>
    %13 = arith.addf %10, %12 : vector<8x384xf32>
    %14 = math.tanh %13 : vector<8x384xf32>
    %c0_10 = arith.constant 0 : index
    %c0_11 = arith.constant 0 : index
    %15 = vector.load %arg6[%c0_10, %c0_11] : memref<384x128xbf16, #tpu.memory_space<vmem>>, vector<384x128xbf16>
    %16 = arith.truncf %14 : vector<8x384xf32> to vector<8x384xbf16>
    %cst_12 = arith.constant dense<0.000000e+00> : vector<8x128xf32>
    %17 = tpu.matmul %16, %15, %cst_12 {dimension_numbers = #tpu.dot_dimension_numbers<[1], [0], [0], [1], [0, 0, 1, 1], [], []>} : vector<8x384xbf16>, vector<384x128xbf16>, vector<8x128xf32> -> vector<8x128xf32>
    %c0_13 = arith.constant 0 : index
    %c0_14 = arith.constant 0 : index
    %18 = vector.load %arg7[%c0_13, %c0_14] : memref<1x128xf32, #tpu.memory_space<vmem>>, vector<1x128xf32>
    %19 = vector.broadcast %18 : vector<1x128xf32> to vector<8x128xf32>
    %20 = arith.addf %17, %19 : vector<8x128xf32>
    %cst_15 = arith.constant 0.000000e+00 : f32
    %21 = vector.broadcast %cst_15 : f32 to vector<8x128xf32>
    %22 = arith.maximumf %20, %21 : vector<8x128xf32>
    %c0_16 = arith.constant 0 : index
    %c0_17 = arith.constant 0 : index
    %23 = vector.load %arg8[%c0_16, %c0_17] : memref<128x64xbf16, #tpu.memory_space<vmem>>, vector<128x64xbf16>
    %24 = arith.truncf %22 : vector<8x128xf32> to vector<8x128xbf16>
    %cst_18 = arith.constant dense<0.000000e+00> : vector<8x64xf32>
    %25 = tpu.matmul %24, %23, %cst_18 {dimension_numbers = #tpu.dot_dimension_numbers<[1], [0], [0], [1], [0, 0, 1, 1], [], []>} : vector<8x128xbf16>, vector<128x64xbf16>, vector<8x64xf32> -> vector<8x64xf32>
    %c0_19 = arith.constant 0 : index
    %c0_20 = arith.constant 0 : index
    %26 = vector.load %arg9[%c0_19, %c0_20] : memref<1x64xf32, #tpu.memory_space<vmem>>, vector<1x64xf32>
    %27 = vector.broadcast %26 : vector<1x64xf32> to vector<8x64xf32>
    %28 = arith.addf %25, %27 : vector<8x64xf32>
    %c0_21 = arith.constant 0 : index
    %c0_22 = arith.constant 0 : index
    %29 = vector.load %arg10[%c0_21, %c0_22] : memref<64x128xbf16, #tpu.memory_space<vmem>>, vector<64x128xbf16>
    %30 = arith.truncf %28 : vector<8x64xf32> to vector<8x64xbf16>
    %cst_23 = arith.constant dense<0.000000e+00> : vector<8x128xf32>
    %31 = tpu.matmul %30, %29, %cst_23 {dimension_numbers = #tpu.dot_dimension_numbers<[1], [0], [0], [1], [0, 0, 1, 1], [], []>} : vector<8x64xbf16>, vector<64x128xbf16>, vector<8x128xf32> -> vector<8x128xf32>
    %c0_24 = arith.constant 0 : index
    %c0_25 = arith.constant 0 : index
    %32 = vector.load %arg11[%c0_24, %c0_25] : memref<1x128xf32, #tpu.memory_space<vmem>>, vector<1x128xf32>
    %33 = vector.broadcast %32 : vector<1x128xf32> to vector<8x128xf32>
    %34 = arith.addf %31, %33 : vector<8x128xf32>
    %cst_26 = arith.constant 0.000000e+00 : f32
    %35 = vector.broadcast %cst_26 : f32 to vector<8x128xf32>
    %36 = arith.maximumf %34, %35 : vector<8x128xf32>
    %c0_27 = arith.constant 0 : index
    %c0_28 = arith.constant 0 : index
    %37 = vector.load %arg12[%c0_27, %c0_28] : memref<128x256xbf16, #tpu.memory_space<vmem>>, vector<128x256xbf16>
    %38 = arith.truncf %36 : vector<8x128xf32> to vector<8x128xbf16>
    %cst_29 = arith.constant dense<0.000000e+00> : vector<8x256xf32>
    %39 = tpu.matmul %38, %37, %cst_29 {dimension_numbers = #tpu.dot_dimension_numbers<[1], [0], [0], [1], [0, 0, 1, 1], [], []>} : vector<8x128xbf16>, vector<128x256xbf16>, vector<8x256xf32> -> vector<8x256xf32>
    %c0_30 = arith.constant 0 : index
    %c0_31 = arith.constant 0 : index
    %40 = vector.load %arg13[%c0_30, %c0_31] : memref<1x256xf32, #tpu.memory_space<vmem>>, vector<1x256xf32>
    %41 = vector.broadcast %40 : vector<1x256xf32> to vector<8x256xf32>
    %42 = arith.addf %39, %41 : vector<8x256xf32>
    %43 = math.tanh %42 : vector<8x256xf32>
    %c0_32 = arith.constant 0 : index
    %c0_33 = arith.constant 0 : index
    %44 = vector.load %arg14[%c0_32, %c0_33] : memref<256x512xbf16, #tpu.memory_space<vmem>>, vector<256x512xbf16>
    %45 = arith.truncf %43 : vector<8x256xf32> to vector<8x256xbf16>
    %cst_34 = arith.constant dense<0.000000e+00> : vector<8x512xf32>
    %46 = tpu.matmul %45, %44, %cst_34 {dimension_numbers = #tpu.dot_dimension_numbers<[1], [0], [0], [1], [0, 0, 1, 1], [], []>} : vector<8x256xbf16>, vector<256x512xbf16>, vector<8x512xf32> -> vector<8x512xf32>
    %c0_35 = arith.constant 0 : index
    %c0_36 = arith.constant 0 : index
    %47 = vector.load %arg15[%c0_35, %c0_36] : memref<1x512xf32, #tpu.memory_space<vmem>>, vector<1x512xf32>
    %48 = vector.broadcast %47 : vector<1x512xf32> to vector<8x512xf32>
    %49 = arith.addf %46, %48 : vector<8x512xf32>
    %50 = math.tanh %49 : vector<8x512xf32>
    %c0_37 = arith.constant 0 : index
    %c0_38 = arith.constant 0 : index
    %51 = vector.load %arg16[%c0_37, %c0_38] : memref<512x1846xbf16, #tpu.memory_space<vmem>>, vector<512x1846xbf16>
    %52 = arith.truncf %50 : vector<8x512xf32> to vector<8x512xbf16>
    %cst_39 = arith.constant dense<0.000000e+00> : vector<8x1846xf32>
    %53 = tpu.matmul %52, %51, %cst_39 {dimension_numbers = #tpu.dot_dimension_numbers<[1], [0], [0], [1], [0, 0, 1, 1], [], []>} : vector<8x512xbf16>, vector<512x1846xbf16>, vector<8x1846xf32> -> vector<8x1846xf32>
    %c0_40 = arith.constant 0 : index
    %c0_41 = arith.constant 0 : index
    %54 = vector.load %arg17[%c0_40, %c0_41] : memref<1x1846xf32, #tpu.memory_space<vmem>>, vector<1x1846xf32>
    %55 = vector.broadcast %54 : vector<1x1846xf32> to vector<8x1846xf32>
    %56 = arith.addf %53, %55 : vector<8x1846xf32>
    %c0_42 = arith.constant 0 : index
    %c0_43 = arith.constant 0 : index
    %57 = vector.load %arg1[%c0_42, %c0_43] : memref<8x1846xf32, #tpu.memory_space<vmem>>, vector<8x1846xf32>
    %58 = arith.addf %56, %57 : vector<8x1846xf32>
    %c0_44 = arith.constant 0 : index
    %c0_45 = arith.constant 0 : index
    %59 = vector.load %arg18[%c0_44, %c0_45] : memref<8x1846xf32, #tpu.memory_space<vmem>>, vector<8x1846xf32>
    tpu.vector_store %arg18[%c0_44, %c0_45], %58 {strides = array<i32>} : memref<8x1846xf32, #tpu.memory_space<vmem>>, vector<8x1846xf32>,
    return
  }
  func.func @transform_0(%arg0: i32) -> (i32, i32) {
    %c0_i32 = arith.constant 0 : i32
    %c0_i32_0 = arith.constant 0 : i32
    return %arg0, %c0_i32 : i32, i32
  }
  func.func @transform_1(%arg0: i32) -> (i32, i32) {
    %c0_i32 = arith.constant 0 : i32
    %c0_i32_0 = arith.constant 0 : i32
    %c0_i32_1 = arith.constant 0 : i32
    return %c0_i32, %c0_i32_0 : i32, i32
  }
  func.func @transform_2(%arg0: i32) -> (i32, i32) {
    %c0_i32 = arith.constant 0 : i32
    %c0_i32_0 = arith.constant 0 : i32
    %c0_i32_1 = arith.constant 0 : i32
    return %c0_i32, %c0_i32_0 : i32, i32
  }
  func.func @transform_3(%arg0: i32) -> (i32, i32) {
    %c0_i32 = arith.constant 0 : i32
    %c0_i32_0 = arith.constant 0 : i32
    %c0_i32_1 = arith.constant 0 : i32
    return %c0_i32, %c0_i32_0 : i32, i32
  }
  func.func @transform_4(%arg0: i32) -> (i32, i32) {
    %c0_i32 = arith.constant 0 : i32
    %c0_i32_0 = arith.constant 0 : i32
    %c0_i32_1 = arith.constant 0 : i32
    return %c0_i32, %c0_i32_0 : i32, i32
  }
  func.func @transform_5(%arg0: i32) -> (i32, i32) {
    %c0_i32 = arith.constant 0 : i32
    %c0_i32_0 = arith.constant 0 : i32
    %c0_i32_1 = arith.constant 0 : i32
    return %c0_i32, %c0_i32_0 : i32, i32
  }
  func.func @transform_6(%arg0: i32) -> (i32, i32) {
    %c0_i32 = arith.constant 0 : i32
    %c0_i32_0 = arith.constant 0 : i32
    %c0_i32_1 = arith.constant 0 : i32
    return %c0_i32, %c0_i32_0 : i32, i32
  }
  func.func @transform_7(%arg0: i32) -> (i32, i32) {
    %c0_i32 = arith.constant 0 : i32
    %c0_i32_0 = arith.constant 0 : i32
    %c0_i32_1 = arith.constant 0 : i32
    return %c0_i32, %c0_i32_0 : i32, i32
  }
  func.func @transform_8(%arg0: i32) -> (i32, i32) {
    %c0_i32 = arith.constant 0 : i32
    %c0_i32_0 = arith.constant 0 : i32
    %c0_i32_1 = arith.constant 0 : i32
    return %c0_i32, %c0_i32_0 : i32, i32
  }
  func.func @transform_9(%arg0: i32) -> (i32, i32) {
    %c0_i32 = arith.constant 0 : i32
    %c0_i32_0 = arith.constant 0 : i32
    %c0_i32_1 = arith.constant 0 : i32
    return %c0_i32, %c0_i32_0 : i32, i32
  }
  func.func @transform_10(%arg0: i32) -> (i32, i32) {
    %c0_i32 = arith.constant 0 : i32
    %c0_i32_0 = arith.constant 0 : i32
    %c0_i32_1 = arith.constant 0 : i32
    return %c0_i32, %c0_i32_0 : i32, i32
  }
  func.func @transform_11(%arg0: i32) -> (i32, i32) {
    %c0_i32 = arith.constant 0 : i32
    %c0_i32_0 = arith.constant 0 : i32
    %c0_i32_1 = arith.constant 0 : i32
    return %c0_i32, %c0_i32_0 : i32, i32
  }
  func.func @transform_12(%arg0: i32) -> (i32, i32) {
    %c0_i32 = arith.constant 0 : i32
    %c0_i32_0 = arith.constant 0 : i32
    %c0_i32_1 = arith.constant 0 : i32
    return %c0_i32, %c0_i32_0 : i32, i32
  }
  func.func @transform_13(%arg0: i32) -> (i32, i32) {
    %c0_i32 = arith.constant 0 : i32
    %c0_i32_0 = arith.constant 0 : i32
    %c0_i32_1 = arith.constant 0 : i32
    return %c0_i32, %c0_i32_0 : i32, i32
  }
  func.func @transform_14(%arg0: i32) -> (i32, i32) {
    %c0_i32 = arith.constant 0 : i32
    %c0_i32_0 = arith.constant 0 : i32
    %c0_i32_1 = arith.constant 0 : i32
    return %c0_i32, %c0_i32_0 : i32, i32
  }
  func.func @transform_15(%arg0: i32) -> (i32, i32) {
    %c0_i32 = arith.constant 0 : i32
    %c0_i32_0 = arith.constant 0 : i32
    %c0_i32_1 = arith.constant 0 : i32
    return %c0_i32, %c0_i32_0 : i32, i32
  }
  func.func @transform_16(%arg0: i32) -> (i32, i32) {
    %c0_i32 = arith.constant 0 : i32
    %c0_i32_0 = arith.constant 0 : i32
    %c0_i32_1 = arith.constant 0 : i32
    return %c0_i32, %c0_i32_0 : i32, i32
  }
  func.func @transform_17(%arg0: i32) -> (i32, i32) {
    %c0_i32 = arith.constant 0 : i32
    %c0_i32_0 = arith.constant 0 : i32
    return %arg0, %c0_i32 : i32, i32
  }
}

</mosaic_0001>

<llo_original>
// kernel: ae_forward.1
$region0: #{ae_forward.1}
  #allocation0 [shape = 'u32[]', space=smem, size = 0x4, offset = 0x4, fixed_abs, tag = 'smem constant byte address 0x4 - core index']
  #allocation1 [shape = 'u32[72,128]{1,0:T(1,128)}', space=vmem, size = 0x9000, scoped, tag = 'internal scratch']
  %s0 = inlined_call_operand.hbm [shape: f32[8,1846], index: 0, kind: input, shape index: {}, may-alias: {0,17}]
  %s1 = inlined_call_operand.vmem [shape: bf16[1846,512], index: 1, kind: input, shape index: {}]
  %s2 = inlined_call_operand.vmem [shape: f32[1,512], index: 2, kind: input, shape index: {}]
  %s3 = inlined_call_operand.vmem [shape: bf16[512,384], index: 3, kind: input, shape index: {}]
  %s4 = inlined_call_operand.vmem [shape: f32[1,384], index: 4, kind: input, shape index: {}]
  %s5 = inlined_call_operand.vmem [shape: bf16[384,128], index: 5, kind: input, shape index: {}]
  %s6 = inlined_call_operand.vmem [shape: f32[1,128], index: 6, kind: input, shape index: {}]
  %s7 = inlined_call_operand.vmem [shape: bf16[128,64], index: 7, kind: input, shape index: {}]
  %s8 = inlined_call_operand.vmem [shape: f32[1,64], index: 8, kind: input, shape index: {}]
  %s9 = inlined_call_operand.vmem [shape: bf16[64,128], index: 9, kind: input, shape index: {}]
  %s10 = inlined_call_operand.vmem [shape: f32[1,128], index: 10, kind: input, shape index: {}]
  %s11 = inlined_call_operand.vmem [shape: bf16[128,256], index: 11, kind: input, shape index: {}]
  %s12 = inlined_call_operand.vmem [shape: f32[1,256], index: 12, kind: input, shape index: {}]
  %s13 = inlined_call_operand.vmem [shape: bf16[256,512], index: 13, kind: input, shape index: {}]
  %s14 = inlined_call_operand.vmem [shape: f32[1,512], index: 14, kind: input, shape index: {}]
  %s15 = inlined_call_operand.vmem [shape: bf16[512,1846], index: 15, kind: input, shape index: {}]
  %s16 = inlined_call_operand.vmem [shape: f32[1,1846], index: 16, kind: input, shape index: {}]
  %s17 = inlined_call_operand.hbm [shape: f32[8,1846], index: 17, kind: output, shape index: {}, may-alias: {0,17}]
  %s18 = sld [smem:[#allocation0]]
  $region82: #{ae_forward.1} parent=0
    _
  %s20 = ssub.s32 1, %s18
  %s21 = scalar_select 0, %s20, %s18
  $region1: #{ae_forward.1} parent=0
    #allocation2 [shape = 'u8[61440]{0}', space=vmem, size = 0xf000, scoped, tag = 'input window, operand 0, single buffered']
    #allocation3 [shape = 's32[1]{0}', space=sflag, size = 0x4, scoped, tag = 'scoped memory for ae_forward.1']
    #allocation4 [shape = 's32[1]{0}', space=sflag, size = 0x4, scoped, tag = 'scoped memory for ae_forward.1']
    #allocation5 [shape = 'u8[61440]{0}', space=vmem, size = 0xf000, scoped, tag = 'output window, operand 0, single buffered']
    %22 = vsyncpa [#allocation3], 0
    %23 = vsyncpa [#allocation4], 0
    // Predicated region
    $region2: #{ae_forward.1} parent=1 // pred_check
      _
    $region3: #{ae_forward.1} parent=1 // pred_check_branch
      %25 = sbr.rel (0) target = $region5
    $region4: #{ae_forward.1} parent=1 // pred_region
      %27 = vsyncadd [#allocation3], 0
      %s29 = sshll.u32 %s0, 4
      %s30 = int_to_ptr.hbm [resolvable:$true] %s29
      %s31 = sshll.u32 [#allocation2], 4
      %s32 = int_to_ptr.vmem [resolvable:$true] %s31
      %34 = dma.hbm_to_vmem [thread:$0]  %s30, 1920, %s32, [#allocation3]
    $region5: #{ae_forward.1} parent=1 // pred_fallthru
      _
    // Predicated region
    $region6: #{ae_forward.1} parent=1 // pred_check
      _
    $region7: #{ae_forward.1} parent=1 // pred_check_branch
      %36 = sbr.rel (0) target = $region9
    $region8: #{ae_forward.1} parent=1 // pred_region
      _
    $region9: #{ae_forward.1} parent=1 // pred_fallthru
      _
    // Predicated region
    $region10: #{ae_forward.1} parent=1 // pred_check
      _
    $region11: #{ae_forward.1} parent=1 // pred_check_branch
      %38 = sbr.rel (0) target = $region13
    $region12: #{ae_forward.1} parent=1 // pred_region
      _
    $region13: #{ae_forward.1} parent=1 // pred_fallthru
      _
    // Predicated region
    $region14: #{ae_forward.1} parent=1 // pred_check
      _
    $region15: #{ae_forward.1} parent=1 // pred_check_branch
      %40 = sbr.rel (0) target = $region17
    $region16: #{ae_forward.1} parent=1 // pred_region
      _
    $region17: #{ae_forward.1} parent=1 // pred_fallthru
      _
    // Predicated region
    $region18: #{ae_forward.1} parent=1 // pred_check
      _
    $region19: #{ae_forward.1} parent=1 // pred_check_branch
      %42 = sbr.rel (0) target = $region21
    $region20: #{ae_forward.1} parent=1 // pred_region
      _
    $region21: #{ae_forward.1} parent=1 // pred_fallthru
      _
    // Predicated region
    $region22: #{ae_forward.1} parent=1 // pred_check
      _
    $region23: #{ae_forward.1} parent=1 // pred_check_branch
      %44 = sbr.rel (0) target = $region25
    $region24: #{ae_forward.1} parent=1 // pred_region
      _
    $region25: #{ae_forward.1} parent=1 // pred_fallthru
      _
    // Predicated region
    $region26: #{ae_forward.1} parent=1 // pred_check
      _
    $region27: #{ae_forward.1} parent=1 // pred_check_branch
      %46 = sbr.rel (0) target = $region29
    $region28: #{ae_forward.1} parent=1 // pred_region
      _
    $region29: #{ae_forward.1} parent=1 // pred_fallthru
      _
    // Predicated region
    $region30: #{ae_forward.1} parent=1 // pred_check
      _
    $region31: #{ae_forward.1} parent=1 // pred_check_branch
      %48 = sbr.rel (0) target = $region33
    $region32: #{ae_forward.1} parent=1 // pred_region
      _
    $region33: #{ae_forward.1} parent=1 // pred_fallthru
      _
    // Predicated region
    $region34: #{ae_forward.1} parent=1 // pred_check
      _
    $region35: #{ae_forward.1} parent=1 // pred_check_branch
      %50 = sbr.rel (0) target = $region37
    $region36: #{ae_forward.1} parent=1 // pred_region
      _
    $region37: #{ae_forward.1} parent=1 // pred_fallthru
      _
    // Predicated region
    $region38: #{ae_forward.1} parent=1 // pred_check
      _
    $region39: #{ae_forward.1} parent=1 // pred_check_branch
      %52 = sbr.rel (0) target = $region41
    $region40: #{ae_forward.1} parent=1 // pred_region
      _
    $region41: #{ae_forward.1} parent=1 // pred_fallthru
      _
    // Predicated region
    $region42: #{ae_forward.1} parent=1 // pred_check
      _
    $region43: #{ae_forward.1} parent=1 // pred_check_branch
      %54 = sbr.rel (0) target = $region45
    $region44: #{ae_forward.1} parent=1 // pred_region
      _
    $region45: #{ae_forward.1} parent=1 // pred_fallthru
      _
    // Predicated region
    $region46: #{ae_forward.1} parent=1 // pred_check
      _
    $region47: #{ae_forward.1} parent=1 // pred_check_branch
      %56 = sbr.rel (0) target = $region49
    $region48: #{ae_forward.1} parent=1 // pred_region
      _
    $region49: #{ae_forward.1} parent=1 // pred_fallthru
      _
    // Predicated region
    $region50: #{ae_forward.1} parent=1 // pred_check
      _
    $region51: #{ae_forward.1} parent=1 // pred_check_branch
      %58 = sbr.rel (0) target = $region53
    $region52: #{ae_forward.1} parent=1 // pred_region
      _
    $region53: #{ae_forward.1} parent=1 // pred_fallthru
      _
    // Predicated region
    $region54: #{ae_forward.1} parent=1 // pred_check
      _
    $region55: #{ae_forward.1} parent=1 // pred_check_branch
      %60 = sbr.rel (0) target = $region57
    $region56: #{ae_forward.1} parent=1 // pred_region
      _
    $region57: #{ae_forward.1} parent=1 // pred_fallthru
      _
    // Predicated region
    $region58: #{ae_forward.1} parent=1 // pred_check
      _
    $region59: #{ae_forward.1} parent=1 // pred_check_branch
      %62 = sbr.rel (0) target = $region61
    $region60: #{ae_forward.1} parent=1 // pred_region
      _
    $region61: #{ae_forward.1} parent=1 // pred_fallthru
      _
    // Predicated region
    $region62: #{ae_forward.1} parent=1 // pred_check
      _
    $region63: #{ae_forward.1} parent=1 // pred_check_branch
      %64 = sbr.rel (0) target = $region65
    $region64: #{ae_forward.1} parent=1 // pred_region
      _
    $region65: #{ae_forward.1} parent=1 // pred_fallthru
      _
    // Predicated region
    $region66: #{ae_forward.1} parent=1 // pred_check
      _
    $region67: #{ae_forward.1} parent=1 // pred_check_branch
      %66 = sbr.rel (0) target = $region69
    $region68: #{ae_forward.1} parent=1 // pred_region
      _
    $region69: #{ae_forward.1} parent=1 // pred_fallthru
      _
    // Predicated region
    $region70: #{ae_forward.1} parent=1 // pred_check
      _
    $region71: #{ae_forward.1} parent=1 // pred_check_branch
      %68 = sbr.rel (0) target = $region73
    $region72: #{ae_forward.1} parent=1 // pred_region
      %70 = dma.done [#allocation3], 1920
    $region73: #{ae_forward.1} parent=1 // pred_fallthru
      _
    %v72 = vld [vmem:[#allocation2] sm:$0xff]
    %v73 = vld [vmem:[#allocation2 + $0x8] sm:$0xff]
    %v74 = vld [vmem:[#allocation2 + $0x10] sm:$0xff]
    %v75 = vld [vmem:[#allocation2 + $0x18] sm:$0xff]
    %v76 = vld [vmem:[#allocation2 + $0x20] sm:$0xff]
    %v77 = vld [vmem:[#allocation2 + $0x28] sm:$0xff]
    %v78 = vld [vmem:[#allocation2 + $0x30] sm:$0xff]
    %v79 = vld [vmem:[#allocation2 + $0x38] sm:$0xff]
    %v80 = vld [vmem:[#allocation2 + $0x40] sm:$0xff]
    %v81 = vld [vmem:[#allocation2 + $0x48] sm:$0xff]
    %v82 = vld [vmem:[#allocation2 + $0x50] sm:$0xff]
    %v83 = vld [vmem:[#allocation2 + $0x58] sm:$0xff]
    %v84 = vld [vmem:[#allocation2 + $0x60] sm:$0xff]
    %v85 = vld [vmem:[#allocation2 + $0x68] sm:$0xff]
    %v86 = vld [vmem:[#allocation2 + $0x70] sm:$0xff]
    %v87 = vld [vmem:[%s1] sm:$0xff]
    %v88 = vld [vmem:[%s1 + $0x8] sm:$0xff]
    %v89 = vld [vmem:[%s1 + $0x10] sm:$0xff]
    %v90 = vld [vmem:[%s1 + $0x18] sm:$0xff]
    %v91 = vld [vmem:[%s1 + $0x20] sm:$0xff]
    %v92 = vld [vmem:[%s1 + $0x28] sm:$0xff]
    %v93 = vld [vmem:[%s1 + $0x30] sm:$0xff]
    %v94 = vld [vmem:[%s1 + $0x38] sm:$0xff]
    %v95 = vld [vmem:[%s1 + $0x40] sm:$0xff]
    %v96 = vld [vmem:[%s1 + $0x48] sm:$0xff]
    %v97 = vld [vmem:[%s1 + $0x50] sm:$0xff]
    %v98 = vld [vmem:[%s1 + $0x58] sm:$0xff]
    %v99 = vld [vmem:[%s1 + $0x60] sm:$0xff]
    %v100 = vld [vmem:[%s1 + $0x68] sm:$0xff]
    %v101 = vld [vmem:[%s1 + $0x70] sm:$0xff]
    %v102 = vld [vmem:[%s1 + $0x78] sm:$0xff]
    %v103 = vld [vmem:[%s1 + $0x80] sm:$0xff]
    %v104 = vld [vmem:[%s1 + $0x88] sm:$0xff]
    %v105 = vld [vmem:[%s1 + $0x90] sm:$0xff]
    %v106 = vld [vmem:[%s1 + $0x98] sm:$0xff]
    %v107 = vld [vmem:[%s1 + $0xa0] sm:$0xff]
    %v108 = vld [vmem:[%s1 + $0xa8] sm:$0xff]
    %v109 = vld [vmem:[%s1 + $0xb0] sm:$0xff]
    %v110 = vld [vmem:[%s1 + $0xb8] sm:$0xff]
    %v111 = vld [vmem:[%s1 + $0xc0] sm:$0xff]
    %v112 = vld [vmem:[%s1 + $0xc8] sm:$0xff]
    %v113 = vld [vmem:[%s1 + $0xd0] sm:$0xff]
    %v114 = vld [vmem:[%s1 + $0xd8] sm:$0xff]
    %v115 = vld [vmem:[%s1 + $0xe0] sm:$0xff]
    %v116 = vld [vmem:[%s1 + $0xe8] sm:$0xff]
    %v117 = vld [vmem:[%s1 + $0xf0] sm:$0xff]
    %v118 = vld [vmem:[%s1 + $0xf8] sm:$0xff]
    %v119 = vld [vmem:[%s1 + $0x100] sm:$0xff]
    %v120 = vld [vmem:[%s1 + $0x108] sm:$0xff]
    %v121 = vld [vmem:[%s1 + $0x110] sm:$0xff]
    %v122 = vld [vmem:[%s1 + $0x118] sm:$0xff]
    %v123 = vld [vmem:[%s1 + $0x120] sm:$0xff]
    %v124 = vld [vmem:[%s1 + $0x128] sm:$0xff]
    %v125 = vld [vmem:[%s1 + $0x130] sm:$0xff]
    %v126 = vld [vmem:[%s1 + $0x138] sm:$0xff]
    %v127 = vld [vmem:[%s1 + $0x140] sm:$0xff]
    %v128 = vld [vmem:[%s1 + $0x148] sm:$0xff]
    %v129 = vld [vmem:[%s1 + $0x150] sm:$0xff]
    %v130 = vld [vmem:[%s1 + $0x158] sm:$0xff]
    %v131 = vld [vmem:[%s1 + $0x160] sm:$0xff]
    %v132 = vld [vmem:[%s1 + $0x168] sm:$0xff]
    %v133 = vld [vmem:[%s1 + $0x170] sm:$0xff]
    %v134 = vld [vmem:[%s1 + $0x178] sm:$0xff]
    %v135 = vld [vmem:[%s1 + $0x180] sm:$0xff]
    %v136 = vld [vmem:[%s1 + $0x188] sm:$0xff]
    %v137 = vld [vmem:[%s1 + $0x190] sm:$0xff]
    %v138 = vld [vmem:[%s1 + $0x198] sm:$0xff]
    %v139 = vld [vmem:[%s1 + $0x1a0] sm:$0xff]
    %v140 = vld [vmem:[%s1 + $0x1a8] sm:$0xff]
    %v141 = vld [vmem:[%s1 + $0x1b0] sm:$0xff]
    %v142 = vld [vmem:[%s1 + $0x1b8] sm:$0xff]
    %v143 = vld [vmem:[%s1 + $0x1c0] sm:$0xff]
    %v144 = vld [vmem:[%s1 + $0x1c8] sm:$0xff]
    %v145 = vld [vmem:[%s1 + $0x1d0] sm:$0xff]
    %v146 = vld [vmem:[%s1 + $0x1d8] sm:$0xff]
    %v147 = vld [vmem:[%s1 + $0x1e0] sm:$0xff]
    %v148 = vld [vmem:[%s1 + $0x1e8] sm:$0xff]
    %v149 = vld [vmem:[%s1 + $0x1f0] sm:$0xff]
    %v150 = vld [vmem:[%s1 + $0x1f8] sm:$0xff]
    %v151 = vld [vmem:[%s1 + $0x200] sm:$0xff]
    %v152 = vld [vmem:[%s1 + $0x208] sm:$0xff]
    %v153 = vld [vmem:[%s1 + $0x210] sm:$0xff]
    %v154 = vld [vmem:[%s1 + $0x218] sm:$0xff]
    %v155 = vld [vmem:[%s1 + $0x220] sm:$0xff]
    %v156 = vld [vmem:[%s1 + $0x228] sm:$0xff]
    %v157 = vld [vmem:[%s1 + $0x230] sm:$0xff]
    %v158 = vld [vmem:[%s1 + $0x238] sm:$0xff]
    %v159 = vld [vmem:[%s1 + $0x240] sm:$0xff]
    %v160 = vld [vmem:[%s1 + $0x248] sm:$0xff]
    %v161 = vld [vmem:[%s1 + $0x250] sm:$0xff]
    %v162 = vld [vmem:[%s1 + $0x258] sm:$0xff]
    %v163 = vld [vmem:[%s1 + $0x260] sm:$0xff]
    %v164 = vld [vmem:[%s1 + $0x268] sm:$0xff]
    %v165 = vld [vmem:[%s1 + $0x270] sm:$0xff]
    %v166 = vld [vmem:[%s1 + $0x278] sm:$0xff]
    %v167 = vld [vmem:[%s1 + $0x280] sm:$0xff]
    %v168 = vld [vmem:[%s1 + $0x288] sm:$0xff]
    %v169 = vld [vmem:[%s1 + $0x290] sm:$0xff]
    %v170 = vld [vmem:[%s1 + $0x298] sm:$0xff]
    %v171 = vld [vmem:[%s1 + $0x2a0] sm:$0xff]
    %v172 = vld [vmem:[%s1 + $0x2a8] sm:$0xff]
    %v173 = vld [vmem:[%s1 + $0x2b0] sm:$0xff]
    %v174 = vld [vmem:[%s1 + $0x2b8] sm:$0xff]
    %v175 = vld [vmem:[%s1 + $0x2c0] sm:$0xff]
    %v176 = vld [vmem:[%s1 + $0x2c8] sm:$0xff]
    %v177 = vld [vmem:[%s1 + $0x2d0] sm:$0xff]
    %v178 = vld [vmem:[%s1 + $0x2d8] sm:$0xff]
    %v179 = vld [vmem:[%s1 + $0x2e0] sm:$0xff]
    %v180 = vld [vmem:[%s1 + $0x2e8] sm:$0xff]
    %v181 = vld [vmem:[%s1 + $0x2f0] sm:$0xff]
    %v182 = vld [vmem:[%s1 + $0x2f8] sm:$0xff]
    %v183 = vld [vmem:[%s1 + $0x300] sm:$0xff]
    %v184 = vld [vmem:[%s1 + $0x308] sm:$0xff]
    %v185 = vld [vmem:[%s1 + $0x310] sm:$0xff]
    %v186 = vld [vmem:[%s1 + $0x318] sm:$0xff]
    %v187 = vld [vmem:[%s1 + $0x320] sm:$0xff]
    %v188 = vld [vmem:[%s1 + $0x328] sm:$0xff]
    %v189 = vld [vmem:[%s1 + $0x330] sm:$0xff]
    %v190 = vld [vmem:[%s1 + $0x338] sm:$0xff]
    %v191 = vld [vmem:[%s1 + $0x340] sm:$0xff]
    %v192 = vld [vmem:[%s1 + $0x348] sm:$0xff]
    %v193 = vld [vmem:[%s1 + $0x350] sm:$0xff]
    %v194 = vld [vmem:[%s1 + $0x358] sm:$0xff]
    %v195 = vld [vmem:[%s1 + $0x360] sm:$0xff]
    %v196 = vld [vmem:[%s1 + $0x368] sm:$0xff]
    %v197 = vld [vmem:[%s1 + $0x370] sm:$0xff]
    %v198 = vld [vmem:[%s1 + $0x378] sm:$0xff]
    %v199 = vld [vmem:[%s1 + $0x380] sm:$0xff]
    %v200 = vld [vmem:[%s1 + $0x388] sm:$0xff]
    %v201 = vld [vmem:[%s1 + $0x390] sm:$0xff]
    %v202 = vld [vmem:[%s1 + $0x398] sm:$0xff]
    %v203 = vld [vmem:[%s1 + $0x3a0] sm:$0xff]
    %v204 = vld [vmem:[%s1 + $0x3a8] sm:$0xff]
    %v205 = vld [vmem:[%s1 + $0x3b0] sm:$0xff]
    %v206 = vld [vmem:[%s1 + $0x3b8] sm:$0xff]
    %v207 = vld [vmem:[%s1 + $0x3c0] sm:$0xff]
    %v208 = vld [vmem:[%s1 + $0x3c8] sm:$0xff]
    %v209 = vld [vmem:[%s1 + $0x3d0] sm:$0xff]
    %v210 = vld [vmem:[%s1 + $0x3d8] sm:$0xff]
    %v211 = vld [vmem:[%s1 + $0x3e0] sm:$0xff]
    %v212 = vld [vmem:[%s1 + $0x3e8] sm:$0xff]
    %v213 = vld [vmem:[%s1 + $0x3f0] sm:$0xff]
    %v214 = vld [vmem:[%s1 + $0x3f8] sm:$0xff]
    %v215 = vld [vmem:[%s1 + $0x400] sm:$0xff]
    %v216 = vld [vmem:[%s1 + $0x408] sm:$0xff]
    %v217 = vld [vmem:[%s1 + $0x410] sm:$0xff]
    %v218 = vld [vmem:[%s1 + $0x418] sm:$0xff]
    %v219 = vld [vmem:[%s1 + $0x420] sm:$0xff]
    %v220 = vld [vmem:[%s1 + $0x428] sm:$0xff]
    %v221 = vld [vmem:[%s1 + $0x430] sm:$0xff]
    %v222 = vld [vmem:[%s1 + $0x438] sm:$0xff]
    %v223 = vld [vmem:[%s1 + $0x440] sm:$0xff]
    %v224 = vld [vmem:[%s1 + $0x448] sm:$0xff]
    %v225 = vld [vmem:[%s1 + $0x450] sm:$0xff]
    %v226 = vld [vmem:[%s1 + $0x458] sm:$0xff]
    %v227 = vld [vmem:[%s1 + $0x460] sm:$0xff]
    %v228 = vld [vmem:[%s1 + $0x468] sm:$0xff]
    %v229 = vld [vmem:[%s1 + $0x470] sm:$0xff]
    %v230 = vld [vmem:[%s1 + $0x478] sm:$0xff]
    %v231 = vld [vmem:[%s1 + $0x480] sm:$0xff]
    %v232 = vld [vmem:[%s1 + $0x488] sm:$0xff]
    %v233 = vld [vmem:[%s1 + $0x490] sm:$0xff]
    %v234 = vld [vmem:[%s1 + $0x498] sm:$0xff]
    %v235 = vld [vmem:[%s1 + $0x4a0] sm:$0xff]
    %v236 = vld [vmem:[%s1 + $0x4a8] sm:$0xff]
    %v237 = vld [vmem:[%s1 + $0x4b0] sm:$0xff]
    %v238 = vld [vmem:[%s1 + $0x4b8] sm:$0xff]
    %v239 = vld [vmem:[%s1 + $0x4c0] sm:$0xff]
    %v240 = vld [vmem:[%s1 + $0x4c8] sm:$0xff]
    %v241 = vld [vmem:[%s1 + $0x4d0] sm:$0xff]
    %v242 = vld [vmem:[%s1 + $0x4d8] sm:$0xff]
    %v243 = vld [vmem:[%s1 + $0x4e0] sm:$0xff]
    %v244 = vld [vmem:[%s1 + $0x4e8] sm:$0xff]
    %v245 = vld [vmem:[%s1 + $0x4f0] sm:$0xff]
    %v246 = vld [vmem:[%s1 + $0x4f8] sm:$0xff]
    %v247 = vld [vmem:[%s1 + $0x500] sm:$0xff]
    %v248 = vld [vmem:[%s1 + $0x508] sm:$0xff]
    %v249 = vld [vmem:[%s1 + $0x510] sm:$0xff]
    %v250 = vld [vmem:[%s1 + $0x518] sm:$0xff]
    %v251 = vld [vmem:[%s1 + $0x520] sm:$0xff]
    %v252 = vld [vmem:[%s1 + $0x528] sm:$0xff]
    %v253 = vld [vmem:[%s1 + $0x530] sm:$0xff]
    %v254 = vld [vmem:[%s1 + $0x538] sm:$0xff]
    %v255 = vld [vmem:[%s1 + $0x540] sm:$0xff]
    %v256 = vld [vmem:[%s1 + $0x548] sm:$0xff]
    %v257 = vld [vmem:[%s1 + $0x550] sm:$0xff]
    %v258 = vld [vmem:[%s1 + $0x558] sm:$0xff]
    %v259 = vld [vmem:[%s1 + $0x560] sm:$0xff]
    %v260 = vld [vmem:[%s1 + $0x568] sm:$0xff]
    %v261 = vld [vmem:[%s1 + $0x570] sm:$0xff]
    %v262 = vld [vmem:[%s1 + $0x578] sm:$0xff]
    %v263 = vld [vmem:[%s1 + $0x580] sm:$0xff]
    %v264 = vld [vmem:[%s1 + $0x588] sm:$0xff]
    %v265 = vld [vmem:[%s1 + $0x590] sm:$0xff]
    %v266 = vld [vmem:[%s1 + $0x598] sm:$0xff]
    %v267 = vld [vmem:[%s1 + $0x5a0] sm:$0xff]
    %v268 = vld [vmem:[%s1 + $0x5a8] sm:$0xff]
    %v269 = vld [vmem:[%s1 + $0x5b0] sm:$0xff]
    %v270 = vld [vmem:[%s1 + $0x5b8] sm:$0xff]
    %v271 = vld [vmem:[%s1 + $0x5c0] sm:$0xff]
    %v272 = vld [vmem:[%s1 + $0x5c8] sm:$0xff]
    %v273 = vld [vmem:[%s1 + $0x5d0] sm:$0xff]
    %v274 = vld [vmem:[%s1 + $0x5d8] sm:$0xff]
    %v275 = vld [vmem:[%s1 + $0x5e0] sm:$0xff]
    %v276 = vld [vmem:[%s1 + $0x5e8] sm:$0xff]
    %v277 = vld [vmem:[%s1 + $0x5f0] sm:$0xff]
    %v278 = vld [vmem:[%s1 + $0x5f8] sm:$0xff]
    %v279 = vld [vmem:[%s1 + $0x600] sm:$0xff]
    %v280 = vld [vmem:[%s1 + $0x608] sm:$0xff]
    %v281 = vld [vmem:[%s1 + $0x610] sm:$0xff]
    %v282 = vld [vmem:[%s1 + $0x618] sm:$0xff]
    %v283 = vld [vmem:[%s1 + $0x620] sm:$0xff]
    %v284 = vld [vmem:[%s1 + $0x628] sm:$0xff]
    %v285 = vld [vmem:[%s1 + $0x630] sm:$0xff]
    %v286 = vld [vmem:[%s1 + $0x638] sm:$0xff]
    %v287 = vld [vmem:[%s1 + $0x640] sm:$0xff]
    %v288 = vld [vmem:[%s1 + $0x648] sm:$0xff]
    %v289 = vld [vmem:[%s1 + $0x650] sm:$0xff]
    %v290 = vld [vmem:[%s1 + $0x658] sm:$0xff]
    %v291 = vld [vmem:[%s1 + $0x660] sm:$0xff]
    %v292 = vld [vmem:[%s1 + $0x668] sm:$0xff]
    %v293 = vld [vmem:[%s1 + $0x670] sm:$0xff]
    %v294 = vld [vmem:[%s1 + $0x678] sm:$0xff]
    %v295 = vld [vmem:[%s1 + $0x680] sm:$0xff]
    %v296 = vld [vmem:[%s1 + $0x688] sm:$0xff]
    %v297 = vld [vmem:[%s1 + $0x690] sm:$0xff]
    %v298 = vld [vmem:[%s1 + $0x698] sm:$0xff]
    %v299 = vld [vmem:[%s1 + $0x6a0] sm:$0xff]
    %v300 = vld [vmem:[%s1 + $0x6a8] sm:$0xff]
    %v301 = vld [vmem:[%s1 + $0x6b0] sm:$0xff]
    %v302 = vld [vmem:[%s1 + $0x6b8] sm:$0xff]
    %v303 = vld [vmem:[%s1 + $0x6c0] sm:$0xff]
    %v304 = vld [vmem:[%s1 + $0x6c8] sm:$0xff]
    %v305 = vld [vmem:[%s1 + $0x6d0] sm:$0xff]
    %v306 = vld [vmem:[%s1 + $0x6d8] sm:$0xff]
    %v307 = vld [vmem:[%s1 + $0x6e0] sm:$0xff]
    %v308 = vld [vmem:[%s1 + $0x6e8] sm:$0xff]
    %v309 = vld [vmem:[%s1 + $0x6f0] sm:$0xff]
    %v310 = vld [vmem:[%s1 + $0x6f8] sm:$0xff]
    %v311 = vld [vmem:[%s1 + $0x700] sm:$0xff]
    %v312 = vld [vmem:[%s1 + $0x708] sm:$0xff]
    %v313 = vld [vmem:[%s1 + $0x710] sm:$0xff]
    %v314 = vld [vmem:[%s1 + $0x718] sm:$0xff]
    %v315 = vld [vmem:[%s1 + $0x720] sm:$0xff]
    %v316 = vld [vmem:[%s1 + $0x728] sm:$0xff]
    %v317 = vld [vmem:[%s1 + $0x730] sm:$0xff]
    %v318 = vld [vmem:[%s1 + $0x738] sm:$0xff]
    %v319 = vld [vmem:[%s1 + $0x740] sm:$0xff]
    %v320 = vld [vmem:[%s1 + $0x748] sm:$0xff]
    %v321 = vld [vmem:[%s1 + $0x750] sm:$0xff]
    %v322 = vld [vmem:[%s1 + $0x758] sm:$0xff]
    %v323 = vld [vmem:[%s1 + $0x760] sm:$0xff]
    %v324 = vld [vmem:[%s1 + $0x768] sm:$0xff]
    %v325 = vld [vmem:[%s1 + $0x770] sm:$0xff]
    %v326 = vld [vmem:[%s1 + $0x778] sm:$0xff]
    %v327 = vld [vmem:[%s1 + $0x780] sm:$0xff]
    %v328 = vld [vmem:[%s1 + $0x788] sm:$0xff]
    %v329 = vld [vmem:[%s1 + $0x790] sm:$0xff]
    %v330 = vld [vmem:[%s1 + $0x798] sm:$0xff]
    %v331 = vld [vmem:[%s1 + $0x7a0] sm:$0xff]
    %v332 = vld [vmem:[%s1 + $0x7a8] sm:$0xff]
    %v333 = vld [vmem:[%s1 + $0x7b0] sm:$0xff]
    %v334 = vld [vmem:[%s1 + $0x7b8] sm:$0xff]
    %v335 = vld [vmem:[%s1 + $0x7c0] sm:$0xff]
    %v336 = vld [vmem:[%s1 + $0x7c8] sm:$0xff]
    %v337 = vld [vmem:[%s1 + $0x7d0] sm:$0xff]
    %v338 = vld [vmem:[%s1 + $0x7d8] sm:$0xff]
    %v339 = vld [vmem:[%s1 + $0x7e0] sm:$0xff]
    %v340 = vld [vmem:[%s1 + $0x7e8] sm:$0xff]
    %v341 = vld [vmem:[%s1 + $0x7f0] sm:$0xff]
    %v342 = vld [vmem:[%s1 + $0x7f8] sm:$0xff]
    %v343 = vld [vmem:[%s1 + $0x800] sm:$0xff]
    %v344 = vld [vmem:[%s1 + $0x808] sm:$0xff]
    %v345 = vld [vmem:[%s1 + $0x810] sm:$0xff]
    %v346 = vld [vmem:[%s1 + $0x818] sm:$0xff]
    %v347 = vld [vmem:[%s1 + $0x820] sm:$0xff]
    %v348 = vld [vmem:[%s1 + $0x828] sm:$0xff]
    %v349 = vld [vmem:[%s1 + $0x830] sm:$0xff]
    %v350 = vld [vmem:[%s1 + $0x838] sm:$0xff]
    %v351 = vld [vmem:[%s1 + $0x840] sm:$0xff]
    %v352 = vld [vmem:[%s1 + $0x848] sm:$0xff]
    %v353 = vld [vmem:[%s1 + $0x850] sm:$0xff]
    %v354 = vld [vmem:[%s1 + $0x858] sm:$0xff]
    %v355 = vld [vmem:[%s1 + $0x860] sm:$0xff]
    %v356 = vld [vmem:[%s1 + $0x868] sm:$0xff]
    %v357 = vld [vmem:[%s1 + $0x870] sm:$0xff]
    %v358 = vld [vmem:[%s1 + $0x878] sm:$0xff]
    %v359 = vld [vmem:[%s1 + $0x880] sm:$0xff]
    %v360 = vld [vmem:[%s1 + $0x888] sm:$0xff]
    %v361 = vld [vmem:[%s1 + $0x890] sm:$0xff]
    %v362 = vld [vmem:[%s1 + $0x898] sm:$0xff]
    %v363 = vld [vmem:[%s1 + $0x8a0] sm:$0xff]
    %v364 = vld [vmem:[%s1 + $0x8a8] sm:$0xff]
    %v365 = vld [vmem:[%s1 + $0x8b0] sm:$0xff]
    %v366 = vld [vmem:[%s1 + $0x8b8] sm:$0xff]
    %v367 = vld [vmem:[%s1 + $0x8c0] sm:$0xff]
    %v368 = vld [vmem:[%s1 + $0x8c8] sm:$0xff]
    %v369 = vld [vmem:[%s1 + $0x8d0] sm:$0xff]
    %v370 = vld [vmem:[%s1 + $0x8d8] sm:$0xff]
    %v371 = vld [vmem:[%s1 + $0x8e0] sm:$0xff]
    %v372 = vld [vmem:[%s1 + $0x8e8] sm:$0xff]
    %v373 = vld [vmem:[%s1 + $0x8f0] sm:$0xff]
    %v374 = vld [vmem:[%s1 + $0x8f8] sm:$0xff]
    %v375 = vld [vmem:[%s1 + $0x900] sm:$0xff]
    %v376 = vld [vmem:[%s1 + $0x908] sm:$0xff]
    %v377 = vld [vmem:[%s1 + $0x910] sm:$0xff]
    %v378 = vld [vmem:[%s1 + $0x918] sm:$0xff]
    %v379 = vld [vmem:[%s1 + $0x920] sm:$0xff]
    %v380 = vld [vmem:[%s1 + $0x928] sm:$0xff]
    %v381 = vld [vmem:[%s1 + $0x930] sm:$0xff]
    %v382 = vld [vmem:[%s1 + $0x938] sm:$0xff]
    %v383 = vld [vmem:[%s1 + $0x940] sm:$0xff]
    %v384 = vld [vmem:[%s1 + $0x948] sm:$0xff]
    %v385 = vld [vmem:[%s1 + $0x950] sm:$0xff]
    %v386 = vld [vmem:[%s1 + $0x958] sm:$0xff]
    %v387 = vld [vmem:[%s1 + $0x960] sm:$0xff]
    %v388 = vld [vmem:[%s1 + $0x968] sm:$0xff]
    %v389 = vld [vmem:[%s1 + $0x970] sm:$0xff]
    %v390 = vld [vmem:[%s1 + $0x978] sm:$0xff]
    %v391 = vld [vmem:[%s1 + $0x980] sm:$0xff]
    %v392 = vld [vmem:[%s1 + $0x988] sm:$0xff]
    %v393 = vld [vmem:[%s1 + $0x990] sm:$0xff]
    %v394 = vld [vmem:[%s1 + $0x998] sm:$0xff]
    %v395 = vld [vmem:[%s1 + $0x9a0] sm:$0xff]
    %v396 = vld [vmem:[%s1 + $0x9a8] sm:$0xff]
    %v397 = vld [vmem:[%s1 + $0x9b0] sm:$0xff]
    %v398 = vld [vmem:[%s1 + $0x9b8] sm:$0xff]
    %v399 = vld [vmem:[%s1 + $0x9c0] sm:$0xff]
    %v400 = vld [vmem:[%s1 + $0x9c8] sm:$0xff]
    %v401 = vld [vmem:[%s1 + $0x9d0] sm:$0xff]
    %v402 = vld [vmem:[%s1 + $0x9d8] sm:$0xff]
    %v403 = vld [vmem:[%s1 + $0x9e0] sm:$0xff]
    %v404 = vld [vmem:[%s1 + $0x9e8] sm:$0xff]
    %v405 = vld [vmem:[%s1 + $0x9f0] sm:$0xff]
    %v406 = vld [vmem:[%s1 + $0x9f8] sm:$0xff]
    %v407 = vld [vmem:[%s1 + $0xa00] sm:$0xff]
    %v408 = vld [vmem:[%s1 + $0xa08] sm:$0xff]
    %v409 = vld [vmem:[%s1 + $0xa10] sm:$0xff]
    %v410 = vld [vmem:[%s1 + $0xa18] sm:$0xff]
    %v411 = vld [vmem:[%s1 + $0xa20] sm:$0xff]
    %v412 = vld [vmem:[%s1 + $0xa28] sm:$0xff]
    %v413 = vld [vmem:[%s1 + $0xa30] sm:$0xff]
    %v414 = vld [vmem:[%s1 + $0xa38] sm:$0xff]
    %v415 = vld [vmem:[%s1 + $0xa40] sm:$0xff]
    %v416 = vld [vmem:[%s1 + $0xa48] sm:$0xff]
    %v417 = vld [vmem:[%s1 + $0xa50] sm:$0xff]
    %v418 = vld [vmem:[%s1 + $0xa58] sm:$0xff]
    %v419 = vld [vmem:[%s1 + $0xa60] sm:$0xff]
    %v420 = vld [vmem:[%s1 + $0xa68] sm:$0xff]
    %v421 = vld [vmem:[%s1 + $0xa70] sm:$0xff]
    %v422 = vld [vmem:[%s1 + $0xa78] sm:$0xff]
    %v423 = vld [vmem:[%s1 + $0xa80] sm:$0xff]
    %v424 = vld [vmem:[%s1 + $0xa88] sm:$0xff]
    %v425 = vld [vmem:[%s1 + $0xa90] sm:$0xff]
    %v426 = vld [vmem:[%s1 + $0xa98] sm:$0xff]
    %v427 = vld [vmem:[%s1 + $0xaa0] sm:$0xff]
    %v428 = vld [vmem:[%s1 + $0xaa8] sm:$0xff]
    %v429 = vld [vmem:[%s1 + $0xab0] sm:$0xff]
    %v430 = vld [vmem:[%s1 + $0xab8] sm:$0xff]
    %v431 = vld [vmem:[%s1 + $0xac0] sm:$0xff]
    %v432 = vld [vmem:[%s1 + $0xac8] sm:$0xff]
    %v433 = vld [vmem:[%s1 + $0xad0] sm:$0xff]
    %v434 = vld [vmem:[%s1 + $0xad8] sm:$0xff]
    %v435 = vld [vmem:[%s1 + $0xae0] sm:$0xff]
    %v436 = vld [vmem:[%s1 + $0xae8] sm:$0xff]
    %v437 = vld [vmem:[%s1 + $0xaf0] sm:$0xff]
    %v438 = vld [vmem:[%s1 + $0xaf8] sm:$0xff]
    %v439 = vld [vmem:[%s1 + $0xb00] sm:$0xff]
    %v440 = vld [vmem:[%s1 + $0xb08] sm:$0xff]
    %v441 = vld [vmem:[%s1 + $0xb10] sm:$0xff]
    %v442 = vld [vmem:[%s1 + $0xb18] sm:$0xff]
    %v443 = vld [vmem:[%s1 + $0xb20] sm:$0xff]
    %v444 = vld [vmem:[%s1 + $0xb28] sm:$0xff]
    %v445 = vld [vmem:[%s1 + $0xb30] sm:$0xff]
    %v446 = vld [vmem:[%s1 + $0xb38] sm:$0xff]
    %v447 = vld [vmem:[%s1 + $0xb40] sm:$0xff]
    %v448 = vld [vmem:[%s1 + $0xb48] sm:$0xff]
    %v449 = vld [vmem:[%s1 + $0xb50] sm:$0xff]
    %v450 = vld [vmem:[%s1 + $0xb58] sm:$0xff]
    %v451 = vld [vmem:[%s1 + $0xb60] sm:$0xff]
    %v452 = vld [vmem:[%s1 + $0xb68] sm:$0xff]
    %v453 = vld [vmem:[%s1 + $0xb70] sm:$0xff]
    %v454 = vld [vmem:[%s1 + $0xb78] sm:$0xff]
    %v455 = vld [vmem:[%s1 + $0xb80] sm:$0xff]
    %v456 = vld [vmem:[%s1 + $0xb88] sm:$0xff]
    %v457 = vld [vmem:[%s1 + $0xb90] sm:$0xff]
    %v458 = vld [vmem:[%s1 + $0xb98] sm:$0xff]
    %v459 = vld [vmem:[%s1 + $0xba0] sm:$0xff]
    %v460 = vld [vmem:[%s1 + $0xba8] sm:$0xff]
    %v461 = vld [vmem:[%s1 + $0xbb0] sm:$0xff]
    %v462 = vld [vmem:[%s1 + $0xbb8] sm:$0xff]
    %v463 = vld [vmem:[%s1 + $0xbc0] sm:$0xff]
    %v464 = vld [vmem:[%s1 + $0xbc8] sm:$0xff]
    %v465 = vld [vmem:[%s1 + $0xbd0] sm:$0xff]
    %v466 = vld [vmem:[%s1 + $0xbd8] sm:$0xff]
    %v467 = vld [vmem:[%s1 + $0xbe0] sm:$0xff]
    %v468 = vld [vmem:[%s1 + $0xbe8] sm:$0xff]
    %v469 = vld [vmem:[%s1 + $0xbf0] sm:$0xff]
    %v470 = vld [vmem:[%s1 + $0xbf8] sm:$0xff]
    %v471 = vld [vmem:[%s1 + $0xc00] sm:$0xff]
    %v472 = vld [vmem:[%s1 + $0xc08] sm:$0xff]
    %v473 = vld [vmem:[%s1 + $0xc10] sm:$0xff]
    %v474 = vld [vmem:[%s1 + $0xc18] sm:$0xff]
    %v475 = vld [vmem:[%s1 + $0xc20] sm:$0xff]
    %v476 = vld [vmem:[%s1 + $0xc28] sm:$0xff]
    %v477 = vld [vmem:[%s1 + $0xc30] sm:$0xff]
    %v478 = vld [vmem:[%s1 + $0xc38] sm:$0xff]
    %v479 = vld [vmem:[%s1 + $0xc40] sm:$0xff]
    %v480 = vld [vmem:[%s1 + $0xc48] sm:$0xff]
    %v481 = vld [vmem:[%s1 + $0xc50] sm:$0xff]
    %v482 = vld [vmem:[%s1 + $0xc58] sm:$0xff]
    %v483 = vld [vmem:[%s1 + $0xc60] sm:$0xff]
    %v484 = vld [vmem:[%s1 + $0xc68] sm:$0xff]
    %v485 = vld [vmem:[%s1 + $0xc70] sm:$0xff]
    %v486 = vld [vmem:[%s1 + $0xc78] sm:$0xff]
    %v487 = vld [vmem:[%s1 + $0xc80] sm:$0xff]
    %v488 = vld [vmem:[%s1 + $0xc88] sm:$0xff]
    %v489 = vld [vmem:[%s1 + $0xc90] sm:$0xff]
    %v490 = vld [vmem:[%s1 + $0xc98] sm:$0xff]
    %v491 = vld [vmem:[%s1 + $0xca0] sm:$0xff]
    %v492 = vld [vmem:[%s1 + $0xca8] sm:$0xff]
    %v493 = vld [vmem:[%s1 + $0xcb0] sm:$0xff]
    %v494 = vld [vmem:[%s1 + $0xcb8] sm:$0xff]
    %v495 = vld [vmem:[%s1 + $0xcc0] sm:$0xff]
    %v496 = vld [vmem:[%s1 + $0xcc8] sm:$0xff]
    %v497 = vld [vmem:[%s1 + $0xcd0] sm:$0xff]
    %v498 = vld [vmem:[%s1 + $0xcd8] sm:$0xff]
    %v499 = vld [vmem:[%s1 + $0xce0] sm:$0xff]
    %v500 = vld [vmem:[%s1 + $0xce8] sm:$0xff]
    %v501 = vld [vmem:[%s1 + $0xcf0] sm:$0xff]
    %v502 = vld [vmem:[%s1 + $0xcf8] sm:$0xff]
    %v503 = vld [vmem:[%s1 + $0xd00] sm:$0xff]
    %v504 = vld [vmem:[%s1 + $0xd08] sm:$0xff]
    %v505 = vld [vmem:[%s1 + $0xd10] sm:$0xff]
    %v506 = vld [vmem:[%s1 + $0xd18] sm:$0xff]
    %v507 = vld [vmem:[%s1 + $0xd20] sm:$0xff]
    %v508 = vld [vmem:[%s1 + $0xd28] sm:$0xff]
    %v509 = vld [vmem:[%s1 + $0xd30] sm:$0xff]
    %v510 = vld [vmem:[%s1 + $0xd38] sm:$0xff]
    %v511 = vld [vmem:[%s1 + $0xd40] sm:$0xff]
    %v512 = vld [vmem:[%s1 + $0xd48] sm:$0xff]
    %v513 = vld [vmem:[%s1 + $0xd50] sm:$0xff]
    %v514 = vld [vmem:[%s1 + $0xd58] sm:$0xff]
    %v515 = vld [vmem:[%s1 + $0xd60] sm:$0xff]
    %v516 = vld [vmem:[%s1 + $0xd68] sm:$0xff]
    %v517 = vld [vmem:[%s1 + $0xd70] sm:$0xff]
    %v518 = vld [vmem:[%s1 + $0xd78] sm:$0xff]
    %v519 = vld [vmem:[%s1 + $0xd80] sm:$0xff]
    %v520 = vld [vmem:[%s1 + $0xd88] sm:$0xff]
    %v521 = vld [vmem:[%s1 + $0xd90] sm:$0xff]
    %v522 = vld [vmem:[%s1 + $0xd98] sm:$0xff]
    %v523 = vld [vmem:[%s1 + $0xda0] sm:$0xff]
    %v524 = vld [vmem:[%s1 + $0xda8] sm:$0xff]
    %v525 = vld [vmem:[%s1 + $0xdb0] sm:$0xff]
    %v526 = vld [vmem:[%s1 + $0xdb8] sm:$0xff]
    %v527 = vld [vmem:[%s1 + $0xdc0] sm:$0xff]
    %v528 = vld [vmem:[%s1 + $0xdc8] sm:$0xff]
    %v529 = vld [vmem:[%s1 + $0xdd0] sm:$0xff]
    %v530 = vld [vmem:[%s1 + $0xdd8] sm:$0xff]
    %v531 = vld [vmem:[%s1 + $0xde0] sm:$0xff]
    %v532 = vld [vmem:[%s1 + $0xde8] sm:$0xff]
    %v533 = vld [vmem:[%s1 + $0xdf0] sm:$0xff]
    %v534 = vld [vmem:[%s1 + $0xdf8] sm:$0xff]
    %v535 = vld [vmem:[%s1 + $0xe00] sm:$0xff]
    %v536 = vld [vmem:[%s1 + $0xe08] sm:$0xff]
    %v537 = vld [vmem:[%s1 + $0xe10] sm:$0xff]
    %v538 = vld [vmem:[%s1 + $0xe18] sm:$0xff]
    %v539 = vld [vmem:[%s1 + $0xe20] sm:$0xff]
    %v540 = vld [vmem:[%s1 + $0xe28] sm:$0xff]
    %v541 = vld [vmem:[%s1 + $0xe30] sm:$0xff]
    %v542 = vld [vmem:[%s1 + $0xe38] sm:$0xff]
    %v543 = vld [vmem:[%s1 + $0xe40] sm:$0xff]
    %v544 = vld [vmem:[%s1 + $0xe48] sm:$0xff]
    %v545 = vld [vmem:[%s1 + $0xe50] sm:$0xff]
    %v546 = vld [vmem:[%s1 + $0xe58] sm:$0xff]
    %v547 = vld [vmem:[%s1 + $0xe60] sm:$0x77]
    %v548 = vld [vmem:[%s1 + $0xe68] sm:$0x77]
    %v549 = vpack.c.bf16 %v72, %v72
    %v550 = vpack.c.bf16 %v73, %v73
    %v551 = vpack.c.bf16 %v74, %v74
    %v552 = vpack.c.bf16 %v75, %v75
    %v553 = vpack.c.bf16 %v76, %v76
    %v554 = vpack.c.bf16 %v77, %v77
    %v555 = vpack.c.bf16 %v78, %v78
    %v556 = vpack.c.bf16 %v79, %v79
    %v557 = vpack.c.bf16 %v80, %v80
    %v558 = vpack.c.bf16 %v81, %v81
    %v559 = vpack.c.bf16 %v82, %v82
    %v560 = vpack.c.bf16 %v83, %v83
    %v561 = vpack.c.bf16 %v84, %v84
    %v562 = vpack.c.bf16 %v85, %v85
    %v563 = vpack.c.bf16 %v86, %v86
    %v564 = vld [vmem:[%s2] sm:$0xf]
    %v566 = vperm.slane %v564, 0
    %v567 = vperm.slane %v564, 1
    %v568 = vperm.slane %v564, 2
    %v569 = vperm.slane %v564, 3
    %v1036 = vunpack.c.l.b16 %v87
    %v1037 = vunpack.c.h.b16 %v87
    %v1038 = vunpack.c.l.b16 %v88
    %v1039 = vunpack.c.h.b16 %v88
    %v1040 = vunpack.c.l.b16 %v89
    %v1041 = vunpack.c.h.b16 %v89
    %v1042 = vunpack.c.l.b16 %v90
    %v1043 = vunpack.c.h.b16 %v90
    %v1044 = vunpack.c.l.b16 %v91
    %v1045 = vunpack.c.h.b16 %v91
    %v1046 = vunpack.c.l.b16 %v92
    %v1047 = vunpack.c.h.b16 %v92
    %v1048 = vunpack.c.l.b16 %v93
    %v1049 = vunpack.c.h.b16 %v93
    %v1050 = vunpack.c.l.b16 %v94
    %v1051 = vunpack.c.h.b16 %v94
    %v1052 = vunpack.c.l.b16 %v95
    %v1053 = vunpack.c.h.b16 %v95
    %v1054 = vunpack.c.l.b16 %v96
    %v1055 = vunpack.c.h.b16 %v96
    %v1056 = vunpack.c.l.b16 %v97
    %v1057 = vunpack.c.h.b16 %v97
    %v1058 = vunpack.c.l.b16 %v98
    %v1059 = vunpack.c.h.b16 %v98
    %v1060 = vunpack.c.l.b16 %v99
    %v1061 = vunpack.c.h.b16 %v99
    %v1062 = vunpack.c.l.b16 %v100
    %v1063 = vunpack.c.h.b16 %v100
    %v1064 = vunpack.c.l.b16 %v101
    %v1065 = vunpack.c.h.b16 %v101
    %v1066 = vunpack.c.l.b16 %v102
    %v1067 = vunpack.c.h.b16 %v102
    %v1068 = vunpack.c.l.b16 %v103
    %v1069 = vunpack.c.h.b16 %v103
    %v1070 = vunpack.c.l.b16 %v104
    %v1071 = vunpack.c.h.b16 %v104
    %v1072 = vunpack.c.l.b16 %v105
    %v1073 = vunpack.c.h.b16 %v105
    %v1074 = vunpack.c.l.b16 %v106
    %v1075 = vunpack.c.h.b16 %v106
    %v1076 = vunpack.c.l.b16 %v107
    %v1077 = vunpack.c.h.b16 %v107
    %v1078 = vunpack.c.l.b16 %v108
    %v1079 = vunpack.c.h.b16 %v108
    %v1080 = vunpack.c.l.b16 %v109
    %v1081 = vunpack.c.h.b16 %v109
    %v1082 = vunpack.c.l.b16 %v110
    %v1083 = vunpack.c.h.b16 %v110
    %v1084 = vunpack.c.l.b16 %v111
    %v1085 = vunpack.c.h.b16 %v111
    %v1086 = vunpack.c.l.b16 %v112
    %v1087 = vunpack.c.h.b16 %v112
    %v1088 = vunpack.c.l.b16 %v113
    %v1089 = vunpack.c.h.b16 %v113
    %v1090 = vunpack.c.l.b16 %v114
    %v1091 = vunpack.c.h.b16 %v114
    %v1092 = vunpack.c.l.b16 %v115
    %v1093 = vunpack.c.h.b16 %v115
    %v1094 = vunpack.c.l.b16 %v116
    %v1095 = vunpack.c.h.b16 %v116
    %v1096 = vunpack.c.l.b16 %v117
    %v1097 = vunpack.c.h.b16 %v117
    %v1098 = vunpack.c.l.b16 %v118
    %v1099 = vunpack.c.h.b16 %v118
    %v1100 = vunpack.c.l.b16 %v119
    %v1101 = vunpack.c.h.b16 %v119
    %v1102 = vunpack.c.l.b16 %v120
    %v1103 = vunpack.c.h.b16 %v120
    %v1104 = vunpack.c.l.b16 %v121
    %v1105 = vunpack.c.h.b16 %v121
    %v1106 = vunpack.c.l.b16 %v122
    %v1107 = vunpack.c.h.b16 %v122
    %v1108 = vunpack.c.l.b16 %v123
    %v1109 = vunpack.c.h.b16 %v123
    %v1110 = vunpack.c.l.b16 %v124
    %v1111 = vunpack.c.h.b16 %v124
    %v1112 = vunpack.c.l.b16 %v125
    %v1113 = vunpack.c.h.b16 %v125
    %v1114 = vunpack.c.l.b16 %v126
    %v1115 = vunpack.c.h.b16 %v126
    %v1116 = vunpack.c.l.b16 %v127
    %v1117 = vunpack.c.h.b16 %v127
    %v1118 = vunpack.c.l.b16 %v128
    %v1119 = vunpack.c.h.b16 %v128
    %v1120 = vunpack.c.l.b16 %v129
    %v1121 = vunpack.c.h.b16 %v129
    %v1122 = vunpack.c.l.b16 %v130
    %v1123 = vunpack.c.h.b16 %v130
    %v1124 = vunpack.c.l.b16 %v131
    %v1125 = vunpack.c.h.b16 %v131
    %v1126 = vunpack.c.l.b16 %v132
    %v1127 = vunpack.c.h.b16 %v132
    %v1128 = vunpack.c.l.b16 %v133
    %v1129 = vunpack.c.h.b16 %v133
    %v1130 = vunpack.c.l.b16 %v134
    %v1131 = vunpack.c.h.b16 %v134
    %v1132 = vunpack.c.l.b16 %v135
    %v1133 = vunpack.c.h.b16 %v135
    %v1134 = vunpack.c.l.b16 %v136
    %v1135 = vunpack.c.h.b16 %v136
    %v1136 = vunpack.c.l.b16 %v137
    %v1137 = vunpack.c.h.b16 %v137
    %v1138 = vunpack.c.l.b16 %v138
    %v1139 = vunpack.c.h.b16 %v138
    %v1140 = vunpack.c.l.b16 %v139
    %v1141 = vunpack.c.h.b16 %v139
    %v1142 = vunpack.c.l.b16 %v140
    %v1143 = vunpack.c.h.b16 %v140
    %v1144 = vunpack.c.l.b16 %v141
    %v1145 = vunpack.c.h.b16 %v141
    %v1146 = vunpack.c.l.b16 %v142
    %v1147 = vunpack.c.h.b16 %v142
    %v1148 = vunpack.c.l.b16 %v143
    %v1149 = vunpack.c.h.b16 %v143
    %v1150 = vunpack.c.l.b16 %v144
    %v1151 = vunpack.c.h.b16 %v144
    %v1152 = vunpack.c.l.b16 %v145
    %v1153 = vunpack.c.h.b16 %v145
    %v1154 = vunpack.c.l.b16 %v146
    %v1155 = vunpack.c.h.b16 %v146
    %v1156 = vunpack.c.l.b16 %v147
    %v1157 = vunpack.c.h.b16 %v147
    %v1158 = vunpack.c.l.b16 %v148
    %v1159 = vunpack.c.h.b16 %v148
    %v1160 = vunpack.c.l.b16 %v149
    %v1161 = vunpack.c.h.b16 %v149
    %v1162 = vunpack.c.l.b16 %v150
    %v1163 = vunpack.c.h.b16 %v150
    %v1164 = vunpack.c.l.b16 %v151
    %v1165 = vunpack.c.h.b16 %v151
    %v1166 = vunpack.c.l.b16 %v152
    %v1167 = vunpack.c.h.b16 %v152
    %v1168 = vunpack.c.l.b16 %v153
    %v1169 = vunpack.c.h.b16 %v153
    %v1170 = vunpack.c.l.b16 %v154
    %v1171 = vunpack.c.h.b16 %v154
    %v1172 = vunpack.c.l.b16 %v155
    %v1173 = vunpack.c.h.b16 %v155
    %v1174 = vunpack.c.l.b16 %v156
    %v1175 = vunpack.c.h.b16 %v156
    %v1176 = vunpack.c.l.b16 %v157
    %v1177 = vunpack.c.h.b16 %v157
    %v1178 = vunpack.c.l.b16 %v158
    %v1179 = vunpack.c.h.b16 %v158
    %v1180 = vunpack.c.l.b16 %v159
    %v1181 = vunpack.c.h.b16 %v159
    %v1182 = vunpack.c.l.b16 %v160
    %v1183 = vunpack.c.h.b16 %v160
    %v1184 = vunpack.c.l.b16 %v161
    %v1185 = vunpack.c.h.b16 %v161
    %v1186 = vunpack.c.l.b16 %v162
    %v1187 = vunpack.c.h.b16 %v162
    %v1188 = vunpack.c.l.b16 %v163
    %v1189 = vunpack.c.h.b16 %v163
    %v1190 = vunpack.c.l.b16 %v164
    %v1191 = vunpack.c.h.b16 %v164
    %v1192 = vunpack.c.l.b16 %v165
    %v1193 = vunpack.c.h.b16 %v165
    %v1194 = vunpack.c.l.b16 %v166
    %v1195 = vunpack.c.h.b16 %v166
    %v1196 = vunpack.c.l.b16 %v167
    %v1197 = vunpack.c.h.b16 %v167
    %v1198 = vunpack.c.l.b16 %v168
    %v1199 = vunpack.c.h.b16 %v168
    %v1200 = vunpack.c.l.b16 %v169
    %v1201 = vunpack.c.h.b16 %v169
    %v1202 = vunpack.c.l.b16 %v170
    %v1203 = vunpack.c.h.b16 %v170
    %v1204 = vunpack.c.l.b16 %v171
    %v1205 = vunpack.c.h.b16 %v171
    %v1206 = vunpack.c.l.b16 %v172
    %v1207 = vunpack.c.h.b16 %v172
    %v1208 = vunpack.c.l.b16 %v173
    %v1209 = vunpack.c.h.b16 %v173
    %v1210 = vunpack.c.l.b16 %v174
    %v1211 = vunpack.c.h.b16 %v174
    %v1212 = vunpack.c.l.b16 %v175
    %v1213 = vunpack.c.h.b16 %v175
    %v1214 = vunpack.c.l.b16 %v176
    %v1215 = vunpack.c.h.b16 %v176
    %v1216 = vunpack.c.l.b16 %v177
    %v1217 = vunpack.c.h.b16 %v177
    %v1218 = vunpack.c.l.b16 %v178
    %v1219 = vunpack.c.h.b16 %v178
    %v1220 = vunpack.c.l.b16 %v179
    %v1221 = vunpack.c.h.b16 %v179
    %v1222 = vunpack.c.l.b16 %v180
    %v1223 = vunpack.c.h.b16 %v180
    %v1224 = vunpack.c.l.b16 %v181
    %v1225 = vunpack.c.h.b16 %v181
    %v1226 = vunpack.c.l.b16 %v182
    %v1227 = vunpack.c.h.b16 %v182
    %v1228 = vunpack.c.l.b16 %v183
    %v1229 = vunpack.c.h.b16 %v183
    %v1230 = vunpack.c.l.b16 %v184
    %v1231 = vunpack.c.h.b16 %v184
    %v1232 = vunpack.c.l.b16 %v185
    %v1233 = vunpack.c.h.b16 %v185
    %v1234 = vunpack.c.l.b16 %v186
    %v1235 = vunpack.c.h.b16 %v186
    %v1236 = vunpack.c.l.b16 %v187
    %v1237 = vunpack.c.h.b16 %v187
    %v1238 = vunpack.c.l.b16 %v188
    %v1239 = vunpack.c.h.b16 %v188
    %v1240 = vunpack.c.l.b16 %v189
    %v1241 = vunpack.c.h.b16 %v189
    %v1242 = vunpack.c.l.b16 %v190
    %v1243 = vunpack.c.h.b16 %v190
    %v1244 = vunpack.c.l.b16 %v191
    %v1245 = vunpack.c.h.b16 %v191
    %v1246 = vunpack.c.l.b16 %v192
    %v1247 = vunpack.c.h.b16 %v192
    %v1248 = vunpack.c.l.b16 %v193
    %v1249 = vunpack.c.h.b16 %v193
    %v1250 = vunpack.c.l.b16 %v194
    %v1251 = vunpack.c.h.b16 %v194
    %v1252 = vunpack.c.l.b16 %v195
    %v1253 = vunpack.c.h.b16 %v195
    %v1254 = vunpack.c.l.b16 %v196
    %v1255 = vunpack.c.h.b16 %v196
    %v1256 = vunpack.c.l.b16 %v197
    %v1257 = vunpack.c.h.b16 %v197
    %v1258 = vunpack.c.l.b16 %v198
    %v1259 = vunpack.c.h.b16 %v198
    %v1260 = vunpack.c.l.b16 %v199
    %v1261 = vunpack.c.h.b16 %v199
    %v1262 = vunpack.c.l.b16 %v200
    %v1263 = vunpack.c.h.b16 %v200
    %v1264 = vunpack.c.l.b16 %v201
    %v1265 = vunpack.c.h.b16 %v201
    %v1266 = vunpack.c.l.b16 %v202
    %v1267 = vunpack.c.h.b16 %v202
    %v1268 = vunpack.c.l.b16 %v203
    %v1269 = vunpack.c.h.b16 %v203
    %v1270 = vunpack.c.l.b16 %v204
    %v1271 = vunpack.c.h.b16 %v204
    %v1272 = vunpack.c.l.b16 %v205
    %v1273 = vunpack.c.h.b16 %v205
    %v1274 = vunpack.c.l.b16 %v206
    %v1275 = vunpack.c.h.b16 %v206
    %v1276 = vunpack.c.l.b16 %v207
    %v1277 = vunpack.c.h.b16 %v207
    %v1278 = vunpack.c.l.b16 %v208
    %v1279 = vunpack.c.h.b16 %v208
    %v1280 = vunpack.c.l.b16 %v209
    %v1281 = vunpack.c.h.b16 %v209
    %v1282 = vunpack.c.l.b16 %v210
    %v1283 = vunpack.c.h.b16 %v210
    %v1284 = vunpack.c.l.b16 %v211
    %v1285 = vunpack.c.h.b16 %v211
    %v1286 = vunpack.c.l.b16 %v212
    %v1287 = vunpack.c.h.b16 %v212
    %v1288 = vunpack.c.l.b16 %v213
    %v1289 = vunpack.c.h.b16 %v213
    %v1290 = vunpack.c.l.b16 %v214
    %v1291 = vunpack.c.h.b16 %v214
    %v1292 = vunpack.c.l.b16 %v215
    %v1293 = vunpack.c.h.b16 %v215
    %v1294 = vunpack.c.l.b16 %v216
    %v1295 = vunpack.c.h.b16 %v216
    %v1296 = vunpack.c.l.b16 %v217
    %v1297 = vunpack.c.h.b16 %v217
    %v1298 = vunpack.c.l.b16 %v218
    %v1299 = vunpack.c.h.b16 %v218
    %v1300 = vunpack.c.l.b16 %v219
    %v1301 = vunpack.c.h.b16 %v219
    %v1302 = vunpack.c.l.b16 %v220
    %v1303 = vunpack.c.h.b16 %v220
    %v1304 = vunpack.c.l.b16 %v221
    %v1305 = vunpack.c.h.b16 %v221
    %v1306 = vunpack.c.l.b16 %v222
    %v1307 = vunpack.c.h.b16 %v222
    %v1308 = vunpack.c.l.b16 %v223
    %v1309 = vunpack.c.h.b16 %v223
    %v1310 = vunpack.c.l.b16 %v224
    %v1311 = vunpack.c.h.b16 %v224
    %v1312 = vunpack.c.l.b16 %v225
    %v1313 = vunpack.c.h.b16 %v225
    %v1314 = vunpack.c.l.b16 %v226
    %v1315 = vunpack.c.h.b16 %v226
    %v1316 = vunpack.c.l.b16 %v227
    %v1317 = vunpack.c.h.b16 %v227
    %v1318 = vunpack.c.l.b16 %v228
    %v1319 = vunpack.c.h.b16 %v228
    %v1320 = vunpack.c.l.b16 %v229
    %v1321 = vunpack.c.h.b16 %v229
    %v1322 = vunpack.c.l.b16 %v230
    %v1323 = vunpack.c.h.b16 %v230
    %v1324 = vunpack.c.l.b16 %v231
    %v1325 = vunpack.c.h.b16 %v231
    %v1326 = vunpack.c.l.b16 %v232
    %v1327 = vunpack.c.h.b16 %v232
    %v1328 = vunpack.c.l.b16 %v233
    %v1329 = vunpack.c.h.b16 %v233
    %v1330 = vunpack.c.l.b16 %v234
    %v1331 = vunpack.c.h.b16 %v234
    %v1332 = vunpack.c.l.b16 %v235
    %v1333 = vunpack.c.h.b16 %v235
    %v1334 = vunpack.c.l.b16 %v236
    %v1335 = vunpack.c.h.b16 %v236
    %v1336 = vunpack.c.l.b16 %v237
    %v1337 = vunpack.c.h.b16 %v237
    %v1338 = vunpack.c.l.b16 %v238
    %v1339 = vunpack.c.h.b16 %v238
    %v1340 = vunpack.c.l.b16 %v239
    %v1341 = vunpack.c.h.b16 %v239
    %v1342 = vunpack.c.l.b16 %v240
    %v1343 = vunpack.c.h.b16 %v240
    %v1344 = vunpack.c.l.b16 %v241
    %v1345 = vunpack.c.h.b16 %v241
    %v1346 = vunpack.c.l.b16 %v242
    %v1347 = vunpack.c.h.b16 %v242
    %v1348 = vunpack.c.l.b16 %v243
    %v1349 = vunpack.c.h.b16 %v243
    %v1350 = vunpack.c.l.b16 %v244
    %v1351 = vunpack.c.h.b16 %v244
    %v1352 = vunpack.c.l.b16 %v245
    %v1353 = vunpack.c.h.b16 %v245
    %v1354 = vunpack.c.l.b16 %v246
    %v1355 = vunpack.c.h.b16 %v246
    %v1356 = vunpack.c.l.b16 %v247
    %v1357 = vunpack.c.h.b16 %v247
    %v1358 = vunpack.c.l.b16 %v248
    %v1359 = vunpack.c.h.b16 %v248
    %v1360 = vunpack.c.l.b16 %v249
    %v1361 = vunpack.c.h.b16 %v249
    %v1362 = vunpack.c.l.b16 %v250
    %v1363 = vunpack.c.h.b16 %v250
    %v1364 = vunpack.c.l.b16 %v251
    %v1365 = vunpack.c.h.b16 %v251
    %v1366 = vunpack.c.l.b16 %v252
    %v1367 = vunpack.c.h.b16 %v252
    %v1368 = vunpack.c.l.b16 %v253
    %v1369 = vunpack.c.h.b16 %v253
    %v1370 = vunpack.c.l.b16 %v254
    %v1371 = vunpack.c.h.b16 %v254
    %v1372 = vunpack.c.l.b16 %v255
    %v1373 = vunpack.c.h.b16 %v255
    %v1374 = vunpack.c.l.b16 %v256
    %v1375 = vunpack.c.h.b16 %v256
    %v1376 = vunpack.c.l.b16 %v257
    %v1377 = vunpack.c.h.b16 %v257
    %v1378 = vunpack.c.l.b16 %v258
    %v1379 = vunpack.c.h.b16 %v258
    %v1380 = vunpack.c.l.b16 %v259
    %v1381 = vunpack.c.h.b16 %v259
    %v1382 = vunpack.c.l.b16 %v260
    %v1383 = vunpack.c.h.b16 %v260
    %v1384 = vunpack.c.l.b16 %v261
    %v1385 = vunpack.c.h.b16 %v261
    %v1386 = vunpack.c.l.b16 %v262
    %v1387 = vunpack.c.h.b16 %v262
    %v1388 = vunpack.c.l.b16 %v263
    %v1389 = vunpack.c.h.b16 %v263
    %v1390 = vunpack.c.l.b16 %v264
    %v1391 = vunpack.c.h.b16 %v264
    %v1392 = vunpack.c.l.b16 %v265
    %v1393 = vunpack.c.h.b16 %v265
    %v1394 = vunpack.c.l.b16 %v266
    %v1395 = vunpack.c.h.b16 %v266
    %v1396 = vunpack.c.l.b16 %v267
    %v1397 = vunpack.c.h.b16 %v267
    %v1398 = vunpack.c.l.b16 %v268
    %v1399 = vunpack.c.h.b16 %v268
    %v1400 = vunpack.c.l.b16 %v269
    %v1401 = vunpack.c.h.b16 %v269
    %v1402 = vunpack.c.l.b16 %v270
    %v1403 = vunpack.c.h.b16 %v270
    %v1404 = vunpack.c.l.b16 %v271
    %v1405 = vunpack.c.h.b16 %v271
    %v1406 = vunpack.c.l.b16 %v272
    %v1407 = vunpack.c.h.b16 %v272
    %v1408 = vunpack.c.l.b16 %v273
    %v1409 = vunpack.c.h.b16 %v273
    %v1410 = vunpack.c.l.b16 %v274
    %v1411 = vunpack.c.h.b16 %v274
    %v1412 = vunpack.c.l.b16 %v275
    %v1413 = vunpack.c.h.b16 %v275
    %v1414 = vunpack.c.l.b16 %v276
    %v1415 = vunpack.c.h.b16 %v276
    %v1416 = vunpack.c.l.b16 %v277
    %v1417 = vunpack.c.h.b16 %v277
    %v1418 = vunpack.c.l.b16 %v278
    %v1419 = vunpack.c.h.b16 %v278
    %v1420 = vunpack.c.l.b16 %v279
    %v1421 = vunpack.c.h.b16 %v279
    %v1422 = vunpack.c.l.b16 %v280
    %v1423 = vunpack.c.h.b16 %v280
    %v1424 = vunpack.c.l.b16 %v281
    %v1425 = vunpack.c.h.b16 %v281
    %v1426 = vunpack.c.l.b16 %v282
    %v1427 = vunpack.c.h.b16 %v282
    %v1428 = vunpack.c.l.b16 %v283
    %v1429 = vunpack.c.h.b16 %v283
    %v1430 = vunpack.c.l.b16 %v284
    %v1431 = vunpack.c.h.b16 %v284
    %v1432 = vunpack.c.l.b16 %v285
    %v1433 = vunpack.c.h.b16 %v285
    %v1434 = vunpack.c.l.b16 %v286
    %v1435 = vunpack.c.h.b16 %v286
    %v1436 = vunpack.c.l.b16 %v287
    %v1437 = vunpack.c.h.b16 %v287
    %v1438 = vunpack.c.l.b16 %v288
    %v1439 = vunpack.c.h.b16 %v288
    %v1440 = vunpack.c.l.b16 %v289
    %v1441 = vunpack.c.h.b16 %v289
    %v1442 = vunpack.c.l.b16 %v290
    %v1443 = vunpack.c.h.b16 %v290
    %v1444 = vunpack.c.l.b16 %v291
    %v1445 = vunpack.c.h.b16 %v291
    %v1446 = vunpack.c.l.b16 %v292
    %v1447 = vunpack.c.h.b16 %v292
    %v1448 = vunpack.c.l.b16 %v293
    %v1449 = vunpack.c.h.b16 %v293
    %v1450 = vunpack.c.l.b16 %v294
    %v1451 = vunpack.c.h.b16 %v294
    %v1452 = vunpack.c.l.b16 %v295
    %v1453 = vunpack.c.h.b16 %v295
    %v1454 = vunpack.c.l.b16 %v296
    %v1455 = vunpack.c.h.b16 %v296
    %v1456 = vunpack.c.l.b16 %v297
    %v1457 = vunpack.c.h.b16 %v297
    %v1458 = vunpack.c.l.b16 %v298
    %v1459 = vunpack.c.h.b16 %v298
    %v1460 = vunpack.c.l.b16 %v299
    %v1461 = vunpack.c.h.b16 %v299
    %v1462 = vunpack.c.l.b16 %v300
    %v1463 = vunpack.c.h.b16 %v300
    %v1464 = vunpack.c.l.b16 %v301
    %v1465 = vunpack.c.h.b16 %v301
    %v1466 = vunpack.c.l.b16 %v302
    %v1467 = vunpack.c.h.b16 %v302
    %v1468 = vunpack.c.l.b16 %v303
    %v1469 = vunpack.c.h.b16 %v303
    %v1470 = vunpack.c.l.b16 %v304
    %v1471 = vunpack.c.h.b16 %v304
    %v1472 = vunpack.c.l.b16 %v305
    %v1473 = vunpack.c.h.b16 %v305
    %v1474 = vunpack.c.l.b16 %v306
    %v1475 = vunpack.c.h.b16 %v306
    %v1476 = vunpack.c.l.b16 %v307
    %v1477 = vunpack.c.h.b16 %v307
    %v1478 = vunpack.c.l.b16 %v308
    %v1479 = vunpack.c.h.b16 %v308
    %v1480 = vunpack.c.l.b16 %v309
    %v1481 = vunpack.c.h.b16 %v309
    %v1482 = vunpack.c.l.b16 %v310
    %v1483 = vunpack.c.h.b16 %v310
    %v1484 = vunpack.c.l.b16 %v311
    %v1485 = vunpack.c.h.b16 %v311
    %v1486 = vunpack.c.l.b16 %v312
    %v1487 = vunpack.c.h.b16 %v312
    %v1488 = vunpack.c.l.b16 %v313
    %v1489 = vunpack.c.h.b16 %v313
    %v1490 = vunpack.c.l.b16 %v314
    %v1491 = vunpack.c.h.b16 %v314
    %v1492 = vunpack.c.l.b16 %v315
    %v1493 = vunpack.c.h.b16 %v315
    %v1494 = vunpack.c.l.b16 %v316
    %v1495 = vunpack.c.h.b16 %v316
    %v1496 = vunpack.c.l.b16 %v317
    %v1497 = vunpack.c.h.b16 %v317
    %v1498 = vunpack.c.l.b16 %v318
    %v1499 = vunpack.c.h.b16 %v318
    %v1500 = vunpack.c.l.b16 %v319
    %v1501 = vunpack.c.h.b16 %v319
    %v1502 = vunpack.c.l.b16 %v320
    %v1503 = vunpack.c.h.b16 %v320
    %v1504 = vunpack.c.l.b16 %v321
    %v1505 = vunpack.c.h.b16 %v321
    %v1506 = vunpack.c.l.b16 %v322
    %v1507 = vunpack.c.h.b16 %v322
    %v1508 = vunpack.c.l.b16 %v323
    %v1509 = vunpack.c.h.b16 %v323
    %v1510 = vunpack.c.l.b16 %v324
    %v1511 = vunpack.c.h.b16 %v324
    %v1512 = vunpack.c.l.b16 %v325
    %v1513 = vunpack.c.h.b16 %v325
    %v1514 = vunpack.c.l.b16 %v326
    %v1515 = vunpack.c.h.b16 %v326
    %v1516 = vunpack.c.l.b16 %v327
    %v1517 = vunpack.c.h.b16 %v327
    %v1518 = vunpack.c.l.b16 %v328
    %v1519 = vunpack.c.h.b16 %v328
    %v1520 = vunpack.c.l.b16 %v329
    %v1521 = vunpack.c.h.b16 %v329
    %v1522 = vunpack.c.l.b16 %v330
    %v1523 = vunpack.c.h.b16 %v330
    %v1524 = vunpack.c.l.b16 %v331
    %v1525 = vunpack.c.h.b16 %v331
    %v1526 = vunpack.c.l.b16 %v332
    %v1527 = vunpack.c.h.b16 %v332
    %v1528 = vunpack.c.l.b16 %v333
    %v1529 = vunpack.c.h.b16 %v333
    %v1530 = vunpack.c.l.b16 %v334
    %v1531 = vunpack.c.h.b16 %v334
    %v1532 = vunpack.c.l.b16 %v335
    %v1533 = vunpack.c.h.b16 %v335
    %v1534 = vunpack.c.l.b16 %v336
    %v1535 = vunpack.c.h.b16 %v336
    %v1536 = vunpack.c.l.b16 %v337
    %v1537 = vunpack.c.h.b16 %v337
    %v1538 = vunpack.c.l.b16 %v338
    %v1539 = vunpack.c.h.b16 %v338
    %v1540 = vunpack.c.l.b16 %v339
    %v1541 = vunpack.c.h.b16 %v339
    %v1542 = vunpack.c.l.b16 %v340
    %v1543 = vunpack.c.h.b16 %v340
    %v1544 = vunpack.c.l.b16 %v341
    %v1545 = vunpack.c.h.b16 %v341
    %v1546 = vunpack.c.l.b16 %v342
    %v1547 = vunpack.c.h.b16 %v342
    %v1548 = vunpack.c.l.b16 %v343
    %v1549 = vunpack.c.h.b16 %v343
    %v1550 = vunpack.c.l.b16 %v344
    %v1551 = vunpack.c.h.b16 %v344
    %v1552 = vunpack.c.l.b16 %v345
    %v1553 = vunpack.c.h.b16 %v345
    %v1554 = vunpack.c.l.b16 %v346
    %v1555 = vunpack.c.h.b16 %v346
    %v1556 = vunpack.c.l.b16 %v347
    %v1557 = vunpack.c.h.b16 %v347
    %v1558 = vunpack.c.l.b16 %v348
    %v1559 = vunpack.c.h.b16 %v348
    %v1560 = vunpack.c.l.b16 %v349
    %v1561 = vunpack.c.h.b16 %v349
    %v1562 = vunpack.c.l.b16 %v350
    %v1563 = vunpack.c.h.b16 %v350
    %v1564 = vunpack.c.l.b16 %v351
    %v1565 = vunpack.c.h.b16 %v351
    %v1566 = vunpack.c.l.b16 %v352
    %v1567 = vunpack.c.h.b16 %v352
    %v1568 = vunpack.c.l.b16 %v353
    %v1569 = vunpack.c.h.b16 %v353
    %v1570 = vunpack.c.l.b16 %v354
    %v1571 = vunpack.c.h.b16 %v354
    %v1572 = vunpack.c.l.b16 %v355
    %v1573 = vunpack.c.h.b16 %v355
    %v1574 = vunpack.c.l.b16 %v356
    %v1575 = vunpack.c.h.b16 %v356
    %v1576 = vunpack.c.l.b16 %v357
    %v1577 = vunpack.c.h.b16 %v357
    %v1578 = vunpack.c.l.b16 %v358
    %v1579 = vunpack.c.h.b16 %v358
    %v1580 = vunpack.c.l.b16 %v359
    %v1581 = vunpack.c.h.b16 %v359
    %v1582 = vunpack.c.l.b16 %v360
    %v1583 = vunpack.c.h.b16 %v360
    %v1584 = vunpack.c.l.b16 %v361
    %v1585 = vunpack.c.h.b16 %v361
    %v1586 = vunpack.c.l.b16 %v362
    %v1587 = vunpack.c.h.b16 %v362
    %v1588 = vunpack.c.l.b16 %v363
    %v1589 = vunpack.c.h.b16 %v363
    %v1590 = vunpack.c.l.b16 %v364
    %v1591 = vunpack.c.h.b16 %v364
    %v1592 = vunpack.c.l.b16 %v365
    %v1593 = vunpack.c.h.b16 %v365
    %v1594 = vunpack.c.l.b16 %v366
    %v1595 = vunpack.c.h.b16 %v366
    %v1596 = vunpack.c.l.b16 %v367
    %v1597 = vunpack.c.h.b16 %v367
    %v1598 = vunpack.c.l.b16 %v368
    %v1599 = vunpack.c.h.b16 %v368
    %v1600 = vunpack.c.l.b16 %v369
    %v1601 = vunpack.c.h.b16 %v369
    %v1602 = vunpack.c.l.b16 %v370
    %v1603 = vunpack.c.h.b16 %v370
    %v1604 = vunpack.c.l.b16 %v371
    %v1605 = vunpack.c.h.b16 %v371
    %v1606 = vunpack.c.l.b16 %v372
    %v1607 = vunpack.c.h.b16 %v372
    %v1608 = vunpack.c.l.b16 %v373
    %v1609 = vunpack.c.h.b16 %v373
    %v1610 = vunpack.c.l.b16 %v374
    %v1611 = vunpack.c.h.b16 %v374
    %v1612 = vunpack.c.l.b16 %v375
    %v1613 = vunpack.c.h.b16 %v375
    %v1614 = vunpack.c.l.b16 %v376
    %v1615 = vunpack.c.h.b16 %v376
    %v1616 = vunpack.c.l.b16 %v377
    %v1617 = vunpack.c.h.b16 %v377
    %v1618 = vunpack.c.l.b16 %v378
    %v1619 = vunpack.c.h.b16 %v378
    %v1620 = vunpack.c.l.b16 %v379
    %v1621 = vunpack.c.h.b16 %v379
    %v1622 = vunpack.c.l.b16 %v380
    %v1623 = vunpack.c.h.b16 %v380
    %v1624 = vunpack.c.l.b16 %v381
    %v1625 = vunpack.c.h.b16 %v381
    %v1626 = vunpack.c.l.b16 %v382
    %v1627 = vunpack.c.h.b16 %v382
    %v1628 = vunpack.c.l.b16 %v383
    %v1629 = vunpack.c.h.b16 %v383
    %v1630 = vunpack.c.l.b16 %v384
    %v1631 = vunpack.c.h.b16 %v384
    %v1632 = vunpack.c.l.b16 %v385
    %v1633 = vunpack.c.h.b16 %v385
    %v1634 = vunpack.c.l.b16 %v386
    %v1635 = vunpack.c.h.b16 %v386
    %v1636 = vunpack.c.l.b16 %v387
    %v1637 = vunpack.c.h.b16 %v387
    %v1638 = vunpack.c.l.b16 %v388
    %v1639 = vunpack.c.h.b16 %v388
    %v1640 = vunpack.c.l.b16 %v389
    %v1641 = vunpack.c.h.b16 %v389
    %v1642 = vunpack.c.l.b16 %v390
    %v1643 = vunpack.c.h.b16 %v390
    %v1644 = vunpack.c.l.b16 %v391
    %v1645 = vunpack.c.h.b16 %v391
    %v1646 = vunpack.c.l.b16 %v392
    %v1647 = vunpack.c.h.b16 %v392
    %v1648 = vunpack.c.l.b16 %v393
    %v1649 = vunpack.c.h.b16 %v393
    %v1650 = vunpack.c.l.b16 %v394
    %v1651 = vunpack.c.h.b16 %v394
    %v1652 = vunpack.c.l.b16 %v395
    %v1653 = vunpack.c.h.b16 %v395
    %v1654 = vunpack.c.l.b16 %v396
    %v1655 = vunpack.c.h.b16 %v396
    %v1656 = vunpack.c.l.b16 %v397
    %v1657 = vunpack.c.h.b16 %v397
    %v1658 = vunpack.c.l.b16 %v398
    %v1659 = vunpack.c.h.b16 %v398
    %v1660 = vunpack.c.l.b16 %v399
    %v1661 = vunpack.c.h.b16 %v399
    %v1662 = vunpack.c.l.b16 %v400
    %v1663 = vunpack.c.h.b16 %v400
    %v1664 = vunpack.c.l.b16 %v401
    %v1665 = vunpack.c.h.b16 %v401
    %v1666 = vunpack.c.l.b16 %v402
    %v1667 = vunpack.c.h.b16 %v402
    %v1668 = vunpack.c.l.b16 %v403
    %v1669 = vunpack.c.h.b16 %v403
    %v1670 = vunpack.c.l.b16 %v404
    %v1671 = vunpack.c.h.b16 %v404
    %v1672 = vunpack.c.l.b16 %v405
    %v1673 = vunpack.c.h.b16 %v405
    %v1674 = vunpack.c.l.b16 %v406
    %v1675 = vunpack.c.h.b16 %v406
    %v1676 = vunpack.c.l.b16 %v407
    %v1677 = vunpack.c.h.b16 %v407
    %v1678 = vunpack.c.l.b16 %v408
    %v1679 = vunpack.c.h.b16 %v408
    %v1680 = vunpack.c.l.b16 %v409
    %v1681 = vunpack.c.h.b16 %v409
    %v1682 = vunpack.c.l.b16 %v410
    %v1683 = vunpack.c.h.b16 %v410
    %v1684 = vunpack.c.l.b16 %v411
    %v1685 = vunpack.c.h.b16 %v411
    %v1686 = vunpack.c.l.b16 %v412
    %v1687 = vunpack.c.h.b16 %v412
    %v1688 = vunpack.c.l.b16 %v413
    %v1689 = vunpack.c.h.b16 %v413
    %v1690 = vunpack.c.l.b16 %v414
    %v1691 = vunpack.c.h.b16 %v414
    %v1692 = vunpack.c.l.b16 %v415
    %v1693 = vunpack.c.h.b16 %v415
    %v1694 = vunpack.c.l.b16 %v416
    %v1695 = vunpack.c.h.b16 %v416
    %v1696 = vunpack.c.l.b16 %v417
    %v1697 = vunpack.c.h.b16 %v417
    %v1698 = vunpack.c.l.b16 %v418
    %v1699 = vunpack.c.h.b16 %v418
    %v1700 = vunpack.c.l.b16 %v419
    %v1701 = vunpack.c.h.b16 %v419
    %v1702 = vunpack.c.l.b16 %v420
    %v1703 = vunpack.c.h.b16 %v420
    %v1704 = vunpack.c.l.b16 %v421
    %v1705 = vunpack.c.h.b16 %v421
    %v1706 = vunpack.c.l.b16 %v422
    %v1707 = vunpack.c.h.b16 %v422
    %v1708 = vunpack.c.l.b16 %v423
    %v1709 = vunpack.c.h.b16 %v423
    %v1710 = vunpack.c.l.b16 %v424
    %v1711 = vunpack.c.h.b16 %v424
    %v1712 = vunpack.c.l.b16 %v425
    %v1713 = vunpack.c.h.b16 %v425
    %v1714 = vunpack.c.l.b16 %v426
    %v1715 = vunpack.c.h.b16 %v426
    %v1716 = vunpack.c.l.b16 %v427
    %v1717 = vunpack.c.h.b16 %v427
    %v1718 = vunpack.c.l.b16 %v428
    %v1719 = vunpack.c.h.b16 %v428
    %v1720 = vunpack.c.l.b16 %v429
    %v1721 = vunpack.c.h.b16 %v429
    %v1722 = vunpack.c.l.b16 %v430
    %v1723 = vunpack.c.h.b16 %v430
    %v1724 = vunpack.c.l.b16 %v431
    %v1725 = vunpack.c.h.b16 %v431
    %v1726 = vunpack.c.l.b16 %v432
    %v1727 = vunpack.c.h.b16 %v432
    %v1728 = vunpack.c.l.b16 %v433
    %v1729 = vunpack.c.h.b16 %v433
    %v1730 = vunpack.c.l.b16 %v434
    %v1731 = vunpack.c.h.b16 %v434
    %v1732 = vunpack.c.l.b16 %v435
    %v1733 = vunpack.c.h.b16 %v435
    %v1734 = vunpack.c.l.b16 %v436
    %v1735 = vunpack.c.h.b16 %v436
    %v1736 = vunpack.c.l.b16 %v437
    %v1737 = vunpack.c.h.b16 %v437
    %v1738 = vunpack.c.l.b16 %v438
    %v1739 = vunpack.c.h.b16 %v438
    %v1740 = vunpack.c.l.b16 %v439
    %v1741 = vunpack.c.h.b16 %v439
    %v1742 = vunpack.c.l.b16 %v440
    %v1743 = vunpack.c.h.b16 %v440
    %v1744 = vunpack.c.l.b16 %v441
    %v1745 = vunpack.c.h.b16 %v441
    %v1746 = vunpack.c.l.b16 %v442
    %v1747 = vunpack.c.h.b16 %v442
    %v1748 = vunpack.c.l.b16 %v443
    %v1749 = vunpack.c.h.b16 %v443
    %v1750 = vunpack.c.l.b16 %v444
    %v1751 = vunpack.c.h.b16 %v444
    %v1752 = vunpack.c.l.b16 %v445
    %v1753 = vunpack.c.h.b16 %v445
    %v1754 = vunpack.c.l.b16 %v446
    %v1755 = vunpack.c.h.b16 %v446
    %v1756 = vunpack.c.l.b16 %v447
    %v1757 = vunpack.c.h.b16 %v447
    %v1758 = vunpack.c.l.b16 %v448
    %v1759 = vunpack.c.h.b16 %v448
    %v1760 = vunpack.c.l.b16 %v449
    %v1761 = vunpack.c.h.b16 %v449
    %v1762 = vunpack.c.l.b16 %v450
    %v1763 = vunpack.c.h.b16 %v450
    %v1764 = vunpack.c.l.b16 %v451
    %v1765 = vunpack.c.h.b16 %v451
    %v1766 = vunpack.c.l.b16 %v452
    %v1767 = vunpack.c.h.b16 %v452
    %v1768 = vunpack.c.l.b16 %v453
    %v1769 = vunpack.c.h.b16 %v453
    %v1770 = vunpack.c.l.b16 %v454
    %v1771 = vunpack.c.h.b16 %v454
    %v1772 = vunpack.c.l.b16 %v455
    %v1773 = vunpack.c.h.b16 %v455
    %v1774 = vunpack.c.l.b16 %v456
    %v1775 = vunpack.c.h.b16 %v456
    %v1776 = vunpack.c.l.b16 %v457
    %v1777 = vunpack.c.h.b16 %v457
    %v1778 = vunpack.c.l.b16 %v458
    %v1779 = vunpack.c.h.b16 %v458
    %v1780 = vunpack.c.l.b16 %v459
    %v1781 = vunpack.c.h.b16 %v459
    %v1782 = vunpack.c.l.b16 %v460
    %v1783 = vunpack.c.h.b16 %v460
    %v1784 = vunpack.c.l.b16 %v461
    %v1785 = vunpack.c.h.b16 %v461
    %v1786 = vunpack.c.l.b16 %v462
    %v1787 = vunpack.c.h.b16 %v462
    %v1788 = vunpack.c.l.b16 %v463
    %v1789 = vunpack.c.h.b16 %v463
    %v1790 = vunpack.c.l.b16 %v464
    %v1791 = vunpack.c.h.b16 %v464
    %v1792 = vunpack.c.l.b16 %v465
    %v1793 = vunpack.c.h.b16 %v465
    %v1794 = vunpack.c.l.b16 %v466
    %v1795 = vunpack.c.h.b16 %v466
    %v1796 = vunpack.c.l.b16 %v467
    %v1797 = vunpack.c.h.b16 %v467
    %v1798 = vunpack.c.l.b16 %v468
    %v1799 = vunpack.c.h.b16 %v468
    %v1800 = vunpack.c.l.b16 %v469
    %v1801 = vunpack.c.h.b16 %v469
    %v1802 = vunpack.c.l.b16 %v470
    %v1803 = vunpack.c.h.b16 %v470
    %v1804 = vunpack.c.l.b16 %v471
    %v1805 = vunpack.c.h.b16 %v471
    %v1806 = vunpack.c.l.b16 %v472
    %v1807 = vunpack.c.h.b16 %v472
    %v1808 = vunpack.c.l.b16 %v473
    %v1809 = vunpack.c.h.b16 %v473
    %v1810 = vunpack.c.l.b16 %v474
    %v1811 = vunpack.c.h.b16 %v474
    %v1812 = vunpack.c.l.b16 %v475
    %v1813 = vunpack.c.h.b16 %v475
    %v1814 = vunpack.c.l.b16 %v476
    %v1815 = vunpack.c.h.b16 %v476
    %v1816 = vunpack.c.l.b16 %v477
    %v1817 = vunpack.c.h.b16 %v477
    %v1818 = vunpack.c.l.b16 %v478
    %v1819 = vunpack.c.h.b16 %v478
    %v1820 = vunpack.c.l.b16 %v479
    %v1821 = vunpack.c.h.b16 %v479
    %v1822 = vunpack.c.l.b16 %v480
    %v1823 = vunpack.c.h.b16 %v480
    %v1824 = vunpack.c.l.b16 %v481
    %v1825 = vunpack.c.h.b16 %v481
    %v1826 = vunpack.c.l.b16 %v482
    %v1827 = vunpack.c.h.b16 %v482
    %v1828 = vunpack.c.l.b16 %v483
    %v1829 = vunpack.c.h.b16 %v483
    %v1830 = vunpack.c.l.b16 %v484
    %v1831 = vunpack.c.h.b16 %v484
    %v1832 = vunpack.c.l.b16 %v485
    %v1833 = vunpack.c.h.b16 %v485
    %v1834 = vunpack.c.l.b16 %v486
    %v1835 = vunpack.c.h.b16 %v486
    %v1836 = vunpack.c.l.b16 %v487
    %v1837 = vunpack.c.h.b16 %v487
    %v1838 = vunpack.c.l.b16 %v488
    %v1839 = vunpack.c.h.b16 %v488
    %v1840 = vunpack.c.l.b16 %v489
    %v1841 = vunpack.c.h.b16 %v489
    %v1842 = vunpack.c.l.b16 %v490
    %v1843 = vunpack.c.h.b16 %v490
    %v1844 = vunpack.c.l.b16 %v491
    %v1845 = vunpack.c.h.b16 %v491
    %v1846 = vunpack.c.l.b16 %v492
    %v1847 = vunpack.c.h.b16 %v492
    %v1848 = vunpack.c.l.b16 %v493
    %v1849 = vunpack.c.h.b16 %v493
    %v1850 = vunpack.c.l.b16 %v494
    %v1851 = vunpack.c.h.b16 %v494
    %v1852 = vunpack.c.l.b16 %v495
    %v1853 = vunpack.c.h.b16 %v495
    %v1854 = vunpack.c.l.b16 %v496
    %v1855 = vunpack.c.h.b16 %v496
    %v1856 = vunpack.c.l.b16 %v497
    %v1857 = vunpack.c.h.b16 %v497
    %v1858 = vunpack.c.l.b16 %v498
    %v1859 = vunpack.c.h.b16 %v498
    %v1860 = vunpack.c.l.b16 %v499
    %v1861 = vunpack.c.h.b16 %v499
    %v1862 = vunpack.c.l.b16 %v500
    %v1863 = vunpack.c.h.b16 %v500
    %v1864 = vunpack.c.l.b16 %v501
    %v1865 = vunpack.c.h.b16 %v501
    %v1866 = vunpack.c.l.b16 %v502
    %v1867 = vunpack.c.h.b16 %v502
    %v1868 = vunpack.c.l.b16 %v503
    %v1869 = vunpack.c.h.b16 %v503
    %v1870 = vunpack.c.l.b16 %v504
    %v1871 = vunpack.c.h.b16 %v504
    %v1872 = vunpack.c.l.b16 %v505
    %v1873 = vunpack.c.h.b16 %v505
    %v1874 = vunpack.c.l.b16 %v506
    %v1875 = vunpack.c.h.b16 %v506
    %v1876 = vunpack.c.l.b16 %v507
    %v1877 = vunpack.c.h.b16 %v507
    %v1878 = vunpack.c.l.b16 %v508
    %v1879 = vunpack.c.h.b16 %v508
    %v1880 = vunpack.c.l.b16 %v509
    %v1881 = vunpack.c.h.b16 %v509
    %v1882 = vunpack.c.l.b16 %v510
    %v1883 = vunpack.c.h.b16 %v510
    %v1884 = vunpack.c.l.b16 %v511
    %v1885 = vunpack.c.h.b16 %v511
    %v1886 = vunpack.c.l.b16 %v512
    %v1887 = vunpack.c.h.b16 %v512
    %v1888 = vunpack.c.l.b16 %v513
    %v1889 = vunpack.c.h.b16 %v513
    %v1890 = vunpack.c.l.b16 %v514
    %v1891 = vunpack.c.h.b16 %v514
    %v1892 = vunpack.c.l.b16 %v515
    %v1893 = vunpack.c.h.b16 %v515
    %v1894 = vunpack.c.l.b16 %v516
    %v1895 = vunpack.c.h.b16 %v516
    %v1896 = vunpack.c.l.b16 %v517
    %v1897 = vunpack.c.h.b16 %v517
    %v1898 = vunpack.c.l.b16 %v518
    %v1899 = vunpack.c.h.b16 %v518
    %v1900 = vunpack.c.l.b16 %v519
    %v1901 = vunpack.c.h.b16 %v519
    %v1902 = vunpack.c.l.b16 %v520
    %v1903 = vunpack.c.h.b16 %v520
    %v1904 = vunpack.c.l.b16 %v521
    %v1905 = vunpack.c.h.b16 %v521
    %v1906 = vunpack.c.l.b16 %v522
    %v1907 = vunpack.c.h.b16 %v522
    %v1908 = vunpack.c.l.b16 %v523
    %v1909 = vunpack.c.h.b16 %v523
    %v1910 = vunpack.c.l.b16 %v524
    %v1911 = vunpack.c.h.b16 %v524
    %v1912 = vunpack.c.l.b16 %v525
    %v1913 = vunpack.c.h.b16 %v525
    %v1914 = vunpack.c.l.b16 %v526
    %v1915 = vunpack.c.h.b16 %v526
    %v1916 = vunpack.c.l.b16 %v527
    %v1917 = vunpack.c.h.b16 %v527
    %v1918 = vunpack.c.l.b16 %v528
    %v1919 = vunpack.c.h.b16 %v528
    %v1920 = vunpack.c.l.b16 %v529
    %v1921 = vunpack.c.h.b16 %v529
    %v1922 = vunpack.c.l.b16 %v530
    %v1923 = vunpack.c.h.b16 %v530
    %v1924 = vunpack.c.l.b16 %v531
    %v1925 = vunpack.c.h.b16 %v531
    %v1926 = vunpack.c.l.b16 %v532
    %v1927 = vunpack.c.h.b16 %v532
    %v1928 = vunpack.c.l.b16 %v533
    %v1929 = vunpack.c.h.b16 %v533
    %v1930 = vunpack.c.l.b16 %v534
    %v1931 = vunpack.c.h.b16 %v534
    %v1932 = vunpack.c.l.b16 %v535
    %v1933 = vunpack.c.h.b16 %v535
    %v1934 = vunpack.c.l.b16 %v536
    %v1935 = vunpack.c.h.b16 %v536
    %v1936 = vunpack.c.l.b16 %v537
    %v1937 = vunpack.c.h.b16 %v537
    %v1938 = vunpack.c.l.b16 %v538
    %v1939 = vunpack.c.h.b16 %v538
    %v1940 = vunpack.c.l.b16 %v539
    %v1941 = vunpack.c.h.b16 %v539
    %v1942 = vunpack.c.l.b16 %v540
    %v1943 = vunpack.c.h.b16 %v540
    %v1944 = vunpack.c.l.b16 %v541
    %v1945 = vunpack.c.h.b16 %v541
    %v1946 = vunpack.c.l.b16 %v542
    %v1947 = vunpack.c.h.b16 %v542
    %v1948 = vunpack.c.l.b16 %v543
    %v1949 = vunpack.c.h.b16 %v543
    %v1950 = vunpack.c.l.b16 %v544
    %v1951 = vunpack.c.h.b16 %v544
    %v1952 = vunpack.c.l.b16 %v545
    %v1953 = vunpack.c.h.b16 %v545
    %v1954 = vunpack.c.l.b16 %v546
    %v1955 = vunpack.c.h.b16 %v546
    %v1956 = vunpack.c.l.b16 %v547
    %v1957 = vunpack.c.h.b16 %v547
    %v1958 = vunpack.c.l.b16 %v548
    %v1959 = vunpack.c.h.b16 %v548
    %v1960 = vpack.c.b16 %v1040, %v1036
    %v1961 = vpack.c.b16 %v1041, %v1037
    %v1962 = vpack.c.b16 %v1042, %v1038
    %v1963 = vpack.c.b16 %v1043, %v1039
    %v1964 = vpack.c.b16 %v1048, %v1044
    %v1965 = vpack.c.b16 %v1049, %v1045
    %v1966 = vpack.c.b16 %v1050, %v1046
    %v1967 = vpack.c.b16 %v1051, %v1047
    %v1968 = vpack.c.b16 %v1056, %v1052
    %v1969 = vpack.c.b16 %v1057, %v1053
    %v1970 = vpack.c.b16 %v1058, %v1054
    %v1971 = vpack.c.b16 %v1059, %v1055
    %v1972 = vpack.c.b16 %v1064, %v1060
    %v1973 = vpack.c.b16 %v1065, %v1061
    %v1974 = vpack.c.b16 %v1066, %v1062
    %v1975 = vpack.c.b16 %v1067, %v1063
    %v1976 = vpack.c.b16 %v1072, %v1068
    %v1977 = vpack.c.b16 %v1073, %v1069
    %v1978 = vpack.c.b16 %v1074, %v1070
    %v1979 = vpack.c.b16 %v1075, %v1071
    %v1980 = vpack.c.b16 %v1080, %v1076
    %v1981 = vpack.c.b16 %v1081, %v1077
    %v1982 = vpack.c.b16 %v1082, %v1078
    %v1983 = vpack.c.b16 %v1083, %v1079
    %v1984 = vpack.c.b16 %v1088, %v1084
    %v1985 = vpack.c.b16 %v1089, %v1085
    %v1986 = vpack.c.b16 %v1090, %v1086
    %v1987 = vpack.c.b16 %v1091, %v1087
    %v1988 = vpack.c.b16 %v1096, %v1092
    %v1989 = vpack.c.b16 %v1097, %v1093
    %v1990 = vpack.c.b16 %v1098, %v1094
    %v1991 = vpack.c.b16 %v1099, %v1095
    %v1992 = vpack.c.b16 %v1104, %v1100
    %v1993 = vpack.c.b16 %v1105, %v1101
    %v1994 = vpack.c.b16 %v1106, %v1102
    %v1995 = vpack.c.b16 %v1107, %v1103
    %v1996 = vpack.c.b16 %v1112, %v1108
    %v1997 = vpack.c.b16 %v1113, %v1109
    %v1998 = vpack.c.b16 %v1114, %v1110
    %v1999 = vpack.c.b16 %v1115, %v1111
    %v2000 = vpack.c.b16 %v1120, %v1116
    %v2001 = vpack.c.b16 %v1121, %v1117
    %v2002 = vpack.c.b16 %v1122, %v1118
    %v2003 = vpack.c.b16 %v1123, %v1119
    %v2004 = vpack.c.b16 %v1128, %v1124
    %v2005 = vpack.c.b16 %v1129, %v1125
    %v2006 = vpack.c.b16 %v1130, %v1126
    %v2007 = vpack.c.b16 %v1131, %v1127
    %v2008 = vpack.c.b16 %v1136, %v1132
    %v2009 = vpack.c.b16 %v1137, %v1133
    %v2010 = vpack.c.b16 %v1138, %v1134
    %v2011 = vpack.c.b16 %v1139, %v1135
    %v2012 = vpack.c.b16 %v1144, %v1140
    %v2013 = vpack.c.b16 %v1145, %v1141
    %v2014 = vpack.c.b16 %v1146, %v1142
    %v2015 = vpack.c.b16 %v1147, %v1143
    %v2016 = vpack.c.b16 %v1152, %v1148
    %v2017 = vpack.c.b16 %v1153, %v1149
    %v2018 = vpack.c.b16 %v1154, %v1150
    %v2019 = vpack.c.b16 %v1155, %v1151
    %v2020 = vpack.c.b16 %v1160, %v1156
    %v2021 = vpack.c.b16 %v1161, %v1157
    %v2022 = vpack.c.b16 %v1162, %v1158
    %v2023 = vpack.c.b16 %v1163, %v1159
    %v2024 = vpack.c.b16 %v1168, %v1164
    %v2025 = vpack.c.b16 %v1169, %v1165
    %v2026 = vpack.c.b16 %v1170, %v1166
    %v2027 = vpack.c.b16 %v1171, %v1167
    %v2028 = vpack.c.b16 %v1176, %v1172
    %v2029 = vpack.c.b16 %v1177, %v1173
    %v2030 = vpack.c.b16 %v1178, %v1174
    %v2031 = vpack.c.b16 %v1179, %v1175
    %v2032 = vpack.c.b16 %v1184, %v1180
    %v2033 = vpack.c.b16 %v1185, %v1181
    %v2034 = vpack.c.b16 %v1186, %v1182
    %v2035 = vpack.c.b16 %v1187, %v1183
    %v2036 = vpack.c.b16 %v1192, %v1188
    %v2037 = vpack.c.b16 %v1193, %v1189
    %v2038 = vpack.c.b16 %v1194, %v1190
    %v2039 = vpack.c.b16 %v1195, %v1191
    %v2040 = vpack.c.b16 %v1200, %v1196
    %v2041 = vpack.c.b16 %v1201, %v1197
    %v2042 = vpack.c.b16 %v1202, %v1198
    %v2043 = vpack.c.b16 %v1203, %v1199
    %v2044 = vpack.c.b16 %v1208, %v1204
    %v2045 = vpack.c.b16 %v1209, %v1205
    %v2046 = vpack.c.b16 %v1210, %v1206
    %v2047 = vpack.c.b16 %v1211, %v1207
    %v2048 = vpack.c.b16 %v1216, %v1212
    %v2049 = vpack.c.b16 %v1217, %v1213
    %v2050 = vpack.c.b16 %v1218, %v1214
    %v2051 = vpack.c.b16 %v1219, %v1215
    %v2052 = vpack.c.b16 %v1224, %v1220
    %v2053 = vpack.c.b16 %v1225, %v1221
    %v2054 = vpack.c.b16 %v1226, %v1222
    %v2055 = vpack.c.b16 %v1227, %v1223
    %v2056 = vpack.c.b16 %v1232, %v1228
    %v2057 = vpack.c.b16 %v1233, %v1229
    %v2058 = vpack.c.b16 %v1234, %v1230
    %v2059 = vpack.c.b16 %v1235, %v1231
    %v2060 = vpack.c.b16 %v1240, %v1236
    %v2061 = vpack.c.b16 %v1241, %v1237
    %v2062 = vpack.c.b16 %v1242, %v1238
    %v2063 = vpack.c.b16 %v1243, %v1239
    %v2064 = vpack.c.b16 %v1248, %v1244
    %v2065 = vpack.c.b16 %v1249, %v1245
    %v2066 = vpack.c.b16 %v1250, %v1246
    %v2067 = vpack.c.b16 %v1251, %v1247
    %v2068 = vpack.c.b16 %v1256, %v1252
    %v2069 = vpack.c.b16 %v1257, %v1253
    %v2070 = vpack.c.b16 %v1258, %v1254
    %v2071 = vpack.c.b16 %v1259, %v1255
    %v2072 = vpack.c.b16 %v1264, %v1260
    %v2073 = vpack.c.b16 %v1265, %v1261
    %v2074 = vpack.c.b16 %v1266, %v1262
    %v2075 = vpack.c.b16 %v1267, %v1263
    %v2076 = vpack.c.b16 %v1272, %v1268
    %v2077 = vpack.c.b16 %v1273, %v1269
    %v2078 = vpack.c.b16 %v1274, %v1270
    %v2079 = vpack.c.b16 %v1275, %v1271
    %v2080 = vpack.c.b16 %v1280, %v1276
    %v2081 = vpack.c.b16 %v1281, %v1277
    %v2082 = vpack.c.b16 %v1282, %v1278
    %v2083 = vpack.c.b16 %v1283, %v1279
    %v2084 = vpack.c.b16 %v1288, %v1284
    %v2085 = vpack.c.b16 %v1289, %v1285
    %v2086 = vpack.c.b16 %v1290, %v1286
    %v2087 = vpack.c.b16 %v1291, %v1287
    %v2088 = vpack.c.b16 %v1296, %v1292
    %v2089 = vpack.c.b16 %v1297, %v1293
    %v2090 = vpack.c.b16 %v1298, %v1294
    %v2091 = vpack.c.b16 %v1299, %v1295
    %v2092 = vpack.c.b16 %v1304, %v1300
    %v2093 = vpack.c.b16 %v1305, %v1301
    %v2094 = vpack.c.b16 %v1306, %v1302
    %v2095 = vpack.c.b16 %v1307, %v1303
    %v2096 = vpack.c.b16 %v1312, %v1308
    %v2097 = vpack.c.b16 %v1313, %v1309
    %v2098 = vpack.c.b16 %v1314, %v1310
    %v2099 = vpack.c.b16 %v1315, %v1311
    %v2100 = vpack.c.b16 %v1320, %v1316
    %v2101 = vpack.c.b16 %v1321, %v1317
    %v2102 = vpack.c.b16 %v1322, %v1318
    %v2103 = vpack.c.b16 %v1323, %v1319
    %v2104 = vpack.c.b16 %v1328, %v1324
    %v2105 = vpack.c.b16 %v1329, %v1325
    %v2106 = vpack.c.b16 %v1330, %v1326
    %v2107 = vpack.c.b16 %v1331, %v1327
    %v2108 = vpack.c.b16 %v1336, %v1332
    %v2109 = vpack.c.b16 %v1337, %v1333
    %v2110 = vpack.c.b16 %v1338, %v1334
    %v2111 = vpack.c.b16 %v1339, %v1335
    %v2112 = vpack.c.b16 %v1344, %v1340
    %v2113 = vpack.c.b16 %v1345, %v1341
    %v2114 = vpack.c.b16 %v1346, %v1342
    %v2115 = vpack.c.b16 %v1347, %v1343
    %v2116 = vpack.c.b16 %v1352, %v1348
    %v2117 = vpack.c.b16 %v1353, %v1349
    %v2118 = vpack.c.b16 %v1354, %v1350
    %v2119 = vpack.c.b16 %v1355, %v1351
    %v2120 = vpack.c.b16 %v1360, %v1356
    %v2121 = vpack.c.b16 %v1361, %v1357
    %v2122 = vpack.c.b16 %v1362, %v1358
    %v2123 = vpack.c.b16 %v1363, %v1359
    %v2124 = vpack.c.b16 %v1368, %v1364
    %v2125 = vpack.c.b16 %v1369, %v1365
    %v2126 = vpack.c.b16 %v1370, %v1366
    %v2127 = vpack.c.b16 %v1371, %v1367
    %v2128 = vpack.c.b16 %v1376, %v1372
    %v2129 = vpack.c.b16 %v1377, %v1373
    %v2130 = vpack.c.b16 %v1378, %v1374
    %v2131 = vpack.c.b16 %v1379, %v1375
    %v2132 = vpack.c.b16 %v1384, %v1380
    %v2133 = vpack.c.b16 %v1385, %v1381
    %v2134 = vpack.c.b16 %v1386, %v1382
    %v2135 = vpack.c.b16 %v1387, %v1383
    %v2136 = vpack.c.b16 %v1392, %v1388
    %v2137 = vpack.c.b16 %v1393, %v1389
    %v2138 = vpack.c.b16 %v1394, %v1390
    %v2139 = vpack.c.b16 %v1395, %v1391
    %v2140 = vpack.c.b16 %v1400, %v1396
    %v2141 = vpack.c.b16 %v1401, %v1397
    %v2142 = vpack.c.b16 %v1402, %v1398
    %v2143 = vpack.c.b16 %v1403, %v1399
    %v2144 = vpack.c.b16 %v1408, %v1404
    %v2145 = vpack.c.b16 %v1409, %v1405
    %v2146 = vpack.c.b16 %v1410, %v1406
    %v2147 = vpack.c.b16 %v1411, %v1407
    %v2148 = vpack.c.b16 %v1416, %v1412
    %v2149 = vpack.c.b16 %v1417, %v1413
    %v2150 = vpack.c.b16 %v1418, %v1414
    %v2151 = vpack.c.b16 %v1419, %v1415
    %v2152 = vpack.c.b16 %v1424, %v1420
    %v2153 = vpack.c.b16 %v1425, %v1421
    %v2154 = vpack.c.b16 %v1426, %v1422
    %v2155 = vpack.c.b16 %v1427, %v1423
    %v2156 = vpack.c.b16 %v1432, %v1428
    %v2157 = vpack.c.b16 %v1433, %v1429
    %v2158 = vpack.c.b16 %v1434, %v1430
    %v2159 = vpack.c.b16 %v1435, %v1431
    %v2160 = vpack.c.b16 %v1440, %v1436
    %v2161 = vpack.c.b16 %v1441, %v1437
    %v2162 = vpack.c.b16 %v1442, %v1438
    %v2163 = vpack.c.b16 %v1443, %v1439
    %v2164 = vpack.c.b16 %v1448, %v1444
    %v2165 = vpack.c.b16 %v1449, %v1445
    %v2166 = vpack.c.b16 %v1450, %v1446
    %v2167 = vpack.c.b16 %v1451, %v1447
    %v2168 = vpack.c.b16 %v1456, %v1452
    %v2169 = vpack.c.b16 %v1457, %v1453
    %v2170 = vpack.c.b16 %v1458, %v1454
    %v2171 = vpack.c.b16 %v1459, %v1455
    %v2172 = vpack.c.b16 %v1464, %v1460
    %v2173 = vpack.c.b16 %v1465, %v1461
    %v2174 = vpack.c.b16 %v1466, %v1462
    %v2175 = vpack.c.b16 %v1467, %v1463
    %v2176 = vpack.c.b16 %v1472, %v1468
    %v2177 = vpack.c.b16 %v1473, %v1469
    %v2178 = vpack.c.b16 %v1474, %v1470
    %v2179 = vpack.c.b16 %v1475, %v1471
    %v2180 = vpack.c.b16 %v1480, %v1476
    %v2181 = vpack.c.b16 %v1481, %v1477
    %v2182 = vpack.c.b16 %v1482, %v1478
    %v2183 = vpack.c.b16 %v1483, %v1479
    %v2184 = vpack.c.b16 %v1488, %v1484
    %v2185 = vpack.c.b16 %v1489, %v1485
    %v2186 = vpack.c.b16 %v1490, %v1486
    %v2187 = vpack.c.b16 %v1491, %v1487
    %v2188 = vpack.c.b16 %v1496, %v1492
    %v2189 = vpack.c.b16 %v1497, %v1493
    %v2190 = vpack.c.b16 %v1498, %v1494
    %v2191 = vpack.c.b16 %v1499, %v1495
    %v2192 = vpack.c.b16 %v1504, %v1500
    %v2193 = vpack.c.b16 %v1505, %v1501
    %v2194 = vpack.c.b16 %v1506, %v1502
    %v2195 = vpack.c.b16 %v1507, %v1503
    %v2196 = vpack.c.b16 %v1512, %v1508
    %v2197 = vpack.c.b16 %v1513, %v1509
    %v2198 = vpack.c.b16 %v1514, %v1510
    %v2199 = vpack.c.b16 %v1515, %v1511
    %v2200 = vpack.c.b16 %v1520, %v1516
    %v2201 = vpack.c.b16 %v1521, %v1517
    %v2202 = vpack.c.b16 %v1522, %v1518
    %v2203 = vpack.c.b16 %v1523, %v1519
    %v2204 = vpack.c.b16 %v1528, %v1524
    %v2205 = vpack.c.b16 %v1529, %v1525
    %v2206 = vpack.c.b16 %v1530, %v1526
    %v2207 = vpack.c.b16 %v1531, %v1527
    %v2208 = vpack.c.b16 %v1536, %v1532
    %v2209 = vpack.c.b16 %v1537, %v1533
    %v2210 = vpack.c.b16 %v1538, %v1534
    %v2211 = vpack.c.b16 %v1539, %v1535
    %v2212 = vpack.c.b16 %v1544, %v1540
    %v2213 = vpack.c.b16 %v1545, %v1541
    %v2214 = vpack.c.b16 %v1546, %v1542
    %v2215 = vpack.c.b16 %v1547, %v1543
    %v2216 = vpack.c.b16 %v1552, %v1548
    %v2217 = vpack.c.b16 %v1553, %v1549
    %v2218 = vpack.c.b16 %v1554, %v1550
    %v2219 = vpack.c.b16 %v1555, %v1551
    %v2220 = vpack.c.b16 %v1560, %v1556
    %v2221 = vpack.c.b16 %v1561, %v1557
    %v2222 = vpack.c.b16 %v1562, %v1558
    %v2223 = vpack.c.b16 %v1563, %v1559
    %v2224 = vpack.c.b16 %v1568, %v1564
    %v2225 = vpack.c.b16 %v1569, %v1565
    %v2226 = vpack.c.b16 %v1570, %v1566
    %v2227 = vpack.c.b16 %v1571, %v1567
    %v2228 = vpack.c.b16 %v1576, %v1572
    %v2229 = vpack.c.b16 %v1577, %v1573
    %v2230 = vpack.c.b16 %v1578, %v1574
    %v2231 = vpack.c.b16 %v1579, %v1575
    %v2232 = vpack.c.b16 %v1584, %v1580
    %v2233 = vpack.c.b16 %v1585, %v1581
    %v2234 = vpack.c.b16 %v1586, %v1582
    %v2235 = vpack.c.b16 %v1587, %v1583
    %v2236 = vpack.c.b16 %v1592, %v1588
    %v2237 = vpack.c.b16 %v1593, %v1589
    %v2238 = vpack.c.b16 %v1594, %v1590
    %v2239 = vpack.c.b16 %v1595, %v1591
    %v2240 = vpack.c.b16 %v1600, %v1596
    %v2241 = vpack.c.b16 %v1601, %v1597
    %v2242 = vpack.c.b16 %v1602, %v1598
    %v2243 = vpack.c.b16 %v1603, %v1599
    %v2244 = vpack.c.b16 %v1608, %v1604
    %v2245 = vpack.c.b16 %v1609, %v1605
    %v2246 = vpack.c.b16 %v1610, %v1606
    %v2247 = vpack.c.b16 %v1611, %v1607
    %v2248 = vpack.c.b16 %v1616, %v1612
    %v2249 = vpack.c.b16 %v1617, %v1613
    %v2250 = vpack.c.b16 %v1618, %v1614
    %v2251 = vpack.c.b16 %v1619, %v1615
    %v2252 = vpack.c.b16 %v1624, %v1620
    %v2253 = vpack.c.b16 %v1625, %v1621
    %v2254 = vpack.c.b16 %v1626, %v1622
    %v2255 = vpack.c.b16 %v1627, %v1623
    %v2256 = vpack.c.b16 %v1632, %v1628
    %v2257 = vpack.c.b16 %v1633, %v1629
    %v2258 = vpack.c.b16 %v1634, %v1630
    %v2259 = vpack.c.b16 %v1635, %v1631
    %v2260 = vpack.c.b16 %v1640, %v1636
    %v2261 = vpack.c.b16 %v1641, %v1637
    %v2262 = vpack.c.b16 %v1642, %v1638
    %v2263 = vpack.c.b16 %v1643, %v1639
    %v2264 = vpack.c.b16 %v1648, %v1644
    %v2265 = vpack.c.b16 %v1649, %v1645
    %v2266 = vpack.c.b16 %v1650, %v1646
    %v2267 = vpack.c.b16 %v1651, %v1647
    %v2268 = vpack.c.b16 %v1656, %v1652
    %v2269 = vpack.c.b16 %v1657, %v1653
    %v2270 = vpack.c.b16 %v1658, %v1654
    %v2271 = vpack.c.b16 %v1659, %v1655
    %v2272 = vpack.c.b16 %v1664, %v1660
    %v2273 = vpack.c.b16 %v1665, %v1661
    %v2274 = vpack.c.b16 %v1666, %v1662
    %v2275 = vpack.c.b16 %v1667, %v1663
    %v2276 = vpack.c.b16 %v1672, %v1668
    %v2277 = vpack.c.b16 %v1673, %v1669
    %v2278 = vpack.c.b16 %v1674, %v1670
    %v2279 = vpack.c.b16 %v1675, %v1671
    %v2280 = vpack.c.b16 %v1680, %v1676
    %v2281 = vpack.c.b16 %v1681, %v1677
    %v2282 = vpack.c.b16 %v1682, %v1678
    %v2283 = vpack.c.b16 %v1683, %v1679
    %v2284 = vpack.c.b16 %v1688, %v1684
    %v2285 = vpack.c.b16 %v1689, %v1685
    %v2286 = vpack.c.b16 %v1690, %v1686
    %v2287 = vpack.c.b16 %v1691, %v1687
    %v2288 = vpack.c.b16 %v1696, %v1692
    %v2289 = vpack.c.b16 %v1697, %v1693
    %v2290 = vpack.c.b16 %v1698, %v1694
    %v2291 = vpack.c.b16 %v1699, %v1695
    %v2292 = vpack.c.b16 %v1704, %v1700
    %v2293 = vpack.c.b16 %v1705, %v1701
    %v2294 = vpack.c.b16 %v1706, %v1702
    %v2295 = vpack.c.b16 %v1707, %v1703
    %v2296 = vpack.c.b16 %v1712, %v1708
    %v2297 = vpack.c.b16 %v1713, %v1709
    %v2298 = vpack.c.b16 %v1714, %v1710
    %v2299 = vpack.c.b16 %v1715, %v1711
    %v2300 = vpack.c.b16 %v1720, %v1716
    %v2301 = vpack.c.b16 %v1721, %v1717
    %v2302 = vpack.c.b16 %v1722, %v1718
    %v2303 = vpack.c.b16 %v1723, %v1719
    %v2304 = vpack.c.b16 %v1728, %v1724
    %v2305 = vpack.c.b16 %v1729, %v1725
    %v2306 = vpack.c.b16 %v1730, %v1726
    %v2307 = vpack.c.b16 %v1731, %v1727
    %v2308 = vpack.c.b16 %v1736, %v1732
    %v2309 = vpack.c.b16 %v1737, %v1733
    %v2310 = vpack.c.b16 %v1738, %v1734
    %v2311 = vpack.c.b16 %v1739, %v1735
    %v2312 = vpack.c.b16 %v1744, %v1740
    %v2313 = vpack.c.b16 %v1745, %v1741
    %v2314 = vpack.c.b16 %v1746, %v1742
    %v2315 = vpack.c.b16 %v1747, %v1743
    %v2316 = vpack.c.b16 %v1752, %v1748
    %v2317 = vpack.c.b16 %v1753, %v1749
    %v2318 = vpack.c.b16 %v1754, %v1750
    %v2319 = vpack.c.b16 %v1755, %v1751
    %v2320 = vpack.c.b16 %v1760, %v1756
    %v2321 = vpack.c.b16 %v1761, %v1757
    %v2322 = vpack.c.b16 %v1762, %v1758
    %v2323 = vpack.c.b16 %v1763, %v1759
    %v2324 = vpack.c.b16 %v1768, %v1764
    %v2325 = vpack.c.b16 %v1769, %v1765
    %v2326 = vpack.c.b16 %v1770, %v1766
    %v2327 = vpack.c.b16 %v1771, %v1767
    %v2328 = vpack.c.b16 %v1776, %v1772
    %v2329 = vpack.c.b16 %v1777, %v1773
    %v2330 = vpack.c.b16 %v1778, %v1774
    %v2331 = vpack.c.b16 %v1779, %v1775
    %v2332 = vpack.c.b16 %v1784, %v1780
    %v2333 = vpack.c.b16 %v1785, %v1781
    %v2334 = vpack.c.b16 %v1786, %v1782
    %v2335 = vpack.c.b16 %v1787, %v1783
    %v2336 = vpack.c.b16 %v1792, %v1788
    %v2337 = vpack.c.b16 %v1793, %v1789
    %v2338 = vpack.c.b16 %v1794, %v1790
    %v2339 = vpack.c.b16 %v1795, %v1791
    %v2340 = vpack.c.b16 %v1800, %v1796
    %v2341 = vpack.c.b16 %v1801, %v1797
    %v2342 = vpack.c.b16 %v1802, %v1798
    %v2343 = vpack.c.b16 %v1803, %v1799
    %v2344 = vpack.c.b16 %v1808, %v1804
    %v2345 = vpack.c.b16 %v1809, %v1805
    %v2346 = vpack.c.b16 %v1810, %v1806
    %v2347 = vpack.c.b16 %v1811, %v1807
    %v2348 = vpack.c.b16 %v1816, %v1812
    %v2349 = vpack.c.b16 %v1817, %v1813
    %v2350 = vpack.c.b16 %v1818, %v1814
    %v2351 = vpack.c.b16 %v1819, %v1815
    %v2352 = vpack.c.b16 %v1824, %v1820
    %v2353 = vpack.c.b16 %v1825, %v1821
    %v2354 = vpack.c.b16 %v1826, %v1822
    %v2355 = vpack.c.b16 %v1827, %v1823
    %v2356 = vpack.c.b16 %v1832, %v1828
    %v2357 = vpack.c.b16 %v1833, %v1829
    %v2358 = vpack.c.b16 %v1834, %v1830
    %v2359 = vpack.c.b16 %v1835, %v1831
    %v2360 = vpack.c.b16 %v1840, %v1836
    %v2361 = vpack.c.b16 %v1841, %v1837
    %v2362 = vpack.c.b16 %v1842, %v1838
    %v2363 = vpack.c.b16 %v1843, %v1839
    %v2364 = vpack.c.b16 %v1848, %v1844
    %v2365 = vpack.c.b16 %v1849, %v1845
    %v2366 = vpack.c.b16 %v1850, %v1846
    %v2367 = vpack.c.b16 %v1851, %v1847
    %v2368 = vpack.c.b16 %v1856, %v1852
    %v2369 = vpack.c.b16 %v1857, %v1853
    %v2370 = vpack.c.b16 %v1858, %v1854
    %v2371 = vpack.c.b16 %v1859, %v1855
    %v2372 = vpack.c.b16 %v1864, %v1860
    %v2373 = vpack.c.b16 %v1865, %v1861
    %v2374 = vpack.c.b16 %v1866, %v1862
    %v2375 = vpack.c.b16 %v1867, %v1863
    %v2376 = vpack.c.b16 %v1872, %v1868
    %v2377 = vpack.c.b16 %v1873, %v1869
    %v2378 = vpack.c.b16 %v1874, %v1870
    %v2379 = vpack.c.b16 %v1875, %v1871
    %v2380 = vpack.c.b16 %v1880, %v1876
    %v2381 = vpack.c.b16 %v1881, %v1877
    %v2382 = vpack.c.b16 %v1882, %v1878
    %v2383 = vpack.c.b16 %v1883, %v1879
    %v2384 = vpack.c.b16 %v1888, %v1884
    %v2385 = vpack.c.b16 %v1889, %v1885
    %v2386 = vpack.c.b16 %v1890, %v1886
    %v2387 = vpack.c.b16 %v1891, %v1887
    %v2388 = vpack.c.b16 %v1896, %v1892
    %v2389 = vpack.c.b16 %v1897, %v1893
    %v2390 = vpack.c.b16 %v1898, %v1894
    %v2391 = vpack.c.b16 %v1899, %v1895
    %v2392 = vpack.c.b16 %v1904, %v1900
    %v2393 = vpack.c.b16 %v1905, %v1901
    %v2394 = vpack.c.b16 %v1906, %v1902
    %v2395 = vpack.c.b16 %v1907, %v1903
    %v2396 = vpack.c.b16 %v1912, %v1908
    %v2397 = vpack.c.b16 %v1913, %v1909
    %v2398 = vpack.c.b16 %v1914, %v1910
    %v2399 = vpack.c.b16 %v1915, %v1911
    %v2400 = vpack.c.b16 %v1920, %v1916
    %v2401 = vpack.c.b16 %v1921, %v1917
    %v2402 = vpack.c.b16 %v1922, %v1918
    %v2403 = vpack.c.b16 %v1923, %v1919
    %v2404 = vpack.c.b16 %v1928, %v1924
    %v2405 = vpack.c.b16 %v1929, %v1925
    %v2406 = vpack.c.b16 %v1930, %v1926
    %v2407 = vpack.c.b16 %v1931, %v1927
    %v2408 = vpack.c.b16 %v1936, %v1932
    %v2409 = vpack.c.b16 %v1937, %v1933
    %v2410 = vpack.c.b16 %v1938, %v1934
    %v2411 = vpack.c.b16 %v1939, %v1935
    %v2412 = vpack.c.b16 %v1944, %v1940
    %v2413 = vpack.c.b16 %v1945, %v1941
    %v2414 = vpack.c.b16 %v1946, %v1942
    %v2415 = vpack.c.b16 %v1947, %v1943
    %v2416 = vpack.c.b16 %v1952, %v1948
    %v2417 = vpack.c.b16 %v1953, %v1949
    %v2418 = vpack.c.b16 %v1954, %v1950
    %v2419 = vpack.c.b16 %v1955, %v1951
    %v2420 = vpack.c.b16 %v1956, %v1956
    %v2421 = vpack.c.b16 %v1957, %v1957
    %v2422 = vpack.c.b16 %v1958, %v1958
    %v2423 = vpack.c.b16 %v1959, %v1959
    %vm2884 = vcmask 441344
    %v2886 = vsel %vm2884, %v563, 0
    %vm2888 = vcmask 1042432
    %v2890 = vsel %vm2888, %v2420, 0
    %v2893 = vsel %vm2888, %v2421, 0
    %v2896 = vsel %vm2888, %v2422, 0
    %v2899 = vsel %vm2888, %v2423, 0
    %2901 = vmatpush.bf16.msra.mxu0 %v1988
    %2902 = vmatpush.bf16.msra.mxu0 %v1984
    %2903 = vmatpush.bf16.msra.mxu0 %v1980
    %2904 = vmatpush.bf16.msra.mxu0 %v1976
    %2905 = vmatpush.bf16.msra.mxu0 %v1972
    %2906 = vmatpush.bf16.msra.mxu0 %v1968
    %2907 = vmatpush.bf16.msra.mxu0 %v1964
    %2908 = vmatpush.bf16.msra.mxu0 %v1960
    %2909 = vmatmul.bf16.gmra.mxu0 %v549
    %v2910 = vpop.f32.mrf.mxu0
    %v2911 = vadd.f32 %v566, %v2910
    %v2912 = vpop.f32.mrf.mxu0
    %2913 = vdwg.mxu0
    %2914 = vmatpush.bf16.msra.mxu0 %v2020
    %2915 = vmatpush.bf16.msra.mxu0 %v2016
    %2916 = vmatpush.bf16.msra.mxu0 %v2012
    %2917 = vmatpush.bf16.msra.mxu0 %v2008
    %2918 = vmatpush.bf16.msra.mxu0 %v2004
    %2919 = vmatpush.bf16.msra.mxu0 %v2000
    %2920 = vmatpush.bf16.msra.mxu0 %v1996
    %2921 = vmatpush.bf16.msra.mxu0 %v1992
    %2922 = vmatmul.bf16.gmra.mxu0 %v550
    %v2923 = vpop.f32.mrf.mxu0
    %v2924 = vadd.f32 %v2911, %v2923
    %v2925 = vpop.f32.mrf.mxu0
    %2926 = vdwg.mxu0
    %2927 = vmatpush.bf16.msra.mxu0 %v2052
    %2928 = vmatpush.bf16.msra.mxu0 %v2048
    %2929 = vmatpush.bf16.msra.mxu0 %v2044
    %2930 = vmatpush.bf16.msra.mxu0 %v2040
    %2931 = vmatpush.bf16.msra.mxu0 %v2036
    %2932 = vmatpush.bf16.msra.mxu0 %v2032
    %2933 = vmatpush.bf16.msra.mxu0 %v2028
    %2934 = vmatpush.bf16.msra.mxu0 %v2024
    %2935 = vmatmul.bf16.gmra.mxu0 %v551
    %v2936 = vpop.f32.mrf.mxu0
    %v2937 = vadd.f32 %v2924, %v2936
    %v2938 = vpop.f32.mrf.mxu0
    %2939 = vdwg.mxu0
    %2940 = vmatpush.bf16.msra.mxu0 %v2084
    %2941 = vmatpush.bf16.msra.mxu0 %v2080
    %2942 = vmatpush.bf16.msra.mxu0 %v2076
    %2943 = vmatpush.bf16.msra.mxu0 %v2072
    %2944 = vmatpush.bf16.msra.mxu0 %v2068
    %2945 = vmatpush.bf16.msra.mxu0 %v2064
    %2946 = vmatpush.bf16.msra.mxu0 %v2060
    %2947 = vmatpush.bf16.msra.mxu0 %v2056
    %2948 = vmatmul.bf16.gmra.mxu0 %v552
    %v2949 = vpop.f32.mrf.mxu0
    %v2950 = vadd.f32 %v2937, %v2949
    %v2951 = vpop.f32.mrf.mxu0
    %2952 = vdwg.mxu0
    %2953 = vmatpush.bf16.msra.mxu0 %v2116
    %2954 = vmatpush.bf16.msra.mxu0 %v2112
    %2955 = vmatpush.bf16.msra.mxu0 %v2108
    %2956 = vmatpush.bf16.msra.mxu0 %v2104
    %2957 = vmatpush.bf16.msra.mxu0 %v2100
    %2958 = vmatpush.bf16.msra.mxu0 %v2096
    %2959 = vmatpush.bf16.msra.mxu0 %v2092
    %2960 = vmatpush.bf16.msra.mxu0 %v2088
    %2961 = vmatmul.bf16.gmra.mxu0 %v553
    %v2962 = vpop.f32.mrf.mxu0
    %v2963 = vadd.f32 %v2950, %v2962
    %v2964 = vpop.f32.mrf.mxu0
    %2965 = vdwg.mxu0
    %2966 = vmatpush.bf16.msra.mxu0 %v2148
    %2967 = vmatpush.bf16.msra.mxu0 %v2144
    %2968 = vmatpush.bf16.msra.mxu0 %v2140
    %2969 = vmatpush.bf16.msra.mxu0 %v2136
    %2970 = vmatpush.bf16.msra.mxu0 %v2132
    %2971 = vmatpush.bf16.msra.mxu0 %v2128
    %2972 = vmatpush.bf16.msra.mxu0 %v2124
    %2973 = vmatpush.bf16.msra.mxu0 %v2120
    %2974 = vmatmul.bf16.gmra.mxu0 %v554
    %v2975 = vpop.f32.mrf.mxu0
    %v2976 = vadd.f32 %v2963, %v2975
    %v2977 = vpop.f32.mrf.mxu0
    %2978 = vdwg.mxu0
    %2979 = vmatpush.bf16.msra.mxu0 %v2180
    %2980 = vmatpush.bf16.msra.mxu0 %v2176
    %2981 = vmatpush.bf16.msra.mxu0 %v2172
    %2982 = vmatpush.bf16.msra.mxu0 %v2168
    %2983 = vmatpush.bf16.msra.mxu0 %v2164
    %2984 = vmatpush.bf16.msra.mxu0 %v2160
    %2985 = vmatpush.bf16.msra.mxu0 %v2156
    %2986 = vmatpush.bf16.msra.mxu0 %v2152
    %2987 = vmatmul.bf16.gmra.mxu0 %v555
    %v2988 = vpop.f32.mrf.mxu0
    %v2989 = vadd.f32 %v2976, %v2988
    %v2990 = vpop.f32.mrf.mxu0
    %2991 = vdwg.mxu0
    %2992 = vmatpush.bf16.msra.mxu0 %v2212
    %2993 = vmatpush.bf16.msra.mxu0 %v2208
    %2994 = vmatpush.bf16.msra.mxu0 %v2204
    %2995 = vmatpush.bf16.msra.mxu0 %v2200
    %2996 = vmatpush.bf16.msra.mxu0 %v2196
    %2997 = vmatpush.bf16.msra.mxu0 %v2192
    %2998 = vmatpush.bf16.msra.mxu0 %v2188
    %2999 = vmatpush.bf16.msra.mxu0 %v2184
    %3000 = vmatmul.bf16.gmra.mxu0 %v556
    %v3001 = vpop.f32.mrf.mxu0
    %v3002 = vadd.f32 %v2989, %v3001
    %v3003 = vpop.f32.mrf.mxu0
    %3004 = vdwg.mxu0
    %3005 = vmatpush.bf16.msra.mxu0 %v2244
    %3006 = vmatpush.bf16.msra.mxu0 %v2240
    %3007 = vmatpush.bf16.msra.mxu0 %v2236
    %3008 = vmatpush.bf16.msra.mxu0 %v2232
    %3009 = vmatpush.bf16.msra.mxu0 %v2228
    %3010 = vmatpush.bf16.msra.mxu0 %v2224
    %3011 = vmatpush.bf16.msra.mxu0 %v2220
    %3012 = vmatpush.bf16.msra.mxu0 %v2216
    %3013 = vmatmul.bf16.gmra.mxu0 %v557
    %v3014 = vpop.f32.mrf.mxu0
    %v3015 = vadd.f32 %v3002, %v3014
    %v3016 = vpop.f32.mrf.mxu0
    %3017 = vdwg.mxu0
    %3018 = vmatpush.bf16.msra.mxu0 %v2276
    %3019 = vmatpush.bf16.msra.mxu0 %v2272
    %3020 = vmatpush.bf16.msra.mxu0 %v2268
    %3021 = vmatpush.bf16.msra.mxu0 %v2264
    %3022 = vmatpush.bf16.msra.mxu0 %v2260
    %3023 = vmatpush.bf16.msra.mxu0 %v2256
    %3024 = vmatpush.bf16.msra.mxu0 %v2252
    %3025 = vmatpush.bf16.msra.mxu0 %v2248
    %3026 = vmatmul.bf16.gmra.mxu0 %v558
    %v3027 = vpop.f32.mrf.mxu0
    %v3028 = vadd.f32 %v3015, %v3027
    %v3029 = vpop.f32.mrf.mxu0
    %3030 = vdwg.mxu0
    %3031 = vmatpush.bf16.msra.mxu0 %v2308
    %3032 = vmatpush.bf16.msra.mxu0 %v2304
    %3033 = vmatpush.bf16.msra.mxu0 %v2300
    %3034 = vmatpush.bf16.msra.mxu0 %v2296
    %3035 = vmatpush.bf16.msra.mxu0 %v2292
    %3036 = vmatpush.bf16.msra.mxu0 %v2288
    %3037 = vmatpush.bf16.msra.mxu0 %v2284
    %3038 = vmatpush.bf16.msra.mxu0 %v2280
    %3039 = vmatmul.bf16.gmra.mxu0 %v559
    %v3040 = vpop.f32.mrf.mxu0
    %v3041 = vadd.f32 %v3028, %v3040
    %v3042 = vpop.f32.mrf.mxu0
    %3043 = vdwg.mxu0
    %3044 = vmatpush.bf16.msra.mxu0 %v2340
    %3045 = vmatpush.bf16.msra.mxu0 %v2336
    %3046 = vmatpush.bf16.msra.mxu0 %v2332
    %3047 = vmatpush.bf16.msra.mxu0 %v2328
    %3048 = vmatpush.bf16.msra.mxu0 %v2324
    %3049 = vmatpush.bf16.msra.mxu0 %v2320
    %3050 = vmatpush.bf16.msra.mxu0 %v2316
    %3051 = vmatpush.bf16.msra.mxu0 %v2312
    %3052 = vmatmul.bf16.gmra.mxu0 %v560
    %v3053 = vpop.f32.mrf.mxu0
    %v3054 = vadd.f32 %v3041, %v3053
    %v3055 = vpop.f32.mrf.mxu0
    %3056 = vdwg.mxu0
    %3057 = vmatpush.bf16.msra.mxu0 %v2372
    %3058 = vmatpush.bf16.msra.mxu0 %v2368
    %3059 = vmatpush.bf16.msra.mxu0 %v2364
    %3060 = vmatpush.bf16.msra.mxu0 %v2360
    %3061 = vmatpush.bf16.msra.mxu0 %v2356
    %3062 = vmatpush.bf16.msra.mxu0 %v2352
    %3063 = vmatpush.bf16.msra.mxu0 %v2348
    %3064 = vmatpush.bf16.msra.mxu0 %v2344
    %3065 = vmatmul.bf16.gmra.mxu0 %v561
    %v3066 = vpop.f32.mrf.mxu0
    %v3067 = vadd.f32 %v3054, %v3066
    %v3068 = vpop.f32.mrf.mxu0
    %3069 = vdwg.mxu0
    %3070 = vmatpush.bf16.msra.mxu0 %v2404
    %3071 = vmatpush.bf16.msra.mxu0 %v2400
    %3072 = vmatpush.bf16.msra.mxu0 %v2396
    %3073 = vmatpush.bf16.msra.mxu0 %v2392
    %3074 = vmatpush.bf16.msra.mxu0 %v2388
    %3075 = vmatpush.bf16.msra.mxu0 %v2384
    %3076 = vmatpush.bf16.msra.mxu0 %v2380
    %3077 = vmatpush.bf16.msra.mxu0 %v2376
    %3078 = vmatmul.bf16.gmra.mxu0 %v562
    %v3079 = vpop.f32.mrf.mxu0
    %v3080 = vadd.f32 %v3067, %v3079
    %v3081 = vpop.f32.mrf.mxu0
    %3082 = vdwg.mxu0
    %3083 = vmatpush.bf16.msra.mxu0 0
    %3084 = vmatpush.bf16.msra.mxu0 0
    %3085 = vmatpush.bf16.msra.mxu0 0
    %3086 = vmatpush.bf16.msra.mxu0 0
    %3087 = vmatpush.bf16.msra.mxu0 %v2890
    %3088 = vmatpush.bf16.msra.mxu0 %v2416
    %3089 = vmatpush.bf16.msra.mxu0 %v2412
    %3090 = vmatpush.bf16.msra.mxu0 %v2408
    %3091 = vmatmul.bf16.gmra.mxu0 %v2886
    %v3092 = vpop.f32.mrf.mxu0
    %v3093 = vadd.f32 %v3080, %v3092
    %v3094 = vpop.f32.mrf.mxu0
    %3095 = vdwg.mxu0
    %3096 = vmatpush.bf16.msra.mxu0 %v1989
    %3097 = vmatpush.bf16.msra.mxu0 %v1985
    %3098 = vmatpush.bf16.msra.mxu0 %v1981
    %3099 = vmatpush.bf16.msra.mxu0 %v1977
    %3100 = vmatpush.bf16.msra.mxu0 %v1973
    %3101 = vmatpush.bf16.msra.mxu0 %v1969
    %3102 = vmatpush.bf16.msra.mxu0 %v1965
    %3103 = vmatpush.bf16.msra.mxu0 %v1961
    %3104 = vmatmul.bf16.gmra.mxu0 %v549
    %v3105 = vpop.f32.mrf.mxu0
    %v3106 = vadd.f32 %v567, %v3105
    %v3107 = vpop.f32.mrf.mxu0
    %3108 = vdwg.mxu0
    %3109 = vmatpush.bf16.msra.mxu0 %v2021
    %3110 = vmatpush.bf16.msra.mxu0 %v2017
    %3111 = vmatpush.bf16.msra.mxu0 %v2013
    %3112 = vmatpush.bf16.msra.mxu0 %v2009
    %3113 = vmatpush.bf16.msra.mxu0 %v2005
    %3114 = vmatpush.bf16.msra.mxu0 %v2001
    %3115 = vmatpush.bf16.msra.mxu0 %v1997
    %3116 = vmatpush.bf16.msra.mxu0 %v1993
    %3117 = vmatmul.bf16.gmra.mxu0 %v550
    %v3118 = vpop.f32.mrf.mxu0
    %v3119 = vadd.f32 %v3106, %v3118
    %v3120 = vpop.f32.mrf.mxu0
    %3121 = vdwg.mxu0
    %3122 = vmatpush.bf16.msra.mxu0 %v2053
    %3123 = vmatpush.bf16.msra.mxu0 %v2049
    %3124 = vmatpush.bf16.msra.mxu0 %v2045
    %3125 = vmatpush.bf16.msra.mxu0 %v2041
    %3126 = vmatpush.bf16.msra.mxu0 %v2037
    %3127 = vmatpush.bf16.msra.mxu0 %v2033
    %3128 = vmatpush.bf16.msra.mxu0 %v2029
    %3129 = vmatpush.bf16.msra.mxu0 %v2025
    %3130 = vmatmul.bf16.gmra.mxu0 %v551
    %v3131 = vpop.f32.mrf.mxu0
    %v3132 = vadd.f32 %v3119, %v3131
    %v3133 = vpop.f32.mrf.mxu0
    %3134 = vdwg.mxu0
    %3135 = vmatpush.bf16.msra.mxu0 %v2085
    %3136 = vmatpush.bf16.msra.mxu0 %v2081
    %3137 = vmatpush.bf16.msra.mxu0 %v2077
    %3138 = vmatpush.bf16.msra.mxu0 %v2073
    %3139 = vmatpush.bf16.msra.mxu0 %v2069
    %3140 = vmatpush.bf16.msra.mxu0 %v2065
    %3141 = vmatpush.bf16.msra.mxu0 %v2061
    %3142 = vmatpush.bf16.msra.mxu0 %v2057
    %3143 = vmatmul.bf16.gmra.mxu0 %v552
    %v3144 = vpop.f32.mrf.mxu0
    %v3145 = vadd.f32 %v3132, %v3144
    %v3146 = vpop.f32.mrf.mxu0
    %3147 = vdwg.mxu0
    %3148 = vmatpush.bf16.msra.mxu0 %v2117
    %3149 = vmatpush.bf16.msra.mxu0 %v2113
    %3150 = vmatpush.bf16.msra.mxu0 %v2109
    %3151 = vmatpush.bf16.msra.mxu0 %v2105
    %3152 = vmatpush.bf16.msra.mxu0 %v2101
    %3153 = vmatpush.bf16.msra.mxu0 %v2097
    %3154 = vmatpush.bf16.msra.mxu0 %v2093
    %3155 = vmatpush.bf16.msra.mxu0 %v2089
    %3156 = vmatmul.bf16.gmra.mxu0 %v553
    %v3157 = vpop.f32.mrf.mxu0
    %v3158 = vadd.f32 %v3145, %v3157
    %v3159 = vpop.f32.mrf.mxu0
    %3160 = vdwg.mxu0
    %3161 = vmatpush.bf16.msra.mxu0 %v2149
    %3162 = vmatpush.bf16.msra.mxu0 %v2145
    %3163 = vmatpush.bf16.msra.mxu0 %v2141
    %3164 = vmatpush.bf16.msra.mxu0 %v2137
    %3165 = vmatpush.bf16.msra.mxu0 %v2133
    %3166 = vmatpush.bf16.msra.mxu0 %v2129
    %3167 = vmatpush.bf16.msra.mxu0 %v2125
    %3168 = vmatpush.bf16.msra.mxu0 %v2121
    %3169 = vmatmul.bf16.gmra.mxu0 %v554
    %v3170 = vpop.f32.mrf.mxu0
    %v3171 = vadd.f32 %v3158, %v3170
    %v3172 = vpop.f32.mrf.mxu0
    %3173 = vdwg.mxu0
    %3174 = vmatpush.bf16.msra.mxu0 %v2181
    %3175 = vmatpush.bf16.msra.mxu0 %v2177
    %3176 = vmatpush.bf16.msra.mxu0 %v2173
    %3177 = vmatpush.bf16.msra.mxu0 %v2169
    %3178 = vmatpush.bf16.msra.mxu0 %v2165
    %3179 = vmatpush.bf16.msra.mxu0 %v2161
    %3180 = vmatpush.bf16.msra.mxu0 %v2157
    %3181 = vmatpush.bf16.msra.mxu0 %v2153
    %3182 = vmatmul.bf16.gmra.mxu0 %v555
    %v3183 = vpop.f32.mrf.mxu0
    %v3184 = vadd.f32 %v3171, %v3183
    %v3185 = vpop.f32.mrf.mxu0
    %3186 = vdwg.mxu0
    %3187 = vmatpush.bf16.msra.mxu0 %v2213
    %3188 = vmatpush.bf16.msra.mxu0 %v2209
    %3189 = vmatpush.bf16.msra.mxu0 %v2205
    %3190 = vmatpush.bf16.msra.mxu0 %v2201
    %3191 = vmatpush.bf16.msra.mxu0 %v2197
    %3192 = vmatpush.bf16.msra.mxu0 %v2193
    %3193 = vmatpush.bf16.msra.mxu0 %v2189
    %3194 = vmatpush.bf16.msra.mxu0 %v2185
    %3195 = vmatmul.bf16.gmra.mxu0 %v556
    %v3196 = vpop.f32.mrf.mxu0
    %v3197 = vadd.f32 %v3184, %v3196
    %v3198 = vpop.f32.mrf.mxu0
    %3199 = vdwg.mxu0
    %3200 = vmatpush.bf16.msra.mxu0 %v2245
    %3201 = vmatpush.bf16.msra.mxu0 %v2241
    %3202 = vmatpush.bf16.msra.mxu0 %v2237
    %3203 = vmatpush.bf16.msra.mxu0 %v2233
    %3204 = vmatpush.bf16.msra.mxu0 %v2229
    %3205 = vmatpush.bf16.msra.mxu0 %v2225
    %3206 = vmatpush.bf16.msra.mxu0 %v2221
    %3207 = vmatpush.bf16.msra.mxu0 %v2217
    %3208 = vmatmul.bf16.gmra.mxu0 %v557
    %v3209 = vpop.f32.mrf.mxu0
    %v3210 = vadd.f32 %v3197, %v3209
    %v3211 = vpop.f32.mrf.mxu0
    %3212 = vdwg.mxu0
    %3213 = vmatpush.bf16.msra.mxu0 %v2277
    %3214 = vmatpush.bf16.msra.mxu0 %v2273
    %3215 = vmatpush.bf16.msra.mxu0 %v2269
    %3216 = vmatpush.bf16.msra.mxu0 %v2265
    %3217 = vmatpush.bf16.msra.mxu0 %v2261
    %3218 = vmatpush.bf16.msra.mxu0 %v2257
    %3219 = vmatpush.bf16.msra.mxu0 %v2253
    %3220 = vmatpush.bf16.msra.mxu0 %v2249
    %3221 = vmatmul.bf16.gmra.mxu0 %v558
    %v3222 = vpop.f32.mrf.mxu0
    %v3223 = vadd.f32 %v3210, %v3222
    %v3224 = vpop.f32.mrf.mxu0
    %3225 = vdwg.mxu0
    %3226 = vmatpush.bf16.msra.mxu0 %v2309
    %3227 = vmatpush.bf16.msra.mxu0 %v2305
    %3228 = vmatpush.bf16.msra.mxu0 %v2301
    %3229 = vmatpush.bf16.msra.mxu0 %v2297
    %3230 = vmatpush.bf16.msra.mxu0 %v2293
    %3231 = vmatpush.bf16.msra.mxu0 %v2289
    %3232 = vmatpush.bf16.msra.mxu0 %v2285
    %3233 = vmatpush.bf16.msra.mxu0 %v2281
    %3234 = vmatmul.bf16.gmra.mxu0 %v559
    %v3235 = vpop.f32.mrf.mxu0
    %v3236 = vadd.f32 %v3223, %v3235
    %v3237 = vpop.f32.mrf.mxu0
    %3238 = vdwg.mxu0
    %3239 = vmatpush.bf16.msra.mxu0 %v2341
    %3240 = vmatpush.bf16.msra.mxu0 %v2337
    %3241 = vmatpush.bf16.msra.mxu0 %v2333
    %3242 = vmatpush.bf16.msra.mxu0 %v2329
    %3243 = vmatpush.bf16.msra.mxu0 %v2325
    %3244 = vmatpush.bf16.msra.mxu0 %v2321
    %3245 = vmatpush.bf16.msra.mxu0 %v2317
    %3246 = vmatpush.bf16.msra.mxu0 %v2313
    %3247 = vmatmul.bf16.gmra.mxu0 %v560
    %v3248 = vpop.f32.mrf.mxu0
    %v3249 = vadd.f32 %v3236, %v3248
    %v3250 = vpop.f32.mrf.mxu0
    %3251 = vdwg.mxu0
    %3252 = vmatpush.bf16.msra.mxu0 %v2373
    %3253 = vmatpush.bf16.msra.mxu0 %v2369
    %3254 = vmatpush.bf16.msra.mxu0 %v2365
    %3255 = vmatpush.bf16.msra.mxu0 %v2361
    %3256 = vmatpush.bf16.msra.mxu0 %v2357
    %3257 = vmatpush.bf16.msra.mxu0 %v2353
    %3258 = vmatpush.bf16.msra.mxu0 %v2349
    %3259 = vmatpush.bf16.msra.mxu0 %v2345
    %3260 = vmatmul.bf16.gmra.mxu0 %v561
    %v3261 = vpop.f32.mrf.mxu0
    %v3262 = vadd.f32 %v3249, %v3261
    %v3263 = vpop.f32.mrf.mxu0
    %3264 = vdwg.mxu0
    %3265 = vmatpush.bf16.msra.mxu0 %v2405
    %3266 = vmatpush.bf16.msra.mxu0 %v2401
    %3267 = vmatpush.bf16.msra.mxu0 %v2397
    %3268 = vmatpush.bf16.msra.mxu0 %v2393
    %3269 = vmatpush.bf16.msra.mxu0 %v2389
    %3270 = vmatpush.bf16.msra.mxu0 %v2385
    %3271 = vmatpush.bf16.msra.mxu0 %v2381
    %3272 = vmatpush.bf16.msra.mxu0 %v2377
    %3273 = vmatmul.bf16.gmra.mxu0 %v562
    %v3274 = vpop.f32.mrf.mxu0
    %v3275 = vadd.f32 %v3262, %v3274
    %v3276 = vpop.f32.mrf.mxu0
    %3277 = vdwg.mxu0
    %3278 = vmatpush.bf16.msra.mxu0 0
    %3279 = vmatpush.bf16.msra.mxu0 0
    %3280 = vmatpush.bf16.msra.mxu0 0
    %3281 = vmatpush.bf16.msra.mxu0 0
    %3282 = vmatpush.bf16.msra.mxu0 %v2893
    %3283 = vmatpush.bf16.msra.mxu0 %v2417
    %3284 = vmatpush.bf16.msra.mxu0 %v2413
    %3285 = vmatpush.bf16.msra.mxu0 %v2409
    %3286 = vmatmul.bf16.gmra.mxu0 %v2886
    %v3287 = vpop.f32.mrf.mxu0
    %v3288 = vadd.f32 %v3275, %v3287
    %v3289 = vpop.f32.mrf.mxu0
    %3290 = vdwg.mxu0
    %3291 = vmatpush.bf16.msra.mxu0 %v1990
    %3292 = vmatpush.bf16.msra.mxu0 %v1986
    %3293 = vmatpush.bf16.msra.mxu0 %v1982
    %3294 = vmatpush.bf16.msra.mxu0 %v1978
    %3295 = vmatpush.bf16.msra.mxu0 %v1974
    %3296 = vmatpush.bf16.msra.mxu0 %v1970
    %3297 = vmatpush.bf16.msra.mxu0 %v1966
    %3298 = vmatpush.bf16.msra.mxu0 %v1962
    %3299 = vmatmul.bf16.gmra.mxu0 %v549
    %v3300 = vpop.f32.mrf.mxu0
    %v3301 = vadd.f32 %v568, %v3300
    %v3302 = vpop.f32.mrf.mxu0
    %3303 = vdwg.mxu0
    %3304 = vmatpush.bf16.msra.mxu0 %v2022
    %3305 = vmatpush.bf16.msra.mxu0 %v2018
    %3306 = vmatpush.bf16.msra.mxu0 %v2014
    %3307 = vmatpush.bf16.msra.mxu0 %v2010
    %3308 = vmatpush.bf16.msra.mxu0 %v2006
    %3309 = vmatpush.bf16.msra.mxu0 %v2002
    %3310 = vmatpush.bf16.msra.mxu0 %v1998
    %3311 = vmatpush.bf16.msra.mxu0 %v1994
    %3312 = vmatmul.bf16.gmra.mxu0 %v550
    %v3313 = vpop.f32.mrf.mxu0
    %v3314 = vadd.f32 %v3301, %v3313
    %v3315 = vpop.f32.mrf.mxu0
    %3316 = vdwg.mxu0
    %3317 = vmatpush.bf16.msra.mxu0 %v2054
    %3318 = vmatpush.bf16.msra.mxu0 %v2050
    %3319 = vmatpush.bf16.msra.mxu0 %v2046
    %3320 = vmatpush.bf16.msra.mxu0 %v2042
    %3321 = vmatpush.bf16.msra.mxu0 %v2038
    %3322 = vmatpush.bf16.msra.mxu0 %v2034
    %3323 = vmatpush.bf16.msra.mxu0 %v2030
    %3324 = vmatpush.bf16.msra.mxu0 %v2026
    %3325 = vmatmul.bf16.gmra.mxu0 %v551
    %v3326 = vpop.f32.mrf.mxu0
    %v3327 = vadd.f32 %v3314, %v3326
    %v3328 = vpop.f32.mrf.mxu0
    %3329 = vdwg.mxu0
    %3330 = vmatpush.bf16.msra.mxu0 %v2086
    %3331 = vmatpush.bf16.msra.mxu0 %v2082
    %3332 = vmatpush.bf16.msra.mxu0 %v2078
    %3333 = vmatpush.bf16.msra.mxu0 %v2074
    %3334 = vmatpush.bf16.msra.mxu0 %v2070
    %3335 = vmatpush.bf16.msra.mxu0 %v2066
    %3336 = vmatpush.bf16.msra.mxu0 %v2062
    %3337 = vmatpush.bf16.msra.mxu0 %v2058
    %3338 = vmatmul.bf16.gmra.mxu0 %v552
    %v3339 = vpop.f32.mrf.mxu0
    %v3340 = vadd.f32 %v3327, %v3339
    %v3341 = vpop.f32.mrf.mxu0
    %3342 = vdwg.mxu0
    %3343 = vmatpush.bf16.msra.mxu0 %v2118
    %3344 = vmatpush.bf16.msra.mxu0 %v2114
    %3345 = vmatpush.bf16.msra.mxu0 %v2110
    %3346 = vmatpush.bf16.msra.mxu0 %v2106
    %3347 = vmatpush.bf16.msra.mxu0 %v2102
    %3348 = vmatpush.bf16.msra.mxu0 %v2098
    %3349 = vmatpush.bf16.msra.mxu0 %v2094
    %3350 = vmatpush.bf16.msra.mxu0 %v2090
    %3351 = vmatmul.bf16.gmra.mxu0 %v553
    %v3352 = vpop.f32.mrf.mxu0
    %v3353 = vadd.f32 %v3340, %v3352
    %v3354 = vpop.f32.mrf.mxu0
    %3355 = vdwg.mxu0
    %3356 = vmatpush.bf16.msra.mxu0 %v2150
    %3357 = vmatpush.bf16.msra.mxu0 %v2146
    %3358 = vmatpush.bf16.msra.mxu0 %v2142
    %3359 = vmatpush.bf16.msra.mxu0 %v2138
    %3360 = vmatpush.bf16.msra.mxu0 %v2134
    %3361 = vmatpush.bf16.msra.mxu0 %v2130
    %3362 = vmatpush.bf16.msra.mxu0 %v2126
    %3363 = vmatpush.bf16.msra.mxu0 %v2122
    %3364 = vmatmul.bf16.gmra.mxu0 %v554
    %v3365 = vpop.f32.mrf.mxu0
    %v3366 = vadd.f32 %v3353, %v3365
    %v3367 = vpop.f32.mrf.mxu0
    %3368 = vdwg.mxu0
    %3369 = vmatpush.bf16.msra.mxu0 %v2182
    %3370 = vmatpush.bf16.msra.mxu0 %v2178
    %3371 = vmatpush.bf16.msra.mxu0 %v2174
    %3372 = vmatpush.bf16.msra.mxu0 %v2170
    %3373 = vmatpush.bf16.msra.mxu0 %v2166
    %3374 = vmatpush.bf16.msra.mxu0 %v2162
    %3375 = vmatpush.bf16.msra.mxu0 %v2158
    %3376 = vmatpush.bf16.msra.mxu0 %v2154
    %3377 = vmatmul.bf16.gmra.mxu0 %v555
    %v3378 = vpop.f32.mrf.mxu0
    %v3379 = vadd.f32 %v3366, %v3378
    %v3380 = vpop.f32.mrf.mxu0
    %3381 = vdwg.mxu0
    %3382 = vmatpush.bf16.msra.mxu0 %v2214
    %3383 = vmatpush.bf16.msra.mxu0 %v2210
    %3384 = vmatpush.bf16.msra.mxu0 %v2206
    %3385 = vmatpush.bf16.msra.mxu0 %v2202
    %3386 = vmatpush.bf16.msra.mxu0 %v2198
    %3387 = vmatpush.bf16.msra.mxu0 %v2194
    %3388 = vmatpush.bf16.msra.mxu0 %v2190
    %3389 = vmatpush.bf16.msra.mxu0 %v2186
    %3390 = vmatmul.bf16.gmra.mxu0 %v556
    %v3391 = vpop.f32.mrf.mxu0
    %v3392 = vadd.f32 %v3379, %v3391
    %v3393 = vpop.f32.mrf.mxu0
    %3394 = vdwg.mxu0
    %3395 = vmatpush.bf16.msra.mxu0 %v2246
    %3396 = vmatpush.bf16.msra.mxu0 %v2242
    %3397 = vmatpush.bf16.msra.mxu0 %v2238
    %3398 = vmatpush.bf16.msra.mxu0 %v2234
    %3399 = vmatpush.bf16.msra.mxu0 %v2230
    %3400 = vmatpush.bf16.msra.mxu0 %v2226
    %3401 = vmatpush.bf16.msra.mxu0 %v2222
    %3402 = vmatpush.bf16.msra.mxu0 %v2218
    %3403 = vmatmul.bf16.gmra.mxu0 %v557
    %v3404 = vpop.f32.mrf.mxu0
    %v3405 = vadd.f32 %v3392, %v3404
    %v3406 = vpop.f32.mrf.mxu0
    %3407 = vdwg.mxu0
    %3408 = vmatpush.bf16.msra.mxu0 %v2278
    %3409 = vmatpush.bf16.msra.mxu0 %v2274
    %3410 = vmatpush.bf16.msra.mxu0 %v2270
    %3411 = vmatpush.bf16.msra.mxu0 %v2266
    %3412 = vmatpush.bf16.msra.mxu0 %v2262
    %3413 = vmatpush.bf16.msra.mxu0 %v2258
    %3414 = vmatpush.bf16.msra.mxu0 %v2254
    %3415 = vmatpush.bf16.msra.mxu0 %v2250
    %3416 = vmatmul.bf16.gmra.mxu0 %v558
    %v3417 = vpop.f32.mrf.mxu0
    %v3418 = vadd.f32 %v3405, %v3417
    %v3419 = vpop.f32.mrf.mxu0
    %3420 = vdwg.mxu0
    %3421 = vmatpush.bf16.msra.mxu0 %v2310
    %3422 = vmatpush.bf16.msra.mxu0 %v2306
    %3423 = vmatpush.bf16.msra.mxu0 %v2302
    %3424 = vmatpush.bf16.msra.mxu0 %v2298
    %3425 = vmatpush.bf16.msra.mxu0 %v2294
    %3426 = vmatpush.bf16.msra.mxu0 %v2290
    %3427 = vmatpush.bf16.msra.mxu0 %v2286
    %3428 = vmatpush.bf16.msra.mxu0 %v2282
    %3429 = vmatmul.bf16.gmra.mxu0 %v559
    %v3430 = vpop.f32.mrf.mxu0
    %v3431 = vadd.f32 %v3418, %v3430
    %v3432 = vpop.f32.mrf.mxu0
    %3433 = vdwg.mxu0
    %3434 = vmatpush.bf16.msra.mxu0 %v2342
    %3435 = vmatpush.bf16.msra.mxu0 %v2338
    %3436 = vmatpush.bf16.msra.mxu0 %v2334
    %3437 = vmatpush.bf16.msra.mxu0 %v2330
    %3438 = vmatpush.bf16.msra.mxu0 %v2326
    %3439 = vmatpush.bf16.msra.mxu0 %v2322
    %3440 = vmatpush.bf16.msra.mxu0 %v2318
    %3441 = vmatpush.bf16.msra.mxu0 %v2314
    %3442 = vmatmul.bf16.gmra.mxu0 %v560
    %v3443 = vpop.f32.mrf.mxu0
    %v3444 = vadd.f32 %v3431, %v3443
    %v3445 = vpop.f32.mrf.mxu0
    %3446 = vdwg.mxu0
    %3447 = vmatpush.bf16.msra.mxu0 %v2374
    %3448 = vmatpush.bf16.msra.mxu0 %v2370
    %3449 = vmatpush.bf16.msra.mxu0 %v2366
    %3450 = vmatpush.bf16.msra.mxu0 %v2362
    %3451 = vmatpush.bf16.msra.mxu0 %v2358
    %3452 = vmatpush.bf16.msra.mxu0 %v2354
    %3453 = vmatpush.bf16.msra.mxu0 %v2350
    %3454 = vmatpush.bf16.msra.mxu0 %v2346
    %3455 = vmatmul.bf16.gmra.mxu0 %v561
    %v3456 = vpop.f32.mrf.mxu0
    %v3457 = vadd.f32 %v3444, %v3456
    %v3458 = vpop.f32.mrf.mxu0
    %3459 = vdwg.mxu0
    %3460 = vmatpush.bf16.msra.mxu0 %v2406
    %3461 = vmatpush.bf16.msra.mxu0 %v2402
    %3462 = vmatpush.bf16.msra.mxu0 %v2398
    %3463 = vmatpush.bf16.msra.mxu0 %v2394
    %3464 = vmatpush.bf16.msra.mxu0 %v2390
    %3465 = vmatpush.bf16.msra.mxu0 %v2386
    %3466 = vmatpush.bf16.msra.mxu0 %v2382
    %3467 = vmatpush.bf16.msra.mxu0 %v2378
    %3468 = vmatmul.bf16.gmra.mxu0 %v562
    %v3469 = vpop.f32.mrf.mxu0
    %v3470 = vadd.f32 %v3457, %v3469
    %v3471 = vpop.f32.mrf.mxu0
    %3472 = vdwg.mxu0
    %3473 = vmatpush.bf16.msra.mxu0 0
    %3474 = vmatpush.bf16.msra.mxu0 0
    %3475 = vmatpush.bf16.msra.mxu0 0
    %3476 = vmatpush.bf16.msra.mxu0 0
    %3477 = vmatpush.bf16.msra.mxu0 %v2896
    %3478 = vmatpush.bf16.msra.mxu0 %v2418
    %3479 = vmatpush.bf16.msra.mxu0 %v2414
    %3480 = vmatpush.bf16.msra.mxu0 %v2410
    %3481 = vmatmul.bf16.gmra.mxu0 %v2886
    %v3482 = vpop.f32.mrf.mxu0
    %v3483 = vadd.f32 %v3470, %v3482
    %v3484 = vpop.f32.mrf.mxu0
    %3485 = vdwg.mxu0
    %3486 = vmatpush.bf16.msra.mxu0 %v1991
    %3487 = vmatpush.bf16.msra.mxu0 %v1987
    %3488 = vmatpush.bf16.msra.mxu0 %v1983
    %3489 = vmatpush.bf16.msra.mxu0 %v1979
    %3490 = vmatpush.bf16.msra.mxu0 %v1975
    %3491 = vmatpush.bf16.msra.mxu0 %v1971
    %3492 = vmatpush.bf16.msra.mxu0 %v1967
    %3493 = vmatpush.bf16.msra.mxu0 %v1963
    %3494 = vmatmul.bf16.gmra.mxu0 %v549
    %v3495 = vpop.f32.mrf.mxu0
    %v3496 = vadd.f32 %v569, %v3495
    %v3497 = vpop.f32.mrf.mxu0
    %3498 = vdwg.mxu0
    %3499 = vmatpush.bf16.msra.mxu0 %v2023
    %3500 = vmatpush.bf16.msra.mxu0 %v2019
    %3501 = vmatpush.bf16.msra.mxu0 %v2015
    %3502 = vmatpush.bf16.msra.mxu0 %v2011
    %3503 = vmatpush.bf16.msra.mxu0 %v2007
    %3504 = vmatpush.bf16.msra.mxu0 %v2003
    %3505 = vmatpush.bf16.msra.mxu0 %v1999
    %3506 = vmatpush.bf16.msra.mxu0 %v1995
    %3507 = vmatmul.bf16.gmra.mxu0 %v550
    %v3508 = vpop.f32.mrf.mxu0
    %v3509 = vadd.f32 %v3496, %v3508
    %v3510 = vpop.f32.mrf.mxu0
    %3511 = vdwg.mxu0
    %3512 = vmatpush.bf16.msra.mxu0 %v2055
    %3513 = vmatpush.bf16.msra.mxu0 %v2051
    %3514 = vmatpush.bf16.msra.mxu0 %v2047
    %3515 = vmatpush.bf16.msra.mxu0 %v2043
    %3516 = vmatpush.bf16.msra.mxu0 %v2039
    %3517 = vmatpush.bf16.msra.mxu0 %v2035
    %3518 = vmatpush.bf16.msra.mxu0 %v2031
    %3519 = vmatpush.bf16.msra.mxu0 %v2027
    %3520 = vmatmul.bf16.gmra.mxu0 %v551
    %v3521 = vpop.f32.mrf.mxu0
    %v3522 = vadd.f32 %v3509, %v3521
    %v3523 = vpop.f32.mrf.mxu0
    %3524 = vdwg.mxu0
    %3525 = vmatpush.bf16.msra.mxu0 %v2087
    %3526 = vmatpush.bf16.msra.mxu0 %v2083
    %3527 = vmatpush.bf16.msra.mxu0 %v2079
    %3528 = vmatpush.bf16.msra.mxu0 %v2075
    %3529 = vmatpush.bf16.msra.mxu0 %v2071
    %3530 = vmatpush.bf16.msra.mxu0 %v2067
    %3531 = vmatpush.bf16.msra.mxu0 %v2063
    %3532 = vmatpush.bf16.msra.mxu0 %v2059
    %3533 = vmatmul.bf16.gmra.mxu0 %v552
    %v3534 = vpop.f32.mrf.mxu0
    %v3535 = vadd.f32 %v3522, %v3534
    %v3536 = vpop.f32.mrf.mxu0
    %3537 = vdwg.mxu0
    %3538 = vmatpush.bf16.msra.mxu0 %v2119
    %3539 = vmatpush.bf16.msra.mxu0 %v2115
    %3540 = vmatpush.bf16.msra.mxu0 %v2111
    %3541 = vmatpush.bf16.msra.mxu0 %v2107
    %3542 = vmatpush.bf16.msra.mxu0 %v2103
    %3543 = vmatpush.bf16.msra.mxu0 %v2099
    %3544 = vmatpush.bf16.msra.mxu0 %v2095
    %3545 = vmatpush.bf16.msra.mxu0 %v2091
    %3546 = vmatmul.bf16.gmra.mxu0 %v553
    %v3547 = vpop.f32.mrf.mxu0
    %v3548 = vadd.f32 %v3535, %v3547
    %v3549 = vpop.f32.mrf.mxu0
    %3550 = vdwg.mxu0
    %3551 = vmatpush.bf16.msra.mxu0 %v2151
    %3552 = vmatpush.bf16.msra.mxu0 %v2147
    %3553 = vmatpush.bf16.msra.mxu0 %v2143
    %3554 = vmatpush.bf16.msra.mxu0 %v2139
    %3555 = vmatpush.bf16.msra.mxu0 %v2135
    %3556 = vmatpush.bf16.msra.mxu0 %v2131
    %3557 = vmatpush.bf16.msra.mxu0 %v2127
    %3558 = vmatpush.bf16.msra.mxu0 %v2123
    %3559 = vmatmul.bf16.gmra.mxu0 %v554
    %v3560 = vpop.f32.mrf.mxu0
    %v3561 = vadd.f32 %v3548, %v3560
    %v3562 = vpop.f32.mrf.mxu0
    %3563 = vdwg.mxu0
    %3564 = vmatpush.bf16.msra.mxu0 %v2183
    %3565 = vmatpush.bf16.msra.mxu0 %v2179
    %3566 = vmatpush.bf16.msra.mxu0 %v2175
    %3567 = vmatpush.bf16.msra.mxu0 %v2171
    %3568 = vmatpush.bf16.msra.mxu0 %v2167
    %3569 = vmatpush.bf16.msra.mxu0 %v2163
    %3570 = vmatpush.bf16.msra.mxu0 %v2159
    %3571 = vmatpush.bf16.msra.mxu0 %v2155
    %3572 = vmatmul.bf16.gmra.mxu0 %v555
    %v3573 = vpop.f32.mrf.mxu0
    %v3574 = vadd.f32 %v3561, %v3573
    %v3575 = vpop.f32.mrf.mxu0
    %3576 = vdwg.mxu0
    %3577 = vmatpush.bf16.msra.mxu0 %v2215
    %3578 = vmatpush.bf16.msra.mxu0 %v2211
    %3579 = vmatpush.bf16.msra.mxu0 %v2207
    %3580 = vmatpush.bf16.msra.mxu0 %v2203
    %3581 = vmatpush.bf16.msra.mxu0 %v2199
    %3582 = vmatpush.bf16.msra.mxu0 %v2195
    %3583 = vmatpush.bf16.msra.mxu0 %v2191
    %3584 = vmatpush.bf16.msra.mxu0 %v2187
    %3585 = vmatmul.bf16.gmra.mxu0 %v556
    %v3586 = vpop.f32.mrf.mxu0
    %v3587 = vadd.f32 %v3574, %v3586
    %v3588 = vpop.f32.mrf.mxu0
    %3589 = vdwg.mxu0
    %3590 = vmatpush.bf16.msra.mxu0 %v2247
    %3591 = vmatpush.bf16.msra.mxu0 %v2243
    %3592 = vmatpush.bf16.msra.mxu0 %v2239
    %3593 = vmatpush.bf16.msra.mxu0 %v2235
    %3594 = vmatpush.bf16.msra.mxu0 %v2231
    %3595 = vmatpush.bf16.msra.mxu0 %v2227
    %3596 = vmatpush.bf16.msra.mxu0 %v2223
    %3597 = vmatpush.bf16.msra.mxu0 %v2219
    %3598 = vmatmul.bf16.gmra.mxu0 %v557
    %v3599 = vpop.f32.mrf.mxu0
    %v3600 = vadd.f32 %v3587, %v3599
    %v3601 = vpop.f32.mrf.mxu0
    %3602 = vdwg.mxu0
    %3603 = vmatpush.bf16.msra.mxu0 %v2279
    %3604 = vmatpush.bf16.msra.mxu0 %v2275
    %3605 = vmatpush.bf16.msra.mxu0 %v2271
    %3606 = vmatpush.bf16.msra.mxu0 %v2267
    %3607 = vmatpush.bf16.msra.mxu0 %v2263
    %3608 = vmatpush.bf16.msra.mxu0 %v2259
    %3609 = vmatpush.bf16.msra.mxu0 %v2255
    %3610 = vmatpush.bf16.msra.mxu0 %v2251
    %3611 = vmatmul.bf16.gmra.mxu0 %v558
    %v3612 = vpop.f32.mrf.mxu0
    %v3613 = vadd.f32 %v3600, %v3612
    %v3614 = vpop.f32.mrf.mxu0
    %3615 = vdwg.mxu0
    %3616 = vmatpush.bf16.msra.mxu0 %v2311
    %3617 = vmatpush.bf16.msra.mxu0 %v2307
    %3618 = vmatpush.bf16.msra.mxu0 %v2303
    %3619 = vmatpush.bf16.msra.mxu0 %v2299
    %3620 = vmatpush.bf16.msra.mxu0 %v2295
    %3621 = vmatpush.bf16.msra.mxu0 %v2291
    %3622 = vmatpush.bf16.msra.mxu0 %v2287
    %3623 = vmatpush.bf16.msra.mxu0 %v2283
    %3624 = vmatmul.bf16.gmra.mxu0 %v559
    %v3625 = vpop.f32.mrf.mxu0
    %v3626 = vadd.f32 %v3613, %v3625
    %v3627 = vpop.f32.mrf.mxu0
    %3628 = vdwg.mxu0
    %3629 = vmatpush.bf16.msra.mxu0 %v2343
    %3630 = vmatpush.bf16.msra.mxu0 %v2339
    %3631 = vmatpush.bf16.msra.mxu0 %v2335
    %3632 = vmatpush.bf16.msra.mxu0 %v2331
    %3633 = vmatpush.bf16.msra.mxu0 %v2327
    %3634 = vmatpush.bf16.msra.mxu0 %v2323
    %3635 = vmatpush.bf16.msra.mxu0 %v2319
    %3636 = vmatpush.bf16.msra.mxu0 %v2315
    %3637 = vmatmul.bf16.gmra.mxu0 %v560
    %v3638 = vpop.f32.mrf.mxu0
    %v3639 = vadd.f32 %v3626, %v3638
    %v3640 = vpop.f32.mrf.mxu0
    %3641 = vdwg.mxu0
    %3642 = vmatpush.bf16.msra.mxu0 %v2375
    %3643 = vmatpush.bf16.msra.mxu0 %v2371
    %3644 = vmatpush.bf16.msra.mxu0 %v2367
    %3645 = vmatpush.bf16.msra.mxu0 %v2363
    %3646 = vmatpush.bf16.msra.mxu0 %v2359
    %3647 = vmatpush.bf16.msra.mxu0 %v2355
    %3648 = vmatpush.bf16.msra.mxu0 %v2351
    %3649 = vmatpush.bf16.msra.mxu0 %v2347
    %3650 = vmatmul.bf16.gmra.mxu0 %v561
    %v3651 = vpop.f32.mrf.mxu0
    %v3652 = vadd.f32 %v3639, %v3651
    %v3653 = vpop.f32.mrf.mxu0
    %3654 = vdwg.mxu0
    %3655 = vmatpush.bf16.msra.mxu0 %v2407
    %3656 = vmatpush.bf16.msra.mxu0 %v2403
    %3657 = vmatpush.bf16.msra.mxu0 %v2399
    %3658 = vmatpush.bf16.msra.mxu0 %v2395
    %3659 = vmatpush.bf16.msra.mxu0 %v2391
    %3660 = vmatpush.bf16.msra.mxu0 %v2387
    %3661 = vmatpush.bf16.msra.mxu0 %v2383
    %3662 = vmatpush.bf16.msra.mxu0 %v2379
    %3663 = vmatmul.bf16.gmra.mxu0 %v562
    %v3664 = vpop.f32.mrf.mxu0
    %v3665 = vadd.f32 %v3652, %v3664
    %v3666 = vpop.f32.mrf.mxu0
    %3667 = vdwg.mxu0
    %3668 = vmatpush.bf16.msra.mxu0 0
    %3669 = vmatpush.bf16.msra.mxu0 0
    %3670 = vmatpush.bf16.msra.mxu0 0
    %3671 = vmatpush.bf16.msra.mxu0 0
    %3672 = vmatpush.bf16.msra.mxu0 %v2899
    %3673 = vmatpush.bf16.msra.mxu0 %v2419
    %3674 = vmatpush.bf16.msra.mxu0 %v2415
    %3675 = vmatpush.bf16.msra.mxu0 %v2411
    %3676 = vmatmul.bf16.gmra.mxu0 %v2886
    %v3677 = vpop.f32.mrf.mxu0
    %v3678 = vadd.f32 %v3665, %v3677
    %v3679 = vpop.f32.mrf.mxu0
    %3680 = vdwg.mxu0
    %v3681 = vtanh.pop %v3093
    %v3682 = vtanh.pop %v3288
    %v3683 = vtanh.pop %v3483
    %v3684 = vtanh.pop %v3678
    %v3685 = vld [vmem:[%s3] sm:$0xff]
    %v3686 = vld [vmem:[%s3 + $0x8] sm:$0xf]
    %v3687 = vld [vmem:[%s3 + $0xc] sm:$0xff]
    %v3688 = vld [vmem:[%s3 + $0x14] sm:$0xf]
    %v3689 = vld [vmem:[%s3 + $0x18] sm:$0xff]
    %v3690 = vld [vmem:[%s3 + $0x20] sm:$0xf]
    %v3691 = vld [vmem:[%s3 + $0x24] sm:$0xff]
    %v3692 = vld [vmem:[%s3 + $0x2c] sm:$0xf]
    %v3693 = vld [vmem:[%s3 + $0x30] sm:$0xff]
    %v3694 = vld [vmem:[%s3 + $0x38] sm:$0xf]
    %v3695 = vld [vmem:[%s3 + $0x3c] sm:$0xff]
    %v3696 = vld [vmem:[%s3 + $0x44] sm:$0xf]
    %v3697 = vld [vmem:[%s3 + $0x48] sm:$0xff]
    %v3698 = vld [vmem:[%s3 + $0x50] sm:$0xf]
    %v3699 = vld [vmem:[%s3 + $0x54] sm:$0xff]
    %v3700 = vld [vmem:[%s3 + $0x5c] sm:$0xf]
    %v3701 = vld [vmem:[%s3 + $0x60] sm:$0xff]
    %v3702 = vld [vmem:[%s3 + $0x68] sm:$0xf]
    %v3703 = vld [vmem:[%s3 + $0x6c] sm:$0xff]
    %v3704 = vld [vmem:[%s3 + $0x74] sm:$0xf]
    %v3705 = vld [vmem:[%s3 + $0x78] sm:$0xff]
    %v3706 = vld [vmem:[%s3 + $0x80] sm:$0xf]
    %v3707 = vld [vmem:[%s3 + $0x84] sm:$0xff]
    %v3708 = vld [vmem:[%s3 + $0x8c] sm:$0xf]
    %v3709 = vld [vmem:[%s3 + $0x90] sm:$0xff]
    %v3710 = vld [vmem:[%s3 + $0x98] sm:$0xf]
    %v3711 = vld [vmem:[%s3 + $0x9c] sm:$0xff]
    %v3712 = vld [vmem:[%s3 + $0xa4] sm:$0xf]
    %v3713 = vld [vmem:[%s3 + $0xa8] sm:$0xff]
    %v3714 = vld [vmem:[%s3 + $0xb0] sm:$0xf]
    %v3715 = vld [vmem:[%s3 + $0xb4] sm:$0xff]
    %v3716 = vld [vmem:[%s3 + $0xbc] sm:$0xf]
    %v3717 = vld [vmem:[%s3 + $0xc0] sm:$0xff]
    %v3718 = vld [vmem:[%s3 + $0xc8] sm:$0xf]
    %v3719 = vld [vmem:[%s3 + $0xcc] sm:$0xff]
    %v3720 = vld [vmem:[%s3 + $0xd4] sm:$0xf]
    %v3721 = vld [vmem:[%s3 + $0xd8] sm:$0xff]
    %v3722 = vld [vmem:[%s3 + $0xe0] sm:$0xf]
    %v3723 = vld [vmem:[%s3 + $0xe4] sm:$0xff]
    %v3724 = vld [vmem:[%s3 + $0xec] sm:$0xf]
    %v3725 = vld [vmem:[%s3 + $0xf0] sm:$0xff]
    %v3726 = vld [vmem:[%s3 + $0xf8] sm:$0xf]
    %v3727 = vld [vmem:[%s3 + $0xfc] sm:$0xff]
    %v3728 = vld [vmem:[%s3 + $0x104] sm:$0xf]
    %v3729 = vld [vmem:[%s3 + $0x108] sm:$0xff]
    %v3730 = vld [vmem:[%s3 + $0x110] sm:$0xf]
    %v3731 = vld [vmem:[%s3 + $0x114] sm:$0xff]
    %v3732 = vld [vmem:[%s3 + $0x11c] sm:$0xf]
    %v3733 = vld [vmem:[%s3 + $0x120] sm:$0xff]
    %v3734 = vld [vmem:[%s3 + $0x128] sm:$0xf]
    %v3735 = vld [vmem:[%s3 + $0x12c] sm:$0xff]
    %v3736 = vld [vmem:[%s3 + $0x134] sm:$0xf]
    %v3737 = vld [vmem:[%s3 + $0x138] sm:$0xff]
    %v3738 = vld [vmem:[%s3 + $0x140] sm:$0xf]
    %v3739 = vld [vmem:[%s3 + $0x144] sm:$0xff]
    %v3740 = vld [vmem:[%s3 + $0x14c] sm:$0xf]
    %v3741 = vld [vmem:[%s3 + $0x150] sm:$0xff]
    %v3742 = vld [vmem:[%s3 + $0x158] sm:$0xf]
    %v3743 = vld [vmem:[%s3 + $0x15c] sm:$0xff]
    %v3744 = vld [vmem:[%s3 + $0x164] sm:$0xf]
    %v3745 = vld [vmem:[%s3 + $0x168] sm:$0xff]
    %v3746 = vld [vmem:[%s3 + $0x170] sm:$0xf]
    %v3747 = vld [vmem:[%s3 + $0x174] sm:$0xff]
    %v3748 = vld [vmem:[%s3 + $0x17c] sm:$0xf]
    %v3749 = vld [vmem:[%s3 + $0x180] sm:$0xff]
    %v3750 = vld [vmem:[%s3 + $0x188] sm:$0xf]
    %v3751 = vld [vmem:[%s3 + $0x18c] sm:$0xff]
    %v3752 = vld [vmem:[%s3 + $0x194] sm:$0xf]
    %v3753 = vld [vmem:[%s3 + $0x198] sm:$0xff]
    %v3754 = vld [vmem:[%s3 + $0x1a0] sm:$0xf]
    %v3755 = vld [vmem:[%s3 + $0x1a4] sm:$0xff]
    %v3756 = vld [vmem:[%s3 + $0x1ac] sm:$0xf]
    %v3757 = vld [vmem:[%s3 + $0x1b0] sm:$0xff]
    %v3758 = vld [vmem:[%s3 + $0x1b8] sm:$0xf]
    %v3759 = vld [vmem:[%s3 + $0x1bc] sm:$0xff]
    %v3760 = vld [vmem:[%s3 + $0x1c4] sm:$0xf]
    %v3761 = vld [vmem:[%s3 + $0x1c8] sm:$0xff]
    %v3762 = vld [vmem:[%s3 + $0x1d0] sm:$0xf]
    %v3763 = vld [vmem:[%s3 + $0x1d4] sm:$0xff]
    %v3764 = vld [vmem:[%s3 + $0x1dc] sm:$0xf]
    %v3765 = vld [vmem:[%s3 + $0x1e0] sm:$0xff]
    %v3766 = vld [vmem:[%s3 + $0x1e8] sm:$0xf]
    %v3767 = vld [vmem:[%s3 + $0x1ec] sm:$0xff]
    %v3768 = vld [vmem:[%s3 + $0x1f4] sm:$0xf]
    %v3769 = vld [vmem:[%s3 + $0x1f8] sm:$0xff]
    %v3770 = vld [vmem:[%s3 + $0x200] sm:$0xf]
    %v3771 = vld [vmem:[%s3 + $0x204] sm:$0xff]
    %v3772 = vld [vmem:[%s3 + $0x20c] sm:$0xf]
    %v3773 = vld [vmem:[%s3 + $0x210] sm:$0xff]
    %v3774 = vld [vmem:[%s3 + $0x218] sm:$0xf]
    %v3775 = vld [vmem:[%s3 + $0x21c] sm:$0xff]
    %v3776 = vld [vmem:[%s3 + $0x224] sm:$0xf]
    %v3777 = vld [vmem:[%s3 + $0x228] sm:$0xff]
    %v3778 = vld [vmem:[%s3 + $0x230] sm:$0xf]
    %v3779 = vld [vmem:[%s3 + $0x234] sm:$0xff]
    %v3780 = vld [vmem:[%s3 + $0x23c] sm:$0xf]
    %v3781 = vld [vmem:[%s3 + $0x240] sm:$0xff]
    %v3782 = vld [vmem:[%s3 + $0x248] sm:$0xf]
    %v3783 = vld [vmem:[%s3 + $0x24c] sm:$0xff]
    %v3784 = vld [vmem:[%s3 + $0x254] sm:$0xf]
    %v3785 = vld [vmem:[%s3 + $0x258] sm:$0xff]
    %v3786 = vld [vmem:[%s3 + $0x260] sm:$0xf]
    %v3787 = vld [vmem:[%s3 + $0x264] sm:$0xff]
    %v3788 = vld [vmem:[%s3 + $0x26c] sm:$0xf]
    %v3789 = vld [vmem:[%s3 + $0x270] sm:$0xff]
    %v3790 = vld [vmem:[%s3 + $0x278] sm:$0xf]
    %v3791 = vld [vmem:[%s3 + $0x27c] sm:$0xff]
    %v3792 = vld [vmem:[%s3 + $0x284] sm:$0xf]
    %v3793 = vld [vmem:[%s3 + $0x288] sm:$0xff]
    %v3794 = vld [vmem:[%s3 + $0x290] sm:$0xf]
    %v3795 = vld [vmem:[%s3 + $0x294] sm:$0xff]
    %v3796 = vld [vmem:[%s3 + $0x29c] sm:$0xf]
    %v3797 = vld [vmem:[%s3 + $0x2a0] sm:$0xff]
    %v3798 = vld [vmem:[%s3 + $0x2a8] sm:$0xf]
    %v3799 = vld [vmem:[%s3 + $0x2ac] sm:$0xff]
    %v3800 = vld [vmem:[%s3 + $0x2b4] sm:$0xf]
    %v3801 = vld [vmem:[%s3 + $0x2b8] sm:$0xff]
    %v3802 = vld [vmem:[%s3 + $0x2c0] sm:$0xf]
    %v3803 = vld [vmem:[%s3 + $0x2c4] sm:$0xff]
    %v3804 = vld [vmem:[%s3 + $0x2cc] sm:$0xf]
    %v3805 = vld [vmem:[%s3 + $0x2d0] sm:$0xff]
    %v3806 = vld [vmem:[%s3 + $0x2d8] sm:$0xf]
    %v3807 = vld [vmem:[%s3 + $0x2dc] sm:$0xff]
    %v3808 = vld [vmem:[%s3 + $0x2e4] sm:$0xf]
    %v3809 = vld [vmem:[%s3 + $0x2e8] sm:$0xff]
    %v3810 = vld [vmem:[%s3 + $0x2f0] sm:$0xf]
    %v3811 = vld [vmem:[%s3 + $0x2f4] sm:$0xff]
    %v3812 = vld [vmem:[%s3 + $0x2fc] sm:$0xf]
    %v3813 = vpack.c.bf16 %v3681, %v3681
    %v3814 = vpack.c.bf16 %v3682, %v3682
    %v3815 = vpack.c.bf16 %v3683, %v3683
    %v3816 = vpack.c.bf16 %v3684, %v3684
    %v3817 = vld [vmem:[%s4] sm:$0x7]
    %v3819 = vperm.slane %v3817, 0
    %v3820 = vperm.slane %v3817, 1
    %v3821 = vperm.slane %v3817, 2
    %v3953 = vunpack.c.l.b16 %v3685
    %v3954 = vunpack.c.h.b16 %v3685
    %v3955 = vunpack.c.l.b16 %v3686
    %v3956 = vunpack.c.l.b16 %v3687
    %v3957 = vunpack.c.h.b16 %v3687
    %v3958 = vunpack.c.l.b16 %v3688
    %v3959 = vunpack.c.l.b16 %v3689
    %v3960 = vunpack.c.h.b16 %v3689
    %v3961 = vunpack.c.l.b16 %v3690
    %v3962 = vunpack.c.l.b16 %v3691
    %v3963 = vunpack.c.h.b16 %v3691
    %v3964 = vunpack.c.l.b16 %v3692
    %v3965 = vunpack.c.l.b16 %v3693
    %v3966 = vunpack.c.h.b16 %v3693
    %v3967 = vunpack.c.l.b16 %v3694
    %v3968 = vunpack.c.l.b16 %v3695
    %v3969 = vunpack.c.h.b16 %v3695
    %v3970 = vunpack.c.l.b16 %v3696
    %v3971 = vunpack.c.l.b16 %v3697
    %v3972 = vunpack.c.h.b16 %v3697
    %v3973 = vunpack.c.l.b16 %v3698
    %v3974 = vunpack.c.l.b16 %v3699
    %v3975 = vunpack.c.h.b16 %v3699
    %v3976 = vunpack.c.l.b16 %v3700
    %v3977 = vunpack.c.l.b16 %v3701
    %v3978 = vunpack.c.h.b16 %v3701
    %v3979 = vunpack.c.l.b16 %v3702
    %v3980 = vunpack.c.l.b16 %v3703
    %v3981 = vunpack.c.h.b16 %v3703
    %v3982 = vunpack.c.l.b16 %v3704
    %v3983 = vunpack.c.l.b16 %v3705
    %v3984 = vunpack.c.h.b16 %v3705
    %v3985 = vunpack.c.l.b16 %v3706
    %v3986 = vunpack.c.l.b16 %v3707
    %v3987 = vunpack.c.h.b16 %v3707
    %v3988 = vunpack.c.l.b16 %v3708
    %v3989 = vunpack.c.l.b16 %v3709
    %v3990 = vunpack.c.h.b16 %v3709
    %v3991 = vunpack.c.l.b16 %v3710
    %v3992 = vunpack.c.l.b16 %v3711
    %v3993 = vunpack.c.h.b16 %v3711
    %v3994 = vunpack.c.l.b16 %v3712
    %v3995 = vunpack.c.l.b16 %v3713
    %v3996 = vunpack.c.h.b16 %v3713
    %v3997 = vunpack.c.l.b16 %v3714
    %v3998 = vunpack.c.l.b16 %v3715
    %v3999 = vunpack.c.h.b16 %v3715
    %v4000 = vunpack.c.l.b16 %v3716
    %v4001 = vunpack.c.l.b16 %v3717
    %v4002 = vunpack.c.h.b16 %v3717
    %v4003 = vunpack.c.l.b16 %v3718
    %v4004 = vunpack.c.l.b16 %v3719
    %v4005 = vunpack.c.h.b16 %v3719
    %v4006 = vunpack.c.l.b16 %v3720
    %v4007 = vunpack.c.l.b16 %v3721
    %v4008 = vunpack.c.h.b16 %v3721
    %v4009 = vunpack.c.l.b16 %v3722
    %v4010 = vunpack.c.l.b16 %v3723
    %v4011 = vunpack.c.h.b16 %v3723
    %v4012 = vunpack.c.l.b16 %v3724
    %v4013 = vunpack.c.l.b16 %v3725
    %v4014 = vunpack.c.h.b16 %v3725
    %v4015 = vunpack.c.l.b16 %v3726
    %v4016 = vunpack.c.l.b16 %v3727
    %v4017 = vunpack.c.h.b16 %v3727
    %v4018 = vunpack.c.l.b16 %v3728
    %v4019 = vunpack.c.l.b16 %v3729
    %v4020 = vunpack.c.h.b16 %v3729
    %v4021 = vunpack.c.l.b16 %v3730
    %v4022 = vunpack.c.l.b16 %v3731
    %v4023 = vunpack.c.h.b16 %v3731
    %v4024 = vunpack.c.l.b16 %v3732
    %v4025 = vunpack.c.l.b16 %v3733
    %v4026 = vunpack.c.h.b16 %v3733
    %v4027 = vunpack.c.l.b16 %v3734
    %v4028 = vunpack.c.l.b16 %v3735
    %v4029 = vunpack.c.h.b16 %v3735
    %v4030 = vunpack.c.l.b16 %v3736
    %v4031 = vunpack.c.l.b16 %v3737
    %v4032 = vunpack.c.h.b16 %v3737
    %v4033 = vunpack.c.l.b16 %v3738
    %v4034 = vunpack.c.l.b16 %v3739
    %v4035 = vunpack.c.h.b16 %v3739
    %v4036 = vunpack.c.l.b16 %v3740
    %v4037 = vunpack.c.l.b16 %v3741
    %v4038 = vunpack.c.h.b16 %v3741
    %v4039 = vunpack.c.l.b16 %v3742
    %v4040 = vunpack.c.l.b16 %v3743
    %v4041 = vunpack.c.h.b16 %v3743
    %v4042 = vunpack.c.l.b16 %v3744
    %v4043 = vunpack.c.l.b16 %v3745
    %v4044 = vunpack.c.h.b16 %v3745
    %v4045 = vunpack.c.l.b16 %v3746
    %v4046 = vunpack.c.l.b16 %v3747
    %v4047 = vunpack.c.h.b16 %v3747
    %v4048 = vunpack.c.l.b16 %v3748
    %v4049 = vunpack.c.l.b16 %v3749
    %v4050 = vunpack.c.h.b16 %v3749
    %v4051 = vunpack.c.l.b16 %v3750
    %v4052 = vunpack.c.l.b16 %v3751
    %v4053 = vunpack.c.h.b16 %v3751
    %v4054 = vunpack.c.l.b16 %v3752
    %v4055 = vunpack.c.l.b16 %v3753
    %v4056 = vunpack.c.h.b16 %v3753
    %v4057 = vunpack.c.l.b16 %v3754
    %v4058 = vunpack.c.l.b16 %v3755
    %v4059 = vunpack.c.h.b16 %v3755
    %v4060 = vunpack.c.l.b16 %v3756
    %v4061 = vunpack.c.l.b16 %v3757
    %v4062 = vunpack.c.h.b16 %v3757
    %v4063 = vunpack.c.l.b16 %v3758
    %v4064 = vunpack.c.l.b16 %v3759
    %v4065 = vunpack.c.h.b16 %v3759
    %v4066 = vunpack.c.l.b16 %v3760
    %v4067 = vunpack.c.l.b16 %v3761
    %v4068 = vunpack.c.h.b16 %v3761
    %v4069 = vunpack.c.l.b16 %v3762
    %v4070 = vunpack.c.l.b16 %v3763
    %v4071 = vunpack.c.h.b16 %v3763
    %v4072 = vunpack.c.l.b16 %v3764
    %v4073 = vunpack.c.l.b16 %v3765
    %v4074 = vunpack.c.h.b16 %v3765
    %v4075 = vunpack.c.l.b16 %v3766
    %v4076 = vunpack.c.l.b16 %v3767
    %v4077 = vunpack.c.h.b16 %v3767
    %v4078 = vunpack.c.l.b16 %v3768
    %v4079 = vunpack.c.l.b16 %v3769
    %v4080 = vunpack.c.h.b16 %v3769
    %v4081 = vunpack.c.l.b16 %v3770
    %v4082 = vunpack.c.l.b16 %v3771
    %v4083 = vunpack.c.h.b16 %v3771
    %v4084 = vunpack.c.l.b16 %v3772
    %v4085 = vunpack.c.l.b16 %v3773
    %v4086 = vunpack.c.h.b16 %v3773
    %v4087 = vunpack.c.l.b16 %v3774
    %v4088 = vunpack.c.l.b16 %v3775
    %v4089 = vunpack.c.h.b16 %v3775
    %v4090 = vunpack.c.l.b16 %v3776
    %v4091 = vunpack.c.l.b16 %v3777
    %v4092 = vunpack.c.h.b16 %v3777
    %v4093 = vunpack.c.l.b16 %v3778
    %v4094 = vunpack.c.l.b16 %v3779
    %v4095 = vunpack.c.h.b16 %v3779
    %v4096 = vunpack.c.l.b16 %v3780
    %v4097 = vunpack.c.l.b16 %v3781
    %v4098 = vunpack.c.h.b16 %v3781
    %v4099 = vunpack.c.l.b16 %v3782
    %v4100 = vunpack.c.l.b16 %v3783
    %v4101 = vunpack.c.h.b16 %v3783
    %v4102 = vunpack.c.l.b16 %v3784
    %v4103 = vunpack.c.l.b16 %v3785
    %v4104 = vunpack.c.h.b16 %v3785
    %v4105 = vunpack.c.l.b16 %v3786
    %v4106 = vunpack.c.l.b16 %v3787
    %v4107 = vunpack.c.h.b16 %v3787
    %v4108 = vunpack.c.l.b16 %v3788
    %v4109 = vunpack.c.l.b16 %v3789
    %v4110 = vunpack.c.h.b16 %v3789
    %v4111 = vunpack.c.l.b16 %v3790
    %v4112 = vunpack.c.l.b16 %v3791
    %v4113 = vunpack.c.h.b16 %v3791
    %v4114 = vunpack.c.l.b16 %v3792
    %v4115 = vunpack.c.l.b16 %v3793
    %v4116 = vunpack.c.h.b16 %v3793
    %v4117 = vunpack.c.l.b16 %v3794
    %v4118 = vunpack.c.l.b16 %v3795
    %v4119 = vunpack.c.h.b16 %v3795
    %v4120 = vunpack.c.l.b16 %v3796
    %v4121 = vunpack.c.l.b16 %v3797
    %v4122 = vunpack.c.h.b16 %v3797
    %v4123 = vunpack.c.l.b16 %v3798
    %v4124 = vunpack.c.l.b16 %v3799
    %v4125 = vunpack.c.h.b16 %v3799
    %v4126 = vunpack.c.l.b16 %v3800
    %v4127 = vunpack.c.l.b16 %v3801
    %v4128 = vunpack.c.h.b16 %v3801
    %v4129 = vunpack.c.l.b16 %v3802
    %v4130 = vunpack.c.l.b16 %v3803
    %v4131 = vunpack.c.h.b16 %v3803
    %v4132 = vunpack.c.l.b16 %v3804
    %v4133 = vunpack.c.l.b16 %v3805
    %v4134 = vunpack.c.h.b16 %v3805
    %v4135 = vunpack.c.l.b16 %v3806
    %v4136 = vunpack.c.l.b16 %v3807
    %v4137 = vunpack.c.h.b16 %v3807
    %v4138 = vunpack.c.l.b16 %v3808
    %v4139 = vunpack.c.l.b16 %v3809
    %v4140 = vunpack.c.h.b16 %v3809
    %v4141 = vunpack.c.l.b16 %v3810
    %v4142 = vunpack.c.l.b16 %v3811
    %v4143 = vunpack.c.h.b16 %v3811
    %v4144 = vunpack.c.l.b16 %v3812
    %v4145 = vpack.c.b16 %v3956, %v3953
    %v4146 = vpack.c.b16 %v3957, %v3954
    %v4147 = vpack.c.b16 %v3958, %v3955
    %v4148 = vpack.c.b16 %v3962, %v3959
    %v4149 = vpack.c.b16 %v3963, %v3960
    %v4150 = vpack.c.b16 %v3964, %v3961
    %v4151 = vpack.c.b16 %v3968, %v3965
    %v4152 = vpack.c.b16 %v3969, %v3966
    %v4153 = vpack.c.b16 %v3970, %v3967
    %v4154 = vpack.c.b16 %v3974, %v3971
    %v4155 = vpack.c.b16 %v3975, %v3972
    %v4156 = vpack.c.b16 %v3976, %v3973
    %v4157 = vpack.c.b16 %v3980, %v3977
    %v4158 = vpack.c.b16 %v3981, %v3978
    %v4159 = vpack.c.b16 %v3982, %v3979
    %v4160 = vpack.c.b16 %v3986, %v3983
    %v4161 = vpack.c.b16 %v3987, %v3984
    %v4162 = vpack.c.b16 %v3988, %v3985
    %v4163 = vpack.c.b16 %v3992, %v3989
    %v4164 = vpack.c.b16 %v3993, %v3990
    %v4165 = vpack.c.b16 %v3994, %v3991
    %v4166 = vpack.c.b16 %v3998, %v3995
    %v4167 = vpack.c.b16 %v3999, %v3996
    %v4168 = vpack.c.b16 %v4000, %v3997
    %v4169 = vpack.c.b16 %v4004, %v4001
    %v4170 = vpack.c.b16 %v4005, %v4002
    %v4171 = vpack.c.b16 %v4006, %v4003
    %v4172 = vpack.c.b16 %v4010, %v4007
    %v4173 = vpack.c.b16 %v4011, %v4008
    %v4174 = vpack.c.b16 %v4012, %v4009
    %v4175 = vpack.c.b16 %v4016, %v4013
    %v4176 = vpack.c.b16 %v4017, %v4014
    %v4177 = vpack.c.b16 %v4018, %v4015
    %v4178 = vpack.c.b16 %v4022, %v4019
    %v4179 = vpack.c.b16 %v4023, %v4020
    %v4180 = vpack.c.b16 %v4024, %v4021
    %v4181 = vpack.c.b16 %v4028, %v4025
    %v4182 = vpack.c.b16 %v4029, %v4026
    %v4183 = vpack.c.b16 %v4030, %v4027
    %v4184 = vpack.c.b16 %v4034, %v4031
    %v4185 = vpack.c.b16 %v4035, %v4032
    %v4186 = vpack.c.b16 %v4036, %v4033
    %v4187 = vpack.c.b16 %v4040, %v4037
    %v4188 = vpack.c.b16 %v4041, %v4038
    %v4189 = vpack.c.b16 %v4042, %v4039
    %v4190 = vpack.c.b16 %v4046, %v4043
    %v4191 = vpack.c.b16 %v4047, %v4044
    %v4192 = vpack.c.b16 %v4048, %v4045
    %v4193 = vpack.c.b16 %v4052, %v4049
    %v4194 = vpack.c.b16 %v4053, %v4050
    %v4195 = vpack.c.b16 %v4054, %v4051
    %v4196 = vpack.c.b16 %v4058, %v4055
    %v4197 = vpack.c.b16 %v4059, %v4056
    %v4198 = vpack.c.b16 %v4060, %v4057
    %v4199 = vpack.c.b16 %v4064, %v4061
    %v4200 = vpack.c.b16 %v4065, %v4062
    %v4201 = vpack.c.b16 %v4066, %v4063
    %v4202 = vpack.c.b16 %v4070, %v4067
    %v4203 = vpack.c.b16 %v4071, %v4068
    %v4204 = vpack.c.b16 %v4072, %v4069
    %v4205 = vpack.c.b16 %v4076, %v4073
    %v4206 = vpack.c.b16 %v4077, %v4074
    %v4207 = vpack.c.b16 %v4078, %v4075
    %v4208 = vpack.c.b16 %v4082, %v4079
    %v4209 = vpack.c.b16 %v4083, %v4080
    %v4210 = vpack.c.b16 %v4084, %v4081
    %v4211 = vpack.c.b16 %v4088, %v4085
    %v4212 = vpack.c.b16 %v4089, %v4086
    %v4213 = vpack.c.b16 %v4090, %v4087
    %v4214 = vpack.c.b16 %v4094, %v4091
    %v4215 = vpack.c.b16 %v4095, %v4092
    %v4216 = vpack.c.b16 %v4096, %v4093
    %v4217 = vpack.c.b16 %v4100, %v4097
    %v4218 = vpack.c.b16 %v4101, %v4098
    %v4219 = vpack.c.b16 %v4102, %v4099
    %v4220 = vpack.c.b16 %v4106, %v4103
    %v4221 = vpack.c.b16 %v4107, %v4104
    %v4222 = vpack.c.b16 %v4108, %v4105
    %v4223 = vpack.c.b16 %v4112, %v4109
    %v4224 = vpack.c.b16 %v4113, %v4110
    %v4225 = vpack.c.b16 %v4114, %v4111
    %v4226 = vpack.c.b16 %v4118, %v4115
    %v4227 = vpack.c.b16 %v4119, %v4116
    %v4228 = vpack.c.b16 %v4120, %v4117
    %v4229 = vpack.c.b16 %v4124, %v4121
    %v4230 = vpack.c.b16 %v4125, %v4122
    %v4231 = vpack.c.b16 %v4126, %v4123
    %v4232 = vpack.c.b16 %v4130, %v4127
    %v4233 = vpack.c.b16 %v4131, %v4128
    %v4234 = vpack.c.b16 %v4132, %v4129
    %v4235 = vpack.c.b16 %v4136, %v4133
    %v4236 = vpack.c.b16 %v4137, %v4134
    %v4237 = vpack.c.b16 %v4138, %v4135
    %v4238 = vpack.c.b16 %v4142, %v4139
    %v4239 = vpack.c.b16 %v4143, %v4140
    %v4240 = vpack.c.b16 %v4144, %v4141
    %4337 = vmatpush.bf16.msra.mxu0 %v4166
    %4338 = vmatpush.bf16.msra.mxu0 %v4163
    %4339 = vmatpush.bf16.msra.mxu0 %v4160
    %4340 = vmatpush.bf16.msra.mxu0 %v4157
    %4341 = vmatpush.bf16.msra.mxu0 %v4154
    %4342 = vmatpush.bf16.msra.mxu0 %v4151
    %4343 = vmatpush.bf16.msra.mxu0 %v4148
    %4344 = vmatpush.bf16.msra.mxu0 %v4145
    %4345 = vmatmul.bf16.gmra.mxu0 %v3813
    %v4346 = vpop.f32.mrf.mxu0
    %v4347 = vadd.f32 %v3819, %v4346
    %v4348 = vpop.f32.mrf.mxu0
    %4349 = vdwg.mxu0
    %4350 = vmatpush.bf16.msra.mxu0 %v4190
    %4351 = vmatpush.bf16.msra.mxu0 %v4187
    %4352 = vmatpush.bf16.msra.mxu0 %v4184
    %4353 = vmatpush.bf16.msra.mxu0 %v4181
    %4354 = vmatpush.bf16.msra.mxu0 %v4178
    %4355 = vmatpush.bf16.msra.mxu0 %v4175
    %4356 = vmatpush.bf16.msra.mxu0 %v4172
    %4357 = vmatpush.bf16.msra.mxu0 %v4169
    %4358 = vmatmul.bf16.gmra.mxu0 %v3814
    %v4359 = vpop.f32.mrf.mxu0
    %v4360 = vadd.f32 %v4347, %v4359
    %v4361 = vpop.f32.mrf.mxu0
    %4362 = vdwg.mxu0
    %4363 = vmatpush.bf16.msra.mxu0 %v4214
    %4364 = vmatpush.bf16.msra.mxu0 %v4211
    %4365 = vmatpush.bf16.msra.mxu0 %v4208
    %4366 = vmatpush.bf16.msra.mxu0 %v4205
    %4367 = vmatpush.bf16.msra.mxu0 %v4202
    %4368 = vmatpush.bf16.msra.mxu0 %v4199
    %4369 = vmatpush.bf16.msra.mxu0 %v4196
    %4370 = vmatpush.bf16.msra.mxu0 %v4193
    %4371 = vmatmul.bf16.gmra.mxu0 %v3815
    %v4372 = vpop.f32.mrf.mxu0
    %v4373 = vadd.f32 %v4360, %v4372
    %v4374 = vpop.f32.mrf.mxu0
    %4375 = vdwg.mxu0
    %4376 = vmatpush.bf16.msra.mxu0 %v4238
    %4377 = vmatpush.bf16.msra.mxu0 %v4235
    %4378 = vmatpush.bf16.msra.mxu0 %v4232
    %4379 = vmatpush.bf16.msra.mxu0 %v4229
    %4380 = vmatpush.bf16.msra.mxu0 %v4226
    %4381 = vmatpush.bf16.msra.mxu0 %v4223
    %4382 = vmatpush.bf16.msra.mxu0 %v4220
    %4383 = vmatpush.bf16.msra.mxu0 %v4217
    %4384 = vmatmul.bf16.gmra.mxu0 %v3816
    %v4385 = vpop.f32.mrf.mxu0
    %v4386 = vadd.f32 %v4373, %v4385
    %v4387 = vpop.f32.mrf.mxu0
    %4388 = vdwg.mxu0
    %4389 = vmatpush.bf16.msra.mxu0 %v4167
    %4390 = vmatpush.bf16.msra.mxu0 %v4164
    %4391 = vmatpush.bf16.msra.mxu0 %v4161
    %4392 = vmatpush.bf16.msra.mxu0 %v4158
    %4393 = vmatpush.bf16.msra.mxu0 %v4155
    %4394 = vmatpush.bf16.msra.mxu0 %v4152
    %4395 = vmatpush.bf16.msra.mxu0 %v4149
    %4396 = vmatpush.bf16.msra.mxu0 %v4146
    %4397 = vmatmul.bf16.gmra.mxu0 %v3813
    %v4398 = vpop.f32.mrf.mxu0
    %v4399 = vadd.f32 %v3820, %v4398
    %v4400 = vpop.f32.mrf.mxu0
    %4401 = vdwg.mxu0
    %4402 = vmatpush.bf16.msra.mxu0 %v4191
    %4403 = vmatpush.bf16.msra.mxu0 %v4188
    %4404 = vmatpush.bf16.msra.mxu0 %v4185
    %4405 = vmatpush.bf16.msra.mxu0 %v4182
    %4406 = vmatpush.bf16.msra.mxu0 %v4179
    %4407 = vmatpush.bf16.msra.mxu0 %v4176
    %4408 = vmatpush.bf16.msra.mxu0 %v4173
    %4409 = vmatpush.bf16.msra.mxu0 %v4170
    %4410 = vmatmul.bf16.gmra.mxu0 %v3814
    %v4411 = vpop.f32.mrf.mxu0
    %v4412 = vadd.f32 %v4399, %v4411
    %v4413 = vpop.f32.mrf.mxu0
    %4414 = vdwg.mxu0
    %4415 = vmatpush.bf16.msra.mxu0 %v4215
    %4416 = vmatpush.bf16.msra.mxu0 %v4212
    %4417 = vmatpush.bf16.msra.mxu0 %v4209
    %4418 = vmatpush.bf16.msra.mxu0 %v4206
    %4419 = vmatpush.bf16.msra.mxu0 %v4203
    %4420 = vmatpush.bf16.msra.mxu0 %v4200
    %4421 = vmatpush.bf16.msra.mxu0 %v4197
    %4422 = vmatpush.bf16.msra.mxu0 %v4194
    %4423 = vmatmul.bf16.gmra.mxu0 %v3815
    %v4424 = vpop.f32.mrf.mxu0
    %v4425 = vadd.f32 %v4412, %v4424
    %v4426 = vpop.f32.mrf.mxu0
    %4427 = vdwg.mxu0
    %4428 = vmatpush.bf16.msra.mxu0 %v4239
    %4429 = vmatpush.bf16.msra.mxu0 %v4236
    %4430 = vmatpush.bf16.msra.mxu0 %v4233
    %4431 = vmatpush.bf16.msra.mxu0 %v4230
    %4432 = vmatpush.bf16.msra.mxu0 %v4227
    %4433 = vmatpush.bf16.msra.mxu0 %v4224
    %4434 = vmatpush.bf16.msra.mxu0 %v4221
    %4435 = vmatpush.bf16.msra.mxu0 %v4218
    %4436 = vmatmul.bf16.gmra.mxu0 %v3816
    %v4437 = vpop.f32.mrf.mxu0
    %v4438 = vadd.f32 %v4425, %v4437
    %v4439 = vpop.f32.mrf.mxu0
    %4440 = vdwg.mxu0
    %4441 = vmatpush.bf16.msra.mxu0 %v4168
    %4442 = vmatpush.bf16.msra.mxu0 %v4165
    %4443 = vmatpush.bf16.msra.mxu0 %v4162
    %4444 = vmatpush.bf16.msra.mxu0 %v4159
    %4445 = vmatpush.bf16.msra.mxu0 %v4156
    %4446 = vmatpush.bf16.msra.mxu0 %v4153
    %4447 = vmatpush.bf16.msra.mxu0 %v4150
    %4448 = vmatpush.bf16.msra.mxu0 %v4147
    %4449 = vmatmul.bf16.gmra.mxu0 %v3813
    %v4450 = vpop.f32.mrf.mxu0
    %v4451 = vadd.f32 %v3821, %v4450
    %v4452 = vpop.f32.mrf.mxu0
    %4453 = vdwg.mxu0
    %4454 = vmatpush.bf16.msra.mxu0 %v4192
    %4455 = vmatpush.bf16.msra.mxu0 %v4189
    %4456 = vmatpush.bf16.msra.mxu0 %v4186
    %4457 = vmatpush.bf16.msra.mxu0 %v4183
    %4458 = vmatpush.bf16.msra.mxu0 %v4180
    %4459 = vmatpush.bf16.msra.mxu0 %v4177
    %4460 = vmatpush.bf16.msra.mxu0 %v4174
    %4461 = vmatpush.bf16.msra.mxu0 %v4171
    %4462 = vmatmul.bf16.gmra.mxu0 %v3814
    %v4463 = vpop.f32.mrf.mxu0
    %v4464 = vadd.f32 %v4451, %v4463
    %v4465 = vpop.f32.mrf.mxu0
    %4466 = vdwg.mxu0
    %4467 = vmatpush.bf16.msra.mxu0 %v4216
    %4468 = vmatpush.bf16.msra.mxu0 %v4213
    %4469 = vmatpush.bf16.msra.mxu0 %v4210
    %4470 = vmatpush.bf16.msra.mxu0 %v4207
    %4471 = vmatpush.bf16.msra.mxu0 %v4204
    %4472 = vmatpush.bf16.msra.mxu0 %v4201
    %4473 = vmatpush.bf16.msra.mxu0 %v4198
    %4474 = vmatpush.bf16.msra.mxu0 %v4195
    %4475 = vmatmul.bf16.gmra.mxu0 %v3815
    %v4476 = vpop.f32.mrf.mxu0
    %v4477 = vadd.f32 %v4464, %v4476
    %v4478 = vpop.f32.mrf.mxu0
    %4479 = vdwg.mxu0
    %4480 = vmatpush.bf16.msra.mxu0 %v4240
    %4481 = vmatpush.bf16.msra.mxu0 %v4237
    %4482 = vmatpush.bf16.msra.mxu0 %v4234
    %4483 = vmatpush.bf16.msra.mxu0 %v4231
    %4484 = vmatpush.bf16.msra.mxu0 %v4228
    %4485 = vmatpush.bf16.msra.mxu0 %v4225
    %4486 = vmatpush.bf16.msra.mxu0 %v4222
    %4487 = vmatpush.bf16.msra.mxu0 %v4219
    %4488 = vmatmul.bf16.gmra.mxu0 %v3816
    %v4489 = vpop.f32.mrf.mxu0
    %v4490 = vadd.f32 %v4477, %v4489
    %v4491 = vpop.f32.mrf.mxu0
    %4492 = vdwg.mxu0
    %v4493 = vtanh.pop %v4386
    %v4494 = vtanh.pop %v4438
    %v4495 = vtanh.pop %v4490
    %v4496 = vld [vmem:[%s5] sm:$0xf]
    %v4497 = vld [vmem:[%s5 + $0x4] sm:$0xf]
    %v4498 = vld [vmem:[%s5 + $0x8] sm:$0xf]
    %v4499 = vld [vmem:[%s5 + $0xc] sm:$0xf]
    %v4500 = vld [vmem:[%s5 + $0x10] sm:$0xf]
    %v4501 = vld [vmem:[%s5 + $0x14] sm:$0xf]
    %v4502 = vld [vmem:[%s5 + $0x18] sm:$0xf]
    %v4503 = vld [vmem:[%s5 + $0x1c] sm:$0xf]
    %v4504 = vld [vmem:[%s5 + $0x20] sm:$0xf]
    %v4505 = vld [vmem:[%s5 + $0x24] sm:$0xf]
    %v4506 = vld [vmem:[%s5 + $0x28] sm:$0xf]
    %v4507 = vld [vmem:[%s5 + $0x2c] sm:$0xf]
    %v4508 = vld [vmem:[%s5 + $0x30] sm:$0xf]
    %v4509 = vld [vmem:[%s5 + $0x34] sm:$0xf]
    %v4510 = vld [vmem:[%s5 + $0x38] sm:$0xf]
    %v4511 = vld [vmem:[%s5 + $0x3c] sm:$0xf]
    %v4512 = vld [vmem:[%s5 + $0x40] sm:$0xf]
    %v4513 = vld [vmem:[%s5 + $0x44] sm:$0xf]
    %v4514 = vld [vmem:[%s5 + $0x48] sm:$0xf]
    %v4515 = vld [vmem:[%s5 + $0x4c] sm:$0xf]
    %v4516 = vld [vmem:[%s5 + $0x50] sm:$0xf]
    %v4517 = vld [vmem:[%s5 + $0x54] sm:$0xf]
    %v4518 = vld [vmem:[%s5 + $0x58] sm:$0xf]
    %v4519 = vld [vmem:[%s5 + $0x5c] sm:$0xf]
    %v4520 = vld [vmem:[%s5 + $0x60] sm:$0xf]
    %v4521 = vld [vmem:[%s5 + $0x64] sm:$0xf]
    %v4522 = vld [vmem:[%s5 + $0x68] sm:$0xf]
    %v4523 = vld [vmem:[%s5 + $0x6c] sm:$0xf]
    %v4524 = vld [vmem:[%s5 + $0x70] sm:$0xf]
    %v4525 = vld [vmem:[%s5 + $0x74] sm:$0xf]
    %v4526 = vld [vmem:[%s5 + $0x78] sm:$0xf]
    %v4527 = vld [vmem:[%s5 + $0x7c] sm:$0xf]
    %v4528 = vld [vmem:[%s5 + $0x80] sm:$0xf]
    %v4529 = vld [vmem:[%s5 + $0x84] sm:$0xf]
    %v4530 = vld [vmem:[%s5 + $0x88] sm:$0xf]
    %v4531 = vld [vmem:[%s5 + $0x8c] sm:$0xf]
    %v4532 = vld [vmem:[%s5 + $0x90] sm:$0xf]
    %v4533 = vld [vmem:[%s5 + $0x94] sm:$0xf]
    %v4534 = vld [vmem:[%s5 + $0x98] sm:$0xf]
    %v4535 = vld [vmem:[%s5 + $0x9c] sm:$0xf]
    %v4536 = vld [vmem:[%s5 + $0xa0] sm:$0xf]
    %v4537 = vld [vmem:[%s5 + $0xa4] sm:$0xf]
    %v4538 = vld [vmem:[%s5 + $0xa8] sm:$0xf]
    %v4539 = vld [vmem:[%s5 + $0xac] sm:$0xf]
    %v4540 = vld [vmem:[%s5 + $0xb0] sm:$0xf]
    %v4541 = vld [vmem:[%s5 + $0xb4] sm:$0xf]
    %v4542 = vld [vmem:[%s5 + $0xb8] sm:$0xf]
    %v4543 = vld [vmem:[%s5 + $0xbc] sm:$0xf]
    %v4544 = vpack.c.bf16 %v4493, %v4493
    %v4545 = vpack.c.bf16 %v4494, %v4494
    %v4546 = vpack.c.bf16 %v4495, %v4495
    %v4547 = vld [vmem:[%s6] sm:$0x1]
    %v4549 = vperm.slane %v4547, 0
    %v4599 = vunpack.c.l.b16 %v4496
    %v4600 = vunpack.c.l.b16 %v4497
    %v4601 = vunpack.c.l.b16 %v4498
    %v4602 = vunpack.c.l.b16 %v4499
    %v4603 = vunpack.c.l.b16 %v4500
    %v4604 = vunpack.c.l.b16 %v4501
    %v4605 = vunpack.c.l.b16 %v4502
    %v4606 = vunpack.c.l.b16 %v4503
    %v4607 = vunpack.c.l.b16 %v4504
    %v4608 = vunpack.c.l.b16 %v4505
    %v4609 = vunpack.c.l.b16 %v4506
    %v4610 = vunpack.c.l.b16 %v4507
    %v4611 = vunpack.c.l.b16 %v4508
    %v4612 = vunpack.c.l.b16 %v4509
    %v4613 = vunpack.c.l.b16 %v4510
    %v4614 = vunpack.c.l.b16 %v4511
    %v4615 = vunpack.c.l.b16 %v4512
    %v4616 = vunpack.c.l.b16 %v4513
    %v4617 = vunpack.c.l.b16 %v4514
    %v4618 = vunpack.c.l.b16 %v4515
    %v4619 = vunpack.c.l.b16 %v4516
    %v4620 = vunpack.c.l.b16 %v4517
    %v4621 = vunpack.c.l.b16 %v4518
    %v4622 = vunpack.c.l.b16 %v4519
    %v4623 = vunpack.c.l.b16 %v4520
    %v4624 = vunpack.c.l.b16 %v4521
    %v4625 = vunpack.c.l.b16 %v4522
    %v4626 = vunpack.c.l.b16 %v4523
    %v4627 = vunpack.c.l.b16 %v4524
    %v4628 = vunpack.c.l.b16 %v4525
    %v4629 = vunpack.c.l.b16 %v4526
    %v4630 = vunpack.c.l.b16 %v4527
    %v4631 = vunpack.c.l.b16 %v4528
    %v4632 = vunpack.c.l.b16 %v4529
    %v4633 = vunpack.c.l.b16 %v4530
    %v4634 = vunpack.c.l.b16 %v4531
    %v4635 = vunpack.c.l.b16 %v4532
    %v4636 = vunpack.c.l.b16 %v4533
    %v4637 = vunpack.c.l.b16 %v4534
    %v4638 = vunpack.c.l.b16 %v4535
    %v4639 = vunpack.c.l.b16 %v4536
    %v4640 = vunpack.c.l.b16 %v4537
    %v4641 = vunpack.c.l.b16 %v4538
    %v4642 = vunpack.c.l.b16 %v4539
    %v4643 = vunpack.c.l.b16 %v4540
    %v4644 = vunpack.c.l.b16 %v4541
    %v4645 = vunpack.c.l.b16 %v4542
    %v4646 = vunpack.c.l.b16 %v4543
    %v4647 = vpack.c.b16 %v4600, %v4599
    %v4648 = vpack.c.b16 %v4602, %v4601
    %v4649 = vpack.c.b16 %v4604, %v4603
    %v4650 = vpack.c.b16 %v4606, %v4605
    %v4651 = vpack.c.b16 %v4608, %v4607
    %v4652 = vpack.c.b16 %v4610, %v4609
    %v4653 = vpack.c.b16 %v4612, %v4611
    %v4654 = vpack.c.b16 %v4614, %v4613
    %v4655 = vpack.c.b16 %v4616, %v4615
    %v4656 = vpack.c.b16 %v4618, %v4617
    %v4657 = vpack.c.b16 %v4620, %v4619
    %v4658 = vpack.c.b16 %v4622, %v4621
    %v4659 = vpack.c.b16 %v4624, %v4623
    %v4660 = vpack.c.b16 %v4626, %v4625
    %v4661 = vpack.c.b16 %v4628, %v4627
    %v4662 = vpack.c.b16 %v4630, %v4629
    %v4663 = vpack.c.b16 %v4632, %v4631
    %v4664 = vpack.c.b16 %v4634, %v4633
    %v4665 = vpack.c.b16 %v4636, %v4635
    %v4666 = vpack.c.b16 %v4638, %v4637
    %v4667 = vpack.c.b16 %v4640, %v4639
    %v4668 = vpack.c.b16 %v4642, %v4641
    %v4669 = vpack.c.b16 %v4644, %v4643
    %v4670 = vpack.c.b16 %v4646, %v4645
    %4695 = vmatpush.bf16.msra.mxu0 %v4654
    %4696 = vmatpush.bf16.msra.mxu0 %v4653
    %4697 = vmatpush.bf16.msra.mxu0 %v4652
    %4698 = vmatpush.bf16.msra.mxu0 %v4651
    %4699 = vmatpush.bf16.msra.mxu0 %v4650
    %4700 = vmatpush.bf16.msra.mxu0 %v4649
    %4701 = vmatpush.bf16.msra.mxu0 %v4648
    %4702 = vmatpush.bf16.msra.mxu0 %v4647
    %4703 = vmatmul.bf16.gmra.mxu0 %v4544
    %v4704 = vpop.f32.mrf.mxu0
    %v4705 = vadd.f32 %v4549, %v4704
    %v4706 = vpop.f32.mrf.mxu0
    %4707 = vdwg.mxu0
    %4708 = vmatpush.bf16.msra.mxu0 %v4662
    %4709 = vmatpush.bf16.msra.mxu0 %v4661
    %4710 = vmatpush.bf16.msra.mxu0 %v4660
    %4711 = vmatpush.bf16.msra.mxu0 %v4659
    %4712 = vmatpush.bf16.msra.mxu0 %v4658
    %4713 = vmatpush.bf16.msra.mxu0 %v4657
    %4714 = vmatpush.bf16.msra.mxu0 %v4656
    %4715 = vmatpush.bf16.msra.mxu0 %v4655
    %4716 = vmatmul.bf16.gmra.mxu0 %v4545
    %v4717 = vpop.f32.mrf.mxu0
    %v4718 = vadd.f32 %v4705, %v4717
    %v4719 = vpop.f32.mrf.mxu0
    %4720 = vdwg.mxu0
    %4721 = vmatpush.bf16.msra.mxu0 %v4670
    %4722 = vmatpush.bf16.msra.mxu0 %v4669
    %4723 = vmatpush.bf16.msra.mxu0 %v4668
    %4724 = vmatpush.bf16.msra.mxu0 %v4667
    %4725 = vmatpush.bf16.msra.mxu0 %v4666
    %4726 = vmatpush.bf16.msra.mxu0 %v4665
    %4727 = vmatpush.bf16.msra.mxu0 %v4664
    %4728 = vmatpush.bf16.msra.mxu0 %v4663
    %4729 = vmatmul.bf16.gmra.mxu0 %v4546
    %v4730 = vpop.f32.mrf.mxu0
    %v4731 = vadd.f32 %v4718, %v4730
    %v4732 = vpop.f32.mrf.mxu0
    %4733 = vdwg.mxu0
    %v4734 = vmax.f32 %v4731, 0.0
    %v4735 = vld [vmem:[%s7] sm:$0xf]
    %v4736 = vld [vmem:[%s7 + $0x4] sm:$0xf]
    %v4737 = vld [vmem:[%s7 + $0x8] sm:$0xf]
    %v4738 = vld [vmem:[%s7 + $0xc] sm:$0xf]
    %v4739 = vld [vmem:[%s7 + $0x10] sm:$0xf]
    %v4740 = vld [vmem:[%s7 + $0x14] sm:$0xf]
    %v4741 = vld [vmem:[%s7 + $0x18] sm:$0xf]
    %v4742 = vld [vmem:[%s7 + $0x1c] sm:$0xf]
    %v4743 = vld [vmem:[%s7 + $0x20] sm:$0xf]
    %v4744 = vld [vmem:[%s7 + $0x24] sm:$0xf]
    %v4745 = vld [vmem:[%s7 + $0x28] sm:$0xf]
    %v4746 = vld [vmem:[%s7 + $0x2c] sm:$0xf]
    %v4747 = vld [vmem:[%s7 + $0x30] sm:$0xf]
    %v4748 = vld [vmem:[%s7 + $0x34] sm:$0xf]
    %v4749 = vld [vmem:[%s7 + $0x38] sm:$0xf]
    %v4750 = vld [vmem:[%s7 + $0x3c] sm:$0xf]
    %v4751 = vpack.c.bf16 %v4734, %v4734
    %v4752 = vld [vmem:[%s8] sm:$0x1]
    %v4754 = vperm.slane %v4752, 0
    %v4772 = vunpack.c.l.b16 %v4735
    %v4773 = vunpack.c.l.b16 %v4736
    %v4774 = vunpack.c.l.b16 %v4737
    %v4775 = vunpack.c.l.b16 %v4738
    %v4776 = vunpack.c.l.b16 %v4739
    %v4777 = vunpack.c.l.b16 %v4740
    %v4778 = vunpack.c.l.b16 %v4741
    %v4779 = vunpack.c.l.b16 %v4742
    %v4780 = vunpack.c.l.b16 %v4743
    %v4781 = vunpack.c.l.b16 %v4744
    %v4782 = vunpack.c.l.b16 %v4745
    %v4783 = vunpack.c.l.b16 %v4746
    %v4784 = vunpack.c.l.b16 %v4747
    %v4785 = vunpack.c.l.b16 %v4748
    %v4786 = vunpack.c.l.b16 %v4749
    %v4787 = vunpack.c.l.b16 %v4750
    %v4788 = vpack.c.b16 %v4773, %v4772
    %v4789 = vpack.c.b16 %v4775, %v4774
    %v4790 = vpack.c.b16 %v4777, %v4776
    %v4791 = vpack.c.b16 %v4779, %v4778
    %v4792 = vpack.c.b16 %v4781, %v4780
    %v4793 = vpack.c.b16 %v4783, %v4782
    %v4794 = vpack.c.b16 %v4785, %v4784
    %v4795 = vpack.c.b16 %v4787, %v4786
    %4804 = vmatpush.bf16.msra.mxu0 %v4795
    %4805 = vmatpush.bf16.msra.mxu0 %v4794
    %4806 = vmatpush.bf16.msra.mxu0 %v4793
    %4807 = vmatpush.bf16.msra.mxu0 %v4792
    %4808 = vmatpush.bf16.msra.mxu0 %v4791
    %4809 = vmatpush.bf16.msra.mxu0 %v4790
    %4810 = vmatpush.bf16.msra.mxu0 %v4789
    %4811 = vmatpush.bf16.msra.mxu0 %v4788
    %4812 = vmatmul.bf16.gmra.mxu0 %v4751
    %v4813 = vpop.f32.mrf.mxu0
    %v4814 = vadd.f32 %v4754, %v4813
    %v4815 = vpop.f32.mrf.mxu0
    %4816 = vdwg.mxu0
    %v4817 = vld [vmem:[%s9] sm:$0xf]
    %v4818 = vld [vmem:[%s9 + $0x4] sm:$0xf]
    %v4819 = vld [vmem:[%s9 + $0x8] sm:$0xf]
    %v4820 = vld [vmem:[%s9 + $0xc] sm:$0xf]
    %v4821 = vld [vmem:[%s9 + $0x10] sm:$0xf]
    %v4822 = vld [vmem:[%s9 + $0x14] sm:$0xf]
    %v4823 = vld [vmem:[%s9 + $0x18] sm:$0xf]
    %v4824 = vld [vmem:[%s9 + $0x1c] sm:$0xf]
    %v4825 = vpack.c.bf16 %v4814, %v4814
    %v4826 = vld [vmem:[%s10] sm:$0x1]
    %v4828 = vperm.slane %v4826, 0
    %v4838 = vunpack.c.l.b16 %v4817
    %v4839 = vunpack.c.l.b16 %v4818
    %v4840 = vunpack.c.l.b16 %v4819
    %v4841 = vunpack.c.l.b16 %v4820
    %v4842 = vunpack.c.l.b16 %v4821
    %v4843 = vunpack.c.l.b16 %v4822
    %v4844 = vunpack.c.l.b16 %v4823
    %v4845 = vunpack.c.l.b16 %v4824
    %v4846 = vpack.c.b16 %v4839, %v4838
    %v4847 = vpack.c.b16 %v4841, %v4840
    %v4848 = vpack.c.b16 %v4843, %v4842
    %v4849 = vpack.c.b16 %v4845, %v4844
    %vm4854 = vcmask 523264
    %v4856 = vsel %vm4854, %v4825, 0
    %4858 = vmatpush.bf16.msra.mxu0 0
    %4859 = vmatpush.bf16.msra.mxu0 0
    %4860 = vmatpush.bf16.msra.mxu0 0
    %4861 = vmatpush.bf16.msra.mxu0 0
    %4862 = vmatpush.bf16.msra.mxu0 %v4849
    %4863 = vmatpush.bf16.msra.mxu0 %v4848
    %4864 = vmatpush.bf16.msra.mxu0 %v4847
    %4865 = vmatpush.bf16.msra.mxu0 %v4846
    %4866 = vmatmul.bf16.gmra.mxu0 %v4856
    %v4867 = vpop.f32.mrf.mxu0
    %v4868 = vadd.f32 %v4828, %v4867
    %v4869 = vpop.f32.mrf.mxu0
    %4870 = vdwg.mxu0
    %v4871 = vmax.f32 %v4868, 0.0
    %v4872 = vld [vmem:[%s11] sm:$0xff]
    %v4873 = vld [vmem:[%s11 + $0x8] sm:$0xff]
    %v4874 = vld [vmem:[%s11 + $0x10] sm:$0xff]
    %v4875 = vld [vmem:[%s11 + $0x18] sm:$0xff]
    %v4876 = vld [vmem:[%s11 + $0x20] sm:$0xff]
    %v4877 = vld [vmem:[%s11 + $0x28] sm:$0xff]
    %v4878 = vld [vmem:[%s11 + $0x30] sm:$0xff]
    %v4879 = vld [vmem:[%s11 + $0x38] sm:$0xff]
    %v4880 = vld [vmem:[%s11 + $0x40] sm:$0xff]
    %v4881 = vld [vmem:[%s11 + $0x48] sm:$0xff]
    %v4882 = vld [vmem:[%s11 + $0x50] sm:$0xff]
    %v4883 = vld [vmem:[%s11 + $0x58] sm:$0xff]
    %v4884 = vld [vmem:[%s11 + $0x60] sm:$0xff]
    %v4885 = vld [vmem:[%s11 + $0x68] sm:$0xff]
    %v4886 = vld [vmem:[%s11 + $0x70] sm:$0xff]
    %v4887 = vld [vmem:[%s11 + $0x78] sm:$0xff]
    %v4888 = vpack.c.bf16 %v4871, %v4871
    %v4889 = vld [vmem:[%s12] sm:$0x3]
    %v4891 = vperm.slane %v4889, 0
    %v4892 = vperm.slane %v4889, 1
    %v4911 = vunpack.c.l.b16 %v4872
    %v4912 = vunpack.c.h.b16 %v4872
    %v4913 = vunpack.c.l.b16 %v4873
    %v4914 = vunpack.c.h.b16 %v4873
    %v4915 = vunpack.c.l.b16 %v4874
    %v4916 = vunpack.c.h.b16 %v4874
    %v4917 = vunpack.c.l.b16 %v4875
    %v4918 = vunpack.c.h.b16 %v4875
    %v4919 = vunpack.c.l.b16 %v4876
    %v4920 = vunpack.c.h.b16 %v4876
    %v4921 = vunpack.c.l.b16 %v4877
    %v4922 = vunpack.c.h.b16 %v4877
    %v4923 = vunpack.c.l.b16 %v4878
    %v4924 = vunpack.c.h.b16 %v4878
    %v4925 = vunpack.c.l.b16 %v4879
    %v4926 = vunpack.c.h.b16 %v4879
    %v4927 = vunpack.c.l.b16 %v4880
    %v4928 = vunpack.c.h.b16 %v4880
    %v4929 = vunpack.c.l.b16 %v4881
    %v4930 = vunpack.c.h.b16 %v4881
    %v4931 = vunpack.c.l.b16 %v4882
    %v4932 = vunpack.c.h.b16 %v4882
    %v4933 = vunpack.c.l.b16 %v4883
    %v4934 = vunpack.c.h.b16 %v4883
    %v4935 = vunpack.c.l.b16 %v4884
    %v4936 = vunpack.c.h.b16 %v4884
    %v4937 = vunpack.c.l.b16 %v4885
    %v4938 = vunpack.c.h.b16 %v4885
    %v4939 = vunpack.c.l.b16 %v4886
    %v4940 = vunpack.c.h.b16 %v4886
    %v4941 = vunpack.c.l.b16 %v4887
    %v4942 = vunpack.c.h.b16 %v4887
    %v4943 = vpack.c.b16 %v4913, %v4911
    %v4944 = vpack.c.b16 %v4914, %v4912
    %v4945 = vpack.c.b16 %v4917, %v4915
    %v4946 = vpack.c.b16 %v4918, %v4916
    %v4947 = vpack.c.b16 %v4921, %v4919
    %v4948 = vpack.c.b16 %v4922, %v4920
    %v4949 = vpack.c.b16 %v4925, %v4923
    %v4950 = vpack.c.b16 %v4926, %v4924
    %v4951 = vpack.c.b16 %v4929, %v4927
    %v4952 = vpack.c.b16 %v4930, %v4928
    %v4953 = vpack.c.b16 %v4933, %v4931
    %v4954 = vpack.c.b16 %v4934, %v4932
    %v4955 = vpack.c.b16 %v4937, %v4935
    %v4956 = vpack.c.b16 %v4938, %v4936
    %v4957 = vpack.c.b16 %v4941, %v4939
    %v4958 = vpack.c.b16 %v4942, %v4940
    %4975 = vmatpush.bf16.msra.mxu0 %v4957
    %4976 = vmatpush.bf16.msra.mxu0 %v4955
    %4977 = vmatpush.bf16.msra.mxu0 %v4953
    %4978 = vmatpush.bf16.msra.mxu0 %v4951
    %4979 = vmatpush.bf16.msra.mxu0 %v4949
    %4980 = vmatpush.bf16.msra.mxu0 %v4947
    %4981 = vmatpush.bf16.msra.mxu0 %v4945
    %4982 = vmatpush.bf16.msra.mxu0 %v4943
    %4983 = vmatmul.bf16.gmra.mxu0 %v4888
    %v4984 = vpop.f32.mrf.mxu0
    %v4985 = vadd.f32 %v4891, %v4984
    %v4986 = vpop.f32.mrf.mxu0
    %4987 = vdwg.mxu0
    %4988 = vmatpush.bf16.msra.mxu0 %v4958
    %4989 = vmatpush.bf16.msra.mxu0 %v4956
    %4990 = vmatpush.bf16.msra.mxu0 %v4954
    %4991 = vmatpush.bf16.msra.mxu0 %v4952
    %4992 = vmatpush.bf16.msra.mxu0 %v4950
    %4993 = vmatpush.bf16.msra.mxu0 %v4948
    %4994 = vmatpush.bf16.msra.mxu0 %v4946
    %4995 = vmatpush.bf16.msra.mxu0 %v4944
    %4996 = vmatmul.bf16.gmra.mxu0 %v4888
    %v4997 = vpop.f32.mrf.mxu0
    %v4998 = vadd.f32 %v4892, %v4997
    %v4999 = vpop.f32.mrf.mxu0
    %5000 = vdwg.mxu0
    %v5001 = vtanh.pop %v4985
    %v5002 = vtanh.pop %v4998
    %v5003 = vld [vmem:[%s13] sm:$0xff]
    %v5004 = vld [vmem:[%s13 + $0x8] sm:$0xff]
    %v5005 = vld [vmem:[%s13 + $0x10] sm:$0xff]
    %v5006 = vld [vmem:[%s13 + $0x18] sm:$0xff]
    %v5007 = vld [vmem:[%s13 + $0x20] sm:$0xff]
    %v5008 = vld [vmem:[%s13 + $0x28] sm:$0xff]
    %v5009 = vld [vmem:[%s13 + $0x30] sm:$0xff]
    %v5010 = vld [vmem:[%s13 + $0x38] sm:$0xff]
    %v5011 = vld [vmem:[%s13 + $0x40] sm:$0xff]
    %v5012 = vld [vmem:[%s13 + $0x48] sm:$0xff]
    %v5013 = vld [vmem:[%s13 + $0x50] sm:$0xff]
    %v5014 = vld [vmem:[%s13 + $0x58] sm:$0xff]
    %v5015 = vld [vmem:[%s13 + $0x60] sm:$0xff]
    %v5016 = vld [vmem:[%s13 + $0x68] sm:$0xff]
    %v5017 = vld [vmem:[%s13 + $0x70] sm:$0xff]
    %v5018 = vld [vmem:[%s13 + $0x78] sm:$0xff]
    %v5019 = vld [vmem:[%s13 + $0x80] sm:$0xff]
    %v5020 = vld [vmem:[%s13 + $0x88] sm:$0xff]
    %v5021 = vld [vmem:[%s13 + $0x90] sm:$0xff]
    %v5022 = vld [vmem:[%s13 + $0x98] sm:$0xff]
    %v5023 = vld [vmem:[%s13 + $0xa0] sm:$0xff]
    %v5024 = vld [vmem:[%s13 + $0xa8] sm:$0xff]
    %v5025 = vld [vmem:[%s13 + $0xb0] sm:$0xff]
    %v5026 = vld [vmem:[%s13 + $0xb8] sm:$0xff]
    %v5027 = vld [vmem:[%s13 + $0xc0] sm:$0xff]
    %v5028 = vld [vmem:[%s13 + $0xc8] sm:$0xff]
    %v5029 = vld [vmem:[%s13 + $0xd0] sm:$0xff]
    %v5030 = vld [vmem:[%s13 + $0xd8] sm:$0xff]
    %v5031 = vld [vmem:[%s13 + $0xe0] sm:$0xff]
    %v5032 = vld [vmem:[%s13 + $0xe8] sm:$0xff]
    %v5033 = vld [vmem:[%s13 + $0xf0] sm:$0xff]
    %v5034 = vld [vmem:[%s13 + $0xf8] sm:$0xff]
    %v5035 = vld [vmem:[%s13 + $0x100] sm:$0xff]
    %v5036 = vld [vmem:[%s13 + $0x108] sm:$0xff]
    %v5037 = vld [vmem:[%s13 + $0x110] sm:$0xff]
    %v5038 = vld [vmem:[%s13 + $0x118] sm:$0xff]
    %v5039 = vld [vmem:[%s13 + $0x120] sm:$0xff]
    %v5040 = vld [vmem:[%s13 + $0x128] sm:$0xff]
    %v5041 = vld [vmem:[%s13 + $0x130] sm:$0xff]
    %v5042 = vld [vmem:[%s13 + $0x138] sm:$0xff]
    %v5043 = vld [vmem:[%s13 + $0x140] sm:$0xff]
    %v5044 = vld [vmem:[%s13 + $0x148] sm:$0xff]
    %v5045 = vld [vmem:[%s13 + $0x150] sm:$0xff]
    %v5046 = vld [vmem:[%s13 + $0x158] sm:$0xff]
    %v5047 = vld [vmem:[%s13 + $0x160] sm:$0xff]
    %v5048 = vld [vmem:[%s13 + $0x168] sm:$0xff]
    %v5049 = vld [vmem:[%s13 + $0x170] sm:$0xff]
    %v5050 = vld [vmem:[%s13 + $0x178] sm:$0xff]
    %v5051 = vld [vmem:[%s13 + $0x180] sm:$0xff]
    %v5052 = vld [vmem:[%s13 + $0x188] sm:$0xff]
    %v5053 = vld [vmem:[%s13 + $0x190] sm:$0xff]
    %v5054 = vld [vmem:[%s13 + $0x198] sm:$0xff]
    %v5055 = vld [vmem:[%s13 + $0x1a0] sm:$0xff]
    %v5056 = vld [vmem:[%s13 + $0x1a8] sm:$0xff]
    %v5057 = vld [vmem:[%s13 + $0x1b0] sm:$0xff]
    %v5058 = vld [vmem:[%s13 + $0x1b8] sm:$0xff]
    %v5059 = vld [vmem:[%s13 + $0x1c0] sm:$0xff]
    %v5060 = vld [vmem:[%s13 + $0x1c8] sm:$0xff]
    %v5061 = vld [vmem:[%s13 + $0x1d0] sm:$0xff]
    %v5062 = vld [vmem:[%s13 + $0x1d8] sm:$0xff]
    %v5063 = vld [vmem:[%s13 + $0x1e0] sm:$0xff]
    %v5064 = vld [vmem:[%s13 + $0x1e8] sm:$0xff]
    %v5065 = vld [vmem:[%s13 + $0x1f0] sm:$0xff]
    %v5066 = vld [vmem:[%s13 + $0x1f8] sm:$0xff]
    %v5067 = vpack.c.bf16 %v5001, %v5001
    %v5068 = vpack.c.bf16 %v5002, %v5002
    %v5069 = vld [vmem:[%s14] sm:$0xf]
    %v5071 = vperm.slane %v5069, 0
    %v5072 = vperm.slane %v5069, 1
    %v5073 = vperm.slane %v5069, 2
    %v5074 = vperm.slane %v5069, 3
    %v5143 = vunpack.c.l.b16 %v5003
    %v5144 = vunpack.c.h.b16 %v5003
    %v5145 = vunpack.c.l.b16 %v5004
    %v5146 = vunpack.c.h.b16 %v5004
    %v5147 = vunpack.c.l.b16 %v5005
    %v5148 = vunpack.c.h.b16 %v5005
    %v5149 = vunpack.c.l.b16 %v5006
    %v5150 = vunpack.c.h.b16 %v5006
    %v5151 = vunpack.c.l.b16 %v5007
    %v5152 = vunpack.c.h.b16 %v5007
    %v5153 = vunpack.c.l.b16 %v5008
    %v5154 = vunpack.c.h.b16 %v5008
    %v5155 = vunpack.c.l.b16 %v5009
    %v5156 = vunpack.c.h.b16 %v5009
    %v5157 = vunpack.c.l.b16 %v5010
    %v5158 = vunpack.c.h.b16 %v5010
    %v5159 = vunpack.c.l.b16 %v5011
    %v5160 = vunpack.c.h.b16 %v5011
    %v5161 = vunpack.c.l.b16 %v5012
    %v5162 = vunpack.c.h.b16 %v5012
    %v5163 = vunpack.c.l.b16 %v5013
    %v5164 = vunpack.c.h.b16 %v5013
    %v5165 = vunpack.c.l.b16 %v5014
    %v5166 = vunpack.c.h.b16 %v5014
    %v5167 = vunpack.c.l.b16 %v5015
    %v5168 = vunpack.c.h.b16 %v5015
    %v5169 = vunpack.c.l.b16 %v5016
    %v5170 = vunpack.c.h.b16 %v5016
    %v5171 = vunpack.c.l.b16 %v5017
    %v5172 = vunpack.c.h.b16 %v5017
    %v5173 = vunpack.c.l.b16 %v5018
    %v5174 = vunpack.c.h.b16 %v5018
    %v5175 = vunpack.c.l.b16 %v5019
    %v5176 = vunpack.c.h.b16 %v5019
    %v5177 = vunpack.c.l.b16 %v5020
    %v5178 = vunpack.c.h.b16 %v5020
    %v5179 = vunpack.c.l.b16 %v5021
    %v5180 = vunpack.c.h.b16 %v5021
    %v5181 = vunpack.c.l.b16 %v5022
    %v5182 = vunpack.c.h.b16 %v5022
    %v5183 = vunpack.c.l.b16 %v5023
    %v5184 = vunpack.c.h.b16 %v5023
    %v5185 = vunpack.c.l.b16 %v5024
    %v5186 = vunpack.c.h.b16 %v5024
    %v5187 = vunpack.c.l.b16 %v5025
    %v5188 = vunpack.c.h.b16 %v5025
    %v5189 = vunpack.c.l.b16 %v5026
    %v5190 = vunpack.c.h.b16 %v5026
    %v5191 = vunpack.c.l.b16 %v5027
    %v5192 = vunpack.c.h.b16 %v5027
    %v5193 = vunpack.c.l.b16 %v5028
    %v5194 = vunpack.c.h.b16 %v5028
    %v5195 = vunpack.c.l.b16 %v5029
    %v5196 = vunpack.c.h.b16 %v5029
    %v5197 = vunpack.c.l.b16 %v5030
    %v5198 = vunpack.c.h.b16 %v5030
    %v5199 = vunpack.c.l.b16 %v5031
    %v5200 = vunpack.c.h.b16 %v5031
    %v5201 = vunpack.c.l.b16 %v5032
    %v5202 = vunpack.c.h.b16 %v5032
    %v5203 = vunpack.c.l.b16 %v5033
    %v5204 = vunpack.c.h.b16 %v5033
    %v5205 = vunpack.c.l.b16 %v5034
    %v5206 = vunpack.c.h.b16 %v5034
    %v5207 = vunpack.c.l.b16 %v5035
    %v5208 = vunpack.c.h.b16 %v5035
    %v5209 = vunpack.c.l.b16 %v5036
    %v5210 = vunpack.c.h.b16 %v5036
    %v5211 = vunpack.c.l.b16 %v5037
    %v5212 = vunpack.c.h.b16 %v5037
    %v5213 = vunpack.c.l.b16 %v5038
    %v5214 = vunpack.c.h.b16 %v5038
    %v5215 = vunpack.c.l.b16 %v5039
    %v5216 = vunpack.c.h.b16 %v5039
    %v5217 = vunpack.c.l.b16 %v5040
    %v5218 = vunpack.c.h.b16 %v5040
    %v5219 = vunpack.c.l.b16 %v5041
    %v5220 = vunpack.c.h.b16 %v5041
    %v5221 = vunpack.c.l.b16 %v5042
    %v5222 = vunpack.c.h.b16 %v5042
    %v5223 = vunpack.c.l.b16 %v5043
    %v5224 = vunpack.c.h.b16 %v5043
    %v5225 = vunpack.c.l.b16 %v5044
    %v5226 = vunpack.c.h.b16 %v5044
    %v5227 = vunpack.c.l.b16 %v5045
    %v5228 = vunpack.c.h.b16 %v5045
    %v5229 = vunpack.c.l.b16 %v5046
    %v5230 = vunpack.c.h.b16 %v5046
    %v5231 = vunpack.c.l.b16 %v5047
    %v5232 = vunpack.c.h.b16 %v5047
    %v5233 = vunpack.c.l.b16 %v5048
    %v5234 = vunpack.c.h.b16 %v5048
    %v5235 = vunpack.c.l.b16 %v5049
    %v5236 = vunpack.c.h.b16 %v5049
    %v5237 = vunpack.c.l.b16 %v5050
    %v5238 = vunpack.c.h.b16 %v5050
    %v5239 = vunpack.c.l.b16 %v5051
    %v5240 = vunpack.c.h.b16 %v5051
    %v5241 = vunpack.c.l.b16 %v5052
    %v5242 = vunpack.c.h.b16 %v5052
    %v5243 = vunpack.c.l.b16 %v5053
    %v5244 = vunpack.c.h.b16 %v5053
    %v5245 = vunpack.c.l.b16 %v5054
    %v5246 = vunpack.c.h.b16 %v5054
    %v5247 = vunpack.c.l.b16 %v5055
    %v5248 = vunpack.c.h.b16 %v5055
    %v5249 = vunpack.c.l.b16 %v5056
    %v5250 = vunpack.c.h.b16 %v5056
    %v5251 = vunpack.c.l.b16 %v5057
    %v5252 = vunpack.c.h.b16 %v5057
    %v5253 = vunpack.c.l.b16 %v5058
    %v5254 = vunpack.c.h.b16 %v5058
    %v5255 = vunpack.c.l.b16 %v5059
    %v5256 = vunpack.c.h.b16 %v5059
    %v5257 = vunpack.c.l.b16 %v5060
    %v5258 = vunpack.c.h.b16 %v5060
    %v5259 = vunpack.c.l.b16 %v5061
    %v5260 = vunpack.c.h.b16 %v5061
    %v5261 = vunpack.c.l.b16 %v5062
    %v5262 = vunpack.c.h.b16 %v5062
    %v5263 = vunpack.c.l.b16 %v5063
    %v5264 = vunpack.c.h.b16 %v5063
    %v5265 = vunpack.c.l.b16 %v5064
    %v5266 = vunpack.c.h.b16 %v5064
    %v5267 = vunpack.c.l.b16 %v5065
    %v5268 = vunpack.c.h.b16 %v5065
    %v5269 = vunpack.c.l.b16 %v5066
    %v5270 = vunpack.c.h.b16 %v5066
    %v5271 = vpack.c.b16 %v5147, %v5143
    %v5272 = vpack.c.b16 %v5148, %v5144
    %v5273 = vpack.c.b16 %v5149, %v5145
    %v5274 = vpack.c.b16 %v5150, %v5146
    %v5275 = vpack.c.b16 %v5155, %v5151
    %v5276 = vpack.c.b16 %v5156, %v5152
    %v5277 = vpack.c.b16 %v5157, %v5153
    %v5278 = vpack.c.b16 %v5158, %v5154
    %v5279 = vpack.c.b16 %v5163, %v5159
    %v5280 = vpack.c.b16 %v5164, %v5160
    %v5281 = vpack.c.b16 %v5165, %v5161
    %v5282 = vpack.c.b16 %v5166, %v5162
    %v5283 = vpack.c.b16 %v5171, %v5167
    %v5284 = vpack.c.b16 %v5172, %v5168
    %v5285 = vpack.c.b16 %v5173, %v5169
    %v5286 = vpack.c.b16 %v5174, %v5170
    %v5287 = vpack.c.b16 %v5179, %v5175
    %v5288 = vpack.c.b16 %v5180, %v5176
    %v5289 = vpack.c.b16 %v5181, %v5177
    %v5290 = vpack.c.b16 %v5182, %v5178
    %v5291 = vpack.c.b16 %v5187, %v5183
    %v5292 = vpack.c.b16 %v5188, %v5184
    %v5293 = vpack.c.b16 %v5189, %v5185
    %v5294 = vpack.c.b16 %v5190, %v5186
    %v5295 = vpack.c.b16 %v5195, %v5191
    %v5296 = vpack.c.b16 %v5196, %v5192
    %v5297 = vpack.c.b16 %v5197, %v5193
    %v5298 = vpack.c.b16 %v5198, %v5194
    %v5299 = vpack.c.b16 %v5203, %v5199
    %v5300 = vpack.c.b16 %v5204, %v5200
    %v5301 = vpack.c.b16 %v5205, %v5201
    %v5302 = vpack.c.b16 %v5206, %v5202
    %v5303 = vpack.c.b16 %v5211, %v5207
    %v5304 = vpack.c.b16 %v5212, %v5208
    %v5305 = vpack.c.b16 %v5213, %v5209
    %v5306 = vpack.c.b16 %v5214, %v5210
    %v5307 = vpack.c.b16 %v5219, %v5215
    %v5308 = vpack.c.b16 %v5220, %v5216
    %v5309 = vpack.c.b16 %v5221, %v5217
    %v5310 = vpack.c.b16 %v5222, %v5218
    %v5311 = vpack.c.b16 %v5227, %v5223
    %v5312 = vpack.c.b16 %v5228, %v5224
    %v5313 = vpack.c.b16 %v5229, %v5225
    %v5314 = vpack.c.b16 %v5230, %v5226
    %v5315 = vpack.c.b16 %v5235, %v5231
    %v5316 = vpack.c.b16 %v5236, %v5232
    %v5317 = vpack.c.b16 %v5237, %v5233
    %v5318 = vpack.c.b16 %v5238, %v5234
    %v5319 = vpack.c.b16 %v5243, %v5239
    %v5320 = vpack.c.b16 %v5244, %v5240
    %v5321 = vpack.c.b16 %v5245, %v5241
    %v5322 = vpack.c.b16 %v5246, %v5242
    %v5323 = vpack.c.b16 %v5251, %v5247
    %v5324 = vpack.c.b16 %v5252, %v5248
    %v5325 = vpack.c.b16 %v5253, %v5249
    %v5326 = vpack.c.b16 %v5254, %v5250
    %v5327 = vpack.c.b16 %v5259, %v5255
    %v5328 = vpack.c.b16 %v5260, %v5256
    %v5329 = vpack.c.b16 %v5261, %v5257
    %v5330 = vpack.c.b16 %v5262, %v5258
    %v5331 = vpack.c.b16 %v5267, %v5263
    %v5332 = vpack.c.b16 %v5268, %v5264
    %v5333 = vpack.c.b16 %v5269, %v5265
    %v5334 = vpack.c.b16 %v5270, %v5266
    %5399 = vmatpush.bf16.msra.mxu0 %v5299
    %5400 = vmatpush.bf16.msra.mxu0 %v5295
    %5401 = vmatpush.bf16.msra.mxu0 %v5291
    %5402 = vmatpush.bf16.msra.mxu0 %v5287
    %5403 = vmatpush.bf16.msra.mxu0 %v5283
    %5404 = vmatpush.bf16.msra.mxu0 %v5279
    %5405 = vmatpush.bf16.msra.mxu0 %v5275
    %5406 = vmatpush.bf16.msra.mxu0 %v5271
    %5407 = vmatmul.bf16.gmra.mxu0 %v5067
    %v5408 = vpop.f32.mrf.mxu0
    %v5409 = vadd.f32 %v5071, %v5408
    %v5410 = vpop.f32.mrf.mxu0
    %5411 = vdwg.mxu0
    %5412 = vmatpush.bf16.msra.mxu0 %v5331
    %5413 = vmatpush.bf16.msra.mxu0 %v5327
    %5414 = vmatpush.bf16.msra.mxu0 %v5323
    %5415 = vmatpush.bf16.msra.mxu0 %v5319
    %5416 = vmatpush.bf16.msra.mxu0 %v5315
    %5417 = vmatpush.bf16.msra.mxu0 %v5311
    %5418 = vmatpush.bf16.msra.mxu0 %v5307
    %5419 = vmatpush.bf16.msra.mxu0 %v5303
    %5420 = vmatmul.bf16.gmra.mxu0 %v5068
    %v5421 = vpop.f32.mrf.mxu0
    %v5422 = vadd.f32 %v5409, %v5421
    %v5423 = vpop.f32.mrf.mxu0
    %5424 = vdwg.mxu0
    %5425 = vmatpush.bf16.msra.mxu0 %v5300
    %5426 = vmatpush.bf16.msra.mxu0 %v5296
    %5427 = vmatpush.bf16.msra.mxu0 %v5292
    %5428 = vmatpush.bf16.msra.mxu0 %v5288
    %5429 = vmatpush.bf16.msra.mxu0 %v5284
    %5430 = vmatpush.bf16.msra.mxu0 %v5280
    %5431 = vmatpush.bf16.msra.mxu0 %v5276
    %5432 = vmatpush.bf16.msra.mxu0 %v5272
    %5433 = vmatmul.bf16.gmra.mxu0 %v5067
    %v5434 = vpop.f32.mrf.mxu0
    %v5435 = vadd.f32 %v5072, %v5434
    %v5436 = vpop.f32.mrf.mxu0
    %5437 = vdwg.mxu0
    %5438 = vmatpush.bf16.msra.mxu0 %v5332
    %5439 = vmatpush.bf16.msra.mxu0 %v5328
    %5440 = vmatpush.bf16.msra.mxu0 %v5324
    %5441 = vmatpush.bf16.msra.mxu0 %v5320
    %5442 = vmatpush.bf16.msra.mxu0 %v5316
    %5443 = vmatpush.bf16.msra.mxu0 %v5312
    %5444 = vmatpush.bf16.msra.mxu0 %v5308
    %5445 = vmatpush.bf16.msra.mxu0 %v5304
    %5446 = vmatmul.bf16.gmra.mxu0 %v5068
    %v5447 = vpop.f32.mrf.mxu0
    %v5448 = vadd.f32 %v5435, %v5447
    %v5449 = vpop.f32.mrf.mxu0
    %5450 = vdwg.mxu0
    %5451 = vmatpush.bf16.msra.mxu0 %v5301
    %5452 = vmatpush.bf16.msra.mxu0 %v5297
    %5453 = vmatpush.bf16.msra.mxu0 %v5293
    %5454 = vmatpush.bf16.msra.mxu0 %v5289
    %5455 = vmatpush.bf16.msra.mxu0 %v5285
    %5456 = vmatpush.bf16.msra.mxu0 %v5281
    %5457 = vmatpush.bf16.msra.mxu0 %v5277
    %5458 = vmatpush.bf16.msra.mxu0 %v5273
    %5459 = vmatmul.bf16.gmra.mxu0 %v5067
    %v5460 = vpop.f32.mrf.mxu0
    %v5461 = vadd.f32 %v5073, %v5460
    %v5462 = vpop.f32.mrf.mxu0
    %5463 = vdwg.mxu0
    %5464 = vmatpush.bf16.msra.mxu0 %v5333
    %5465 = vmatpush.bf16.msra.mxu0 %v5329
    %5466 = vmatpush.bf16.msra.mxu0 %v5325
    %5467 = vmatpush.bf16.msra.mxu0 %v5321
    %5468 = vmatpush.bf16.msra.mxu0 %v5317
    %5469 = vmatpush.bf16.msra.mxu0 %v5313
    %5470 = vmatpush.bf16.msra.mxu0 %v5309
    %5471 = vmatpush.bf16.msra.mxu0 %v5305
    %5472 = vmatmul.bf16.gmra.mxu0 %v5068
    %v5473 = vpop.f32.mrf.mxu0
    %v5474 = vadd.f32 %v5461, %v5473
    %v5475 = vpop.f32.mrf.mxu0
    %5476 = vdwg.mxu0
    %5477 = vmatpush.bf16.msra.mxu0 %v5302
    %5478 = vmatpush.bf16.msra.mxu0 %v5298
    %5479 = vmatpush.bf16.msra.mxu0 %v5294
    %5480 = vmatpush.bf16.msra.mxu0 %v5290
    %5481 = vmatpush.bf16.msra.mxu0 %v5286
    %5482 = vmatpush.bf16.msra.mxu0 %v5282
    %5483 = vmatpush.bf16.msra.mxu0 %v5278
    %5484 = vmatpush.bf16.msra.mxu0 %v5274
    %5485 = vmatmul.bf16.gmra.mxu0 %v5067
    %v5486 = vpop.f32.mrf.mxu0
    %v5487 = vadd.f32 %v5074, %v5486
    %v5488 = vpop.f32.mrf.mxu0
    %5489 = vdwg.mxu0
    %5490 = vmatpush.bf16.msra.mxu0 %v5334
    %5491 = vmatpush.bf16.msra.mxu0 %v5330
    %5492 = vmatpush.bf16.msra.mxu0 %v5326
    %5493 = vmatpush.bf16.msra.mxu0 %v5322
    %5494 = vmatpush.bf16.msra.mxu0 %v5318
    %5495 = vmatpush.bf16.msra.mxu0 %v5314
    %5496 = vmatpush.bf16.msra.mxu0 %v5310
    %5497 = vmatpush.bf16.msra.mxu0 %v5306
    %5498 = vmatmul.bf16.gmra.mxu0 %v5068
    %v5499 = vpop.f32.mrf.mxu0
    %v5500 = vadd.f32 %v5487, %v5499
    %v5501 = vpop.f32.mrf.mxu0
    %5502 = vdwg.mxu0
    %v5503 = vtanh.pop %v5422
    %v5504 = vtanh.pop %v5448
    %v5505 = vtanh.pop %v5474
    %v5506 = vtanh.pop %v5500
    %v5507 = vld [vmem:[%s15] sm:$0xff]
    %v5508 = vld [vmem:[%s15 + $0x8] sm:$0xff]
    %v5509 = vld [vmem:[%s15 + $0x10] sm:$0xff]
    %v5510 = vld [vmem:[%s15 + $0x18] sm:$0xff]
    %v5511 = vld [vmem:[%s15 + $0x20] sm:$0xff]
    %v5512 = vld [vmem:[%s15 + $0x28] sm:$0xff]
    %v5513 = vld [vmem:[%s15 + $0x30] sm:$0xff]
    %v5514 = vld [vmem:[%s15 + $0x38] sm:$0xf]
    %v5515 = vld [vmem:[%s15 + $0x3c] sm:$0xff]
    %v5516 = vld [vmem:[%s15 + $0x44] sm:$0xff]
    %v5517 = vld [vmem:[%s15 + $0x4c] sm:$0xff]
    %v5518 = vld [vmem:[%s15 + $0x54] sm:$0xff]
    %v5519 = vld [vmem:[%s15 + $0x5c] sm:$0xff]
    %v5520 = vld [vmem:[%s15 + $0x64] sm:$0xff]
    %v5521 = vld [vmem:[%s15 + $0x6c] sm:$0xff]
    %v5522 = vld [vmem:[%s15 + $0x74] sm:$0xf]
    %v5523 = vld [vmem:[%s15 + $0x78] sm:$0xff]
    %v5524 = vld [vmem:[%s15 + $0x80] sm:$0xff]
    %v5525 = vld [vmem:[%s15 + $0x88] sm:$0xff]
    %v5526 = vld [vmem:[%s15 + $0x90] sm:$0xff]
    %v5527 = vld [vmem:[%s15 + $0x98] sm:$0xff]
    %v5528 = vld [vmem:[%s15 + $0xa0] sm:$0xff]
    %v5529 = vld [vmem:[%s15 + $0xa8] sm:$0xff]
    %v5530 = vld [vmem:[%s15 + $0xb0] sm:$0xf]
    %v5531 = vld [vmem:[%s15 + $0xb4] sm:$0xff]
    %v5532 = vld [vmem:[%s15 + $0xbc] sm:$0xff]
    %v5533 = vld [vmem:[%s15 + $0xc4] sm:$0xff]
    %v5534 = vld [vmem:[%s15 + $0xcc] sm:$0xff]
    %v5535 = vld [vmem:[%s15 + $0xd4] sm:$0xff]
    %v5536 = vld [vmem:[%s15 + $0xdc] sm:$0xff]
    %v5537 = vld [vmem:[%s15 + $0xe4] sm:$0xff]
    %v5538 = vld [vmem:[%s15 + $0xec] sm:$0xf]
    %v5539 = vld [vmem:[%s15 + $0xf0] sm:$0xff]
    %v5540 = vld [vmem:[%s15 + $0xf8] sm:$0xff]
    %v5541 = vld [vmem:[%s15 + $0x100] sm:$0xff]
    %v5542 = vld [vmem:[%s15 + $0x108] sm:$0xff]
    %v5543 = vld [vmem:[%s15 + $0x110] sm:$0xff]
    %v5544 = vld [vmem:[%s15 + $0x118] sm:$0xff]
    %v5545 = vld [vmem:[%s15 + $0x120] sm:$0xff]
    %v5546 = vld [vmem:[%s15 + $0x128] sm:$0xf]
    %v5547 = vld [vmem:[%s15 + $0x12c] sm:$0xff]
    %v5548 = vld [vmem:[%s15 + $0x134] sm:$0xff]
    %v5549 = vld [vmem:[%s15 + $0x13c] sm:$0xff]
    %v5550 = vld [vmem:[%s15 + $0x144] sm:$0xff]
    %v5551 = vld [vmem:[%s15 + $0x14c] sm:$0xff]
    %v5552 = vld [vmem:[%s15 + $0x154] sm:$0xff]
    %v5553 = vld [vmem:[%s15 + $0x15c] sm:$0xff]
    %v5554 = vld [vmem:[%s15 + $0x164] sm:$0xf]
    %v5555 = vld [vmem:[%s15 + $0x168] sm:$0xff]
    %v5556 = vld [vmem:[%s15 + $0x170] sm:$0xff]
    %v5557 = vld [vmem:[%s15 + $0x178] sm:$0xff]
    %v5558 = vld [vmem:[%s15 + $0x180] sm:$0xff]
    %v5559 = vld [vmem:[%s15 + $0x188] sm:$0xff]
    %v5560 = vld [vmem:[%s15 + $0x190] sm:$0xff]
    %v5561 = vld [vmem:[%s15 + $0x198] sm:$0xff]
    %v5562 = vld [vmem:[%s15 + $0x1a0] sm:$0xf]
    %v5563 = vld [vmem:[%s15 + $0x1a4] sm:$0xff]
    %v5564 = vld [vmem:[%s15 + $0x1ac] sm:$0xff]
    %v5565 = vld [vmem:[%s15 + $0x1b4] sm:$0xff]
    %v5566 = vld [vmem:[%s15 + $0x1bc] sm:$0xff]
    %v5567 = vld [vmem:[%s15 + $0x1c4] sm:$0xff]
    %v5568 = vld [vmem:[%s15 + $0x1cc] sm:$0xff]
    %v5569 = vld [vmem:[%s15 + $0x1d4] sm:$0xff]
    %v5570 = vld [vmem:[%s15 + $0x1dc] sm:$0xf]
    %v5571 = vld [vmem:[%s15 + $0x1e0] sm:$0xff]
    %v5572 = vld [vmem:[%s15 + $0x1e8] sm:$0xff]
    %v5573 = vld [vmem:[%s15 + $0x1f0] sm:$0xff]
    %v5574 = vld [vmem:[%s15 + $0x1f8] sm:$0xff]
    %v5575 = vld [vmem:[%s15 + $0x200] sm:$0xff]
    %v5576 = vld [vmem:[%s15 + $0x208] sm:$0xff]
    %v5577 = vld [vmem:[%s15 + $0x210] sm:$0xff]
    %v5578 = vld [vmem:[%s15 + $0x218] sm:$0xf]
    %v5579 = vld [vmem:[%s15 + $0x21c] sm:$0xff]
    %v5580 = vld [vmem:[%s15 + $0x224] sm:$0xff]
    %v5581 = vld [vmem:[%s15 + $0x22c] sm:$0xff]
    %v5582 = vld [vmem:[%s15 + $0x234] sm:$0xff]
    %v5583 = vld [vmem:[%s15 + $0x23c] sm:$0xff]
    %v5584 = vld [vmem:[%s15 + $0x244] sm:$0xff]
    %v5585 = vld [vmem:[%s15 + $0x24c] sm:$0xff]
    %v5586 = vld [vmem:[%s15 + $0x254] sm:$0xf]
    %v5587 = vld [vmem:[%s15 + $0x258] sm:$0xff]
    %v5588 = vld [vmem:[%s15 + $0x260] sm:$0xff]
    %v5589 = vld [vmem:[%s15 + $0x268] sm:$0xff]
    %v5590 = vld [vmem:[%s15 + $0x270] sm:$0xff]
    %v5591 = vld [vmem:[%s15 + $0x278] sm:$0xff]
    %v5592 = vld [vmem:[%s15 + $0x280] sm:$0xff]
    %v5593 = vld [vmem:[%s15 + $0x288] sm:$0xff]
    %v5594 = vld [vmem:[%s15 + $0x290] sm:$0xf]
    %v5595 = vld [vmem:[%s15 + $0x294] sm:$0xff]
    %v5596 = vld [vmem:[%s15 + $0x29c] sm:$0xff]
    %v5597 = vld [vmem:[%s15 + $0x2a4] sm:$0xff]
    %v5598 = vld [vmem:[%s15 + $0x2ac] sm:$0xff]
    %v5599 = vld [vmem:[%s15 + $0x2b4] sm:$0xff]
    %v5600 = vld [vmem:[%s15 + $0x2bc] sm:$0xff]
    %v5601 = vld [vmem:[%s15 + $0x2c4] sm:$0xff]
    %v5602 = vld [vmem:[%s15 + $0x2cc] sm:$0xf]
    %v5603 = vld [vmem:[%s15 + $0x2d0] sm:$0xff]
    %v5604 = vld [vmem:[%s15 + $0x2d8] sm:$0xff]
    %v5605 = vld [vmem:[%s15 + $0x2e0] sm:$0xff]
    %v5606 = vld [vmem:[%s15 + $0x2e8] sm:$0xff]
    %v5607 = vld [vmem:[%s15 + $0x2f0] sm:$0xff]
    %v5608 = vld [vmem:[%s15 + $0x2f8] sm:$0xff]
    %v5609 = vld [vmem:[%s15 + $0x300] sm:$0xff]
    %v5610 = vld [vmem:[%s15 + $0x308] sm:$0xf]
    %v5611 = vld [vmem:[%s15 + $0x30c] sm:$0xff]
    %v5612 = vld [vmem:[%s15 + $0x314] sm:$0xff]
    %v5613 = vld [vmem:[%s15 + $0x31c] sm:$0xff]
    %v5614 = vld [vmem:[%s15 + $0x324] sm:$0xff]
    %v5615 = vld [vmem:[%s15 + $0x32c] sm:$0xff]
    %v5616 = vld [vmem:[%s15 + $0x334] sm:$0xff]
    %v5617 = vld [vmem:[%s15 + $0x33c] sm:$0xff]
    %v5618 = vld [vmem:[%s15 + $0x344] sm:$0xf]
    %v5619 = vld [vmem:[%s15 + $0x348] sm:$0xff]
    %v5620 = vld [vmem:[%s15 + $0x350] sm:$0xff]
    %v5621 = vld [vmem:[%s15 + $0x358] sm:$0xff]
    %v5622 = vld [vmem:[%s15 + $0x360] sm:$0xff]
    %v5623 = vld [vmem:[%s15 + $0x368] sm:$0xff]
    %v5624 = vld [vmem:[%s15 + $0x370] sm:$0xff]
    %v5625 = vld [vmem:[%s15 + $0x378] sm:$0xff]
    %v5626 = vld [vmem:[%s15 + $0x380] sm:$0xf]
    %v5627 = vld [vmem:[%s15 + $0x384] sm:$0xff]
    %v5628 = vld [vmem:[%s15 + $0x38c] sm:$0xff]
    %v5629 = vld [vmem:[%s15 + $0x394] sm:$0xff]
    %v5630 = vld [vmem:[%s15 + $0x39c] sm:$0xff]
    %v5631 = vld [vmem:[%s15 + $0x3a4] sm:$0xff]
    %v5632 = vld [vmem:[%s15 + $0x3ac] sm:$0xff]
    %v5633 = vld [vmem:[%s15 + $0x3b4] sm:$0xff]
    %v5634 = vld [vmem:[%s15 + $0x3bc] sm:$0xf]
    %v5635 = vld [vmem:[%s15 + $0x3c0] sm:$0xff]
    %v5636 = vld [vmem:[%s15 + $0x3c8] sm:$0xff]
    %v5637 = vld [vmem:[%s15 + $0x3d0] sm:$0xff]
    %v5638 = vld [vmem:[%s15 + $0x3d8] sm:$0xff]
    %v5639 = vld [vmem:[%s15 + $0x3e0] sm:$0xff]
    %v5640 = vld [vmem:[%s15 + $0x3e8] sm:$0xff]
    %v5641 = vld [vmem:[%s15 + $0x3f0] sm:$0xff]
    %v5642 = vld [vmem:[%s15 + $0x3f8] sm:$0xf]
    %v5643 = vld [vmem:[%s15 + $0x3fc] sm:$0xff]
    %v5644 = vld [vmem:[%s15 + $0x404] sm:$0xff]
    %v5645 = vld [vmem:[%s15 + $0x40c] sm:$0xff]
    %v5646 = vld [vmem:[%s15 + $0x414] sm:$0xff]
    %v5647 = vld [vmem:[%s15 + $0x41c] sm:$0xff]
    %v5648 = vld [vmem:[%s15 + $0x424] sm:$0xff]
    %v5649 = vld [vmem:[%s15 + $0x42c] sm:$0xff]
    %v5650 = vld [vmem:[%s15 + $0x434] sm:$0xf]
    %v5651 = vld [vmem:[%s15 + $0x438] sm:$0xff]
    %v5652 = vld [vmem:[%s15 + $0x440] sm:$0xff]
    %v5653 = vld [vmem:[%s15 + $0x448] sm:$0xff]
    %v5654 = vld [vmem:[%s15 + $0x450] sm:$0xff]
    %v5655 = vld [vmem:[%s15 + $0x458] sm:$0xff]
    %v5656 = vld [vmem:[%s15 + $0x460] sm:$0xff]
    %v5657 = vld [vmem:[%s15 + $0x468] sm:$0xff]
    %v5658 = vld [vmem:[%s15 + $0x470] sm:$0xf]
    %v5659 = vld [vmem:[%s15 + $0x474] sm:$0xff]
    %v5660 = vld [vmem:[%s15 + $0x47c] sm:$0xff]
    %v5661 = vld [vmem:[%s15 + $0x484] sm:$0xff]
    %v5662 = vld [vmem:[%s15 + $0x48c] sm:$0xff]
    %v5663 = vld [vmem:[%s15 + $0x494] sm:$0xff]
    %v5664 = vld [vmem:[%s15 + $0x49c] sm:$0xff]
    %v5665 = vld [vmem:[%s15 + $0x4a4] sm:$0xff]
    %v5666 = vld [vmem:[%s15 + $0x4ac] sm:$0xf]
    %v5667 = vld [vmem:[%s15 + $0x4b0] sm:$0xff]
    %v5668 = vld [vmem:[%s15 + $0x4b8] sm:$0xff]
    %v5669 = vld [vmem:[%s15 + $0x4c0] sm:$0xff]
    %v5670 = vld [vmem:[%s15 + $0x4c8] sm:$0xff]
    %v5671 = vld [vmem:[%s15 + $0x4d0] sm:$0xff]
    %v5672 = vld [vmem:[%s15 + $0x4d8] sm:$0xff]
    %v5673 = vld [vmem:[%s15 + $0x4e0] sm:$0xff]
    %v5674 = vld [vmem:[%s15 + $0x4e8] sm:$0xf]
    %v5675 = vld [vmem:[%s15 + $0x4ec] sm:$0xff]
    %v5676 = vld [vmem:[%s15 + $0x4f4] sm:$0xff]
    %v5677 = vld [vmem:[%s15 + $0x4fc] sm:$0xff]
    %v5678 = vld [vmem:[%s15 + $0x504] sm:$0xff]
    %v5679 = vld [vmem:[%s15 + $0x50c] sm:$0xff]
    %v5680 = vld [vmem:[%s15 + $0x514] sm:$0xff]
    %v5681 = vld [vmem:[%s15 + $0x51c] sm:$0xff]
    %v5682 = vld [vmem:[%s15 + $0x524] sm:$0xf]
    %v5683 = vld [vmem:[%s15 + $0x528] sm:$0xff]
    %v5684 = vld [vmem:[%s15 + $0x530] sm:$0xff]
    %v5685 = vld [vmem:[%s15 + $0x538] sm:$0xff]
    %v5686 = vld [vmem:[%s15 + $0x540] sm:$0xff]
    %v5687 = vld [vmem:[%s15 + $0x548] sm:$0xff]
    %v5688 = vld [vmem:[%s15 + $0x550] sm:$0xff]
    %v5689 = vld [vmem:[%s15 + $0x558] sm:$0xff]
    %v5690 = vld [vmem:[%s15 + $0x560] sm:$0xf]
    %v5691 = vld [vmem:[%s15 + $0x564] sm:$0xff]
    %v5692 = vld [vmem:[%s15 + $0x56c] sm:$0xff]
    %v5693 = vld [vmem:[%s15 + $0x574] sm:$0xff]
    %v5694 = vld [vmem:[%s15 + $0x57c] sm:$0xff]
    %v5695 = vld [vmem:[%s15 + $0x584] sm:$0xff]
    %v5696 = vld [vmem:[%s15 + $0x58c] sm:$0xff]
    %v5697 = vld [vmem:[%s15 + $0x594] sm:$0xff]
    %v5698 = vld [vmem:[%s15 + $0x59c] sm:$0xf]
    %v5699 = vld [vmem:[%s15 + $0x5a0] sm:$0xff]
    %v5700 = vld [vmem:[%s15 + $0x5a8] sm:$0xff]
    %v5701 = vld [vmem:[%s15 + $0x5b0] sm:$0xff]
    %v5702 = vld [vmem:[%s15 + $0x5b8] sm:$0xff]
    %v5703 = vld [vmem:[%s15 + $0x5c0] sm:$0xff]
    %v5704 = vld [vmem:[%s15 + $0x5c8] sm:$0xff]
    %v5705 = vld [vmem:[%s15 + $0x5d0] sm:$0xff]
    %v5706 = vld [vmem:[%s15 + $0x5d8] sm:$0xf]
    %v5707 = vld [vmem:[%s15 + $0x5dc] sm:$0xff]
    %v5708 = vld [vmem:[%s15 + $0x5e4] sm:$0xff]
    %v5709 = vld [vmem:[%s15 + $0x5ec] sm:$0xff]
    %v5710 = vld [vmem:[%s15 + $0x5f4] sm:$0xff]
    %v5711 = vld [vmem:[%s15 + $0x5fc] sm:$0xff]
    %v5712 = vld [vmem:[%s15 + $0x604] sm:$0xff]
    %v5713 = vld [vmem:[%s15 + $0x60c] sm:$0xff]
    %v5714 = vld [vmem:[%s15 + $0x614] sm:$0xf]
    %v5715 = vld [vmem:[%s15 + $0x618] sm:$0xff]
    %v5716 = vld [vmem:[%s15 + $0x620] sm:$0xff]
    %v5717 = vld [vmem:[%s15 + $0x628] sm:$0xff]
    %v5718 = vld [vmem:[%s15 + $0x630] sm:$0xff]
    %v5719 = vld [vmem:[%s15 + $0x638] sm:$0xff]
    %v5720 = vld [vmem:[%s15 + $0x640] sm:$0xff]
    %v5721 = vld [vmem:[%s15 + $0x648] sm:$0xff]
    %v5722 = vld [vmem:[%s15 + $0x650] sm:$0xf]
    %v5723 = vld [vmem:[%s15 + $0x654] sm:$0xff]
    %v5724 = vld [vmem:[%s15 + $0x65c] sm:$0xff]
    %v5725 = vld [vmem:[%s15 + $0x664] sm:$0xff]
    %v5726 = vld [vmem:[%s15 + $0x66c] sm:$0xff]
    %v5727 = vld [vmem:[%s15 + $0x674] sm:$0xff]
    %v5728 = vld [vmem:[%s15 + $0x67c] sm:$0xff]
    %v5729 = vld [vmem:[%s15 + $0x684] sm:$0xff]
    %v5730 = vld [vmem:[%s15 + $0x68c] sm:$0xf]
    %v5731 = vld [vmem:[%s15 + $0x690] sm:$0xff]
    %v5732 = vld [vmem:[%s15 + $0x698] sm:$0xff]
    %v5733 = vld [vmem:[%s15 + $0x6a0] sm:$0xff]
    %v5734 = vld [vmem:[%s15 + $0x6a8] sm:$0xff]
    %v5735 = vld [vmem:[%s15 + $0x6b0] sm:$0xff]
    %v5736 = vld [vmem:[%s15 + $0x6b8] sm:$0xff]
    %v5737 = vld [vmem:[%s15 + $0x6c0] sm:$0xff]
    %v5738 = vld [vmem:[%s15 + $0x6c8] sm:$0xf]
    %v5739 = vld [vmem:[%s15 + $0x6cc] sm:$0xff]
    %v5740 = vld [vmem:[%s15 + $0x6d4] sm:$0xff]
    %v5741 = vld [vmem:[%s15 + $0x6dc] sm:$0xff]
    %v5742 = vld [vmem:[%s15 + $0x6e4] sm:$0xff]
    %v5743 = vld [vmem:[%s15 + $0x6ec] sm:$0xff]
    %v5744 = vld [vmem:[%s15 + $0x6f4] sm:$0xff]
    %v5745 = vld [vmem:[%s15 + $0x6fc] sm:$0xff]
    %v5746 = vld [vmem:[%s15 + $0x704] sm:$0xf]
    %v5747 = vld [vmem:[%s15 + $0x708] sm:$0xff]
    %v5748 = vld [vmem:[%s15 + $0x710] sm:$0xff]
    %v5749 = vld [vmem:[%s15 + $0x718] sm:$0xff]
    %v5750 = vld [vmem:[%s15 + $0x720] sm:$0xff]
    %v5751 = vld [vmem:[%s15 + $0x728] sm:$0xff]
    %v5752 = vld [vmem:[%s15 + $0x730] sm:$0xff]
    %v5753 = vld [vmem:[%s15 + $0x738] sm:$0xff]
    %v5754 = vld [vmem:[%s15 + $0x740] sm:$0xf]
    %v5755 = vld [vmem:[%s15 + $0x744] sm:$0xff]
    %v5756 = vld [vmem:[%s15 + $0x74c] sm:$0xff]
    %v5757 = vld [vmem:[%s15 + $0x754] sm:$0xff]
    %v5758 = vld [vmem:[%s15 + $0x75c] sm:$0xff]
    %v5759 = vld [vmem:[%s15 + $0x764] sm:$0xff]
    %v5760 = vld [vmem:[%s15 + $0x76c] sm:$0xff]
    %v5761 = vld [vmem:[%s15 + $0x774] sm:$0xff]
    %v5762 = vld [vmem:[%s15 + $0x77c] sm:$0xf]
    %v5763 = vld [vmem:[%s15 + $0x780] sm:$0xff]
    %v5764 = vld [vmem:[%s15 + $0x788] sm:$0xff]
    %v5765 = vld [vmem:[%s15 + $0x790] sm:$0xff]
    %v5766 = vld [vmem:[%s15 + $0x798] sm:$0xff]
    %v5767 = vld [vmem:[%s15 + $0x7a0] sm:$0xff]
    %v5768 = vld [vmem:[%s15 + $0x7a8] sm:$0xff]
    %v5769 = vld [vmem:[%s15 + $0x7b0] sm:$0xff]
    %v5770 = vld [vmem:[%s15 + $0x7b8] sm:$0xf]
    %v5771 = vld [vmem:[%s15 + $0x7bc] sm:$0xff]
    %v5772 = vld [vmem:[%s15 + $0x7c4] sm:$0xff]
    %v5773 = vld [vmem:[%s15 + $0x7cc] sm:$0xff]
    %v5774 = vld [vmem:[%s15 + $0x7d4] sm:$0xff]
    %v5775 = vld [vmem:[%s15 + $0x7dc] sm:$0xff]
    %v5776 = vld [vmem:[%s15 + $0x7e4] sm:$0xff]
    %v5777 = vld [vmem:[%s15 + $0x7ec] sm:$0xff]
    %v5778 = vld [vmem:[%s15 + $0x7f4] sm:$0xf]
    %v5779 = vld [vmem:[%s15 + $0x7f8] sm:$0xff]
    %v5780 = vld [vmem:[%s15 + $0x800] sm:$0xff]
    %v5781 = vld [vmem:[%s15 + $0x808] sm:$0xff]
    %v5782 = vld [vmem:[%s15 + $0x810] sm:$0xff]
    %v5783 = vld [vmem:[%s15 + $0x818] sm:$0xff]
    %v5784 = vld [vmem:[%s15 + $0x820] sm:$0xff]
    %v5785 = vld [vmem:[%s15 + $0x828] sm:$0xff]
    %v5786 = vld [vmem:[%s15 + $0x830] sm:$0xf]
    %v5787 = vld [vmem:[%s15 + $0x834] sm:$0xff]
    %v5788 = vld [vmem:[%s15 + $0x83c] sm:$0xff]
    %v5789 = vld [vmem:[%s15 + $0x844] sm:$0xff]
    %v5790 = vld [vmem:[%s15 + $0x84c] sm:$0xff]
    %v5791 = vld [vmem:[%s15 + $0x854] sm:$0xff]
    %v5792 = vld [vmem:[%s15 + $0x85c] sm:$0xff]
    %v5793 = vld [vmem:[%s15 + $0x864] sm:$0xff]
    %v5794 = vld [vmem:[%s15 + $0x86c] sm:$0xf]
    %v5795 = vld [vmem:[%s15 + $0x870] sm:$0xff]
    %v5796 = vld [vmem:[%s15 + $0x878] sm:$0xff]
    %v5797 = vld [vmem:[%s15 + $0x880] sm:$0xff]
    %v5798 = vld [vmem:[%s15 + $0x888] sm:$0xff]
    %v5799 = vld [vmem:[%s15 + $0x890] sm:$0xff]
    %v5800 = vld [vmem:[%s15 + $0x898] sm:$0xff]
    %v5801 = vld [vmem:[%s15 + $0x8a0] sm:$0xff]
    %v5802 = vld [vmem:[%s15 + $0x8a8] sm:$0xf]
    %v5803 = vld [vmem:[%s15 + $0x8ac] sm:$0xff]
    %v5804 = vld [vmem:[%s15 + $0x8b4] sm:$0xff]
    %v5805 = vld [vmem:[%s15 + $0x8bc] sm:$0xff]
    %v5806 = vld [vmem:[%s15 + $0x8c4] sm:$0xff]
    %v5807 = vld [vmem:[%s15 + $0x8cc] sm:$0xff]
    %v5808 = vld [vmem:[%s15 + $0x8d4] sm:$0xff]
    %v5809 = vld [vmem:[%s15 + $0x8dc] sm:$0xff]
    %v5810 = vld [vmem:[%s15 + $0x8e4] sm:$0xf]
    %v5811 = vld [vmem:[%s15 + $0x8e8] sm:$0xff]
    %v5812 = vld [vmem:[%s15 + $0x8f0] sm:$0xff]
    %v5813 = vld [vmem:[%s15 + $0x8f8] sm:$0xff]
    %v5814 = vld [vmem:[%s15 + $0x900] sm:$0xff]
    %v5815 = vld [vmem:[%s15 + $0x908] sm:$0xff]
    %v5816 = vld [vmem:[%s15 + $0x910] sm:$0xff]
    %v5817 = vld [vmem:[%s15 + $0x918] sm:$0xff]
    %v5818 = vld [vmem:[%s15 + $0x920] sm:$0xf]
    %v5819 = vld [vmem:[%s15 + $0x924] sm:$0xff]
    %v5820 = vld [vmem:[%s15 + $0x92c] sm:$0xff]
    %v5821 = vld [vmem:[%s15 + $0x934] sm:$0xff]
    %v5822 = vld [vmem:[%s15 + $0x93c] sm:$0xff]
    %v5823 = vld [vmem:[%s15 + $0x944] sm:$0xff]
    %v5824 = vld [vmem:[%s15 + $0x94c] sm:$0xff]
    %v5825 = vld [vmem:[%s15 + $0x954] sm:$0xff]
    %v5826 = vld [vmem:[%s15 + $0x95c] sm:$0xf]
    %v5827 = vld [vmem:[%s15 + $0x960] sm:$0xff]
    %v5828 = vld [vmem:[%s15 + $0x968] sm:$0xff]
    %v5829 = vld [vmem:[%s15 + $0x970] sm:$0xff]
    %v5830 = vld [vmem:[%s15 + $0x978] sm:$0xff]
    %v5831 = vld [vmem:[%s15 + $0x980] sm:$0xff]
    %v5832 = vld [vmem:[%s15 + $0x988] sm:$0xff]
    %v5833 = vld [vmem:[%s15 + $0x990] sm:$0xff]
    %v5834 = vld [vmem:[%s15 + $0x998] sm:$0xf]
    %v5835 = vld [vmem:[%s15 + $0x99c] sm:$0xff]
    %v5836 = vld [vmem:[%s15 + $0x9a4] sm:$0xff]
    %v5837 = vld [vmem:[%s15 + $0x9ac] sm:$0xff]
    %v5838 = vld [vmem:[%s15 + $0x9b4] sm:$0xff]
    %v5839 = vld [vmem:[%s15 + $0x9bc] sm:$0xff]
    %v5840 = vld [vmem:[%s15 + $0x9c4] sm:$0xff]
    %v5841 = vld [vmem:[%s15 + $0x9cc] sm:$0xff]
    %v5842 = vld [vmem:[%s15 + $0x9d4] sm:$0xf]
    %v5843 = vld [vmem:[%s15 + $0x9d8] sm:$0xff]
    %v5844 = vld [vmem:[%s15 + $0x9e0] sm:$0xff]
    %v5845 = vld [vmem:[%s15 + $0x9e8] sm:$0xff]
    %v5846 = vld [vmem:[%s15 + $0x9f0] sm:$0xff]
    %v5847 = vld [vmem:[%s15 + $0x9f8] sm:$0xff]
    %v5848 = vld [vmem:[%s15 + $0xa00] sm:$0xff]
    %v5849 = vld [vmem:[%s15 + $0xa08] sm:$0xff]
    %v5850 = vld [vmem:[%s15 + $0xa10] sm:$0xf]
    %v5851 = vld [vmem:[%s15 + $0xa14] sm:$0xff]
    %v5852 = vld [vmem:[%s15 + $0xa1c] sm:$0xff]
    %v5853 = vld [vmem:[%s15 + $0xa24] sm:$0xff]
    %v5854 = vld [vmem:[%s15 + $0xa2c] sm:$0xff]
    %v5855 = vld [vmem:[%s15 + $0xa34] sm:$0xff]
    %v5856 = vld [vmem:[%s15 + $0xa3c] sm:$0xff]
    %v5857 = vld [vmem:[%s15 + $0xa44] sm:$0xff]
    %v5858 = vld [vmem:[%s15 + $0xa4c] sm:$0xf]
    %v5859 = vld [vmem:[%s15 + $0xa50] sm:$0xff]
    %v5860 = vld [vmem:[%s15 + $0xa58] sm:$0xff]
    %v5861 = vld [vmem:[%s15 + $0xa60] sm:$0xff]
    %v5862 = vld [vmem:[%s15 + $0xa68] sm:$0xff]
    %v5863 = vld [vmem:[%s15 + $0xa70] sm:$0xff]
    %v5864 = vld [vmem:[%s15 + $0xa78] sm:$0xff]
    %v5865 = vld [vmem:[%s15 + $0xa80] sm:$0xff]
    %v5866 = vld [vmem:[%s15 + $0xa88] sm:$0xf]
    %v5867 = vld [vmem:[%s15 + $0xa8c] sm:$0xff]
    %v5868 = vld [vmem:[%s15 + $0xa94] sm:$0xff]
    %v5869 = vld [vmem:[%s15 + $0xa9c] sm:$0xff]
    %v5870 = vld [vmem:[%s15 + $0xaa4] sm:$0xff]
    %v5871 = vld [vmem:[%s15 + $0xaac] sm:$0xff]
    %v5872 = vld [vmem:[%s15 + $0xab4] sm:$0xff]
    %v5873 = vld [vmem:[%s15 + $0xabc] sm:$0xff]
    %v5874 = vld [vmem:[%s15 + $0xac4] sm:$0xf]
    %v5875 = vld [vmem:[%s15 + $0xac8] sm:$0xff]
    %v5876 = vld [vmem:[%s15 + $0xad0] sm:$0xff]
    %v5877 = vld [vmem:[%s15 + $0xad8] sm:$0xff]
    %v5878 = vld [vmem:[%s15 + $0xae0] sm:$0xff]
    %v5879 = vld [vmem:[%s15 + $0xae8] sm:$0xff]
    %v5880 = vld [vmem:[%s15 + $0xaf0] sm:$0xff]
    %v5881 = vld [vmem:[%s15 + $0xaf8] sm:$0xff]
    %v5882 = vld [vmem:[%s15 + $0xb00] sm:$0xf]
    %v5883 = vld [vmem:[%s15 + $0xb04] sm:$0xff]
    %v5884 = vld [vmem:[%s15 + $0xb0c] sm:$0xff]
    %v5885 = vld [vmem:[%s15 + $0xb14] sm:$0xff]
    %v5886 = vld [vmem:[%s15 + $0xb1c] sm:$0xff]
    %v5887 = vld [vmem:[%s15 + $0xb24] sm:$0xff]
    %v5888 = vld [vmem:[%s15 + $0xb2c] sm:$0xff]
    %v5889 = vld [vmem:[%s15 + $0xb34] sm:$0xff]
    %v5890 = vld [vmem:[%s15 + $0xb3c] sm:$0xf]
    %v5891 = vld [vmem:[%s15 + $0xb40] sm:$0xff]
    %v5892 = vld [vmem:[%s15 + $0xb48] sm:$0xff]
    %v5893 = vld [vmem:[%s15 + $0xb50] sm:$0xff]
    %v5894 = vld [vmem:[%s15 + $0xb58] sm:$0xff]
    %v5895 = vld [vmem:[%s15 + $0xb60] sm:$0xff]
    %v5896 = vld [vmem:[%s15 + $0xb68] sm:$0xff]
    %v5897 = vld [vmem:[%s15 + $0xb70] sm:$0xff]
    %v5898 = vld [vmem:[%s15 + $0xb78] sm:$0xf]
    %v5899 = vld [vmem:[%s15 + $0xb7c] sm:$0xff]
    %v5900 = vld [vmem:[%s15 + $0xb84] sm:$0xff]
    %v5901 = vld [vmem:[%s15 + $0xb8c] sm:$0xff]
    %v5902 = vld [vmem:[%s15 + $0xb94] sm:$0xff]
    %v5903 = vld [vmem:[%s15 + $0xb9c] sm:$0xff]
    %v5904 = vld [vmem:[%s15 + $0xba4] sm:$0xff]
    %v5905 = vld [vmem:[%s15 + $0xbac] sm:$0xff]
    %v5906 = vld [vmem:[%s15 + $0xbb4] sm:$0xf]
    %v5907 = vld [vmem:[%s15 + $0xbb8] sm:$0xff]
    %v5908 = vld [vmem:[%s15 + $0xbc0] sm:$0xff]
    %v5909 = vld [vmem:[%s15 + $0xbc8] sm:$0xff]
    %v5910 = vld [vmem:[%s15 + $0xbd0] sm:$0xff]
    %v5911 = vld [vmem:[%s15 + $0xbd8] sm:$0xff]
    %v5912 = vld [vmem:[%s15 + $0xbe0] sm:$0xff]
    %v5913 = vld [vmem:[%s15 + $0xbe8] sm:$0xff]
    %v5914 = vld [vmem:[%s15 + $0xbf0] sm:$0xf]
    %v5915 = vld [vmem:[%s15 + $0xbf4] sm:$0xff]
    %v5916 = vld [vmem:[%s15 + $0xbfc] sm:$0xff]
    %v5917 = vld [vmem:[%s15 + $0xc04] sm:$0xff]
    %v5918 = vld [vmem:[%s15 + $0xc0c] sm:$0xff]
    %v5919 = vld [vmem:[%s15 + $0xc14] sm:$0xff]
    %v5920 = vld [vmem:[%s15 + $0xc1c] sm:$0xff]
    %v5921 = vld [vmem:[%s15 + $0xc24] sm:$0xff]
    %v5922 = vld [vmem:[%s15 + $0xc2c] sm:$0xf]
    %v5923 = vld [vmem:[%s15 + $0xc30] sm:$0xff]
    %v5924 = vld [vmem:[%s15 + $0xc38] sm:$0xff]
    %v5925 = vld [vmem:[%s15 + $0xc40] sm:$0xff]
    %v5926 = vld [vmem:[%s15 + $0xc48] sm:$0xff]
    %v5927 = vld [vmem:[%s15 + $0xc50] sm:$0xff]
    %v5928 = vld [vmem:[%s15 + $0xc58] sm:$0xff]
    %v5929 = vld [vmem:[%s15 + $0xc60] sm:$0xff]
    %v5930 = vld [vmem:[%s15 + $0xc68] sm:$0xf]
    %v5931 = vld [vmem:[%s15 + $0xc6c] sm:$0xff]
    %v5932 = vld [vmem:[%s15 + $0xc74] sm:$0xff]
    %v5933 = vld [vmem:[%s15 + $0xc7c] sm:$0xff]
    %v5934 = vld [vmem:[%s15 + $0xc84] sm:$0xff]
    %v5935 = vld [vmem:[%s15 + $0xc8c] sm:$0xff]
    %v5936 = vld [vmem:[%s15 + $0xc94] sm:$0xff]
    %v5937 = vld [vmem:[%s15 + $0xc9c] sm:$0xff]
    %v5938 = vld [vmem:[%s15 + $0xca4] sm:$0xf]
    %v5939 = vld [vmem:[%s15 + $0xca8] sm:$0xff]
    %v5940 = vld [vmem:[%s15 + $0xcb0] sm:$0xff]
    %v5941 = vld [vmem:[%s15 + $0xcb8] sm:$0xff]
    %v5942 = vld [vmem:[%s15 + $0xcc0] sm:$0xff]
    %v5943 = vld [vmem:[%s15 + $0xcc8] sm:$0xff]
    %v5944 = vld [vmem:[%s15 + $0xcd0] sm:$0xff]
    %v5945 = vld [vmem:[%s15 + $0xcd8] sm:$0xff]
    %v5946 = vld [vmem:[%s15 + $0xce0] sm:$0xf]
    %v5947 = vld [vmem:[%s15 + $0xce4] sm:$0xff]
    %v5948 = vld [vmem:[%s15 + $0xcec] sm:$0xff]
    %v5949 = vld [vmem:[%s15 + $0xcf4] sm:$0xff]
    %v5950 = vld [vmem:[%s15 + $0xcfc] sm:$0xff]
    %v5951 = vld [vmem:[%s15 + $0xd04] sm:$0xff]
    %v5952 = vld [vmem:[%s15 + $0xd0c] sm:$0xff]
    %v5953 = vld [vmem:[%s15 + $0xd14] sm:$0xff]
    %v5954 = vld [vmem:[%s15 + $0xd1c] sm:$0xf]
    %v5955 = vld [vmem:[%s15 + $0xd20] sm:$0xff]
    %v5956 = vld [vmem:[%s15 + $0xd28] sm:$0xff]
    %v5957 = vld [vmem:[%s15 + $0xd30] sm:$0xff]
    %v5958 = vld [vmem:[%s15 + $0xd38] sm:$0xff]
    %v5959 = vld [vmem:[%s15 + $0xd40] sm:$0xff]
    %v5960 = vld [vmem:[%s15 + $0xd48] sm:$0xff]
    %v5961 = vld [vmem:[%s15 + $0xd50] sm:$0xff]
    %v5962 = vld [vmem:[%s15 + $0xd58] sm:$0xf]
    %v5963 = vld [vmem:[%s15 + $0xd5c] sm:$0xff]
    %v5964 = vld [vmem:[%s15 + $0xd64] sm:$0xff]
    %v5965 = vld [vmem:[%s15 + $0xd6c] sm:$0xff]
    %v5966 = vld [vmem:[%s15 + $0xd74] sm:$0xff]
    %v5967 = vld [vmem:[%s15 + $0xd7c] sm:$0xff]
    %v5968 = vld [vmem:[%s15 + $0xd84] sm:$0xff]
    %v5969 = vld [vmem:[%s15 + $0xd8c] sm:$0xff]
    %v5970 = vld [vmem:[%s15 + $0xd94] sm:$0xf]
    %v5971 = vld [vmem:[%s15 + $0xd98] sm:$0xff]
    %v5972 = vld [vmem:[%s15 + $0xda0] sm:$0xff]
    %v5973 = vld [vmem:[%s15 + $0xda8] sm:$0xff]
    %v5974 = vld [vmem:[%s15 + $0xdb0] sm:$0xff]
    %v5975 = vld [vmem:[%s15 + $0xdb8] sm:$0xff]
    %v5976 = vld [vmem:[%s15 + $0xdc0] sm:$0xff]
    %v5977 = vld [vmem:[%s15 + $0xdc8] sm:$0xff]
    %v5978 = vld [vmem:[%s15 + $0xdd0] sm:$0xf]
    %v5979 = vld [vmem:[%s15 + $0xdd4] sm:$0xff]
    %v5980 = vld [vmem:[%s15 + $0xddc] sm:$0xff]
    %v5981 = vld [vmem:[%s15 + $0xde4] sm:$0xff]
    %v5982 = vld [vmem:[%s15 + $0xdec] sm:$0xff]
    %v5983 = vld [vmem:[%s15 + $0xdf4] sm:$0xff]
    %v5984 = vld [vmem:[%s15 + $0xdfc] sm:$0xff]
    %v5985 = vld [vmem:[%s15 + $0xe04] sm:$0xff]
    %v5986 = vld [vmem:[%s15 + $0xe0c] sm:$0xf]
    %v5987 = vld [vmem:[%s15 + $0xe10] sm:$0xff]
    %v5988 = vld [vmem:[%s15 + $0xe18] sm:$0xff]
    %v5989 = vld [vmem:[%s15 + $0xe20] sm:$0xff]
    %v5990 = vld [vmem:[%s15 + $0xe28] sm:$0xff]
    %v5991 = vld [vmem:[%s15 + $0xe30] sm:$0xff]
    %v5992 = vld [vmem:[%s15 + $0xe38] sm:$0xff]
    %v5993 = vld [vmem:[%s15 + $0xe40] sm:$0xff]
    %v5994 = vld [vmem:[%s15 + $0xe48] sm:$0xf]
    %v5995 = vld [vmem:[%s15 + $0xe4c] sm:$0xff]
    %v5996 = vld [vmem:[%s15 + $0xe54] sm:$0xff]
    %v5997 = vld [vmem:[%s15 + $0xe5c] sm:$0xff]
    %v5998 = vld [vmem:[%s15 + $0xe64] sm:$0xff]
    %v5999 = vld [vmem:[%s15 + $0xe6c] sm:$0xff]
    %v6000 = vld [vmem:[%s15 + $0xe74] sm:$0xff]
    %v6001 = vld [vmem:[%s15 + $0xe7c] sm:$0xff]
    %v6002 = vld [vmem:[%s15 + $0xe84] sm:$0xf]
    %v6003 = vld [vmem:[%s15 + $0xe88] sm:$0xff]
    %v6004 = vld [vmem:[%s15 + $0xe90] sm:$0xff]
    %v6005 = vld [vmem:[%s15 + $0xe98] sm:$0xff]
    %v6006 = vld [vmem:[%s15 + $0xea0] sm:$0xff]
    %v6007 = vld [vmem:[%s15 + $0xea8] sm:$0xff]
    %v6008 = vld [vmem:[%s15 + $0xeb0] sm:$0xff]
    %v6009 = vld [vmem:[%s15 + $0xeb8] sm:$0xff]
    %v6010 = vld [vmem:[%s15 + $0xec0] sm:$0xf]
    %v6011 = vld [vmem:[%s15 + $0xec4] sm:$0xff]
    %v6012 = vld [vmem:[%s15 + $0xecc] sm:$0xff]
    %v6013 = vld [vmem:[%s15 + $0xed4] sm:$0xff]
    %v6014 = vld [vmem:[%s15 + $0xedc] sm:$0xff]
    %v6015 = vld [vmem:[%s15 + $0xee4] sm:$0xff]
    %v6016 = vld [vmem:[%s15 + $0xeec] sm:$0xff]
    %v6017 = vld [vmem:[%s15 + $0xef4] sm:$0xff]
    %v6018 = vld [vmem:[%s15 + $0xefc] sm:$0xf]
    %v6019 = vpack.c.bf16 %v5503, %v5503
    %v6020 = vpack.c.bf16 %v5504, %v5504
    %v6021 = vpack.c.bf16 %v5505, %v5505
    %v6022 = vpack.c.bf16 %v5506, %v5506
    %v6023 = vld [vmem:[%s16] sm:$0xff]
    %v6024 = vld [vmem:[%s16 + $0x8] sm:$0x7f]
    %v6027 = vperm.slane %v6023, 0
    %v6028 = vperm.slane %v6023, 1
    %v6029 = vperm.slane %v6023, 2
    %v6030 = vperm.slane %v6023, 3
    %v6031 = vperm.slane %v6023, 4
    %v6032 = vperm.slane %v6023, 5
    %v6033 = vperm.slane %v6023, 6
    %v6034 = vperm.slane %v6023, 7
    %v6035 = vperm.slane %v6024, 0
    %v6036 = vperm.slane %v6024, 1
    %v6037 = vperm.slane %v6024, 2
    %v6038 = vperm.slane %v6024, 3
    %v6039 = vperm.slane %v6024, 4
    %v6040 = vperm.slane %v6024, 5
    %v6041 = vperm.slane %v6024, 6
    %v6569 = vunpack.c.l.b16 %v5507
    %v6570 = vunpack.c.h.b16 %v5507
    %v6571 = vunpack.c.l.b16 %v5508
    %v6572 = vunpack.c.h.b16 %v5508
    %v6573 = vunpack.c.l.b16 %v5509
    %v6574 = vunpack.c.h.b16 %v5509
    %v6575 = vunpack.c.l.b16 %v5510
    %v6576 = vunpack.c.h.b16 %v5510
    %v6577 = vunpack.c.l.b16 %v5511
    %v6578 = vunpack.c.h.b16 %v5511
    %v6579 = vunpack.c.l.b16 %v5512
    %v6580 = vunpack.c.h.b16 %v5512
    %v6581 = vunpack.c.l.b16 %v5513
    %v6582 = vunpack.c.h.b16 %v5513
    %v6583 = vunpack.c.l.b16 %v5514
    %v6584 = vunpack.c.l.b16 %v5515
    %v6585 = vunpack.c.h.b16 %v5515
    %v6586 = vunpack.c.l.b16 %v5516
    %v6587 = vunpack.c.h.b16 %v5516
    %v6588 = vunpack.c.l.b16 %v5517
    %v6589 = vunpack.c.h.b16 %v5517
    %v6590 = vunpack.c.l.b16 %v5518
    %v6591 = vunpack.c.h.b16 %v5518
    %v6592 = vunpack.c.l.b16 %v5519
    %v6593 = vunpack.c.h.b16 %v5519
    %v6594 = vunpack.c.l.b16 %v5520
    %v6595 = vunpack.c.h.b16 %v5520
    %v6596 = vunpack.c.l.b16 %v5521
    %v6597 = vunpack.c.h.b16 %v5521
    %v6598 = vunpack.c.l.b16 %v5522
    %v6599 = vunpack.c.l.b16 %v5523
    %v6600 = vunpack.c.h.b16 %v5523
    %v6601 = vunpack.c.l.b16 %v5524
    %v6602 = vunpack.c.h.b16 %v5524
    %v6603 = vunpack.c.l.b16 %v5525
    %v6604 = vunpack.c.h.b16 %v5525
    %v6605 = vunpack.c.l.b16 %v5526
    %v6606 = vunpack.c.h.b16 %v5526
    %v6607 = vunpack.c.l.b16 %v5527
    %v6608 = vunpack.c.h.b16 %v5527
    %v6609 = vunpack.c.l.b16 %v5528
    %v6610 = vunpack.c.h.b16 %v5528
    %v6611 = vunpack.c.l.b16 %v5529
    %v6612 = vunpack.c.h.b16 %v5529
    %v6613 = vunpack.c.l.b16 %v5530
    %v6614 = vunpack.c.l.b16 %v5531
    %v6615 = vunpack.c.h.b16 %v5531
    %v6616 = vunpack.c.l.b16 %v5532
    %v6617 = vunpack.c.h.b16 %v5532
    %v6618 = vunpack.c.l.b16 %v5533
    %v6619 = vunpack.c.h.b16 %v5533
    %v6620 = vunpack.c.l.b16 %v5534
    %v6621 = vunpack.c.h.b16 %v5534
    %v6622 = vunpack.c.l.b16 %v5535
    %v6623 = vunpack.c.h.b16 %v5535
    %v6624 = vunpack.c.l.b16 %v5536
    %v6625 = vunpack.c.h.b16 %v5536
    %v6626 = vunpack.c.l.b16 %v5537
    %v6627 = vunpack.c.h.b16 %v5537
    %v6628 = vunpack.c.l.b16 %v5538
    %v6629 = vunpack.c.l.b16 %v5539
    %v6630 = vunpack.c.h.b16 %v5539
    %v6631 = vunpack.c.l.b16 %v5540
    %v6632 = vunpack.c.h.b16 %v5540
    %v6633 = vunpack.c.l.b16 %v5541
    %v6634 = vunpack.c.h.b16 %v5541
    %v6635 = vunpack.c.l.b16 %v5542
    %v6636 = vunpack.c.h.b16 %v5542
    %v6637 = vunpack.c.l.b16 %v5543
    %v6638 = vunpack.c.h.b16 %v5543
    %v6639 = vunpack.c.l.b16 %v5544
    %v6640 = vunpack.c.h.b16 %v5544
    %v6641 = vunpack.c.l.b16 %v5545
    %v6642 = vunpack.c.h.b16 %v5545
    %v6643 = vunpack.c.l.b16 %v5546
    %v6644 = vunpack.c.l.b16 %v5547
    %v6645 = vunpack.c.h.b16 %v5547
    %v6646 = vunpack.c.l.b16 %v5548
    %v6647 = vunpack.c.h.b16 %v5548
    %v6648 = vunpack.c.l.b16 %v5549
    %v6649 = vunpack.c.h.b16 %v5549
    %v6650 = vunpack.c.l.b16 %v5550
    %v6651 = vunpack.c.h.b16 %v5550
    %v6652 = vunpack.c.l.b16 %v5551
    %v6653 = vunpack.c.h.b16 %v5551
    %v6654 = vunpack.c.l.b16 %v5552
    %v6655 = vunpack.c.h.b16 %v5552
    %v6656 = vunpack.c.l.b16 %v5553
    %v6657 = vunpack.c.h.b16 %v5553
    %v6658 = vunpack.c.l.b16 %v5554
    %v6659 = vunpack.c.l.b16 %v5555
    %v6660 = vunpack.c.h.b16 %v5555
    %v6661 = vunpack.c.l.b16 %v5556
    %v6662 = vunpack.c.h.b16 %v5556
    %v6663 = vunpack.c.l.b16 %v5557
    %v6664 = vunpack.c.h.b16 %v5557
    %v6665 = vunpack.c.l.b16 %v5558
    %v6666 = vunpack.c.h.b16 %v5558
    %v6667 = vunpack.c.l.b16 %v5559
    %v6668 = vunpack.c.h.b16 %v5559
    %v6669 = vunpack.c.l.b16 %v5560
    %v6670 = vunpack.c.h.b16 %v5560
    %v6671 = vunpack.c.l.b16 %v5561
    %v6672 = vunpack.c.h.b16 %v5561
    %v6673 = vunpack.c.l.b16 %v5562
    %v6674 = vunpack.c.l.b16 %v5563
    %v6675 = vunpack.c.h.b16 %v5563
    %v6676 = vunpack.c.l.b16 %v5564
    %v6677 = vunpack.c.h.b16 %v5564
    %v6678 = vunpack.c.l.b16 %v5565
    %v6679 = vunpack.c.h.b16 %v5565
    %v6680 = vunpack.c.l.b16 %v5566
    %v6681 = vunpack.c.h.b16 %v5566
    %v6682 = vunpack.c.l.b16 %v5567
    %v6683 = vunpack.c.h.b16 %v5567
    %v6684 = vunpack.c.l.b16 %v5568
    %v6685 = vunpack.c.h.b16 %v5568
    %v6686 = vunpack.c.l.b16 %v5569
    %v6687 = vunpack.c.h.b16 %v5569
    %v6688 = vunpack.c.l.b16 %v5570
    %v6689 = vunpack.c.l.b16 %v5571
    %v6690 = vunpack.c.h.b16 %v5571
    %v6691 = vunpack.c.l.b16 %v5572
    %v6692 = vunpack.c.h.b16 %v5572
    %v6693 = vunpack.c.l.b16 %v5573
    %v6694 = vunpack.c.h.b16 %v5573
    %v6695 = vunpack.c.l.b16 %v5574
    %v6696 = vunpack.c.h.b16 %v5574
    %v6697 = vunpack.c.l.b16 %v5575
    %v6698 = vunpack.c.h.b16 %v5575
    %v6699 = vunpack.c.l.b16 %v5576
    %v6700 = vunpack.c.h.b16 %v5576
    %v6701 = vunpack.c.l.b16 %v5577
    %v6702 = vunpack.c.h.b16 %v5577
    %v6703 = vunpack.c.l.b16 %v5578
    %v6704 = vunpack.c.l.b16 %v5579
    %v6705 = vunpack.c.h.b16 %v5579
    %v6706 = vunpack.c.l.b16 %v5580
    %v6707 = vunpack.c.h.b16 %v5580
    %v6708 = vunpack.c.l.b16 %v5581
    %v6709 = vunpack.c.h.b16 %v5581
    %v6710 = vunpack.c.l.b16 %v5582
    %v6711 = vunpack.c.h.b16 %v5582
    %v6712 = vunpack.c.l.b16 %v5583
    %v6713 = vunpack.c.h.b16 %v5583
    %v6714 = vunpack.c.l.b16 %v5584
    %v6715 = vunpack.c.h.b16 %v5584
    %v6716 = vunpack.c.l.b16 %v5585
    %v6717 = vunpack.c.h.b16 %v5585
    %v6718 = vunpack.c.l.b16 %v5586
    %v6719 = vunpack.c.l.b16 %v5587
    %v6720 = vunpack.c.h.b16 %v5587
    %v6721 = vunpack.c.l.b16 %v5588
    %v6722 = vunpack.c.h.b16 %v5588
    %v6723 = vunpack.c.l.b16 %v5589
    %v6724 = vunpack.c.h.b16 %v5589
    %v6725 = vunpack.c.l.b16 %v5590
    %v6726 = vunpack.c.h.b16 %v5590
    %v6727 = vunpack.c.l.b16 %v5591
    %v6728 = vunpack.c.h.b16 %v5591
    %v6729 = vunpack.c.l.b16 %v5592
    %v6730 = vunpack.c.h.b16 %v5592
    %v6731 = vunpack.c.l.b16 %v5593
    %v6732 = vunpack.c.h.b16 %v5593
    %v6733 = vunpack.c.l.b16 %v5594
    %v6734 = vunpack.c.l.b16 %v5595
    %v6735 = vunpack.c.h.b16 %v5595
    %v6736 = vunpack.c.l.b16 %v5596
    %v6737 = vunpack.c.h.b16 %v5596
    %v6738 = vunpack.c.l.b16 %v5597
    %v6739 = vunpack.c.h.b16 %v5597
    %v6740 = vunpack.c.l.b16 %v5598
    %v6741 = vunpack.c.h.b16 %v5598
    %v6742 = vunpack.c.l.b16 %v5599
    %v6743 = vunpack.c.h.b16 %v5599
    %v6744 = vunpack.c.l.b16 %v5600
    %v6745 = vunpack.c.h.b16 %v5600
    %v6746 = vunpack.c.l.b16 %v5601
    %v6747 = vunpack.c.h.b16 %v5601
    %v6748 = vunpack.c.l.b16 %v5602
    %v6749 = vunpack.c.l.b16 %v5603
    %v6750 = vunpack.c.h.b16 %v5603
    %v6751 = vunpack.c.l.b16 %v5604
    %v6752 = vunpack.c.h.b16 %v5604
    %v6753 = vunpack.c.l.b16 %v5605
    %v6754 = vunpack.c.h.b16 %v5605
    %v6755 = vunpack.c.l.b16 %v5606
    %v6756 = vunpack.c.h.b16 %v5606
    %v6757 = vunpack.c.l.b16 %v5607
    %v6758 = vunpack.c.h.b16 %v5607
    %v6759 = vunpack.c.l.b16 %v5608
    %v6760 = vunpack.c.h.b16 %v5608
    %v6761 = vunpack.c.l.b16 %v5609
    %v6762 = vunpack.c.h.b16 %v5609
    %v6763 = vunpack.c.l.b16 %v5610
    %v6764 = vunpack.c.l.b16 %v5611
    %v6765 = vunpack.c.h.b16 %v5611
    %v6766 = vunpack.c.l.b16 %v5612
    %v6767 = vunpack.c.h.b16 %v5612
    %v6768 = vunpack.c.l.b16 %v5613
    %v6769 = vunpack.c.h.b16 %v5613
    %v6770 = vunpack.c.l.b16 %v5614
    %v6771 = vunpack.c.h.b16 %v5614
    %v6772 = vunpack.c.l.b16 %v5615
    %v6773 = vunpack.c.h.b16 %v5615
    %v6774 = vunpack.c.l.b16 %v5616
    %v6775 = vunpack.c.h.b16 %v5616
    %v6776 = vunpack.c.l.b16 %v5617
    %v6777 = vunpack.c.h.b16 %v5617
    %v6778 = vunpack.c.l.b16 %v5618
    %v6779 = vunpack.c.l.b16 %v5619
    %v6780 = vunpack.c.h.b16 %v5619
    %v6781 = vunpack.c.l.b16 %v5620
    %v6782 = vunpack.c.h.b16 %v5620
    %v6783 = vunpack.c.l.b16 %v5621
    %v6784 = vunpack.c.h.b16 %v5621
    %v6785 = vunpack.c.l.b16 %v5622
    %v6786 = vunpack.c.h.b16 %v5622
    %v6787 = vunpack.c.l.b16 %v5623
    %v6788 = vunpack.c.h.b16 %v5623
    %v6789 = vunpack.c.l.b16 %v5624
    %v6790 = vunpack.c.h.b16 %v5624
    %v6791 = vunpack.c.l.b16 %v5625
    %v6792 = vunpack.c.h.b16 %v5625
    %v6793 = vunpack.c.l.b16 %v5626
    %v6794 = vunpack.c.l.b16 %v5627
    %v6795 = vunpack.c.h.b16 %v5627
    %v6796 = vunpack.c.l.b16 %v5628
    %v6797 = vunpack.c.h.b16 %v5628
    %v6798 = vunpack.c.l.b16 %v5629
    %v6799 = vunpack.c.h.b16 %v5629
    %v6800 = vunpack.c.l.b16 %v5630
    %v6801 = vunpack.c.h.b16 %v5630
    %v6802 = vunpack.c.l.b16 %v5631
    %v6803 = vunpack.c.h.b16 %v5631
    %v6804 = vunpack.c.l.b16 %v5632
    %v6805 = vunpack.c.h.b16 %v5632
    %v6806 = vunpack.c.l.b16 %v5633
    %v6807 = vunpack.c.h.b16 %v5633
    %v6808 = vunpack.c.l.b16 %v5634
    %v6809 = vunpack.c.l.b16 %v5635
    %v6810 = vunpack.c.h.b16 %v5635
    %v6811 = vunpack.c.l.b16 %v5636
    %v6812 = vunpack.c.h.b16 %v5636
    %v6813 = vunpack.c.l.b16 %v5637
    %v6814 = vunpack.c.h.b16 %v5637
    %v6815 = vunpack.c.l.b16 %v5638
    %v6816 = vunpack.c.h.b16 %v5638
    %v6817 = vunpack.c.l.b16 %v5639
    %v6818 = vunpack.c.h.b16 %v5639
    %v6819 = vunpack.c.l.b16 %v5640
    %v6820 = vunpack.c.h.b16 %v5640
    %v6821 = vunpack.c.l.b16 %v5641
    %v6822 = vunpack.c.h.b16 %v5641
    %v6823 = vunpack.c.l.b16 %v5642
    %v6824 = vunpack.c.l.b16 %v5643
    %v6825 = vunpack.c.h.b16 %v5643
    %v6826 = vunpack.c.l.b16 %v5644
    %v6827 = vunpack.c.h.b16 %v5644
    %v6828 = vunpack.c.l.b16 %v5645
    %v6829 = vunpack.c.h.b16 %v5645
    %v6830 = vunpack.c.l.b16 %v5646
    %v6831 = vunpack.c.h.b16 %v5646
    %v6832 = vunpack.c.l.b16 %v5647
    %v6833 = vunpack.c.h.b16 %v5647
    %v6834 = vunpack.c.l.b16 %v5648
    %v6835 = vunpack.c.h.b16 %v5648
    %v6836 = vunpack.c.l.b16 %v5649
    %v6837 = vunpack.c.h.b16 %v5649
    %v6838 = vunpack.c.l.b16 %v5650
    %v6839 = vunpack.c.l.b16 %v5651
    %v6840 = vunpack.c.h.b16 %v5651
    %v6841 = vunpack.c.l.b16 %v5652
    %v6842 = vunpack.c.h.b16 %v5652
    %v6843 = vunpack.c.l.b16 %v5653
    %v6844 = vunpack.c.h.b16 %v5653
    %v6845 = vunpack.c.l.b16 %v5654
    %v6846 = vunpack.c.h.b16 %v5654
    %v6847 = vunpack.c.l.b16 %v5655
    %v6848 = vunpack.c.h.b16 %v5655
    %v6849 = vunpack.c.l.b16 %v5656
    %v6850 = vunpack.c.h.b16 %v5656
    %v6851 = vunpack.c.l.b16 %v5657
    %v6852 = vunpack.c.h.b16 %v5657
    %v6853 = vunpack.c.l.b16 %v5658
    %v6854 = vunpack.c.l.b16 %v5659
    %v6855 = vunpack.c.h.b16 %v5659
    %v6856 = vunpack.c.l.b16 %v5660
    %v6857 = vunpack.c.h.b16 %v5660
    %v6858 = vunpack.c.l.b16 %v5661
    %v6859 = vunpack.c.h.b16 %v5661
    %v6860 = vunpack.c.l.b16 %v5662
    %v6861 = vunpack.c.h.b16 %v5662
    %v6862 = vunpack.c.l.b16 %v5663
    %v6863 = vunpack.c.h.b16 %v5663
    %v6864 = vunpack.c.l.b16 %v5664
    %v6865 = vunpack.c.h.b16 %v5664
    %v6866 = vunpack.c.l.b16 %v5665
    %v6867 = vunpack.c.h.b16 %v5665
    %v6868 = vunpack.c.l.b16 %v5666
    %v6869 = vunpack.c.l.b16 %v5667
    %v6870 = vunpack.c.h.b16 %v5667
    %v6871 = vunpack.c.l.b16 %v5668
    %v6872 = vunpack.c.h.b16 %v5668
    %v6873 = vunpack.c.l.b16 %v5669
    %v6874 = vunpack.c.h.b16 %v5669
    %v6875 = vunpack.c.l.b16 %v5670
    %v6876 = vunpack.c.h.b16 %v5670
    %v6877 = vunpack.c.l.b16 %v5671
    %v6878 = vunpack.c.h.b16 %v5671
    %v6879 = vunpack.c.l.b16 %v5672
    %v6880 = vunpack.c.h.b16 %v5672
    %v6881 = vunpack.c.l.b16 %v5673
    %v6882 = vunpack.c.h.b16 %v5673
    %v6883 = vunpack.c.l.b16 %v5674
    %v6884 = vunpack.c.l.b16 %v5675
    %v6885 = vunpack.c.h.b16 %v5675
    %v6886 = vunpack.c.l.b16 %v5676
    %v6887 = vunpack.c.h.b16 %v5676
    %v6888 = vunpack.c.l.b16 %v5677
    %v6889 = vunpack.c.h.b16 %v5677
    %v6890 = vunpack.c.l.b16 %v5678
    %v6891 = vunpack.c.h.b16 %v5678
    %v6892 = vunpack.c.l.b16 %v5679
    %v6893 = vunpack.c.h.b16 %v5679
    %v6894 = vunpack.c.l.b16 %v5680
    %v6895 = vunpack.c.h.b16 %v5680
    %v6896 = vunpack.c.l.b16 %v5681
    %v6897 = vunpack.c.h.b16 %v5681
    %v6898 = vunpack.c.l.b16 %v5682
    %v6899 = vunpack.c.l.b16 %v5683
    %v6900 = vunpack.c.h.b16 %v5683
    %v6901 = vunpack.c.l.b16 %v5684
    %v6902 = vunpack.c.h.b16 %v5684
    %v6903 = vunpack.c.l.b16 %v5685
    %v6904 = vunpack.c.h.b16 %v5685
    %v6905 = vunpack.c.l.b16 %v5686
    %v6906 = vunpack.c.h.b16 %v5686
    %v6907 = vunpack.c.l.b16 %v5687
    %v6908 = vunpack.c.h.b16 %v5687
    %v6909 = vunpack.c.l.b16 %v5688
    %v6910 = vunpack.c.h.b16 %v5688
    %v6911 = vunpack.c.l.b16 %v5689
    %v6912 = vunpack.c.h.b16 %v5689
    %v6913 = vunpack.c.l.b16 %v5690
    %v6914 = vunpack.c.l.b16 %v5691
    %v6915 = vunpack.c.h.b16 %v5691
    %v6916 = vunpack.c.l.b16 %v5692
    %v6917 = vunpack.c.h.b16 %v5692
    %v6918 = vunpack.c.l.b16 %v5693
    %v6919 = vunpack.c.h.b16 %v5693
    %v6920 = vunpack.c.l.b16 %v5694
    %v6921 = vunpack.c.h.b16 %v5694
    %v6922 = vunpack.c.l.b16 %v5695
    %v6923 = vunpack.c.h.b16 %v5695
    %v6924 = vunpack.c.l.b16 %v5696
    %v6925 = vunpack.c.h.b16 %v5696
    %v6926 = vunpack.c.l.b16 %v5697
    %v6927 = vunpack.c.h.b16 %v5697
    %v6928 = vunpack.c.l.b16 %v5698
    %v6929 = vunpack.c.l.b16 %v5699
    %v6930 = vunpack.c.h.b16 %v5699
    %v6931 = vunpack.c.l.b16 %v5700
    %v6932 = vunpack.c.h.b16 %v5700
    %v6933 = vunpack.c.l.b16 %v5701
    %v6934 = vunpack.c.h.b16 %v5701
    %v6935 = vunpack.c.l.b16 %v5702
    %v6936 = vunpack.c.h.b16 %v5702
    %v6937 = vunpack.c.l.b16 %v5703
    %v6938 = vunpack.c.h.b16 %v5703
    %v6939 = vunpack.c.l.b16 %v5704
    %v6940 = vunpack.c.h.b16 %v5704
    %v6941 = vunpack.c.l.b16 %v5705
    %v6942 = vunpack.c.h.b16 %v5705
    %v6943 = vunpack.c.l.b16 %v5706
    %v6944 = vunpack.c.l.b16 %v5707
    %v6945 = vunpack.c.h.b16 %v5707
    %v6946 = vunpack.c.l.b16 %v5708
    %v6947 = vunpack.c.h.b16 %v5708
    %v6948 = vunpack.c.l.b16 %v5709
    %v6949 = vunpack.c.h.b16 %v5709
    %v6950 = vunpack.c.l.b16 %v5710
    %v6951 = vunpack.c.h.b16 %v5710
    %v6952 = vunpack.c.l.b16 %v5711
    %v6953 = vunpack.c.h.b16 %v5711
    %v6954 = vunpack.c.l.b16 %v5712
    %v6955 = vunpack.c.h.b16 %v5712
    %v6956 = vunpack.c.l.b16 %v5713
    %v6957 = vunpack.c.h.b16 %v5713
    %v6958 = vunpack.c.l.b16 %v5714
    %v6959 = vunpack.c.l.b16 %v5715
    %v6960 = vunpack.c.h.b16 %v5715
    %v6961 = vunpack.c.l.b16 %v5716
    %v6962 = vunpack.c.h.b16 %v5716
    %v6963 = vunpack.c.l.b16 %v5717
    %v6964 = vunpack.c.h.b16 %v5717
    %v6965 = vunpack.c.l.b16 %v5718
    %v6966 = vunpack.c.h.b16 %v5718
    %v6967 = vunpack.c.l.b16 %v5719
    %v6968 = vunpack.c.h.b16 %v5719
    %v6969 = vunpack.c.l.b16 %v5720
    %v6970 = vunpack.c.h.b16 %v5720
    %v6971 = vunpack.c.l.b16 %v5721
    %v6972 = vunpack.c.h.b16 %v5721
    %v6973 = vunpack.c.l.b16 %v5722
    %v6974 = vunpack.c.l.b16 %v5723
    %v6975 = vunpack.c.h.b16 %v5723
    %v6976 = vunpack.c.l.b16 %v5724
    %v6977 = vunpack.c.h.b16 %v5724
    %v6978 = vunpack.c.l.b16 %v5725
    %v6979 = vunpack.c.h.b16 %v5725
    %v6980 = vunpack.c.l.b16 %v5726
    %v6981 = vunpack.c.h.b16 %v5726
    %v6982 = vunpack.c.l.b16 %v5727
    %v6983 = vunpack.c.h.b16 %v5727
    %v6984 = vunpack.c.l.b16 %v5728
    %v6985 = vunpack.c.h.b16 %v5728
    %v6986 = vunpack.c.l.b16 %v5729
    %v6987 = vunpack.c.h.b16 %v5729
    %v6988 = vunpack.c.l.b16 %v5730
    %v6989 = vunpack.c.l.b16 %v5731
    %v6990 = vunpack.c.h.b16 %v5731
    %v6991 = vunpack.c.l.b16 %v5732
    %v6992 = vunpack.c.h.b16 %v5732
    %v6993 = vunpack.c.l.b16 %v5733
    %v6994 = vunpack.c.h.b16 %v5733
    %v6995 = vunpack.c.l.b16 %v5734
    %v6996 = vunpack.c.h.b16 %v5734
    %v6997 = vunpack.c.l.b16 %v5735
    %v6998 = vunpack.c.h.b16 %v5735
    %v6999 = vunpack.c.l.b16 %v5736
    %v7000 = vunpack.c.h.b16 %v5736
    %v7001 = vunpack.c.l.b16 %v5737
    %v7002 = vunpack.c.h.b16 %v5737
    %v7003 = vunpack.c.l.b16 %v5738
    %v7004 = vunpack.c.l.b16 %v5739
    %v7005 = vunpack.c.h.b16 %v5739
    %v7006 = vunpack.c.l.b16 %v5740
    %v7007 = vunpack.c.h.b16 %v5740
    %v7008 = vunpack.c.l.b16 %v5741
    %v7009 = vunpack.c.h.b16 %v5741
    %v7010 = vunpack.c.l.b16 %v5742
    %v7011 = vunpack.c.h.b16 %v5742
    %v7012 = vunpack.c.l.b16 %v5743
    %v7013 = vunpack.c.h.b16 %v5743
    %v7014 = vunpack.c.l.b16 %v5744
    %v7015 = vunpack.c.h.b16 %v5744
    %v7016 = vunpack.c.l.b16 %v5745
    %v7017 = vunpack.c.h.b16 %v5745
    %v7018 = vunpack.c.l.b16 %v5746
    %v7019 = vunpack.c.l.b16 %v5747
    %v7020 = vunpack.c.h.b16 %v5747
    %v7021 = vunpack.c.l.b16 %v5748
    %v7022 = vunpack.c.h.b16 %v5748
    %v7023 = vunpack.c.l.b16 %v5749
    %v7024 = vunpack.c.h.b16 %v5749
    %v7025 = vunpack.c.l.b16 %v5750
    %v7026 = vunpack.c.h.b16 %v5750
    %v7027 = vunpack.c.l.b16 %v5751
    %v7028 = vunpack.c.h.b16 %v5751
    %v7029 = vunpack.c.l.b16 %v5752
    %v7030 = vunpack.c.h.b16 %v5752
    %v7031 = vunpack.c.l.b16 %v5753
    %v7032 = vunpack.c.h.b16 %v5753
    %v7033 = vunpack.c.l.b16 %v5754
    %v7034 = vunpack.c.l.b16 %v5755
    %v7035 = vunpack.c.h.b16 %v5755
    %v7036 = vunpack.c.l.b16 %v5756
    %v7037 = vunpack.c.h.b16 %v5756
    %v7038 = vunpack.c.l.b16 %v5757
    %v7039 = vunpack.c.h.b16 %v5757
    %v7040 = vunpack.c.l.b16 %v5758
    %v7041 = vunpack.c.h.b16 %v5758
    %v7042 = vunpack.c.l.b16 %v5759
    %v7043 = vunpack.c.h.b16 %v5759
    %v7044 = vunpack.c.l.b16 %v5760
    %v7045 = vunpack.c.h.b16 %v5760
    %v7046 = vunpack.c.l.b16 %v5761
    %v7047 = vunpack.c.h.b16 %v5761
    %v7048 = vunpack.c.l.b16 %v5762
    %v7049 = vunpack.c.l.b16 %v5763
    %v7050 = vunpack.c.h.b16 %v5763
    %v7051 = vunpack.c.l.b16 %v5764
    %v7052 = vunpack.c.h.b16 %v5764
    %v7053 = vunpack.c.l.b16 %v5765
    %v7054 = vunpack.c.h.b16 %v5765
    %v7055 = vunpack.c.l.b16 %v5766
    %v7056 = vunpack.c.h.b16 %v5766
    %v7057 = vunpack.c.l.b16 %v5767
    %v7058 = vunpack.c.h.b16 %v5767
    %v7059 = vunpack.c.l.b16 %v5768
    %v7060 = vunpack.c.h.b16 %v5768
    %v7061 = vunpack.c.l.b16 %v5769
    %v7062 = vunpack.c.h.b16 %v5769
    %v7063 = vunpack.c.l.b16 %v5770
    %v7064 = vunpack.c.l.b16 %v5771
    %v7065 = vunpack.c.h.b16 %v5771
    %v7066 = vunpack.c.l.b16 %v5772
    %v7067 = vunpack.c.h.b16 %v5772
    %v7068 = vunpack.c.l.b16 %v5773
    %v7069 = vunpack.c.h.b16 %v5773
    %v7070 = vunpack.c.l.b16 %v5774
    %v7071 = vunpack.c.h.b16 %v5774
    %v7072 = vunpack.c.l.b16 %v5775
    %v7073 = vunpack.c.h.b16 %v5775
    %v7074 = vunpack.c.l.b16 %v5776
    %v7075 = vunpack.c.h.b16 %v5776
    %v7076 = vunpack.c.l.b16 %v5777
    %v7077 = vunpack.c.h.b16 %v5777
    %v7078 = vunpack.c.l.b16 %v5778
    %v7079 = vunpack.c.l.b16 %v5779
    %v7080 = vunpack.c.h.b16 %v5779
    %v7081 = vunpack.c.l.b16 %v5780
    %v7082 = vunpack.c.h.b16 %v5780
    %v7083 = vunpack.c.l.b16 %v5781
    %v7084 = vunpack.c.h.b16 %v5781
    %v7085 = vunpack.c.l.b16 %v5782
    %v7086 = vunpack.c.h.b16 %v5782
    %v7087 = vunpack.c.l.b16 %v5783
    %v7088 = vunpack.c.h.b16 %v5783
    %v7089 = vunpack.c.l.b16 %v5784
    %v7090 = vunpack.c.h.b16 %v5784
    %v7091 = vunpack.c.l.b16 %v5785
    %v7092 = vunpack.c.h.b16 %v5785
    %v7093 = vunpack.c.l.b16 %v5786
    %v7094 = vunpack.c.l.b16 %v5787
    %v7095 = vunpack.c.h.b16 %v5787
    %v7096 = vunpack.c.l.b16 %v5788
    %v7097 = vunpack.c.h.b16 %v5788
    %v7098 = vunpack.c.l.b16 %v5789
    %v7099 = vunpack.c.h.b16 %v5789
    %v7100 = vunpack.c.l.b16 %v5790
    %v7101 = vunpack.c.h.b16 %v5790
    %v7102 = vunpack.c.l.b16 %v5791
    %v7103 = vunpack.c.h.b16 %v5791
    %v7104 = vunpack.c.l.b16 %v5792
    %v7105 = vunpack.c.h.b16 %v5792
    %v7106 = vunpack.c.l.b16 %v5793
    %v7107 = vunpack.c.h.b16 %v5793
    %v7108 = vunpack.c.l.b16 %v5794
    %v7109 = vunpack.c.l.b16 %v5795
    %v7110 = vunpack.c.h.b16 %v5795
    %v7111 = vunpack.c.l.b16 %v5796
    %v7112 = vunpack.c.h.b16 %v5796
    %v7113 = vunpack.c.l.b16 %v5797
    %v7114 = vunpack.c.h.b16 %v5797
    %v7115 = vunpack.c.l.b16 %v5798
    %v7116 = vunpack.c.h.b16 %v5798
    %v7117 = vunpack.c.l.b16 %v5799
    %v7118 = vunpack.c.h.b16 %v5799
    %v7119 = vunpack.c.l.b16 %v5800
    %v7120 = vunpack.c.h.b16 %v5800
    %v7121 = vunpack.c.l.b16 %v5801
    %v7122 = vunpack.c.h.b16 %v5801
    %v7123 = vunpack.c.l.b16 %v5802
    %v7124 = vunpack.c.l.b16 %v5803
    %v7125 = vunpack.c.h.b16 %v5803
    %v7126 = vunpack.c.l.b16 %v5804
    %v7127 = vunpack.c.h.b16 %v5804
    %v7128 = vunpack.c.l.b16 %v5805
    %v7129 = vunpack.c.h.b16 %v5805
    %v7130 = vunpack.c.l.b16 %v5806
    %v7131 = vunpack.c.h.b16 %v5806
    %v7132 = vunpack.c.l.b16 %v5807
    %v7133 = vunpack.c.h.b16 %v5807
    %v7134 = vunpack.c.l.b16 %v5808
    %v7135 = vunpack.c.h.b16 %v5808
    %v7136 = vunpack.c.l.b16 %v5809
    %v7137 = vunpack.c.h.b16 %v5809
    %v7138 = vunpack.c.l.b16 %v5810
    %v7139 = vunpack.c.l.b16 %v5811
    %v7140 = vunpack.c.h.b16 %v5811
    %v7141 = vunpack.c.l.b16 %v5812
    %v7142 = vunpack.c.h.b16 %v5812
    %v7143 = vunpack.c.l.b16 %v5813
    %v7144 = vunpack.c.h.b16 %v5813
    %v7145 = vunpack.c.l.b16 %v5814
    %v7146 = vunpack.c.h.b16 %v5814
    %v7147 = vunpack.c.l.b16 %v5815
    %v7148 = vunpack.c.h.b16 %v5815
    %v7149 = vunpack.c.l.b16 %v5816
    %v7150 = vunpack.c.h.b16 %v5816
    %v7151 = vunpack.c.l.b16 %v5817
    %v7152 = vunpack.c.h.b16 %v5817
    %v7153 = vunpack.c.l.b16 %v5818
    %v7154 = vunpack.c.l.b16 %v5819
    %v7155 = vunpack.c.h.b16 %v5819
    %v7156 = vunpack.c.l.b16 %v5820
    %v7157 = vunpack.c.h.b16 %v5820
    %v7158 = vunpack.c.l.b16 %v5821
    %v7159 = vunpack.c.h.b16 %v5821
    %v7160 = vunpack.c.l.b16 %v5822
    %v7161 = vunpack.c.h.b16 %v5822
    %v7162 = vunpack.c.l.b16 %v5823
    %v7163 = vunpack.c.h.b16 %v5823
    %v7164 = vunpack.c.l.b16 %v5824
    %v7165 = vunpack.c.h.b16 %v5824
    %v7166 = vunpack.c.l.b16 %v5825
    %v7167 = vunpack.c.h.b16 %v5825
    %v7168 = vunpack.c.l.b16 %v5826
    %v7169 = vunpack.c.l.b16 %v5827
    %v7170 = vunpack.c.h.b16 %v5827
    %v7171 = vunpack.c.l.b16 %v5828
    %v7172 = vunpack.c.h.b16 %v5828
    %v7173 = vunpack.c.l.b16 %v5829
    %v7174 = vunpack.c.h.b16 %v5829
    %v7175 = vunpack.c.l.b16 %v5830
    %v7176 = vunpack.c.h.b16 %v5830
    %v7177 = vunpack.c.l.b16 %v5831
    %v7178 = vunpack.c.h.b16 %v5831
    %v7179 = vunpack.c.l.b16 %v5832
    %v7180 = vunpack.c.h.b16 %v5832
    %v7181 = vunpack.c.l.b16 %v5833
    %v7182 = vunpack.c.h.b16 %v5833
    %v7183 = vunpack.c.l.b16 %v5834
    %v7184 = vunpack.c.l.b16 %v5835
    %v7185 = vunpack.c.h.b16 %v5835
    %v7186 = vunpack.c.l.b16 %v5836
    %v7187 = vunpack.c.h.b16 %v5836
    %v7188 = vunpack.c.l.b16 %v5837
    %v7189 = vunpack.c.h.b16 %v5837
    %v7190 = vunpack.c.l.b16 %v5838
    %v7191 = vunpack.c.h.b16 %v5838
    %v7192 = vunpack.c.l.b16 %v5839
    %v7193 = vunpack.c.h.b16 %v5839
    %v7194 = vunpack.c.l.b16 %v5840
    %v7195 = vunpack.c.h.b16 %v5840
    %v7196 = vunpack.c.l.b16 %v5841
    %v7197 = vunpack.c.h.b16 %v5841
    %v7198 = vunpack.c.l.b16 %v5842
    %v7199 = vunpack.c.l.b16 %v5843
    %v7200 = vunpack.c.h.b16 %v5843
    %v7201 = vunpack.c.l.b16 %v5844
    %v7202 = vunpack.c.h.b16 %v5844
    %v7203 = vunpack.c.l.b16 %v5845
    %v7204 = vunpack.c.h.b16 %v5845
    %v7205 = vunpack.c.l.b16 %v5846
    %v7206 = vunpack.c.h.b16 %v5846
    %v7207 = vunpack.c.l.b16 %v5847
    %v7208 = vunpack.c.h.b16 %v5847
    %v7209 = vunpack.c.l.b16 %v5848
    %v7210 = vunpack.c.h.b16 %v5848
    %v7211 = vunpack.c.l.b16 %v5849
    %v7212 = vunpack.c.h.b16 %v5849
    %v7213 = vunpack.c.l.b16 %v5850
    %v7214 = vunpack.c.l.b16 %v5851
    %v7215 = vunpack.c.h.b16 %v5851
    %v7216 = vunpack.c.l.b16 %v5852
    %v7217 = vunpack.c.h.b16 %v5852
    %v7218 = vunpack.c.l.b16 %v5853
    %v7219 = vunpack.c.h.b16 %v5853
    %v7220 = vunpack.c.l.b16 %v5854
    %v7221 = vunpack.c.h.b16 %v5854
    %v7222 = vunpack.c.l.b16 %v5855
    %v7223 = vunpack.c.h.b16 %v5855
    %v7224 = vunpack.c.l.b16 %v5856
    %v7225 = vunpack.c.h.b16 %v5856
    %v7226 = vunpack.c.l.b16 %v5857
    %v7227 = vunpack.c.h.b16 %v5857
    %v7228 = vunpack.c.l.b16 %v5858
    %v7229 = vunpack.c.l.b16 %v5859
    %v7230 = vunpack.c.h.b16 %v5859
    %v7231 = vunpack.c.l.b16 %v5860
    %v7232 = vunpack.c.h.b16 %v5860
    %v7233 = vunpack.c.l.b16 %v5861
    %v7234 = vunpack.c.h.b16 %v5861
    %v7235 = vunpack.c.l.b16 %v5862
    %v7236 = vunpack.c.h.b16 %v5862
    %v7237 = vunpack.c.l.b16 %v5863
    %v7238 = vunpack.c.h.b16 %v5863
    %v7239 = vunpack.c.l.b16 %v5864
    %v7240 = vunpack.c.h.b16 %v5864
    %v7241 = vunpack.c.l.b16 %v5865
    %v7242 = vunpack.c.h.b16 %v5865
    %v7243 = vunpack.c.l.b16 %v5866
    %v7244 = vunpack.c.l.b16 %v5867
    %v7245 = vunpack.c.h.b16 %v5867
    %v7246 = vunpack.c.l.b16 %v5868
    %v7247 = vunpack.c.h.b16 %v5868
    %v7248 = vunpack.c.l.b16 %v5869
    %v7249 = vunpack.c.h.b16 %v5869
    %v7250 = vunpack.c.l.b16 %v5870
    %v7251 = vunpack.c.h.b16 %v5870
    %v7252 = vunpack.c.l.b16 %v5871
    %v7253 = vunpack.c.h.b16 %v5871
    %v7254 = vunpack.c.l.b16 %v5872
    %v7255 = vunpack.c.h.b16 %v5872
    %v7256 = vunpack.c.l.b16 %v5873
    %v7257 = vunpack.c.h.b16 %v5873
    %v7258 = vunpack.c.l.b16 %v5874
    %v7259 = vunpack.c.l.b16 %v5875
    %v7260 = vunpack.c.h.b16 %v5875
    %v7261 = vunpack.c.l.b16 %v5876
    %v7262 = vunpack.c.h.b16 %v5876
    %v7263 = vunpack.c.l.b16 %v5877
    %v7264 = vunpack.c.h.b16 %v5877
    %v7265 = vunpack.c.l.b16 %v5878
    %v7266 = vunpack.c.h.b16 %v5878
    %v7267 = vunpack.c.l.b16 %v5879
    %v7268 = vunpack.c.h.b16 %v5879
    %v7269 = vunpack.c.l.b16 %v5880
    %v7270 = vunpack.c.h.b16 %v5880
    %v7271 = vunpack.c.l.b16 %v5881
    %v7272 = vunpack.c.h.b16 %v5881
    %v7273 = vunpack.c.l.b16 %v5882
    %v7274 = vunpack.c.l.b16 %v5883
    %v7275 = vunpack.c.h.b16 %v5883
    %v7276 = vunpack.c.l.b16 %v5884
    %v7277 = vunpack.c.h.b16 %v5884
    %v7278 = vunpack.c.l.b16 %v5885
    %v7279 = vunpack.c.h.b16 %v5885
    %v7280 = vunpack.c.l.b16 %v5886
    %v7281 = vunpack.c.h.b16 %v5886
    %v7282 = vunpack.c.l.b16 %v5887
    %v7283 = vunpack.c.h.b16 %v5887
    %v7284 = vunpack.c.l.b16 %v5888
    %v7285 = vunpack.c.h.b16 %v5888
    %v7286 = vunpack.c.l.b16 %v5889
    %v7287 = vunpack.c.h.b16 %v5889
    %v7288 = vunpack.c.l.b16 %v5890
    %v7289 = vunpack.c.l.b16 %v5891
    %v7290 = vunpack.c.h.b16 %v5891
    %v7291 = vunpack.c.l.b16 %v5892
    %v7292 = vunpack.c.h.b16 %v5892
    %v7293 = vunpack.c.l.b16 %v5893
    %v7294 = vunpack.c.h.b16 %v5893
    %v7295 = vunpack.c.l.b16 %v5894
    %v7296 = vunpack.c.h.b16 %v5894
    %v7297 = vunpack.c.l.b16 %v5895
    %v7298 = vunpack.c.h.b16 %v5895
    %v7299 = vunpack.c.l.b16 %v5896
    %v7300 = vunpack.c.h.b16 %v5896
    %v7301 = vunpack.c.l.b16 %v5897
    %v7302 = vunpack.c.h.b16 %v5897
    %v7303 = vunpack.c.l.b16 %v5898
    %v7304 = vunpack.c.l.b16 %v5899
    %v7305 = vunpack.c.h.b16 %v5899
    %v7306 = vunpack.c.l.b16 %v5900
    %v7307 = vunpack.c.h.b16 %v5900
    %v7308 = vunpack.c.l.b16 %v5901
    %v7309 = vunpack.c.h.b16 %v5901
    %v7310 = vunpack.c.l.b16 %v5902
    %v7311 = vunpack.c.h.b16 %v5902
    %v7312 = vunpack.c.l.b16 %v5903
    %v7313 = vunpack.c.h.b16 %v5903
    %v7314 = vunpack.c.l.b16 %v5904
    %v7315 = vunpack.c.h.b16 %v5904
    %v7316 = vunpack.c.l.b16 %v5905
    %v7317 = vunpack.c.h.b16 %v5905
    %v7318 = vunpack.c.l.b16 %v5906
    %v7319 = vunpack.c.l.b16 %v5907
    %v7320 = vunpack.c.h.b16 %v5907
    %v7321 = vunpack.c.l.b16 %v5908
    %v7322 = vunpack.c.h.b16 %v5908
    %v7323 = vunpack.c.l.b16 %v5909
    %v7324 = vunpack.c.h.b16 %v5909
    %v7325 = vunpack.c.l.b16 %v5910
    %v7326 = vunpack.c.h.b16 %v5910
    %v7327 = vunpack.c.l.b16 %v5911
    %v7328 = vunpack.c.h.b16 %v5911
    %v7329 = vunpack.c.l.b16 %v5912
    %v7330 = vunpack.c.h.b16 %v5912
    %v7331 = vunpack.c.l.b16 %v5913
    %v7332 = vunpack.c.h.b16 %v5913
    %v7333 = vunpack.c.l.b16 %v5914
    %v7334 = vunpack.c.l.b16 %v5915
    %v7335 = vunpack.c.h.b16 %v5915
    %v7336 = vunpack.c.l.b16 %v5916
    %v7337 = vunpack.c.h.b16 %v5916
    %v7338 = vunpack.c.l.b16 %v5917
    %v7339 = vunpack.c.h.b16 %v5917
    %v7340 = vunpack.c.l.b16 %v5918
    %v7341 = vunpack.c.h.b16 %v5918
    %v7342 = vunpack.c.l.b16 %v5919
    %v7343 = vunpack.c.h.b16 %v5919
    %v7344 = vunpack.c.l.b16 %v5920
    %v7345 = vunpack.c.h.b16 %v5920
    %v7346 = vunpack.c.l.b16 %v5921
    %v7347 = vunpack.c.h.b16 %v5921
    %v7348 = vunpack.c.l.b16 %v5922
    %v7349 = vunpack.c.l.b16 %v5923
    %v7350 = vunpack.c.h.b16 %v5923
    %v7351 = vunpack.c.l.b16 %v5924
    %v7352 = vunpack.c.h.b16 %v5924
    %v7353 = vunpack.c.l.b16 %v5925
    %v7354 = vunpack.c.h.b16 %v5925
    %v7355 = vunpack.c.l.b16 %v5926
    %v7356 = vunpack.c.h.b16 %v5926
    %v7357 = vunpack.c.l.b16 %v5927
    %v7358 = vunpack.c.h.b16 %v5927
    %v7359 = vunpack.c.l.b16 %v5928
    %v7360 = vunpack.c.h.b16 %v5928
    %v7361 = vunpack.c.l.b16 %v5929
    %v7362 = vunpack.c.h.b16 %v5929
    %v7363 = vunpack.c.l.b16 %v5930
    %v7364 = vunpack.c.l.b16 %v5931
    %v7365 = vunpack.c.h.b16 %v5931
    %v7366 = vunpack.c.l.b16 %v5932
    %v7367 = vunpack.c.h.b16 %v5932
    %v7368 = vunpack.c.l.b16 %v5933
    %v7369 = vunpack.c.h.b16 %v5933
    %v7370 = vunpack.c.l.b16 %v5934
    %v7371 = vunpack.c.h.b16 %v5934
    %v7372 = vunpack.c.l.b16 %v5935
    %v7373 = vunpack.c.h.b16 %v5935
    %v7374 = vunpack.c.l.b16 %v5936
    %v7375 = vunpack.c.h.b16 %v5936
    %v7376 = vunpack.c.l.b16 %v5937
    %v7377 = vunpack.c.h.b16 %v5937
    %v7378 = vunpack.c.l.b16 %v5938
    %v7379 = vunpack.c.l.b16 %v5939
    %v7380 = vunpack.c.h.b16 %v5939
    %v7381 = vunpack.c.l.b16 %v5940
    %v7382 = vunpack.c.h.b16 %v5940
    %v7383 = vunpack.c.l.b16 %v5941
    %v7384 = vunpack.c.h.b16 %v5941
    %v7385 = vunpack.c.l.b16 %v5942
    %v7386 = vunpack.c.h.b16 %v5942
    %v7387 = vunpack.c.l.b16 %v5943
    %v7388 = vunpack.c.h.b16 %v5943
    %v7389 = vunpack.c.l.b16 %v5944
    %v7390 = vunpack.c.h.b16 %v5944
    %v7391 = vunpack.c.l.b16 %v5945
    %v7392 = vunpack.c.h.b16 %v5945
    %v7393 = vunpack.c.l.b16 %v5946
    %v7394 = vunpack.c.l.b16 %v5947
    %v7395 = vunpack.c.h.b16 %v5947
    %v7396 = vunpack.c.l.b16 %v5948
    %v7397 = vunpack.c.h.b16 %v5948
    %v7398 = vunpack.c.l.b16 %v5949
    %v7399 = vunpack.c.h.b16 %v5949
    %v7400 = vunpack.c.l.b16 %v5950
    %v7401 = vunpack.c.h.b16 %v5950
    %v7402 = vunpack.c.l.b16 %v5951
    %v7403 = vunpack.c.h.b16 %v5951
    %v7404 = vunpack.c.l.b16 %v5952
    %v7405 = vunpack.c.h.b16 %v5952
    %v7406 = vunpack.c.l.b16 %v5953
    %v7407 = vunpack.c.h.b16 %v5953
    %v7408 = vunpack.c.l.b16 %v5954
    %v7409 = vunpack.c.l.b16 %v5955
    %v7410 = vunpack.c.h.b16 %v5955
    %v7411 = vunpack.c.l.b16 %v5956
    %v7412 = vunpack.c.h.b16 %v5956
    %v7413 = vunpack.c.l.b16 %v5957
    %v7414 = vunpack.c.h.b16 %v5957
    %v7415 = vunpack.c.l.b16 %v5958
    %v7416 = vunpack.c.h.b16 %v5958
    %v7417 = vunpack.c.l.b16 %v5959
    %v7418 = vunpack.c.h.b16 %v5959
    %v7419 = vunpack.c.l.b16 %v5960
    %v7420 = vunpack.c.h.b16 %v5960
    %v7421 = vunpack.c.l.b16 %v5961
    %v7422 = vunpack.c.h.b16 %v5961
    %v7423 = vunpack.c.l.b16 %v5962
    %v7424 = vunpack.c.l.b16 %v5963
    %v7425 = vunpack.c.h.b16 %v5963
    %v7426 = vunpack.c.l.b16 %v5964
    %v7427 = vunpack.c.h.b16 %v5964
    %v7428 = vunpack.c.l.b16 %v5965
    %v7429 = vunpack.c.h.b16 %v5965
    %v7430 = vunpack.c.l.b16 %v5966
    %v7431 = vunpack.c.h.b16 %v5966
    %v7432 = vunpack.c.l.b16 %v5967
    %v7433 = vunpack.c.h.b16 %v5967
    %v7434 = vunpack.c.l.b16 %v5968
    %v7435 = vunpack.c.h.b16 %v5968
    %v7436 = vunpack.c.l.b16 %v5969
    %v7437 = vunpack.c.h.b16 %v5969
    %v7438 = vunpack.c.l.b16 %v5970
    %v7439 = vunpack.c.l.b16 %v5971
    %v7440 = vunpack.c.h.b16 %v5971
    %v7441 = vunpack.c.l.b16 %v5972
    %v7442 = vunpack.c.h.b16 %v5972
    %v7443 = vunpack.c.l.b16 %v5973
    %v7444 = vunpack.c.h.b16 %v5973
    %v7445 = vunpack.c.l.b16 %v5974
    %v7446 = vunpack.c.h.b16 %v5974
    %v7447 = vunpack.c.l.b16 %v5975
    %v7448 = vunpack.c.h.b16 %v5975
    %v7449 = vunpack.c.l.b16 %v5976
    %v7450 = vunpack.c.h.b16 %v5976
    %v7451 = vunpack.c.l.b16 %v5977
    %v7452 = vunpack.c.h.b16 %v5977
    %v7453 = vunpack.c.l.b16 %v5978
    %v7454 = vunpack.c.l.b16 %v5979
    %v7455 = vunpack.c.h.b16 %v5979
    %v7456 = vunpack.c.l.b16 %v5980
    %v7457 = vunpack.c.h.b16 %v5980
    %v7458 = vunpack.c.l.b16 %v5981
    %v7459 = vunpack.c.h.b16 %v5981
    %v7460 = vunpack.c.l.b16 %v5982
    %v7461 = vunpack.c.h.b16 %v5982
    %v7462 = vunpack.c.l.b16 %v5983
    %v7463 = vunpack.c.h.b16 %v5983
    %v7464 = vunpack.c.l.b16 %v5984
    %v7465 = vunpack.c.h.b16 %v5984
    %v7466 = vunpack.c.l.b16 %v5985
    %v7467 = vunpack.c.h.b16 %v5985
    %v7468 = vunpack.c.l.b16 %v5986
    %v7469 = vunpack.c.l.b16 %v5987
    %v7470 = vunpack.c.h.b16 %v5987
    %v7471 = vunpack.c.l.b16 %v5988
    %v7472 = vunpack.c.h.b16 %v5988
    %v7473 = vunpack.c.l.b16 %v5989
    %v7474 = vunpack.c.h.b16 %v5989
    %v7475 = vunpack.c.l.b16 %v5990
    %v7476 = vunpack.c.h.b16 %v5990
    %v7477 = vunpack.c.l.b16 %v5991
    %v7478 = vunpack.c.h.b16 %v5991
    %v7479 = vunpack.c.l.b16 %v5992
    %v7480 = vunpack.c.h.b16 %v5992
    %v7481 = vunpack.c.l.b16 %v5993
    %v7482 = vunpack.c.h.b16 %v5993
    %v7483 = vunpack.c.l.b16 %v5994
    %v7484 = vunpack.c.l.b16 %v5995
    %v7485 = vunpack.c.h.b16 %v5995
    %v7486 = vunpack.c.l.b16 %v5996
    %v7487 = vunpack.c.h.b16 %v5996
    %v7488 = vunpack.c.l.b16 %v5997
    %v7489 = vunpack.c.h.b16 %v5997
    %v7490 = vunpack.c.l.b16 %v5998
    %v7491 = vunpack.c.h.b16 %v5998
    %v7492 = vunpack.c.l.b16 %v5999
    %v7493 = vunpack.c.h.b16 %v5999
    %v7494 = vunpack.c.l.b16 %v6000
    %v7495 = vunpack.c.h.b16 %v6000
    %v7496 = vunpack.c.l.b16 %v6001
    %v7497 = vunpack.c.h.b16 %v6001
    %v7498 = vunpack.c.l.b16 %v6002
    %v7499 = vunpack.c.l.b16 %v6003
    %v7500 = vunpack.c.h.b16 %v6003
    %v7501 = vunpack.c.l.b16 %v6004
    %v7502 = vunpack.c.h.b16 %v6004
    %v7503 = vunpack.c.l.b16 %v6005
    %v7504 = vunpack.c.h.b16 %v6005
    %v7505 = vunpack.c.l.b16 %v6006
    %v7506 = vunpack.c.h.b16 %v6006
    %v7507 = vunpack.c.l.b16 %v6007
    %v7508 = vunpack.c.h.b16 %v6007
    %v7509 = vunpack.c.l.b16 %v6008
    %v7510 = vunpack.c.h.b16 %v6008
    %v7511 = vunpack.c.l.b16 %v6009
    %v7512 = vunpack.c.h.b16 %v6009
    %v7513 = vunpack.c.l.b16 %v6010
    %v7514 = vunpack.c.l.b16 %v6011
    %v7515 = vunpack.c.h.b16 %v6011
    %v7516 = vunpack.c.l.b16 %v6012
    %v7517 = vunpack.c.h.b16 %v6012
    %v7518 = vunpack.c.l.b16 %v6013
    %v7519 = vunpack.c.h.b16 %v6013
    %v7520 = vunpack.c.l.b16 %v6014
    %v7521 = vunpack.c.h.b16 %v6014
    %v7522 = vunpack.c.l.b16 %v6015
    %v7523 = vunpack.c.h.b16 %v6015
    %v7524 = vunpack.c.l.b16 %v6016
    %v7525 = vunpack.c.h.b16 %v6016
    %v7526 = vunpack.c.l.b16 %v6017
    %v7527 = vunpack.c.h.b16 %v6017
    %v7528 = vunpack.c.l.b16 %v6018
    %v7529 = vpack.c.b16 %v6584, %v6569
    %v7530 = vpack.c.b16 %v6585, %v6570
    %v7531 = vpack.c.b16 %v6586, %v6571
    %v7532 = vpack.c.b16 %v6587, %v6572
    %v7533 = vpack.c.b16 %v6588, %v6573
    %v7534 = vpack.c.b16 %v6589, %v6574
    %v7535 = vpack.c.b16 %v6590, %v6575
    %v7536 = vpack.c.b16 %v6591, %v6576
    %v7537 = vpack.c.b16 %v6592, %v6577
    %v7538 = vpack.c.b16 %v6593, %v6578
    %v7539 = vpack.c.b16 %v6594, %v6579
    %v7540 = vpack.c.b16 %v6595, %v6580
    %v7541 = vpack.c.b16 %v6596, %v6581
    %v7542 = vpack.c.b16 %v6597, %v6582
    %v7543 = vpack.c.b16 %v6598, %v6583
    %v7544 = vpack.c.b16 %v6614, %v6599
    %v7545 = vpack.c.b16 %v6615, %v6600
    %v7546 = vpack.c.b16 %v6616, %v6601
    %v7547 = vpack.c.b16 %v6617, %v6602
    %v7548 = vpack.c.b16 %v6618, %v6603
    %v7549 = vpack.c.b16 %v6619, %v6604
    %v7550 = vpack.c.b16 %v6620, %v6605
    %v7551 = vpack.c.b16 %v6621, %v6606
    %v7552 = vpack.c.b16 %v6622, %v6607
    %v7553 = vpack.c.b16 %v6623, %v6608
    %v7554 = vpack.c.b16 %v6624, %v6609
    %v7555 = vpack.c.b16 %v6625, %v6610
    %v7556 = vpack.c.b16 %v6626, %v6611
    %v7557 = vpack.c.b16 %v6627, %v6612
    %v7558 = vpack.c.b16 %v6628, %v6613
    %v7559 = vpack.c.b16 %v6644, %v6629
    %v7560 = vpack.c.b16 %v6645, %v6630
    %v7561 = vpack.c.b16 %v6646, %v6631
    %v7562 = vpack.c.b16 %v6647, %v6632
    %v7563 = vpack.c.b16 %v6648, %v6633
    %v7564 = vpack.c.b16 %v6649, %v6634
    %v7565 = vpack.c.b16 %v6650, %v6635
    %v7566 = vpack.c.b16 %v6651, %v6636
    %v7567 = vpack.c.b16 %v6652, %v6637
    %v7568 = vpack.c.b16 %v6653, %v6638
    %v7569 = vpack.c.b16 %v6654, %v6639
    %v7570 = vpack.c.b16 %v6655, %v6640
    %v7571 = vpack.c.b16 %v6656, %v6641
    %v7572 = vpack.c.b16 %v6657, %v6642
    %v7573 = vpack.c.b16 %v6658, %v6643
    %v7574 = vpack.c.b16 %v6674, %v6659
    %v7575 = vpack.c.b16 %v6675, %v6660
    %v7576 = vpack.c.b16 %v6676, %v6661
    %v7577 = vpack.c.b16 %v6677, %v6662
    %v7578 = vpack.c.b16 %v6678, %v6663
    %v7579 = vpack.c.b16 %v6679, %v6664
    %v7580 = vpack.c.b16 %v6680, %v6665
    %v7581 = vpack.c.b16 %v6681, %v6666
    %v7582 = vpack.c.b16 %v6682, %v6667
    %v7583 = vpack.c.b16 %v6683, %v6668
    %v7584 = vpack.c.b16 %v6684, %v6669
    %v7585 = vpack.c.b16 %v6685, %v6670
    %v7586 = vpack.c.b16 %v6686, %v6671
    %v7587 = vpack.c.b16 %v6687, %v6672
    %v7588 = vpack.c.b16 %v6688, %v6673
    %v7589 = vpack.c.b16 %v6704, %v6689
    %v7590 = vpack.c.b16 %v6705, %v6690
    %v7591 = vpack.c.b16 %v6706, %v6691
    %v7592 = vpack.c.b16 %v6707, %v6692
    %v7593 = vpack.c.b16 %v6708, %v6693
    %v7594 = vpack.c.b16 %v6709, %v6694
    %v7595 = vpack.c.b16 %v6710, %v6695
    %v7596 = vpack.c.b16 %v6711, %v6696
    %v7597 = vpack.c.b16 %v6712, %v6697
    %v7598 = vpack.c.b16 %v6713, %v6698
    %v7599 = vpack.c.b16 %v6714, %v6699
    %v7600 = vpack.c.b16 %v6715, %v6700
    %v7601 = vpack.c.b16 %v6716, %v6701
    %v7602 = vpack.c.b16 %v6717, %v6702
    %v7603 = vpack.c.b16 %v6718, %v6703
    %v7604 = vpack.c.b16 %v6734, %v6719
    %v7605 = vpack.c.b16 %v6735, %v6720
    %v7606 = vpack.c.b16 %v6736, %v6721
    %v7607 = vpack.c.b16 %v6737, %v6722
    %v7608 = vpack.c.b16 %v6738, %v6723
    %v7609 = vpack.c.b16 %v6739, %v6724
    %v7610 = vpack.c.b16 %v6740, %v6725
    %v7611 = vpack.c.b16 %v6741, %v6726
    %v7612 = vpack.c.b16 %v6742, %v6727
    %v7613 = vpack.c.b16 %v6743, %v6728
    %v7614 = vpack.c.b16 %v6744, %v6729
    %v7615 = vpack.c.b16 %v6745, %v6730
    %v7616 = vpack.c.b16 %v6746, %v6731
    %v7617 = vpack.c.b16 %v6747, %v6732
    %v7618 = vpack.c.b16 %v6748, %v6733
    %v7619 = vpack.c.b16 %v6764, %v6749
    %v7620 = vpack.c.b16 %v6765, %v6750
    %v7621 = vpack.c.b16 %v6766, %v6751
    %v7622 = vpack.c.b16 %v6767, %v6752
    %v7623 = vpack.c.b16 %v6768, %v6753
    %v7624 = vpack.c.b16 %v6769, %v6754
    %v7625 = vpack.c.b16 %v6770, %v6755
    %v7626 = vpack.c.b16 %v6771, %v6756
    %v7627 = vpack.c.b16 %v6772, %v6757
    %v7628 = vpack.c.b16 %v6773, %v6758
    %v7629 = vpack.c.b16 %v6774, %v6759
    %v7630 = vpack.c.b16 %v6775, %v6760
    %v7631 = vpack.c.b16 %v6776, %v6761
    %v7632 = vpack.c.b16 %v6777, %v6762
    %v7633 = vpack.c.b16 %v6778, %v6763
    %v7634 = vpack.c.b16 %v6794, %v6779
    %v7635 = vpack.c.b16 %v6795, %v6780
    %v7636 = vpack.c.b16 %v6796, %v6781
    %v7637 = vpack.c.b16 %v6797, %v6782
    %v7638 = vpack.c.b16 %v6798, %v6783
    %v7639 = vpack.c.b16 %v6799, %v6784
    %v7640 = vpack.c.b16 %v6800, %v6785
    %v7641 = vpack.c.b16 %v6801, %v6786
    %v7642 = vpack.c.b16 %v6802, %v6787
    %v7643 = vpack.c.b16 %v6803, %v6788
    %v7644 = vpack.c.b16 %v6804, %v6789
    %v7645 = vpack.c.b16 %v6805, %v6790
    %v7646 = vpack.c.b16 %v6806, %v6791
    %v7647 = vpack.c.b16 %v6807, %v6792
    %v7648 = vpack.c.b16 %v6808, %v6793
    %v7649 = vpack.c.b16 %v6824, %v6809
    %v7650 = vpack.c.b16 %v6825, %v6810
    %v7651 = vpack.c.b16 %v6826, %v6811
    %v7652 = vpack.c.b16 %v6827, %v6812
    %v7653 = vpack.c.b16 %v6828, %v6813
    %v7654 = vpack.c.b16 %v6829, %v6814
    %v7655 = vpack.c.b16 %v6830, %v6815
    %v7656 = vpack.c.b16 %v6831, %v6816
    %v7657 = vpack.c.b16 %v6832, %v6817
    %v7658 = vpack.c.b16 %v6833, %v6818
    %v7659 = vpack.c.b16 %v6834, %v6819
    %v7660 = vpack.c.b16 %v6835, %v6820
    %v7661 = vpack.c.b16 %v6836, %v6821
    %v7662 = vpack.c.b16 %v6837, %v6822
    %v7663 = vpack.c.b16 %v6838, %v6823
    %v7664 = vpack.c.b16 %v6854, %v6839
    %v7665 = vpack.c.b16 %v6855, %v6840
    %v7666 = vpack.c.b16 %v6856, %v6841
    %v7667 = vpack.c.b16 %v6857, %v6842
    %v7668 = vpack.c.b16 %v6858, %v6843
    %v7669 = vpack.c.b16 %v6859, %v6844
    %v7670 = vpack.c.b16 %v6860, %v6845
    %v7671 = vpack.c.b16 %v6861, %v6846
    %v7672 = vpack.c.b16 %v6862, %v6847
    %v7673 = vpack.c.b16 %v6863, %v6848
    %v7674 = vpack.c.b16 %v6864, %v6849
    %v7675 = vpack.c.b16 %v6865, %v6850
    %v7676 = vpack.c.b16 %v6866, %v6851
    %v7677 = vpack.c.b16 %v6867, %v6852
    %v7678 = vpack.c.b16 %v6868, %v6853
    %v7679 = vpack.c.b16 %v6884, %v6869
    %v7680 = vpack.c.b16 %v6885, %v6870
    %v7681 = vpack.c.b16 %v6886, %v6871
    %v7682 = vpack.c.b16 %v6887, %v6872
    %v7683 = vpack.c.b16 %v6888, %v6873
    %v7684 = vpack.c.b16 %v6889, %v6874
    %v7685 = vpack.c.b16 %v6890, %v6875
    %v7686 = vpack.c.b16 %v6891, %v6876
    %v7687 = vpack.c.b16 %v6892, %v6877
    %v7688 = vpack.c.b16 %v6893, %v6878
    %v7689 = vpack.c.b16 %v6894, %v6879
    %v7690 = vpack.c.b16 %v6895, %v6880
    %v7691 = vpack.c.b16 %v6896, %v6881
    %v7692 = vpack.c.b16 %v6897, %v6882
    %v7693 = vpack.c.b16 %v6898, %v6883
    %v7694 = vpack.c.b16 %v6914, %v6899
    %v7695 = vpack.c.b16 %v6915, %v6900
    %v7696 = vpack.c.b16 %v6916, %v6901
    %v7697 = vpack.c.b16 %v6917, %v6902
    %v7698 = vpack.c.b16 %v6918, %v6903
    %v7699 = vpack.c.b16 %v6919, %v6904
    %v7700 = vpack.c.b16 %v6920, %v6905
    %v7701 = vpack.c.b16 %v6921, %v6906
    %v7702 = vpack.c.b16 %v6922, %v6907
    %v7703 = vpack.c.b16 %v6923, %v6908
    %v7704 = vpack.c.b16 %v6924, %v6909
    %v7705 = vpack.c.b16 %v6925, %v6910
    %v7706 = vpack.c.b16 %v6926, %v6911
    %v7707 = vpack.c.b16 %v6927, %v6912
    %v7708 = vpack.c.b16 %v6928, %v6913
    %v7709 = vpack.c.b16 %v6944, %v6929
    %v7710 = vpack.c.b16 %v6945, %v6930
    %v7711 = vpack.c.b16 %v6946, %v6931
    %v7712 = vpack.c.b16 %v6947, %v6932
    %v7713 = vpack.c.b16 %v6948, %v6933
    %v7714 = vpack.c.b16 %v6949, %v6934
    %v7715 = vpack.c.b16 %v6950, %v6935
    %v7716 = vpack.c.b16 %v6951, %v6936
    %v7717 = vpack.c.b16 %v6952, %v6937
    %v7718 = vpack.c.b16 %v6953, %v6938
    %v7719 = vpack.c.b16 %v6954, %v6939
    %v7720 = vpack.c.b16 %v6955, %v6940
    %v7721 = vpack.c.b16 %v6956, %v6941
    %v7722 = vpack.c.b16 %v6957, %v6942
    %v7723 = vpack.c.b16 %v6958, %v6943
    %v7724 = vpack.c.b16 %v6974, %v6959
    %v7725 = vpack.c.b16 %v6975, %v6960
    %v7726 = vpack.c.b16 %v6976, %v6961
    %v7727 = vpack.c.b16 %v6977, %v6962
    %v7728 = vpack.c.b16 %v6978, %v6963
    %v7729 = vpack.c.b16 %v6979, %v6964
    %v7730 = vpack.c.b16 %v6980, %v6965
    %v7731 = vpack.c.b16 %v6981, %v6966
    %v7732 = vpack.c.b16 %v6982, %v6967
    %v7733 = vpack.c.b16 %v6983, %v6968
    %v7734 = vpack.c.b16 %v6984, %v6969
    %v7735 = vpack.c.b16 %v6985, %v6970
    %v7736 = vpack.c.b16 %v6986, %v6971
    %v7737 = vpack.c.b16 %v6987, %v6972
    %v7738 = vpack.c.b16 %v6988, %v6973
    %v7739 = vpack.c.b16 %v7004, %v6989
    %v7740 = vpack.c.b16 %v7005, %v6990
    %v7741 = vpack.c.b16 %v7006, %v6991
    %v7742 = vpack.c.b16 %v7007, %v6992
    %v7743 = vpack.c.b16 %v7008, %v6993
    %v7744 = vpack.c.b16 %v7009, %v6994
    %v7745 = vpack.c.b16 %v7010, %v6995
    %v7746 = vpack.c.b16 %v7011, %v6996
    %v7747 = vpack.c.b16 %v7012, %v6997
    %v7748 = vpack.c.b16 %v7013, %v6998
    %v7749 = vpack.c.b16 %v7014, %v6999
    %v7750 = vpack.c.b16 %v7015, %v7000
    %v7751 = vpack.c.b16 %v7016, %v7001
    %v7752 = vpack.c.b16 %v7017, %v7002
    %v7753 = vpack.c.b16 %v7018, %v7003
    %v7754 = vpack.c.b16 %v7034, %v7019
    %v7755 = vpack.c.b16 %v7035, %v7020
    %v7756 = vpack.c.b16 %v7036, %v7021
    %v7757 = vpack.c.b16 %v7037, %v7022
    %v7758 = vpack.c.b16 %v7038, %v7023
    %v7759 = vpack.c.b16 %v7039, %v7024
    %v7760 = vpack.c.b16 %v7040, %v7025
    %v7761 = vpack.c.b16 %v7041, %v7026
    %v7762 = vpack.c.b16 %v7042, %v7027
    %v7763 = vpack.c.b16 %v7043, %v7028
    %v7764 = vpack.c.b16 %v7044, %v7029
    %v7765 = vpack.c.b16 %v7045, %v7030
    %v7766 = vpack.c.b16 %v7046, %v7031
    %v7767 = vpack.c.b16 %v7047, %v7032
    %v7768 = vpack.c.b16 %v7048, %v7033
    %v7769 = vpack.c.b16 %v7064, %v7049
    %v7770 = vpack.c.b16 %v7065, %v7050
    %v7771 = vpack.c.b16 %v7066, %v7051
    %v7772 = vpack.c.b16 %v7067, %v7052
    %v7773 = vpack.c.b16 %v7068, %v7053
    %v7774 = vpack.c.b16 %v7069, %v7054
    %v7775 = vpack.c.b16 %v7070, %v7055
    %v7776 = vpack.c.b16 %v7071, %v7056
    %v7777 = vpack.c.b16 %v7072, %v7057
    %v7778 = vpack.c.b16 %v7073, %v7058
    %v7779 = vpack.c.b16 %v7074, %v7059
    %v7780 = vpack.c.b16 %v7075, %v7060
    %v7781 = vpack.c.b16 %v7076, %v7061
    %v7782 = vpack.c.b16 %v7077, %v7062
    %v7783 = vpack.c.b16 %v7078, %v7063
    %v7784 = vpack.c.b16 %v7094, %v7079
    %v7785 = vpack.c.b16 %v7095, %v7080
    %v7786 = vpack.c.b16 %v7096, %v7081
    %v7787 = vpack.c.b16 %v7097, %v7082
    %v7788 = vpack.c.b16 %v7098, %v7083
    %v7789 = vpack.c.b16 %v7099, %v7084
    %v7790 = vpack.c.b16 %v7100, %v7085
    %v7791 = vpack.c.b16 %v7101, %v7086
    %v7792 = vpack.c.b16 %v7102, %v7087
    %v7793 = vpack.c.b16 %v7103, %v7088
    %v7794 = vpack.c.b16 %v7104, %v7089
    %v7795 = vpack.c.b16 %v7105, %v7090
    %v7796 = vpack.c.b16 %v7106, %v7091
    %v7797 = vpack.c.b16 %v7107, %v7092
    %v7798 = vpack.c.b16 %v7108, %v7093
    %v7799 = vpack.c.b16 %v7124, %v7109
    %v7800 = vpack.c.b16 %v7125, %v7110
    %v7801 = vpack.c.b16 %v7126, %v7111
    %v7802 = vpack.c.b16 %v7127, %v7112
    %v7803 = vpack.c.b16 %v7128, %v7113
    %v7804 = vpack.c.b16 %v7129, %v7114
    %v7805 = vpack.c.b16 %v7130, %v7115
    %v7806 = vpack.c.b16 %v7131, %v7116
    %v7807 = vpack.c.b16 %v7132, %v7117
    %v7808 = vpack.c.b16 %v7133, %v7118
    %v7809 = vpack.c.b16 %v7134, %v7119
    %v7810 = vpack.c.b16 %v7135, %v7120
    %v7811 = vpack.c.b16 %v7136, %v7121
    %v7812 = vpack.c.b16 %v7137, %v7122
    %v7813 = vpack.c.b16 %v7138, %v7123
    %v7814 = vpack.c.b16 %v7154, %v7139
    %v7815 = vpack.c.b16 %v7155, %v7140
    %v7816 = vpack.c.b16 %v7156, %v7141
    %v7817 = vpack.c.b16 %v7157, %v7142
    %v7818 = vpack.c.b16 %v7158, %v7143
    %v7819 = vpack.c.b16 %v7159, %v7144
    %v7820 = vpack.c.b16 %v7160, %v7145
    %v7821 = vpack.c.b16 %v7161, %v7146
    %v7822 = vpack.c.b16 %v7162, %v7147
    %v7823 = vpack.c.b16 %v7163, %v7148
    %v7824 = vpack.c.b16 %v7164, %v7149
    %v7825 = vpack.c.b16 %v7165, %v7150
    %v7826 = vpack.c.b16 %v7166, %v7151
    %v7827 = vpack.c.b16 %v7167, %v7152
    %v7828 = vpack.c.b16 %v7168, %v7153
    %v7829 = vpack.c.b16 %v7184, %v7169
    %v7830 = vpack.c.b16 %v7185, %v7170
    %v7831 = vpack.c.b16 %v7186, %v7171
    %v7832 = vpack.c.b16 %v7187, %v7172
    %v7833 = vpack.c.b16 %v7188, %v7173
    %v7834 = vpack.c.b16 %v7189, %v7174
    %v7835 = vpack.c.b16 %v7190, %v7175
    %v7836 = vpack.c.b16 %v7191, %v7176
    %v7837 = vpack.c.b16 %v7192, %v7177
    %v7838 = vpack.c.b16 %v7193, %v7178
    %v7839 = vpack.c.b16 %v7194, %v7179
    %v7840 = vpack.c.b16 %v7195, %v7180
    %v7841 = vpack.c.b16 %v7196, %v7181
    %v7842 = vpack.c.b16 %v7197, %v7182
    %v7843 = vpack.c.b16 %v7198, %v7183
    %v7844 = vpack.c.b16 %v7214, %v7199
    %v7845 = vpack.c.b16 %v7215, %v7200
    %v7846 = vpack.c.b16 %v7216, %v7201
    %v7847 = vpack.c.b16 %v7217, %v7202
    %v7848 = vpack.c.b16 %v7218, %v7203
    %v7849 = vpack.c.b16 %v7219, %v7204
    %v7850 = vpack.c.b16 %v7220, %v7205
    %v7851 = vpack.c.b16 %v7221, %v7206
    %v7852 = vpack.c.b16 %v7222, %v7207
    %v7853 = vpack.c.b16 %v7223, %v7208
    %v7854 = vpack.c.b16 %v7224, %v7209
    %v7855 = vpack.c.b16 %v7225, %v7210
    %v7856 = vpack.c.b16 %v7226, %v7211
    %v7857 = vpack.c.b16 %v7227, %v7212
    %v7858 = vpack.c.b16 %v7228, %v7213
    %v7859 = vpack.c.b16 %v7244, %v7229
    %v7860 = vpack.c.b16 %v7245, %v7230
    %v7861 = vpack.c.b16 %v7246, %v7231
    %v7862 = vpack.c.b16 %v7247, %v7232
    %v7863 = vpack.c.b16 %v7248, %v7233
    %v7864 = vpack.c.b16 %v7249, %v7234
    %v7865 = vpack.c.b16 %v7250, %v7235
    %v7866 = vpack.c.b16 %v7251, %v7236
    %v7867 = vpack.c.b16 %v7252, %v7237
    %v7868 = vpack.c.b16 %v7253, %v7238
    %v7869 = vpack.c.b16 %v7254, %v7239
    %v7870 = vpack.c.b16 %v7255, %v7240
    %v7871 = vpack.c.b16 %v7256, %v7241
    %v7872 = vpack.c.b16 %v7257, %v7242
    %v7873 = vpack.c.b16 %v7258, %v7243
    %v7874 = vpack.c.b16 %v7274, %v7259
    %v7875 = vpack.c.b16 %v7275, %v7260
    %v7876 = vpack.c.b16 %v7276, %v7261
    %v7877 = vpack.c.b16 %v7277, %v7262
    %v7878 = vpack.c.b16 %v7278, %v7263
    %v7879 = vpack.c.b16 %v7279, %v7264
    %v7880 = vpack.c.b16 %v7280, %v7265
    %v7881 = vpack.c.b16 %v7281, %v7266
    %v7882 = vpack.c.b16 %v7282, %v7267
    %v7883 = vpack.c.b16 %v7283, %v7268
    %v7884 = vpack.c.b16 %v7284, %v7269
    %v7885 = vpack.c.b16 %v7285, %v7270
    %v7886 = vpack.c.b16 %v7286, %v7271
    %v7887 = vpack.c.b16 %v7287, %v7272
    %v7888 = vpack.c.b16 %v7288, %v7273
    %v7889 = vpack.c.b16 %v7304, %v7289
    %v7890 = vpack.c.b16 %v7305, %v7290
    %v7891 = vpack.c.b16 %v7306, %v7291
    %v7892 = vpack.c.b16 %v7307, %v7292
    %v7893 = vpack.c.b16 %v7308, %v7293
    %v7894 = vpack.c.b16 %v7309, %v7294
    %v7895 = vpack.c.b16 %v7310, %v7295
    %v7896 = vpack.c.b16 %v7311, %v7296
    %v7897 = vpack.c.b16 %v7312, %v7297
    %v7898 = vpack.c.b16 %v7313, %v7298
    %v7899 = vpack.c.b16 %v7314, %v7299
    %v7900 = vpack.c.b16 %v7315, %v7300
    %v7901 = vpack.c.b16 %v7316, %v7301
    %v7902 = vpack.c.b16 %v7317, %v7302
    %v7903 = vpack.c.b16 %v7318, %v7303
    %v7904 = vpack.c.b16 %v7334, %v7319
    %v7905 = vpack.c.b16 %v7335, %v7320
    %v7906 = vpack.c.b16 %v7336, %v7321
    %v7907 = vpack.c.b16 %v7337, %v7322
    %v7908 = vpack.c.b16 %v7338, %v7323
    %v7909 = vpack.c.b16 %v7339, %v7324
    %v7910 = vpack.c.b16 %v7340, %v7325
    %v7911 = vpack.c.b16 %v7341, %v7326
    %v7912 = vpack.c.b16 %v7342, %v7327
    %v7913 = vpack.c.b16 %v7343, %v7328
    %v7914 = vpack.c.b16 %v7344, %v7329
    %v7915 = vpack.c.b16 %v7345, %v7330
    %v7916 = vpack.c.b16 %v7346, %v7331
    %v7917 = vpack.c.b16 %v7347, %v7332
    %v7918 = vpack.c.b16 %v7348, %v7333
    %v7919 = vpack.c.b16 %v7364, %v7349
    %v7920 = vpack.c.b16 %v7365, %v7350
    %v7921 = vpack.c.b16 %v7366, %v7351
    %v7922 = vpack.c.b16 %v7367, %v7352
    %v7923 = vpack.c.b16 %v7368, %v7353
    %v7924 = vpack.c.b16 %v7369, %v7354
    %v7925 = vpack.c.b16 %v7370, %v7355
    %v7926 = vpack.c.b16 %v7371, %v7356
    %v7927 = vpack.c.b16 %v7372, %v7357
    %v7928 = vpack.c.b16 %v7373, %v7358
    %v7929 = vpack.c.b16 %v7374, %v7359
    %v7930 = vpack.c.b16 %v7375, %v7360
    %v7931 = vpack.c.b16 %v7376, %v7361
    %v7932 = vpack.c.b16 %v7377, %v7362
    %v7933 = vpack.c.b16 %v7378, %v7363
    %v7934 = vpack.c.b16 %v7394, %v7379
    %v7935 = vpack.c.b16 %v7395, %v7380
    %v7936 = vpack.c.b16 %v7396, %v7381
    %v7937 = vpack.c.b16 %v7397, %v7382
    %v7938 = vpack.c.b16 %v7398, %v7383
    %v7939 = vpack.c.b16 %v7399, %v7384
    %v7940 = vpack.c.b16 %v7400, %v7385
    %v7941 = vpack.c.b16 %v7401, %v7386
    %v7942 = vpack.c.b16 %v7402, %v7387
    %v7943 = vpack.c.b16 %v7403, %v7388
    %v7944 = vpack.c.b16 %v7404, %v7389
    %v7945 = vpack.c.b16 %v7405, %v7390
    %v7946 = vpack.c.b16 %v7406, %v7391
    %v7947 = vpack.c.b16 %v7407, %v7392
    %v7948 = vpack.c.b16 %v7408, %v7393
    %v7949 = vpack.c.b16 %v7424, %v7409
    %v7950 = vpack.c.b16 %v7425, %v7410
    %v7951 = vpack.c.b16 %v7426, %v7411
    %v7952 = vpack.c.b16 %v7427, %v7412
    %v7953 = vpack.c.b16 %v7428, %v7413
    %v7954 = vpack.c.b16 %v7429, %v7414
    %v7955 = vpack.c.b16 %v7430, %v7415
    %v7956 = vpack.c.b16 %v7431, %v7416
    %v7957 = vpack.c.b16 %v7432, %v7417
    %v7958 = vpack.c.b16 %v7433, %v7418
    %v7959 = vpack.c.b16 %v7434, %v7419
    %v7960 = vpack.c.b16 %v7435, %v7420
    %v7961 = vpack.c.b16 %v7436, %v7421
    %v7962 = vpack.c.b16 %v7437, %v7422
    %v7963 = vpack.c.b16 %v7438, %v7423
    %v7964 = vpack.c.b16 %v7454, %v7439
    %v7965 = vpack.c.b16 %v7455, %v7440
    %v7966 = vpack.c.b16 %v7456, %v7441
    %v7967 = vpack.c.b16 %v7457, %v7442
    %v7968 = vpack.c.b16 %v7458, %v7443
    %v7969 = vpack.c.b16 %v7459, %v7444
    %v7970 = vpack.c.b16 %v7460, %v7445
    %v7971 = vpack.c.b16 %v7461, %v7446
    %v7972 = vpack.c.b16 %v7462, %v7447
    %v7973 = vpack.c.b16 %v7463, %v7448
    %v7974 = vpack.c.b16 %v7464, %v7449
    %v7975 = vpack.c.b16 %v7465, %v7450
    %v7976 = vpack.c.b16 %v7466, %v7451
    %v7977 = vpack.c.b16 %v7467, %v7452
    %v7978 = vpack.c.b16 %v7468, %v7453
    %v7979 = vpack.c.b16 %v7484, %v7469
    %v7980 = vpack.c.b16 %v7485, %v7470
    %v7981 = vpack.c.b16 %v7486, %v7471
    %v7982 = vpack.c.b16 %v7487, %v7472
    %v7983 = vpack.c.b16 %v7488, %v7473
    %v7984 = vpack.c.b16 %v7489, %v7474
    %v7985 = vpack.c.b16 %v7490, %v7475
    %v7986 = vpack.c.b16 %v7491, %v7476
    %v7987 = vpack.c.b16 %v7492, %v7477
    %v7988 = vpack.c.b16 %v7493, %v7478
    %v7989 = vpack.c.b16 %v7494, %v7479
    %v7990 = vpack.c.b16 %v7495, %v7480
    %v7991 = vpack.c.b16 %v7496, %v7481
    %v7992 = vpack.c.b16 %v7497, %v7482
    %v7993 = vpack.c.b16 %v7498, %v7483
    %v7994 = vpack.c.b16 %v7514, %v7499
    %v7995 = vpack.c.b16 %v7515, %v7500
    %v7996 = vpack.c.b16 %v7516, %v7501
    %v7997 = vpack.c.b16 %v7517, %v7502
    %v7998 = vpack.c.b16 %v7518, %v7503
    %v7999 = vpack.c.b16 %v7519, %v7504
    %v8000 = vpack.c.b16 %v7520, %v7505
    %v8001 = vpack.c.b16 %v7521, %v7506
    %v8002 = vpack.c.b16 %v7522, %v7507
    %v8003 = vpack.c.b16 %v7523, %v7508
    %v8004 = vpack.c.b16 %v7524, %v7509
    %v8005 = vpack.c.b16 %v7525, %v7510
    %v8006 = vpack.c.b16 %v7526, %v7511
    %v8007 = vpack.c.b16 %v7527, %v7512
    %v8008 = vpack.c.b16 %v7528, %v7513
    %8489 = vmatpush.bf16.msra.mxu0 %v7634
    %8490 = vmatpush.bf16.msra.mxu0 %v7619
    %8491 = vmatpush.bf16.msra.mxu0 %v7604
    %8492 = vmatpush.bf16.msra.mxu0 %v7589
    %8493 = vmatpush.bf16.msra.mxu0 %v7574
    %8494 = vmatpush.bf16.msra.mxu0 %v7559
    %8495 = vmatpush.bf16.msra.mxu0 %v7544
    %8496 = vmatpush.bf16.msra.mxu0 %v7529
    %8497 = vmatmul.bf16.gmra.mxu0 %v6019
    %v8498 = vpop.f32.mrf.mxu0
    %v8499 = vadd.f32 %v6027, %v8498
    %v8500 = vpop.f32.mrf.mxu0
    %8501 = vdwg.mxu0
    %8502 = vmatpush.bf16.msra.mxu0 %v7754
    %8503 = vmatpush.bf16.msra.mxu0 %v7739
    %8504 = vmatpush.bf16.msra.mxu0 %v7724
    %8505 = vmatpush.bf16.msra.mxu0 %v7709
    %8506 = vmatpush.bf16.msra.mxu0 %v7694
    %8507 = vmatpush.bf16.msra.mxu0 %v7679
    %8508 = vmatpush.bf16.msra.mxu0 %v7664
    %8509 = vmatpush.bf16.msra.mxu0 %v7649
    %8510 = vmatmul.bf16.gmra.mxu0 %v6020
    %v8511 = vpop.f32.mrf.mxu0
    %v8512 = vadd.f32 %v8499, %v8511
    %v8513 = vpop.f32.mrf.mxu0
    %8514 = vdwg.mxu0
    %8515 = vmatpush.bf16.msra.mxu0 %v7874
    %8516 = vmatpush.bf16.msra.mxu0 %v7859
    %8517 = vmatpush.bf16.msra.mxu0 %v7844
    %8518 = vmatpush.bf16.msra.mxu0 %v7829
    %8519 = vmatpush.bf16.msra.mxu0 %v7814
    %8520 = vmatpush.bf16.msra.mxu0 %v7799
    %8521 = vmatpush.bf16.msra.mxu0 %v7784
    %8522 = vmatpush.bf16.msra.mxu0 %v7769
    %8523 = vmatmul.bf16.gmra.mxu0 %v6021
    %v8524 = vpop.f32.mrf.mxu0
    %v8525 = vadd.f32 %v8512, %v8524
    %v8526 = vpop.f32.mrf.mxu0
    %8527 = vdwg.mxu0
    %8528 = vmatpush.bf16.msra.mxu0 %v7994
    %8529 = vmatpush.bf16.msra.mxu0 %v7979
    %8530 = vmatpush.bf16.msra.mxu0 %v7964
    %8531 = vmatpush.bf16.msra.mxu0 %v7949
    %8532 = vmatpush.bf16.msra.mxu0 %v7934
    %8533 = vmatpush.bf16.msra.mxu0 %v7919
    %8534 = vmatpush.bf16.msra.mxu0 %v7904
    %8535 = vmatpush.bf16.msra.mxu0 %v7889
    %8536 = vmatmul.bf16.gmra.mxu0 %v6022
    %v8537 = vpop.f32.mrf.mxu0
    %v8538 = vadd.f32 %v8525, %v8537
    %v8539 = vpop.f32.mrf.mxu0
    %8540 = vdwg.mxu0
    %8541 = vmatpush.bf16.msra.mxu0 %v7635
    %8542 = vmatpush.bf16.msra.mxu0 %v7620
    %8543 = vmatpush.bf16.msra.mxu0 %v7605
    %8544 = vmatpush.bf16.msra.mxu0 %v7590
    %8545 = vmatpush.bf16.msra.mxu0 %v7575
    %8546 = vmatpush.bf16.msra.mxu0 %v7560
    %8547 = vmatpush.bf16.msra.mxu0 %v7545
    %8548 = vmatpush.bf16.msra.mxu0 %v7530
    %8549 = vmatmul.bf16.gmra.mxu0 %v6019
    %v8550 = vpop.f32.mrf.mxu0
    %v8551 = vadd.f32 %v6028, %v8550
    %v8552 = vpop.f32.mrf.mxu0
    %8553 = vdwg.mxu0
    %8554 = vmatpush.bf16.msra.mxu0 %v7755
    %8555 = vmatpush.bf16.msra.mxu0 %v7740
    %8556 = vmatpush.bf16.msra.mxu0 %v7725
    %8557 = vmatpush.bf16.msra.mxu0 %v7710
    %8558 = vmatpush.bf16.msra.mxu0 %v7695
    %8559 = vmatpush.bf16.msra.mxu0 %v7680
    %8560 = vmatpush.bf16.msra.mxu0 %v7665
    %8561 = vmatpush.bf16.msra.mxu0 %v7650
    %8562 = vmatmul.bf16.gmra.mxu0 %v6020
    %v8563 = vpop.f32.mrf.mxu0
    %v8564 = vadd.f32 %v8551, %v8563
    %v8565 = vpop.f32.mrf.mxu0
    %8566 = vdwg.mxu0
    %8567 = vmatpush.bf16.msra.mxu0 %v7875
    %8568 = vmatpush.bf16.msra.mxu0 %v7860
    %8569 = vmatpush.bf16.msra.mxu0 %v7845
    %8570 = vmatpush.bf16.msra.mxu0 %v7830
    %8571 = vmatpush.bf16.msra.mxu0 %v7815
    %8572 = vmatpush.bf16.msra.mxu0 %v7800
    %8573 = vmatpush.bf16.msra.mxu0 %v7785
    %8574 = vmatpush.bf16.msra.mxu0 %v7770
    %8575 = vmatmul.bf16.gmra.mxu0 %v6021
    %v8576 = vpop.f32.mrf.mxu0
    %v8577 = vadd.f32 %v8564, %v8576
    %v8578 = vpop.f32.mrf.mxu0
    %8579 = vdwg.mxu0
    %8580 = vmatpush.bf16.msra.mxu0 %v7995
    %8581 = vmatpush.bf16.msra.mxu0 %v7980
    %8582 = vmatpush.bf16.msra.mxu0 %v7965
    %8583 = vmatpush.bf16.msra.mxu0 %v7950
    %8584 = vmatpush.bf16.msra.mxu0 %v7935
    %8585 = vmatpush.bf16.msra.mxu0 %v7920
    %8586 = vmatpush.bf16.msra.mxu0 %v7905
    %8587 = vmatpush.bf16.msra.mxu0 %v7890
    %8588 = vmatmul.bf16.gmra.mxu0 %v6022
    %v8589 = vpop.f32.mrf.mxu0
    %v8590 = vadd.f32 %v8577, %v8589
    %v8591 = vpop.f32.mrf.mxu0
    %8592 = vdwg.mxu0
    %8593 = vmatpush.bf16.msra.mxu0 %v7636
    %8594 = vmatpush.bf16.msra.mxu0 %v7621
    %8595 = vmatpush.bf16.msra.mxu0 %v7606
    %8596 = vmatpush.bf16.msra.mxu0 %v7591
    %8597 = vmatpush.bf16.msra.mxu0 %v7576
    %8598 = vmatpush.bf16.msra.mxu0 %v7561
    %8599 = vmatpush.bf16.msra.mxu0 %v7546
    %8600 = vmatpush.bf16.msra.mxu0 %v7531
    %8601 = vmatmul.bf16.gmra.mxu0 %v6019
    %v8602 = vpop.f32.mrf.mxu0
    %v8603 = vadd.f32 %v6029, %v8602
    %v8604 = vpop.f32.mrf.mxu0
    %8605 = vdwg.mxu0
    %8606 = vmatpush.bf16.msra.mxu0 %v7756
    %8607 = vmatpush.bf16.msra.mxu0 %v7741
    %8608 = vmatpush.bf16.msra.mxu0 %v7726
    %8609 = vmatpush.bf16.msra.mxu0 %v7711
    %8610 = vmatpush.bf16.msra.mxu0 %v7696
    %8611 = vmatpush.bf16.msra.mxu0 %v7681
    %8612 = vmatpush.bf16.msra.mxu0 %v7666
    %8613 = vmatpush.bf16.msra.mxu0 %v7651
    %8614 = vmatmul.bf16.gmra.mxu0 %v6020
    %v8615 = vpop.f32.mrf.mxu0
    %v8616 = vadd.f32 %v8603, %v8615
    %v8617 = vpop.f32.mrf.mxu0
    %8618 = vdwg.mxu0
    %8619 = vmatpush.bf16.msra.mxu0 %v7876
    %8620 = vmatpush.bf16.msra.mxu0 %v7861
    %8621 = vmatpush.bf16.msra.mxu0 %v7846
    %8622 = vmatpush.bf16.msra.mxu0 %v7831
    %8623 = vmatpush.bf16.msra.mxu0 %v7816
    %8624 = vmatpush.bf16.msra.mxu0 %v7801
    %8625 = vmatpush.bf16.msra.mxu0 %v7786
    %8626 = vmatpush.bf16.msra.mxu0 %v7771
    %8627 = vmatmul.bf16.gmra.mxu0 %v6021
    %v8628 = vpop.f32.mrf.mxu0
    %v8629 = vadd.f32 %v8616, %v8628
    %v8630 = vpop.f32.mrf.mxu0
    %8631 = vdwg.mxu0
    %8632 = vmatpush.bf16.msra.mxu0 %v7996
    %8633 = vmatpush.bf16.msra.mxu0 %v7981
    %8634 = vmatpush.bf16.msra.mxu0 %v7966
    %8635 = vmatpush.bf16.msra.mxu0 %v7951
    %8636 = vmatpush.bf16.msra.mxu0 %v7936
    %8637 = vmatpush.bf16.msra.mxu0 %v7921
    %8638 = vmatpush.bf16.msra.mxu0 %v7906
    %8639 = vmatpush.bf16.msra.mxu0 %v7891
    %8640 = vmatmul.bf16.gmra.mxu0 %v6022
    %v8641 = vpop.f32.mrf.mxu0
    %v8642 = vadd.f32 %v8629, %v8641
    %v8643 = vpop.f32.mrf.mxu0
    %8644 = vdwg.mxu0
    %8645 = vmatpush.bf16.msra.mxu0 %v7637
    %8646 = vmatpush.bf16.msra.mxu0 %v7622
    %8647 = vmatpush.bf16.msra.mxu0 %v7607
    %8648 = vmatpush.bf16.msra.mxu0 %v7592
    %8649 = vmatpush.bf16.msra.mxu0 %v7577
    %8650 = vmatpush.bf16.msra.mxu0 %v7562
    %8651 = vmatpush.bf16.msra.mxu0 %v7547
    %8652 = vmatpush.bf16.msra.mxu0 %v7532
    %8653 = vmatmul.bf16.gmra.mxu0 %v6019
    %v8654 = vpop.f32.mrf.mxu0
    %v8655 = vadd.f32 %v6030, %v8654
    %v8656 = vpop.f32.mrf.mxu0
    %8657 = vdwg.mxu0
    %8658 = vmatpush.bf16.msra.mxu0 %v7757
    %8659 = vmatpush.bf16.msra.mxu0 %v7742
    %8660 = vmatpush.bf16.msra.mxu0 %v7727
    %8661 = vmatpush.bf16.msra.mxu0 %v7712
    %8662 = vmatpush.bf16.msra.mxu0 %v7697
    %8663 = vmatpush.bf16.msra.mxu0 %v7682
    %8664 = vmatpush.bf16.msra.mxu0 %v7667
    %8665 = vmatpush.bf16.msra.mxu0 %v7652
    %8666 = vmatmul.bf16.gmra.mxu0 %v6020
    %v8667 = vpop.f32.mrf.mxu0
    %v8668 = vadd.f32 %v8655, %v8667
    %v8669 = vpop.f32.mrf.mxu0
    %8670 = vdwg.mxu0
    %8671 = vmatpush.bf16.msra.mxu0 %v7877
    %8672 = vmatpush.bf16.msra.mxu0 %v7862
    %8673 = vmatpush.bf16.msra.mxu0 %v7847
    %8674 = vmatpush.bf16.msra.mxu0 %v7832
    %8675 = vmatpush.bf16.msra.mxu0 %v7817
    %8676 = vmatpush.bf16.msra.mxu0 %v7802
    %8677 = vmatpush.bf16.msra.mxu0 %v7787
    %8678 = vmatpush.bf16.msra.mxu0 %v7772
    %8679 = vmatmul.bf16.gmra.mxu0 %v6021
    %v8680 = vpop.f32.mrf.mxu0
    %v8681 = vadd.f32 %v8668, %v8680
    %v8682 = vpop.f32.mrf.mxu0
    %8683 = vdwg.mxu0
    %8684 = vmatpush.bf16.msra.mxu0 %v7997
    %8685 = vmatpush.bf16.msra.mxu0 %v7982
    %8686 = vmatpush.bf16.msra.mxu0 %v7967
    %8687 = vmatpush.bf16.msra.mxu0 %v7952
    %8688 = vmatpush.bf16.msra.mxu0 %v7937
    %8689 = vmatpush.bf16.msra.mxu0 %v7922
    %8690 = vmatpush.bf16.msra.mxu0 %v7907
    %8691 = vmatpush.bf16.msra.mxu0 %v7892
    %8692 = vmatmul.bf16.gmra.mxu0 %v6022
    %v8693 = vpop.f32.mrf.mxu0
    %v8694 = vadd.f32 %v8681, %v8693
    %v8695 = vpop.f32.mrf.mxu0
    %8696 = vdwg.mxu0
    %8697 = vmatpush.bf16.msra.mxu0 %v7638
    %8698 = vmatpush.bf16.msra.mxu0 %v7623
    %8699 = vmatpush.bf16.msra.mxu0 %v7608
    %8700 = vmatpush.bf16.msra.mxu0 %v7593
    %8701 = vmatpush.bf16.msra.mxu0 %v7578
    %8702 = vmatpush.bf16.msra.mxu0 %v7563
    %8703 = vmatpush.bf16.msra.mxu0 %v7548
    %8704 = vmatpush.bf16.msra.mxu0 %v7533
    %8705 = vmatmul.bf16.gmra.mxu0 %v6019
    %v8706 = vpop.f32.mrf.mxu0
    %v8707 = vadd.f32 %v6031, %v8706
    %v8708 = vpop.f32.mrf.mxu0
    %8709 = vdwg.mxu0
    %8710 = vmatpush.bf16.msra.mxu0 %v7758
    %8711 = vmatpush.bf16.msra.mxu0 %v7743
    %8712 = vmatpush.bf16.msra.mxu0 %v7728
    %8713 = vmatpush.bf16.msra.mxu0 %v7713
    %8714 = vmatpush.bf16.msra.mxu0 %v7698
    %8715 = vmatpush.bf16.msra.mxu0 %v7683
    %8716 = vmatpush.bf16.msra.mxu0 %v7668
    %8717 = vmatpush.bf16.msra.mxu0 %v7653
    %8718 = vmatmul.bf16.gmra.mxu0 %v6020
    %v8719 = vpop.f32.mrf.mxu0
    %v8720 = vadd.f32 %v8707, %v8719
    %v8721 = vpop.f32.mrf.mxu0
    %8722 = vdwg.mxu0
    %8723 = vmatpush.bf16.msra.mxu0 %v7878
    %8724 = vmatpush.bf16.msra.mxu0 %v7863
    %8725 = vmatpush.bf16.msra.mxu0 %v7848
    %8726 = vmatpush.bf16.msra.mxu0 %v7833
    %8727 = vmatpush.bf16.msra.mxu0 %v7818
    %8728 = vmatpush.bf16.msra.mxu0 %v7803
    %8729 = vmatpush.bf16.msra.mxu0 %v7788
    %8730 = vmatpush.bf16.msra.mxu0 %v7773
    %8731 = vmatmul.bf16.gmra.mxu0 %v6021
    %v8732 = vpop.f32.mrf.mxu0
    %v8733 = vadd.f32 %v8720, %v8732
    %v8734 = vpop.f32.mrf.mxu0
    %8735 = vdwg.mxu0
    %8736 = vmatpush.bf16.msra.mxu0 %v7998
    %8737 = vmatpush.bf16.msra.mxu0 %v7983
    %8738 = vmatpush.bf16.msra.mxu0 %v7968
    %8739 = vmatpush.bf16.msra.mxu0 %v7953
    %8740 = vmatpush.bf16.msra.mxu0 %v7938
    %8741 = vmatpush.bf16.msra.mxu0 %v7923
    %8742 = vmatpush.bf16.msra.mxu0 %v7908
    %8743 = vmatpush.bf16.msra.mxu0 %v7893
    %8744 = vmatmul.bf16.gmra.mxu0 %v6022
    %v8745 = vpop.f32.mrf.mxu0
    %v8746 = vadd.f32 %v8733, %v8745
    %v8747 = vpop.f32.mrf.mxu0
    %8748 = vdwg.mxu0
    %8749 = vmatpush.bf16.msra.mxu0 %v7639
    %8750 = vmatpush.bf16.msra.mxu0 %v7624
    %8751 = vmatpush.bf16.msra.mxu0 %v7609
    %8752 = vmatpush.bf16.msra.mxu0 %v7594
    %8753 = vmatpush.bf16.msra.mxu0 %v7579
    %8754 = vmatpush.bf16.msra.mxu0 %v7564
    %8755 = vmatpush.bf16.msra.mxu0 %v7549
    %8756 = vmatpush.bf16.msra.mxu0 %v7534
    %8757 = vmatmul.bf16.gmra.mxu0 %v6019
    %v8758 = vpop.f32.mrf.mxu0
    %v8759 = vadd.f32 %v6032, %v8758
    %v8760 = vpop.f32.mrf.mxu0
    %8761 = vdwg.mxu0
    %8762 = vmatpush.bf16.msra.mxu0 %v7759
    %8763 = vmatpush.bf16.msra.mxu0 %v7744
    %8764 = vmatpush.bf16.msra.mxu0 %v7729
    %8765 = vmatpush.bf16.msra.mxu0 %v7714
    %8766 = vmatpush.bf16.msra.mxu0 %v7699
    %8767 = vmatpush.bf16.msra.mxu0 %v7684
    %8768 = vmatpush.bf16.msra.mxu0 %v7669
    %8769 = vmatpush.bf16.msra.mxu0 %v7654
    %8770 = vmatmul.bf16.gmra.mxu0 %v6020
    %v8771 = vpop.f32.mrf.mxu0
    %v8772 = vadd.f32 %v8759, %v8771
    %v8773 = vpop.f32.mrf.mxu0
    %8774 = vdwg.mxu0
    %8775 = vmatpush.bf16.msra.mxu0 %v7879
    %8776 = vmatpush.bf16.msra.mxu0 %v7864
    %8777 = vmatpush.bf16.msra.mxu0 %v7849
    %8778 = vmatpush.bf16.msra.mxu0 %v7834
    %8779 = vmatpush.bf16.msra.mxu0 %v7819
    %8780 = vmatpush.bf16.msra.mxu0 %v7804
    %8781 = vmatpush.bf16.msra.mxu0 %v7789
    %8782 = vmatpush.bf16.msra.mxu0 %v7774
    %8783 = vmatmul.bf16.gmra.mxu0 %v6021
    %v8784 = vpop.f32.mrf.mxu0
    %v8785 = vadd.f32 %v8772, %v8784
    %v8786 = vpop.f32.mrf.mxu0
    %8787 = vdwg.mxu0
    %8788 = vmatpush.bf16.msra.mxu0 %v7999
    %8789 = vmatpush.bf16.msra.mxu0 %v7984
    %8790 = vmatpush.bf16.msra.mxu0 %v7969
    %8791 = vmatpush.bf16.msra.mxu0 %v7954
    %8792 = vmatpush.bf16.msra.mxu0 %v7939
    %8793 = vmatpush.bf16.msra.mxu0 %v7924
    %8794 = vmatpush.bf16.msra.mxu0 %v7909
    %8795 = vmatpush.bf16.msra.mxu0 %v7894
    %8796 = vmatmul.bf16.gmra.mxu0 %v6022
    %v8797 = vpop.f32.mrf.mxu0
    %v8798 = vadd.f32 %v8785, %v8797
    %v8799 = vpop.f32.mrf.mxu0
    %8800 = vdwg.mxu0
    %8801 = vmatpush.bf16.msra.mxu0 %v7640
    %8802 = vmatpush.bf16.msra.mxu0 %v7625
    %8803 = vmatpush.bf16.msra.mxu0 %v7610
    %8804 = vmatpush.bf16.msra.mxu0 %v7595
    %8805 = vmatpush.bf16.msra.mxu0 %v7580
    %8806 = vmatpush.bf16.msra.mxu0 %v7565
    %8807 = vmatpush.bf16.msra.mxu0 %v7550
    %8808 = vmatpush.bf16.msra.mxu0 %v7535
    %8809 = vmatmul.bf16.gmra.mxu0 %v6019
    %v8810 = vpop.f32.mrf.mxu0
    %v8811 = vadd.f32 %v6033, %v8810
    %v8812 = vpop.f32.mrf.mxu0
    %8813 = vdwg.mxu0
    %8814 = vmatpush.bf16.msra.mxu0 %v7760
    %8815 = vmatpush.bf16.msra.mxu0 %v7745
    %8816 = vmatpush.bf16.msra.mxu0 %v7730
    %8817 = vmatpush.bf16.msra.mxu0 %v7715
    %8818 = vmatpush.bf16.msra.mxu0 %v7700
    %8819 = vmatpush.bf16.msra.mxu0 %v7685
    %8820 = vmatpush.bf16.msra.mxu0 %v7670
    %8821 = vmatpush.bf16.msra.mxu0 %v7655
    %8822 = vmatmul.bf16.gmra.mxu0 %v6020
    %v8823 = vpop.f32.mrf.mxu0
    %v8824 = vadd.f32 %v8811, %v8823
    %v8825 = vpop.f32.mrf.mxu0
    %8826 = vdwg.mxu0
    %8827 = vmatpush.bf16.msra.mxu0 %v7880
    %8828 = vmatpush.bf16.msra.mxu0 %v7865
    %8829 = vmatpush.bf16.msra.mxu0 %v7850
    %8830 = vmatpush.bf16.msra.mxu0 %v7835
    %8831 = vmatpush.bf16.msra.mxu0 %v7820
    %8832 = vmatpush.bf16.msra.mxu0 %v7805
    %8833 = vmatpush.bf16.msra.mxu0 %v7790
    %8834 = vmatpush.bf16.msra.mxu0 %v7775
    %8835 = vmatmul.bf16.gmra.mxu0 %v6021
    %v8836 = vpop.f32.mrf.mxu0
    %v8837 = vadd.f32 %v8824, %v8836
    %v8838 = vpop.f32.mrf.mxu0
    %8839 = vdwg.mxu0
    %8840 = vmatpush.bf16.msra.mxu0 %v8000
    %8841 = vmatpush.bf16.msra.mxu0 %v7985
    %8842 = vmatpush.bf16.msra.mxu0 %v7970
    %8843 = vmatpush.bf16.msra.mxu0 %v7955
    %8844 = vmatpush.bf16.msra.mxu0 %v7940
    %8845 = vmatpush.bf16.msra.mxu0 %v7925
    %8846 = vmatpush.bf16.msra.mxu0 %v7910
    %8847 = vmatpush.bf16.msra.mxu0 %v7895
    %8848 = vmatmul.bf16.gmra.mxu0 %v6022
    %v8849 = vpop.f32.mrf.mxu0
    %v8850 = vadd.f32 %v8837, %v8849
    %v8851 = vpop.f32.mrf.mxu0
    %8852 = vdwg.mxu0
    %8853 = vmatpush.bf16.msra.mxu0 %v7641
    %8854 = vmatpush.bf16.msra.mxu0 %v7626
    %8855 = vmatpush.bf16.msra.mxu0 %v7611
    %8856 = vmatpush.bf16.msra.mxu0 %v7596
    %8857 = vmatpush.bf16.msra.mxu0 %v7581
    %8858 = vmatpush.bf16.msra.mxu0 %v7566
    %8859 = vmatpush.bf16.msra.mxu0 %v7551
    %8860 = vmatpush.bf16.msra.mxu0 %v7536
    %8861 = vmatmul.bf16.gmra.mxu0 %v6019
    %v8862 = vpop.f32.mrf.mxu0
    %v8863 = vadd.f32 %v6034, %v8862
    %v8864 = vpop.f32.mrf.mxu0
    %8865 = vdwg.mxu0
    %8866 = vmatpush.bf16.msra.mxu0 %v7761
    %8867 = vmatpush.bf16.msra.mxu0 %v7746
    %8868 = vmatpush.bf16.msra.mxu0 %v7731
    %8869 = vmatpush.bf16.msra.mxu0 %v7716
    %8870 = vmatpush.bf16.msra.mxu0 %v7701
    %8871 = vmatpush.bf16.msra.mxu0 %v7686
    %8872 = vmatpush.bf16.msra.mxu0 %v7671
    %8873 = vmatpush.bf16.msra.mxu0 %v7656
    %8874 = vmatmul.bf16.gmra.mxu0 %v6020
    %v8875 = vpop.f32.mrf.mxu0
    %v8876 = vadd.f32 %v8863, %v8875
    %v8877 = vpop.f32.mrf.mxu0
    %8878 = vdwg.mxu0
    %8879 = vmatpush.bf16.msra.mxu0 %v7881
    %8880 = vmatpush.bf16.msra.mxu0 %v7866
    %8881 = vmatpush.bf16.msra.mxu0 %v7851
    %8882 = vmatpush.bf16.msra.mxu0 %v7836
    %8883 = vmatpush.bf16.msra.mxu0 %v7821
    %8884 = vmatpush.bf16.msra.mxu0 %v7806
    %8885 = vmatpush.bf16.msra.mxu0 %v7791
    %8886 = vmatpush.bf16.msra.mxu0 %v7776
    %8887 = vmatmul.bf16.gmra.mxu0 %v6021
    %v8888 = vpop.f32.mrf.mxu0
    %v8889 = vadd.f32 %v8876, %v8888
    %v8890 = vpop.f32.mrf.mxu0
    %8891 = vdwg.mxu0
    %8892 = vmatpush.bf16.msra.mxu0 %v8001
    %8893 = vmatpush.bf16.msra.mxu0 %v7986
    %8894 = vmatpush.bf16.msra.mxu0 %v7971
    %8895 = vmatpush.bf16.msra.mxu0 %v7956
    %8896 = vmatpush.bf16.msra.mxu0 %v7941
    %8897 = vmatpush.bf16.msra.mxu0 %v7926
    %8898 = vmatpush.bf16.msra.mxu0 %v7911
    %8899 = vmatpush.bf16.msra.mxu0 %v7896
    %8900 = vmatmul.bf16.gmra.mxu0 %v6022
    %v8901 = vpop.f32.mrf.mxu0
    %v8902 = vadd.f32 %v8889, %v8901
    %v8903 = vpop.f32.mrf.mxu0
    %8904 = vdwg.mxu0
    %8905 = vmatpush.bf16.msra.mxu0 %v7642
    %8906 = vmatpush.bf16.msra.mxu0 %v7627
    %8907 = vmatpush.bf16.msra.mxu0 %v7612
    %8908 = vmatpush.bf16.msra.mxu0 %v7597
    %8909 = vmatpush.bf16.msra.mxu0 %v7582
    %8910 = vmatpush.bf16.msra.mxu0 %v7567
    %8911 = vmatpush.bf16.msra.mxu0 %v7552
    %8912 = vmatpush.bf16.msra.mxu0 %v7537
    %8913 = vmatmul.bf16.gmra.mxu0 %v6019
    %v8914 = vpop.f32.mrf.mxu0
    %v8915 = vadd.f32 %v6035, %v8914
    %v8916 = vpop.f32.mrf.mxu0
    %8917 = vdwg.mxu0
    %8918 = vmatpush.bf16.msra.mxu0 %v7762
    %8919 = vmatpush.bf16.msra.mxu0 %v7747
    %8920 = vmatpush.bf16.msra.mxu0 %v7732
    %8921 = vmatpush.bf16.msra.mxu0 %v7717
    %8922 = vmatpush.bf16.msra.mxu0 %v7702
    %8923 = vmatpush.bf16.msra.mxu0 %v7687
    %8924 = vmatpush.bf16.msra.mxu0 %v7672
    %8925 = vmatpush.bf16.msra.mxu0 %v7657
    %8926 = vmatmul.bf16.gmra.mxu0 %v6020
    %v8927 = vpop.f32.mrf.mxu0
    %v8928 = vadd.f32 %v8915, %v8927
    %v8929 = vpop.f32.mrf.mxu0
    %8930 = vdwg.mxu0
    %8931 = vmatpush.bf16.msra.mxu0 %v7882
    %8932 = vmatpush.bf16.msra.mxu0 %v7867
    %8933 = vmatpush.bf16.msra.mxu0 %v7852
    %8934 = vmatpush.bf16.msra.mxu0 %v7837
    %8935 = vmatpush.bf16.msra.mxu0 %v7822
    %8936 = vmatpush.bf16.msra.mxu0 %v7807
    %8937 = vmatpush.bf16.msra.mxu0 %v7792
    %8938 = vmatpush.bf16.msra.mxu0 %v7777
    %8939 = vmatmul.bf16.gmra.mxu0 %v6021
    %v8940 = vpop.f32.mrf.mxu0
    %v8941 = vadd.f32 %v8928, %v8940
    %v8942 = vpop.f32.mrf.mxu0
    %8943 = vdwg.mxu0
    %8944 = vmatpush.bf16.msra.mxu0 %v8002
    %8945 = vmatpush.bf16.msra.mxu0 %v7987
    %8946 = vmatpush.bf16.msra.mxu0 %v7972
    %8947 = vmatpush.bf16.msra.mxu0 %v7957
    %8948 = vmatpush.bf16.msra.mxu0 %v7942
    %8949 = vmatpush.bf16.msra.mxu0 %v7927
    %8950 = vmatpush.bf16.msra.mxu0 %v7912
    %8951 = vmatpush.bf16.msra.mxu0 %v7897
    %8952 = vmatmul.bf16.gmra.mxu0 %v6022
    %v8953 = vpop.f32.mrf.mxu0
    %v8954 = vadd.f32 %v8941, %v8953
    %v8955 = vpop.f32.mrf.mxu0
    %8956 = vdwg.mxu0
    %8957 = vmatpush.bf16.msra.mxu0 %v7643
    %8958 = vmatpush.bf16.msra.mxu0 %v7628
    %8959 = vmatpush.bf16.msra.mxu0 %v7613
    %8960 = vmatpush.bf16.msra.mxu0 %v7598
    %8961 = vmatpush.bf16.msra.mxu0 %v7583
    %8962 = vmatpush.bf16.msra.mxu0 %v7568
    %8963 = vmatpush.bf16.msra.mxu0 %v7553
    %8964 = vmatpush.bf16.msra.mxu0 %v7538
    %8965 = vmatmul.bf16.gmra.mxu0 %v6019
    %v8966 = vpop.f32.mrf.mxu0
    %v8967 = vadd.f32 %v6036, %v8966
    %v8968 = vpop.f32.mrf.mxu0
    %8969 = vdwg.mxu0
    %8970 = vmatpush.bf16.msra.mxu0 %v7763
    %8971 = vmatpush.bf16.msra.mxu0 %v7748
    %8972 = vmatpush.bf16.msra.mxu0 %v7733
    %8973 = vmatpush.bf16.msra.mxu0 %v7718
    %8974 = vmatpush.bf16.msra.mxu0 %v7703
    %8975 = vmatpush.bf16.msra.mxu0 %v7688
    %8976 = vmatpush.bf16.msra.mxu0 %v7673
    %8977 = vmatpush.bf16.msra.mxu0 %v7658
    %8978 = vmatmul.bf16.gmra.mxu0 %v6020
    %v8979 = vpop.f32.mrf.mxu0
    %v8980 = vadd.f32 %v8967, %v8979
    %v8981 = vpop.f32.mrf.mxu0
    %8982 = vdwg.mxu0
    %8983 = vmatpush.bf16.msra.mxu0 %v7883
    %8984 = vmatpush.bf16.msra.mxu0 %v7868
    %8985 = vmatpush.bf16.msra.mxu0 %v7853
    %8986 = vmatpush.bf16.msra.mxu0 %v7838
    %8987 = vmatpush.bf16.msra.mxu0 %v7823
    %8988 = vmatpush.bf16.msra.mxu0 %v7808
    %8989 = vmatpush.bf16.msra.mxu0 %v7793
    %8990 = vmatpush.bf16.msra.mxu0 %v7778
    %8991 = vmatmul.bf16.gmra.mxu0 %v6021
    %v8992 = vpop.f32.mrf.mxu0
    %v8993 = vadd.f32 %v8980, %v8992
    %v8994 = vpop.f32.mrf.mxu0
    %8995 = vdwg.mxu0
    %8996 = vmatpush.bf16.msra.mxu0 %v8003
    %8997 = vmatpush.bf16.msra.mxu0 %v7988
    %8998 = vmatpush.bf16.msra.mxu0 %v7973
    %8999 = vmatpush.bf16.msra.mxu0 %v7958
    %9000 = vmatpush.bf16.msra.mxu0 %v7943
    %9001 = vmatpush.bf16.msra.mxu0 %v7928
    %9002 = vmatpush.bf16.msra.mxu0 %v7913
    %9003 = vmatpush.bf16.msra.mxu0 %v7898
    %9004 = vmatmul.bf16.gmra.mxu0 %v6022
    %v9005 = vpop.f32.mrf.mxu0
    %v9006 = vadd.f32 %v8993, %v9005
    %v9007 = vpop.f32.mrf.mxu0
    %9008 = vdwg.mxu0
    %9009 = vmatpush.bf16.msra.mxu0 %v7644
    %9010 = vmatpush.bf16.msra.mxu0 %v7629
    %9011 = vmatpush.bf16.msra.mxu0 %v7614
    %9012 = vmatpush.bf16.msra.mxu0 %v7599
    %9013 = vmatpush.bf16.msra.mxu0 %v7584
    %9014 = vmatpush.bf16.msra.mxu0 %v7569
    %9015 = vmatpush.bf16.msra.mxu0 %v7554
    %9016 = vmatpush.bf16.msra.mxu0 %v7539
    %9017 = vmatmul.bf16.gmra.mxu0 %v6019
    %v9018 = vpop.f32.mrf.mxu0
    %v9019 = vadd.f32 %v6037, %v9018
    %v9020 = vpop.f32.mrf.mxu0
    %9021 = vdwg.mxu0
    %9022 = vmatpush.bf16.msra.mxu0 %v7764
    %9023 = vmatpush.bf16.msra.mxu0 %v7749
    %9024 = vmatpush.bf16.msra.mxu0 %v7734
    %9025 = vmatpush.bf16.msra.mxu0 %v7719
    %9026 = vmatpush.bf16.msra.mxu0 %v7704
    %9027 = vmatpush.bf16.msra.mxu0 %v7689
    %9028 = vmatpush.bf16.msra.mxu0 %v7674
    %9029 = vmatpush.bf16.msra.mxu0 %v7659
    %9030 = vmatmul.bf16.gmra.mxu0 %v6020
    %v9031 = vpop.f32.mrf.mxu0
    %v9032 = vadd.f32 %v9019, %v9031
    %v9033 = vpop.f32.mrf.mxu0
    %9034 = vdwg.mxu0
    %9035 = vmatpush.bf16.msra.mxu0 %v7884
    %9036 = vmatpush.bf16.msra.mxu0 %v7869
    %9037 = vmatpush.bf16.msra.mxu0 %v7854
    %9038 = vmatpush.bf16.msra.mxu0 %v7839
    %9039 = vmatpush.bf16.msra.mxu0 %v7824
    %9040 = vmatpush.bf16.msra.mxu0 %v7809
    %9041 = vmatpush.bf16.msra.mxu0 %v7794
    %9042 = vmatpush.bf16.msra.mxu0 %v7779
    %9043 = vmatmul.bf16.gmra.mxu0 %v6021
    %v9044 = vpop.f32.mrf.mxu0
    %v9045 = vadd.f32 %v9032, %v9044
    %v9046 = vpop.f32.mrf.mxu0
    %9047 = vdwg.mxu0
    %9048 = vmatpush.bf16.msra.mxu0 %v8004
    %9049 = vmatpush.bf16.msra.mxu0 %v7989
    %9050 = vmatpush.bf16.msra.mxu0 %v7974
    %9051 = vmatpush.bf16.msra.mxu0 %v7959
    %9052 = vmatpush.bf16.msra.mxu0 %v7944
    %9053 = vmatpush.bf16.msra.mxu0 %v7929
    %9054 = vmatpush.bf16.msra.mxu0 %v7914
    %9055 = vmatpush.bf16.msra.mxu0 %v7899
    %9056 = vmatmul.bf16.gmra.mxu0 %v6022
    %v9057 = vpop.f32.mrf.mxu0
    %v9058 = vadd.f32 %v9045, %v9057
    %v9059 = vpop.f32.mrf.mxu0
    %9060 = vdwg.mxu0
    %9061 = vmatpush.bf16.msra.mxu0 %v7645
    %9062 = vmatpush.bf16.msra.mxu0 %v7630
    %9063 = vmatpush.bf16.msra.mxu0 %v7615
    %9064 = vmatpush.bf16.msra.mxu0 %v7600
    %9065 = vmatpush.bf16.msra.mxu0 %v7585
    %9066 = vmatpush.bf16.msra.mxu0 %v7570
    %9067 = vmatpush.bf16.msra.mxu0 %v7555
    %9068 = vmatpush.bf16.msra.mxu0 %v7540
    %9069 = vmatmul.bf16.gmra.mxu0 %v6019
    %v9070 = vpop.f32.mrf.mxu0
    %v9071 = vadd.f32 %v6038, %v9070
    %v9072 = vpop.f32.mrf.mxu0
    %9073 = vdwg.mxu0
    %9074 = vmatpush.bf16.msra.mxu0 %v7765
    %9075 = vmatpush.bf16.msra.mxu0 %v7750
    %9076 = vmatpush.bf16.msra.mxu0 %v7735
    %9077 = vmatpush.bf16.msra.mxu0 %v7720
    %9078 = vmatpush.bf16.msra.mxu0 %v7705
    %9079 = vmatpush.bf16.msra.mxu0 %v7690
    %9080 = vmatpush.bf16.msra.mxu0 %v7675
    %9081 = vmatpush.bf16.msra.mxu0 %v7660
    %9082 = vmatmul.bf16.gmra.mxu0 %v6020
    %v9083 = vpop.f32.mrf.mxu0
    %v9084 = vadd.f32 %v9071, %v9083
    %v9085 = vpop.f32.mrf.mxu0
    %9086 = vdwg.mxu0
    %9087 = vmatpush.bf16.msra.mxu0 %v7885
    %9088 = vmatpush.bf16.msra.mxu0 %v7870
    %9089 = vmatpush.bf16.msra.mxu0 %v7855
    %9090 = vmatpush.bf16.msra.mxu0 %v7840
    %9091 = vmatpush.bf16.msra.mxu0 %v7825
    %9092 = vmatpush.bf16.msra.mxu0 %v7810
    %9093 = vmatpush.bf16.msra.mxu0 %v7795
    %9094 = vmatpush.bf16.msra.mxu0 %v7780
    %9095 = vmatmul.bf16.gmra.mxu0 %v6021
    %v9096 = vpop.f32.mrf.mxu0
    %v9097 = vadd.f32 %v9084, %v9096
    %v9098 = vpop.f32.mrf.mxu0
    %9099 = vdwg.mxu0
    %9100 = vmatpush.bf16.msra.mxu0 %v8005
    %9101 = vmatpush.bf16.msra.mxu0 %v7990
    %9102 = vmatpush.bf16.msra.mxu0 %v7975
    %9103 = vmatpush.bf16.msra.mxu0 %v7960
    %9104 = vmatpush.bf16.msra.mxu0 %v7945
    %9105 = vmatpush.bf16.msra.mxu0 %v7930
    %9106 = vmatpush.bf16.msra.mxu0 %v7915
    %9107 = vmatpush.bf16.msra.mxu0 %v7900
    %9108 = vmatmul.bf16.gmra.mxu0 %v6022
    %v9109 = vpop.f32.mrf.mxu0
    %v9110 = vadd.f32 %v9097, %v9109
    %v9111 = vpop.f32.mrf.mxu0
    %9112 = vdwg.mxu0
    %9113 = vmatpush.bf16.msra.mxu0 %v7646
    %9114 = vmatpush.bf16.msra.mxu0 %v7631
    %9115 = vmatpush.bf16.msra.mxu0 %v7616
    %9116 = vmatpush.bf16.msra.mxu0 %v7601
    %9117 = vmatpush.bf16.msra.mxu0 %v7586
    %9118 = vmatpush.bf16.msra.mxu0 %v7571
    %9119 = vmatpush.bf16.msra.mxu0 %v7556
    %9120 = vmatpush.bf16.msra.mxu0 %v7541
    %9121 = vmatmul.bf16.gmra.mxu0 %v6019
    %v9122 = vpop.f32.mrf.mxu0
    %v9123 = vadd.f32 %v6039, %v9122
    %v9124 = vpop.f32.mrf.mxu0
    %9125 = vdwg.mxu0
    %9126 = vmatpush.bf16.msra.mxu0 %v7766
    %9127 = vmatpush.bf16.msra.mxu0 %v7751
    %9128 = vmatpush.bf16.msra.mxu0 %v7736
    %9129 = vmatpush.bf16.msra.mxu0 %v7721
    %9130 = vmatpush.bf16.msra.mxu0 %v7706
    %9131 = vmatpush.bf16.msra.mxu0 %v7691
    %9132 = vmatpush.bf16.msra.mxu0 %v7676
    %9133 = vmatpush.bf16.msra.mxu0 %v7661
    %9134 = vmatmul.bf16.gmra.mxu0 %v6020
    %v9135 = vpop.f32.mrf.mxu0
    %v9136 = vadd.f32 %v9123, %v9135
    %v9137 = vpop.f32.mrf.mxu0
    %9138 = vdwg.mxu0
    %9139 = vmatpush.bf16.msra.mxu0 %v7886
    %9140 = vmatpush.bf16.msra.mxu0 %v7871
    %9141 = vmatpush.bf16.msra.mxu0 %v7856
    %9142 = vmatpush.bf16.msra.mxu0 %v7841
    %9143 = vmatpush.bf16.msra.mxu0 %v7826
    %9144 = vmatpush.bf16.msra.mxu0 %v7811
    %9145 = vmatpush.bf16.msra.mxu0 %v7796
    %9146 = vmatpush.bf16.msra.mxu0 %v7781
    %9147 = vmatmul.bf16.gmra.mxu0 %v6021
    %v9148 = vpop.f32.mrf.mxu0
    %v9149 = vadd.f32 %v9136, %v9148
    %v9150 = vpop.f32.mrf.mxu0
    %9151 = vdwg.mxu0
    %9152 = vmatpush.bf16.msra.mxu0 %v8006
    %9153 = vmatpush.bf16.msra.mxu0 %v7991
    %9154 = vmatpush.bf16.msra.mxu0 %v7976
    %9155 = vmatpush.bf16.msra.mxu0 %v7961
    %9156 = vmatpush.bf16.msra.mxu0 %v7946
    %9157 = vmatpush.bf16.msra.mxu0 %v7931
    %9158 = vmatpush.bf16.msra.mxu0 %v7916
    %9159 = vmatpush.bf16.msra.mxu0 %v7901
    %9160 = vmatmul.bf16.gmra.mxu0 %v6022
    %v9161 = vpop.f32.mrf.mxu0
    %v9162 = vadd.f32 %v9149, %v9161
    %v9163 = vpop.f32.mrf.mxu0
    %9164 = vdwg.mxu0
    %9165 = vmatpush.bf16.msra.mxu0 %v7647
    %9166 = vmatpush.bf16.msra.mxu0 %v7632
    %9167 = vmatpush.bf16.msra.mxu0 %v7617
    %9168 = vmatpush.bf16.msra.mxu0 %v7602
    %9169 = vmatpush.bf16.msra.mxu0 %v7587
    %9170 = vmatpush.bf16.msra.mxu0 %v7572
    %9171 = vmatpush.bf16.msra.mxu0 %v7557
    %9172 = vmatpush.bf16.msra.mxu0 %v7542
    %9173 = vmatmul.bf16.gmra.mxu0 %v6019
    %v9174 = vpop.f32.mrf.mxu0
    %v9175 = vadd.f32 %v6040, %v9174
    %v9176 = vpop.f32.mrf.mxu0
    %9177 = vdwg.mxu0
    %9178 = vmatpush.bf16.msra.mxu0 %v7767
    %9179 = vmatpush.bf16.msra.mxu0 %v7752
    %9180 = vmatpush.bf16.msra.mxu0 %v7737
    %9181 = vmatpush.bf16.msra.mxu0 %v7722
    %9182 = vmatpush.bf16.msra.mxu0 %v7707
    %9183 = vmatpush.bf16.msra.mxu0 %v7692
    %9184 = vmatpush.bf16.msra.mxu0 %v7677
    %9185 = vmatpush.bf16.msra.mxu0 %v7662
    %9186 = vmatmul.bf16.gmra.mxu0 %v6020
    %v9187 = vpop.f32.mrf.mxu0
    %v9188 = vadd.f32 %v9175, %v9187
    %v9189 = vpop.f32.mrf.mxu0
    %9190 = vdwg.mxu0
    %9191 = vmatpush.bf16.msra.mxu0 %v7887
    %9192 = vmatpush.bf16.msra.mxu0 %v7872
    %9193 = vmatpush.bf16.msra.mxu0 %v7857
    %9194 = vmatpush.bf16.msra.mxu0 %v7842
    %9195 = vmatpush.bf16.msra.mxu0 %v7827
    %9196 = vmatpush.bf16.msra.mxu0 %v7812
    %9197 = vmatpush.bf16.msra.mxu0 %v7797
    %9198 = vmatpush.bf16.msra.mxu0 %v7782
    %9199 = vmatmul.bf16.gmra.mxu0 %v6021
    %v9200 = vpop.f32.mrf.mxu0
    %v9201 = vadd.f32 %v9188, %v9200
    %v9202 = vpop.f32.mrf.mxu0
    %9203 = vdwg.mxu0
    %9204 = vmatpush.bf16.msra.mxu0 %v8007
    %9205 = vmatpush.bf16.msra.mxu0 %v7992
    %9206 = vmatpush.bf16.msra.mxu0 %v7977
    %9207 = vmatpush.bf16.msra.mxu0 %v7962
    %9208 = vmatpush.bf16.msra.mxu0 %v7947
    %9209 = vmatpush.bf16.msra.mxu0 %v7932
    %9210 = vmatpush.bf16.msra.mxu0 %v7917
    %9211 = vmatpush.bf16.msra.mxu0 %v7902
    %9212 = vmatmul.bf16.gmra.mxu0 %v6022
    %v9213 = vpop.f32.mrf.mxu0
    %v9214 = vadd.f32 %v9201, %v9213
    %v9215 = vpop.f32.mrf.mxu0
    %9216 = vdwg.mxu0
    %9217 = vmatpush.bf16.msra.mxu0 %v7648
    %9218 = vmatpush.bf16.msra.mxu0 %v7633
    %9219 = vmatpush.bf16.msra.mxu0 %v7618
    %9220 = vmatpush.bf16.msra.mxu0 %v7603
    %9221 = vmatpush.bf16.msra.mxu0 %v7588
    %9222 = vmatpush.bf16.msra.mxu0 %v7573
    %9223 = vmatpush.bf16.msra.mxu0 %v7558
    %9224 = vmatpush.bf16.msra.mxu0 %v7543
    %9225 = vmatmul.bf16.gmra.mxu0 %v6019
    %v9226 = vpop.f32.mrf.mxu0
    %v9227 = vadd.f32 %v6041, %v9226
    %v9228 = vpop.f32.mrf.mxu0
    %9229 = vdwg.mxu0
    %9230 = vmatpush.bf16.msra.mxu0 %v7768
    %9231 = vmatpush.bf16.msra.mxu0 %v7753
    %9232 = vmatpush.bf16.msra.mxu0 %v7738
    %9233 = vmatpush.bf16.msra.mxu0 %v7723
    %9234 = vmatpush.bf16.msra.mxu0 %v7708
    %9235 = vmatpush.bf16.msra.mxu0 %v7693
    %9236 = vmatpush.bf16.msra.mxu0 %v7678
    %9237 = vmatpush.bf16.msra.mxu0 %v7663
    %9238 = vmatmul.bf16.gmra.mxu0 %v6020
    %v9239 = vpop.f32.mrf.mxu0
    %v9240 = vadd.f32 %v9227, %v9239
    %v9241 = vpop.f32.mrf.mxu0
    %9242 = vdwg.mxu0
    %9243 = vmatpush.bf16.msra.mxu0 %v7888
    %9244 = vmatpush.bf16.msra.mxu0 %v7873
    %9245 = vmatpush.bf16.msra.mxu0 %v7858
    %9246 = vmatpush.bf16.msra.mxu0 %v7843
    %9247 = vmatpush.bf16.msra.mxu0 %v7828
    %9248 = vmatpush.bf16.msra.mxu0 %v7813
    %9249 = vmatpush.bf16.msra.mxu0 %v7798
    %9250 = vmatpush.bf16.msra.mxu0 %v7783
    %9251 = vmatmul.bf16.gmra.mxu0 %v6021
    %v9252 = vpop.f32.mrf.mxu0
    %v9253 = vadd.f32 %v9240, %v9252
    %v9254 = vpop.f32.mrf.mxu0
    %9255 = vdwg.mxu0
    %9256 = vmatpush.bf16.msra.mxu0 %v8008
    %9257 = vmatpush.bf16.msra.mxu0 %v7993
    %9258 = vmatpush.bf16.msra.mxu0 %v7978
    %9259 = vmatpush.bf16.msra.mxu0 %v7963
    %9260 = vmatpush.bf16.msra.mxu0 %v7948
    %9261 = vmatpush.bf16.msra.mxu0 %v7933
    %9262 = vmatpush.bf16.msra.mxu0 %v7918
    %9263 = vmatpush.bf16.msra.mxu0 %v7903
    %9264 = vmatmul.bf16.gmra.mxu0 %v6022
    %v9265 = vpop.f32.mrf.mxu0
    %v9266 = vadd.f32 %v9253, %v9265
    %v9267 = vpop.f32.mrf.mxu0
    %9268 = vdwg.mxu0
    %v9269 = vadd.f32 %v8538, %v72
    %v9270 = vadd.f32 %v8590, %v73
    %v9271 = vadd.f32 %v8642, %v74
    %v9272 = vadd.f32 %v8694, %v75
    %v9273 = vadd.f32 %v8746, %v76
    %v9274 = vadd.f32 %v8798, %v77
    %v9275 = vadd.f32 %v8850, %v78
    %v9276 = vadd.f32 %v8902, %v79
    %v9277 = vadd.f32 %v8954, %v80
    %v9278 = vadd.f32 %v9006, %v81
    %v9279 = vadd.f32 %v9058, %v82
    %v9280 = vadd.f32 %v9110, %v83
    %v9281 = vadd.f32 %v9162, %v84
    %v9282 = vadd.f32 %v9214, %v85
    %v9283 = vadd.f32 %v9266, %v86
    %9284 = vst [vmem:[#allocation5] sm:$0xff] %v9269
    %9285 = vst [vmem:[#allocation5 + $0x8] sm:$0xff] %v9270
    %9286 = vst [vmem:[#allocation5 + $0x10] sm:$0xff] %v9271
    %9287 = vst [vmem:[#allocation5 + $0x18] sm:$0xff] %v9272
    %9288 = vst [vmem:[#allocation5 + $0x20] sm:$0xff] %v9273
    %9289 = vst [vmem:[#allocation5 + $0x28] sm:$0xff] %v9274
    %9290 = vst [vmem:[#allocation5 + $0x30] sm:$0xff] %v9275
    %9291 = vst [vmem:[#allocation5 + $0x38] sm:$0xff] %v9276
    %9292 = vst [vmem:[#allocation5 + $0x40] sm:$0xff] %v9277
    %9293 = vst [vmem:[#allocation5 + $0x48] sm:$0xff] %v9278
    %9294 = vst [vmem:[#allocation5 + $0x50] sm:$0xff] %v9279
    %9295 = vst [vmem:[#allocation5 + $0x58] sm:$0xff] %v9280
    %9296 = vst [vmem:[#allocation5 + $0x60] sm:$0xff] %v9281
    %9297 = vst [vmem:[#allocation5 + $0x68] sm:$0xff] %v9282
    %9298 = vst.msk [vmem:[#allocation5 + $0x70] sm:$0xff] %vm2884, %v9283
    // Predicated region
    $region74: #{ae_forward.1} parent=1 // pred_check
      _
    $region75: #{ae_forward.1} parent=1 // pred_check_branch
      %9300 = sbr.rel (0) target = $region77
    $region76: #{ae_forward.1} parent=1 // pred_region
      %9302 = vsyncadd [#allocation4], 0
      %s9304 = sshll.u32 [#allocation5], 4
      %s9305 = int_to_ptr.vmem [resolvable:$true] %s9304
      %s9306 = sshll.u32 %s17, 4
      %s9307 = int_to_ptr.hbm [resolvable:$true] %s9306
      %9309 = dma.vmem_to_hbm [thread:$0]  %s9305, 1920, %s9307, [#allocation4]
    $region77: #{ae_forward.1} parent=1 // pred_fallthru
      _
    // Predicated region
    $region78: #{ae_forward.1} parent=1 // pred_check
      _
    $region79: #{ae_forward.1} parent=1 // pred_check_branch
      %9311 = sbr.rel (0) target = $region81
    $region80: #{ae_forward.1} parent=1 // pred_region
      %9313 = dma.done [#allocation4], 1920
    $region81: #{ae_forward.1} parent=1 // pred_fallthru
      _
    %9314 = vsyncpa [#allocation3], 1
    %9315 = vsyncpa [#allocation4], 1

</llo_original>
